<compile_context>
chip_gen: v6e
topology: v6e:2x2x1
jax: 0.10.0
libtpu: 0.0.40
codegen_flags: <defaults>
</compile_context>

<pallas_src>
import functools

import jax
import jax.numpy as jnp
from jax.experimental import pallas as pl
from jax.experimental.pallas import tpu as pltpu

_BN_EPS = 1e-5
_MXU_DTYPE = jnp.bfloat16       # jnp.float32 for exact-ish matching
_IM2COL_CONCAT_MAX_K = 512      # single-dot im2col while 9*Cin <= this


# ------------------------------ kernel helpers -------------------------------

def _conv3x3_from_taps(taps, w_ref, cin, planes):
    """3x3 conv as matmul(s).  taps: 9 (M, cin) bf16 matrices, (dy, dx)
    row-major; w_ref: (9*cin, planes) with rows ordered (dy, dx, cin)."""
    if 9 * cin <= _IM2COL_CONCAT_MAX_K:
        # Narrow channels (toy sizes): one wide-K matmul so the MXU is fed;
        # taps are already bf16, so the concat is half-width.
        col = jnp.concatenate(taps, axis=-1)                     # (M, 9*cin)
        return jnp.dot(col, w_ref[...], preferred_element_type=jnp.float32)
    # Real channel widths: dy-wise accumulated dots (K = 3*cin) -> avoids the
    # 9x im2col materialisation and its vld/vst traffic.
    acc = None
    for dy in range(3):
        col = jnp.concatenate(taps[3 * dy:3 * dy + 3], axis=-1)  # (M, 3*cin)
        part = jnp.dot(col, w_ref[3 * dy * cin:3 * (dy + 1) * cin, :],
                       preferred_element_type=jnp.float32)
        acc = part if acc is None else acc + part
    return acc


def _write_partial_stats(st_ref, y):
    """Per-image BN partials: row 0 = sum, row 1 = sum((y - image_mean)^2).
    The per-image mean shift keeps the pooled-variance combine stable."""
    m = y.shape[0]
    s = jnp.sum(y, axis=0, keepdims=True)                        # (1, C) f32
    mu = s * (1.0 / m)
    st_ref[0:1, :] = s
    st_ref[1:2, :] = jnp.sum(jnp.square(y - mu), axis=0, keepdims=True)


# --------------------------------- kernels -----------------------------------

def _conv1_kernel(*refs, H, W, cin, planes, has_projection):
    """Per image: conv1 (3x3, pad 1) and, if present, the 1x1 projection conv;
    emits raw pre-BN outputs plus per-image BN partial stats."""
    if has_projection:
        xp_ref, w1_ref, wsc_ref, y1_ref, st1_ref, ysc_ref, stsc_ref = refs
    else:
        xp_ref, w1_ref, y1_ref, st1_ref = refs
    M = H * W

    # Taps read straight from the padded bf16 input ref (cast done in wrapper).
    taps = [xp_ref[dy:dy + H, dx:dx + W, :].reshape(M, cin)
            for dy in range(3) for dx in range(3)]

    y1 = _conv3x3_from_taps(taps, w1_ref, cin, planes)           # (M, planes) f32
    y1_ref[...] = y1
    _write_partial_stats(st1_ref, y1)

    if has_projection:
        # 1x1 projection shortcut reuses the centre tap (no extra slice/cast).
        ysc = jnp.dot(taps[4], wsc_ref[...], preferred_element_type=jnp.float32)
        ysc_ref[...] = ysc
        _write_partial_stats(stsc_ref, ysc)


def _conv2_kernel(y1_ref, sc1_ref, sh1_ref, w2_ref, y2_ref, st2_ref, pad_ref,
                  *, H, W, planes):
    """Per image: bn1 affine + ReLU fused in front of conv2 (3x3, pad 1)."""
    M = H * W
    out1 = jnp.maximum(y1_ref[...] * sc1_ref[...] + sh1_ref[...], 0.0)
    out1 = out1.astype(pad_ref.dtype).reshape(H, W, planes)

    # Stage conv2's padded input in a per-image bf16 VMEM scratch:
    # zero only the halo strips, then store the interior.
    zrow = jnp.zeros((1, W + 2, planes), pad_ref.dtype)
    pad_ref[0:1, :, :] = zrow
    pad_ref[H + 1:H + 2, :, :] = zrow
    zcol = jnp.zeros((H, 1, planes), pad_ref.dtype)
    pad_ref[1:H + 1, 0:1, :] = zcol
    pad_ref[1:H + 1, W + 1:W + 2, :] = zcol
    pad_ref[1:H + 1, 1:W + 1, :] = out1

    taps = [pad_ref[dy:dy + H, dx:dx + W, :].reshape(M, planes)
            for dy in range(3) for dx in range(3)]
    y2 = _conv3x3_from_taps(taps, w2_ref, planes, planes)        # (M, planes) f32
    y2_ref[...] = y2
    _write_partial_stats(st2_ref, y2)


def _combine_kernel(*refs, has_projection):
    """Per image: bn2 affine + shortcut (+ its bn affine) + final ReLU."""
    if has_projection:
        y2_ref, sc2_ref, sh2_ref, ysc_ref, scs_ref, shs_ref, out_ref = refs
        shortcut = ysc_ref[...] * scs_ref[...] + shs_ref[...]
    else:
        y2_ref, sc2_ref, sh2_ref, x_ref, out_ref = refs
        shortcut = x_ref[...]
    out = y2_ref[...] * sc2_ref[...] + sh2_ref[...] + shortcut
    out_ref[...] = jnp.maximum(out, 0.0).astype(out_ref.dtype)


# --------------------------------- wrapper ------------------------------------

def _bn_scale_shift(stats, gamma, beta, m_per_img):
    """Fold training-mode BN (biased variance) into a per-channel affine from
    per-image partials.  Tiny O(N*C) per-channel math, left to XLA."""
    s = stats[:, 0, :]                                           # (N, C)
    m2 = stats[:, 1, :]                                          # (N, C)
    total = stats.shape[0] * m_per_img
    mean_i = s / m_per_img
    gmean = jnp.sum(s, axis=0) / total
    var = (jnp.sum(m2, axis=0)
           + m_per_img * jnp.sum(jnp.square(mean_i - gmean[None, :]), axis=0)) / total
    var = jnp.maximum(var, 0.0)
    scale = gamma.reshape(1, -1) * jax.lax.rsqrt(var[None, :] + _BN_EPS)
    shift = beta.reshape(1, -1) - gmean[None, :] * scale
    return scale, shift


def basic_block_forward(x_nchw, params, stride=1):
    """BasicBlock forward (training-mode BN).  NCHW in / NCHW out."""
    assert stride == 1, "TODO(synk): stride > 1 downsampling not implemented"
    w1, g1, b1, w2, g2, b2, wsc, gsc, bsc = params
    N, Cin, H, W = x_nchw.shape
    planes = w1.shape[-1]
    has_projection = (stride != 1) or (Cin != planes)
    M = H * W

    x_nhwc = jnp.transpose(x_nchw, (0, 2, 3, 1))                 # NCHW -> NHWC
    # Cast + pad once in the wrapper: kernels read bf16 taps directly and the
    # activation's HBM DMA is half-width.
    xp = jnp.pad(x_nhwc.astype(_MXU_DTYPE), ((0, 0), (1, 1), (1, 1), (0, 0)))
    w1f = w1.reshape(9 * Cin, planes).astype(_MXU_DTYPE)
    w2f = w2.reshape(9 * planes, planes).astype(_MXU_DTYPE)

    grid = (N,)
    cparams = pltpu.CompilerParams(
        dimension_semantics=("parallel",),    # batch splits across TCs on v7x
        vmem_limit_bytes=32 * 1024 * 1024,    # TODO(synk): raise on v5e/v6e
    )

    def resident(shape):
        # Full-block spec with a constant index -> DMA'd once, VMEM-resident.
        zeros = (0,) * len(shape)
        return pl.BlockSpec(shape, lambda n: zeros)

    img_bs = pl.BlockSpec((None, M, planes), lambda n: (n, 0, 0))
    stats_bs = pl.BlockSpec((None, 2, planes), lambda n: (n, 0, 0))
    img_shape = jax.ShapeDtypeStruct((N, M, planes), jnp.float32)
    stats_shape = jax.ShapeDtypeStruct((N, 2, planes), jnp.float32)

    # ---- pass 1: conv1 (+ projection conv) + BN partial stats ---------------
    in1 = [xp, w1f]
    in1_specs = [pl.BlockSpec((None, H + 2, W + 2, Cin), lambda n: (n, 0, 0, 0)),
                 resident((9 * Cin, planes))]
    out1_shapes = [img_shape, stats_shape]
    out1_specs = [img_bs, stats_bs]
    if has_projection:
        in1.append(wsc.reshape(Cin, planes).astype(_MXU_DTYPE))
        in1_specs.append(resident((Cin, planes)))
        out1_shapes += [img_shape, stats_shape]
        out1_specs += [img_bs, stats_bs]

    res1 = pl.pallas_call(
        functools.partial(_conv1_kernel, H=H, W=W, cin=Cin, planes=planes,
                          has_projection=has_projection),
        grid=grid,
        in_specs=in1_specs,
        out_specs=tuple(out1_specs),
        out_shape=tuple(out1_shapes),
        compiler_params=cparams,
    )(*in1)
    if has_projection:
        y1, st1, ysc, stsc = res1
        scale_sc, shift_sc = _bn_scale_shift(stsc, gsc, bsc, M)
    else:
        y1, st1 = res1
    scale1, shift1 = _bn_scale_shift(st1, g1, b1, M)

    # ---- pass 2: bn1 affine + ReLU + conv2 + BN partial stats ---------------
    y2, st2 = pl.pallas_call(
        functools.partial(_conv2_kernel, H=H, W=W, planes=planes),
        grid=grid,
        in_specs=[img_bs, resident((1, planes)), resident((1, planes)),
                  resident((9 * planes, planes))],
        out_specs=(img_bs, stats_bs),
        out_shape=(img_shape, stats_shape),
        scratch_shapes=[pltpu.VMEM((H + 2, W + 2, planes), _MXU_DTYPE)],
        compiler_params=cparams,
    )(y1, scale1, shift1, w2f)
    scale2, shift2 = _bn_scale_shift(st2, g2, b2, M)

    # ---- pass 3: bn2 affine + shortcut + final ReLU --------------------------
    if has_projection:
        in3 = [y2, scale2, shift2, ysc, scale_sc, shift_sc]
        in3_specs = [img_bs, resident((1, planes)), resident((1, planes)),
                     img_bs, resident((1, planes)), resident((1, planes))]
    else:
        in3 = [y2, scale2, shift2, x_nhwc.reshape(N, M, Cin)]
        in3_specs = [img_bs, resident((1, planes)), resident((1, planes)),
                     pl.BlockSpec((None, M, Cin), lambda n: (n, 0, 0))]

    out = pl.pallas_call(
        functools.partial(_combine_kernel, has_projection=has_projection),
        grid=grid,
        in_specs=in3_specs,
        out_specs=img_bs,
        out_shape=img_shape,
        compiler_params=cparams,
    )(*in3)

    return jnp.transpose(out.reshape(N, H, W, planes), (0, 3, 1, 2))


# ------------------------------- reference ------------------------------------

def basic_block_reference(x_nchw, params, stride=1):
    """Pure-JAX f32 reference (lax conv), same training-mode BN semantics."""
    w1, g1, b1, w2, g2, b2, wsc, gsc, bsc = params
    Cin = x_nchw.shape[1]
    planes = w1.shape[-1]

    def conv(x, w_hwio, s, pad):
        return jax.lax.conv_general_dilated(
            x, w_hwio, (s, s), ((pad, pad), (pad, pad)),
            dimension_numbers=("NCHW", "HWIO", "NCHW"))

    def bn(y, g, b):
        mean = jnp.mean(y, axis=(0, 2, 3), keepdims=True)
        var = jnp.mean(jnp.square(y - mean), axis=(0, 2, 3), keepdims=True)
        return ((y - mean) / jnp.sqrt(var + _BN_EPS)) * g.reshape(1, -1, 1, 1) \
            + b.reshape(1, -1, 1, 1)

    out = jax.nn.relu(bn(conv(x_nchw, w1, stride, 1), g1, b1))
    out = bn(conv(out, w2, 1, 1), g2, b2)
    if stride != 1 or Cin != planes:
        sc = bn(conv(x_nchw, wsc.reshape(1, 1, Cin, planes), stride, 0), gsc, bsc)
    else:
        sc = x_nchw
    return jax.nn.relu(out + sc)


if __name__ == "__main__":
    key = jax.random.PRNGKey(0)
    N, Cin, H, W = 2, 4, 16, 16          # BasicBlock(in_planes=4, planes=8, stride=1)
    planes, stride = 8, 1

    ks = jax.random.split(key, 10)
    x = jax.random.normal(ks[0], (N, Cin, H, W), jnp.float32)

    # Deterministic synthetic parameters (conv weights in HWIO).
    w1 = jax.random.normal(ks[1], (3, 3, Cin, planes), jnp.float32) / (3 * 3 * Cin) ** 0.5
    w2 = jax.random.normal(ks[2], (3, 3, planes, planes), jnp.float32) / (3 * 3 * planes) ** 0.5
    wsc = jax.random.normal(ks[3], (Cin, planes), jnp.float32) / Cin ** 0.5
    g1 = jax.random.uniform(ks[4], (1, planes), jnp.float32, 0.5, 1.5)
    b1 = 0.1 * jax.random.normal(ks[5], (1, planes), jnp.float32)
    g2 = jax.random.uniform(ks[6], (1, planes), jnp.float32, 0.5, 1.5)
    b2 = 0.1 * jax.random.normal(ks[7], (1, planes), jnp.float32)
    gsc = jax.random.uniform(ks[8], (1, planes), jnp.float32, 0.5, 1.5)
    bsc = 0.1 * jax.random.normal(ks[9], (1, planes), jnp.float32)

    params = (w1, g1, b1, w2, g2, b2, wsc, gsc, bsc)

    out = jax.jit(basic_block_forward, static_argnums=2)(x, params, stride)
    out = jax.block_until_ready(out)

    ref = basic_block_reference(x, params, stride)
    assert out.shape == (N, planes, H, W), out.shape
    # Tolerance covers bf16 MXU operands (f32 accumulation) through two stacked
    # convs + BN; with _MXU_DTYPE = float32 the error is < 2e-3.
    assert jnp.allclose(out, ref, rtol=5e-2, atol=5e-2), \
        f"max abs err {float(jnp.max(jnp.abs(out - ref)))}"
    print("KERNEL_OK")
</pallas_src>

<mosaic_0001>
module attributes {stable_mosaic.version = 11 : i64} {
  func.func @_conv1_kernel(%arg0: i32, %arg1: memref<1x18x18x4xbf16, #tpu.memory_space<vmem>>, %arg2: memref<36x8xbf16, #tpu.memory_space<vmem>>, %arg3: memref<4x8xbf16, #tpu.memory_space<vmem>>, %arg4: memref<1x256x8xf32, #tpu.memory_space<vmem>>, %arg5: memref<1x2x8xf32, #tpu.memory_space<vmem>>, %arg6: memref<1x256x8xf32, #tpu.memory_space<vmem>>, %arg7: memref<1x2x8xf32, #tpu.memory_space<vmem>>) attributes {dimension_semantics = [#tpu.dimension_semantics<parallel>], iteration_bounds = array<i64: 2>, scalar_prefetch = 0 : i64, scratch_operands = 0 : i64, tpu.core_type = #tpu.core_type<tc>, window_params = [{transform_indices = @transform_0, window_bounds = array<i64: 1, 18, 18, 4>}, {pipeline_mode = #tpu.pipeline_mode<synchronous>, transform_indices = @transform_1, window_bounds = array<i64: 36, 8>}, {pipeline_mode = #tpu.pipeline_mode<synchronous>, transform_indices = @transform_2, window_bounds = array<i64: 4, 8>}, {transform_indices = @transform_3, window_bounds = array<i64: 1, 256, 8>}, {transform_indices = @transform_4, window_bounds = array<i64: 1, 2, 8>}, {transform_indices = @transform_5, window_bounds = array<i64: 1, 256, 8>}, {transform_indices = @transform_6, window_bounds = array<i64: 1, 2, 8>}]} {
    %c0 = arith.constant 0 : index
    %c0_0 = arith.constant 0 : index
    %c0_1 = arith.constant 0 : index
    %c0_2 = arith.constant 0 : index
    %0 = vector.load %arg1[%c0, %c0_0, %c0_1, %c0_2] : memref<1x18x18x4xbf16, #tpu.memory_space<vmem>>, vector<1x16x16x4xbf16>
    %1 = vector.shape_cast %0 : vector<1x16x16x4xbf16> to vector<16x16x4xbf16>
    %2 = vector.shape_cast %1 : vector<16x16x4xbf16> to vector<256x4xbf16>
    %c0_3 = arith.constant 0 : index
    %c0_4 = arith.constant 0 : index
    %c1 = arith.constant 1 : index
    %c0_5 = arith.constant 0 : index
    %3 = vector.load %arg1[%c0_3, %c0_4, %c1, %c0_5] : memref<1x18x18x4xbf16, #tpu.memory_space<vmem>>, vector<1x16x16x4xbf16>
    %4 = vector.shape_cast %3 : vector<1x16x16x4xbf16> to vector<16x16x4xbf16>
    %5 = vector.shape_cast %4 : vector<16x16x4xbf16> to vector<256x4xbf16>
    %c0_6 = arith.constant 0 : index
    %c0_7 = arith.constant 0 : index
    %c2 = arith.constant 2 : index
    %c0_8 = arith.constant 0 : index
    %6 = vector.load %arg1[%c0_6, %c0_7, %c2, %c0_8] : memref<1x18x18x4xbf16, #tpu.memory_space<vmem>>, vector<1x16x16x4xbf16>
    %7 = vector.shape_cast %6 : vector<1x16x16x4xbf16> to vector<16x16x4xbf16>
    %8 = vector.shape_cast %7 : vector<16x16x4xbf16> to vector<256x4xbf16>
    %c0_9 = arith.constant 0 : index
    %c1_10 = arith.constant 1 : index
    %c0_11 = arith.constant 0 : index
    %c0_12 = arith.constant 0 : index
    %9 = vector.load %arg1[%c0_9, %c1_10, %c0_11, %c0_12] : memref<1x18x18x4xbf16, #tpu.memory_space<vmem>>, vector<1x16x16x4xbf16>
    %10 = vector.shape_cast %9 : vector<1x16x16x4xbf16> to vector<16x16x4xbf16>
    %11 = vector.shape_cast %10 : vector<16x16x4xbf16> to vector<256x4xbf16>
    %c0_13 = arith.constant 0 : index
    %c1_14 = arith.constant 1 : index
    %c1_15 = arith.constant 1 : index
    %c0_16 = arith.constant 0 : index
    %12 = vector.load %arg1[%c0_13, %c1_14, %c1_15, %c0_16] : memref<1x18x18x4xbf16, #tpu.memory_space<vmem>>, vector<1x16x16x4xbf16>
    %13 = vector.shape_cast %12 : vector<1x16x16x4xbf16> to vector<16x16x4xbf16>
    %14 = vector.shape_cast %13 : vector<16x16x4xbf16> to vector<256x4xbf16>
    %c0_17 = arith.constant 0 : index
    %c1_18 = arith.constant 1 : index
    %c2_19 = arith.constant 2 : index
    %c0_20 = arith.constant 0 : index
    %15 = vector.load %arg1[%c0_17, %c1_18, %c2_19, %c0_20] : memref<1x18x18x4xbf16, #tpu.memory_space<vmem>>, vector<1x16x16x4xbf16>
    %16 = vector.shape_cast %15 : vector<1x16x16x4xbf16> to vector<16x16x4xbf16>
    %17 = vector.shape_cast %16 : vector<16x16x4xbf16> to vector<256x4xbf16>
    %c0_21 = arith.constant 0 : index
    %c2_22 = arith.constant 2 : index
    %c0_23 = arith.constant 0 : index
    %c0_24 = arith.constant 0 : index
    %18 = vector.load %arg1[%c0_21, %c2_22, %c0_23, %c0_24] : memref<1x18x18x4xbf16, #tpu.memory_space<vmem>>, vector<1x16x16x4xbf16>
    %19 = vector.shape_cast %18 : vector<1x16x16x4xbf16> to vector<16x16x4xbf16>
    %20 = vector.shape_cast %19 : vector<16x16x4xbf16> to vector<256x4xbf16>
    %c0_25 = arith.constant 0 : index
    %c2_26 = arith.constant 2 : index
    %c1_27 = arith.constant 1 : index
    %c0_28 = arith.constant 0 : index
    %21 = vector.load %arg1[%c0_25, %c2_26, %c1_27, %c0_28] : memref<1x18x18x4xbf16, #tpu.memory_space<vmem>>, vector<1x16x16x4xbf16>
    %22 = vector.shape_cast %21 : vector<1x16x16x4xbf16> to vector<16x16x4xbf16>
    %23 = vector.shape_cast %22 : vector<16x16x4xbf16> to vector<256x4xbf16>
    %c0_29 = arith.constant 0 : index
    %c2_30 = arith.constant 2 : index
    %c2_31 = arith.constant 2 : index
    %c0_32 = arith.constant 0 : index
    %24 = vector.load %arg1[%c0_29, %c2_30, %c2_31, %c0_32] : memref<1x18x18x4xbf16, #tpu.memory_space<vmem>>, vector<1x16x16x4xbf16>
    %25 = vector.shape_cast %24 : vector<1x16x16x4xbf16> to vector<16x16x4xbf16>
    %26 = vector.shape_cast %25 : vector<16x16x4xbf16> to vector<256x4xbf16>
    %27 = tpu.concatenate %2, %5, %8, %11, %14, %17, %20, %23, %26 in 1 : vector<256x4xbf16>, vector<256x4xbf16>, vector<256x4xbf16>, vector<256x4xbf16>, vector<256x4xbf16>, vector<256x4xbf16>, vector<256x4xbf16>, vector<256x4xbf16>, vector<256x4xbf16> -> vector<256x36xbf16>
    %c0_33 = arith.constant 0 : index
    %c0_34 = arith.constant 0 : index
    %28 = vector.load %arg2[%c0_33, %c0_34] : memref<36x8xbf16, #tpu.memory_space<vmem>>, vector<36x8xbf16>
    %cst = arith.constant dense<0.000000e+00> : vector<256x8xf32>
    %29 = tpu.matmul %27, %28, %cst {dimension_numbers = #tpu.dot_dimension_numbers<[1], [0], [0], [1], [0, 0, 1, 1], [], []>} : vector<256x36xbf16>, vector<36x8xbf16>, vector<256x8xf32> -> vector<256x8xf32>
    %c0_35 = arith.constant 0 : index
    %c0_36 = arith.constant 0 : index
    %c0_37 = arith.constant 0 : index
    %30 = vector.load %arg4[%c0_35, %c0_36, %c0_37] : memref<1x256x8xf32, #tpu.memory_space<vmem>>, vector<1x256x8xf32>
    %31 = vector.shape_cast %30 : vector<1x256x8xf32> to vector<256x8xf32>
    %32 = vector.shape_cast %29 : vector<256x8xf32> to vector<1x256x8xf32>
    tpu.vector_store %arg4[%c0_35, %c0_36, %c0_37], %32 {strides = array<i32>} : memref<1x256x8xf32, #tpu.memory_space<vmem>>, vector<1x256x8xf32>,
    %cst_38 = arith.constant dense<0.000000e+00> : vector<8xf32>
    %33 = vector.multi_reduction <add>, %29, %cst_38 [0] : vector<256x8xf32> to vector<8xf32>
    %34 = vector.shape_cast %33 : vector<8xf32> to vector<1x8xf32>
    %cst_39 = arith.constant 3.906250e-03 : f32
    %35 = vector.broadcast %cst_39 : f32 to vector<1x8xf32>
    %36 = arith.mulf %34, %35 : vector<1x8xf32>
    %c0_40 = arith.constant 0 : index
    %c0_41 = arith.constant 0 : index
    %c0_42 = arith.constant 0 : index
    %37 = vector.load %arg5[%c0_40, %c0_41, %c0_42] : memref<1x2x8xf32, #tpu.memory_space<vmem>>, vector<1x1x8xf32>
    %38 = vector.shape_cast %37 : vector<1x1x8xf32> to vector<1x8xf32>
    %39 = vector.shape_cast %34 : vector<1x8xf32> to vector<1x1x8xf32>
    tpu.vector_store %arg5[%c0_40, %c0_41, %c0_42], %39 {strides = array<i32>} : memref<1x2x8xf32, #tpu.memory_space<vmem>>, vector<1x1x8xf32>,
    %40 = vector.broadcast %36 : vector<1x8xf32> to vector<256x8xf32>
    %41 = arith.subf %29, %40 : vector<256x8xf32>
    %42 = arith.mulf %41, %41 : vector<256x8xf32>
    %cst_43 = arith.constant dense<0.000000e+00> : vector<8xf32>
    %43 = vector.multi_reduction <add>, %42, %cst_43 [0] : vector<256x8xf32> to vector<8xf32>
    %44 = vector.shape_cast %43 : vector<8xf32> to vector<1x8xf32>
    %c0_44 = arith.constant 0 : index
    %c1_45 = arith.constant 1 : index
    %c0_46 = arith.constant 0 : index
    %45 = vector.load %arg5[%c0_44, %c1_45, %c0_46] : memref<1x2x8xf32, #tpu.memory_space<vmem>>, vector<1x1x8xf32>
    %46 = vector.shape_cast %45 : vector<1x1x8xf32> to vector<1x8xf32>
    %47 = vector.shape_cast %44 : vector<1x8xf32> to vector<1x1x8xf32>
    tpu.vector_store %arg5[%c0_44, %c1_45, %c0_46], %47 {strides = array<i32>} : memref<1x2x8xf32, #tpu.memory_space<vmem>>, vector<1x1x8xf32>,
    %c0_47 = arith.constant 0 : index
    %c0_48 = arith.constant 0 : index
    %48 = vector.load %arg3[%c0_47, %c0_48] : memref<4x8xbf16, #tpu.memory_space<vmem>>, vector<4x8xbf16>
    %cst_49 = arith.constant dense<0.000000e+00> : vector<256x8xf32>
    %49 = tpu.matmul %14, %48, %cst_49 {dimension_numbers = #tpu.dot_dimension_numbers<[1], [0], [0], [1], [0, 0, 1, 1], [], []>} : vector<256x4xbf16>, vector<4x8xbf16>, vector<256x8xf32> -> vector<256x8xf32>
    %c0_50 = arith.constant 0 : index
    %c0_51 = arith.constant 0 : index
    %c0_52 = arith.constant 0 : index
    %50 = vector.load %arg6[%c0_50, %c0_51, %c0_52] : memref<1x256x8xf32, #tpu.memory_space<vmem>>, vector<1x256x8xf32>
    %51 = vector.shape_cast %50 : vector<1x256x8xf32> to vector<256x8xf32>
    %52 = vector.shape_cast %49 : vector<256x8xf32> to vector<1x256x8xf32>
    tpu.vector_store %arg6[%c0_50, %c0_51, %c0_52], %52 {strides = array<i32>} : memref<1x256x8xf32, #tpu.memory_space<vmem>>, vector<1x256x8xf32>,
    %cst_53 = arith.constant dense<0.000000e+00> : vector<8xf32>
    %53 = vector.multi_reduction <add>, %49, %cst_53 [0] : vector<256x8xf32> to vector<8xf32>
    %54 = vector.shape_cast %53 : vector<8xf32> to vector<1x8xf32>
    %cst_54 = arith.constant 3.906250e-03 : f32
    %55 = vector.broadcast %cst_54 : f32 to vector<1x8xf32>
    %56 = arith.mulf %54, %55 : vector<1x8xf32>
    %c0_55 = arith.constant 0 : index
    %c0_56 = arith.constant 0 : index
    %c0_57 = arith.constant 0 : index
    %57 = vector.load %arg7[%c0_55, %c0_56, %c0_57] : memref<1x2x8xf32, #tpu.memory_space<vmem>>, vector<1x1x8xf32>
    %58 = vector.shape_cast %57 : vector<1x1x8xf32> to vector<1x8xf32>
    %59 = vector.shape_cast %54 : vector<1x8xf32> to vector<1x1x8xf32>
    tpu.vector_store %arg7[%c0_55, %c0_56, %c0_57], %59 {strides = array<i32>} : memref<1x2x8xf32, #tpu.memory_space<vmem>>, vector<1x1x8xf32>,
    %60 = vector.broadcast %56 : vector<1x8xf32> to vector<256x8xf32>
    %61 = arith.subf %49, %60 : vector<256x8xf32>
    %62 = arith.mulf %61, %61 : vector<256x8xf32>
    %cst_58 = arith.constant dense<0.000000e+00> : vector<8xf32>
    %63 = vector.multi_reduction <add>, %62, %cst_58 [0] : vector<256x8xf32> to vector<8xf32>
    %64 = vector.shape_cast %63 : vector<8xf32> to vector<1x8xf32>
    %c0_59 = arith.constant 0 : index
    %c1_60 = arith.constant 1 : index
    %c0_61 = arith.constant 0 : index
    %65 = vector.load %arg7[%c0_59, %c1_60, %c0_61] : memref<1x2x8xf32, #tpu.memory_space<vmem>>, vector<1x1x8xf32>
    %66 = vector.shape_cast %65 : vector<1x1x8xf32> to vector<1x8xf32>
    %67 = vector.shape_cast %64 : vector<1x8xf32> to vector<1x1x8xf32>
    tpu.vector_store %arg7[%c0_59, %c1_60, %c0_61], %67 {strides = array<i32>} : memref<1x2x8xf32, #tpu.memory_space<vmem>>, vector<1x1x8xf32>,
    return
  }
  func.func @transform_0(%arg0: i32) -> (i32, i32, i32, i32) {
    %c0_i32 = arith.constant 0 : i32
    %c0_i32_0 = arith.constant 0 : i32
    %c0_i32_1 = arith.constant 0 : i32
    %c0_i32_2 = arith.constant 0 : i32
    return %arg0, %c0_i32, %c0_i32_0, %c0_i32_1 : i32, i32, i32, i32
  }
  func.func @transform_1(%arg0: i32) -> (i32, i32) {
    %c0_i32 = arith.constant 0 : i32
    %c0_i32_0 = arith.constant 0 : i32
    %c0_i32_1 = arith.constant 0 : i32
    return %c0_i32, %c0_i32_0 : i32, i32
  }
  func.func @transform_2(%arg0: i32) -> (i32, i32) {
    %c0_i32 = arith.constant 0 : i32
    %c0_i32_0 = arith.constant 0 : i32
    %c0_i32_1 = arith.constant 0 : i32
    return %c0_i32, %c0_i32_0 : i32, i32
  }
  func.func @transform_3(%arg0: i32) -> (i32, i32, i32) {
    %c0_i32 = arith.constant 0 : i32
    %c0_i32_0 = arith.constant 0 : i32
    %c0_i32_1 = arith.constant 0 : i32
    return %arg0, %c0_i32, %c0_i32_0 : i32, i32, i32
  }
  func.func @transform_4(%arg0: i32) -> (i32, i32, i32) {
    %c0_i32 = arith.constant 0 : i32
    %c0_i32_0 = arith.constant 0 : i32
    %c0_i32_1 = arith.constant 0 : i32
    return %arg0, %c0_i32, %c0_i32_0 : i32, i32, i32
  }
  func.func @transform_5(%arg0: i32) -> (i32, i32, i32) {
    %c0_i32 = arith.constant 0 : i32
    %c0_i32_0 = arith.constant 0 : i32
    %c0_i32_1 = arith.constant 0 : i32
    return %arg0, %c0_i32, %c0_i32_0 : i32, i32, i32
  }
  func.func @transform_6(%arg0: i32) -> (i32, i32, i32) {
    %c0_i32 = arith.constant 0 : i32
    %c0_i32_0 = arith.constant 0 : i32
    %c0_i32_1 = arith.constant 0 : i32
    return %arg0, %c0_i32, %c0_i32_0 : i32, i32, i32
  }
}

module attributes {stable_mosaic.version = 11 : i64} {
  func.func @_conv2_kernel(%arg0: i32, %arg1: memref<1x256x8xf32, #tpu.memory_space<vmem>>, %arg2: memref<1x8xf32, #tpu.memory_space<vmem>>, %arg3: memref<1x8xf32, #tpu.memory_space<vmem>>, %arg4: memref<72x8xbf16, #tpu.memory_space<vmem>>, %arg5: memref<1x256x8xf32, #tpu.memory_space<vmem>>, %arg6: memref<1x2x8xf32, #tpu.memory_space<vmem>>, %arg7: memref<18x18x8xbf16, #tpu.memory_space<vmem>>) attributes {dimension_semantics = [#tpu.dimension_semantics<parallel>], iteration_bounds = array<i64: 2>, scalar_prefetch = 0 : i64, scratch_operands = 1 : i64, tpu.core_type = #tpu.core_type<tc>, window_params = [{transform_indices = @transform_0, window_bounds = array<i64: 1, 256, 8>}, {pipeline_mode = #tpu.pipeline_mode<synchronous>, transform_indices = @transform_1, window_bounds = array<i64: 1, 8>}, {pipeline_mode = #tpu.pipeline_mode<synchronous>, transform_indices = @transform_2, window_bounds = array<i64: 1, 8>}, {pipeline_mode = #tpu.pipeline_mode<synchronous>, transform_indices = @transform_3, window_bounds = array<i64: 72, 8>}, {transform_indices = @transform_4, window_bounds = array<i64: 1, 256, 8>}, {transform_indices = @transform_5, window_bounds = array<i64: 1, 2, 8>}]} {
    %c0 = arith.constant 0 : index
    %c0_0 = arith.constant 0 : index
    %c0_1 = arith.constant 0 : index
    %0 = vector.load %arg1[%c0, %c0_0, %c0_1] : memref<1x256x8xf32, #tpu.memory_space<vmem>>, vector<1x256x8xf32>
    %1 = vector.shape_cast %0 : vector<1x256x8xf32> to vector<256x8xf32>
    %c0_2 = arith.constant 0 : index
    %c0_3 = arith.constant 0 : index
    %2 = vector.load %arg2[%c0_2, %c0_3] : memref<1x8xf32, #tpu.memory_space<vmem>>, vector<1x8xf32>
    %3 = vector.broadcast %2 : vector<1x8xf32> to vector<256x8xf32>
    %4 = arith.mulf %1, %3 : vector<256x8xf32>
    %c0_4 = arith.constant 0 : index
    %c0_5 = arith.constant 0 : index
    %5 = vector.load %arg3[%c0_4, %c0_5] : memref<1x8xf32, #tpu.memory_space<vmem>>, vector<1x8xf32>
    %6 = vector.broadcast %5 : vector<1x8xf32> to vector<256x8xf32>
    %7 = arith.addf %4, %6 : vector<256x8xf32>
    %cst = arith.constant 0.000000e+00 : f32
    %8 = vector.broadcast %cst : f32 to vector<256x8xf32>
    %9 = arith.maximumf %7, %8 : vector<256x8xf32>
    %10 = arith.truncf %9 : vector<256x8xf32> to vector<256x8xbf16>
    %11 = vector.shape_cast %10 : vector<256x8xbf16> to vector<16x16x8xbf16>
    %cst_6 = arith.constant 0.000000e+00 : bf16
    %12 = vector.broadcast %cst_6 : bf16 to vector<1x18x8xbf16>
    %c0_7 = arith.constant 0 : index
    %c0_8 = arith.constant 0 : index
    %c0_9 = arith.constant 0 : index
    %13 = vector.load %arg7[%c0_7, %c0_8, %c0_9] : memref<18x18x8xbf16, #tpu.memory_space<vmem>>, vector<1x18x8xbf16>
    tpu.vector_store %arg7[%c0_7, %c0_8, %c0_9], %12 {strides = array<i32>} : memref<18x18x8xbf16, #tpu.memory_space<vmem>>, vector<1x18x8xbf16>,
    %c17 = arith.constant 17 : index
    %c0_10 = arith.constant 0 : index
    %c0_11 = arith.constant 0 : index
    %14 = vector.load %arg7[%c17, %c0_10, %c0_11] : memref<18x18x8xbf16, #tpu.memory_space<vmem>>, vector<1x18x8xbf16>
    tpu.vector_store %arg7[%c17, %c0_10, %c0_11], %12 {strides = array<i32>} : memref<18x18x8xbf16, #tpu.memory_space<vmem>>, vector<1x18x8xbf16>,
    %cst_12 = arith.constant 0.000000e+00 : bf16
    %15 = vector.broadcast %cst_12 : bf16 to vector<16x1x8xbf16>
    %c1 = arith.constant 1 : index
    %c0_13 = arith.constant 0 : index
    %c0_14 = arith.constant 0 : index
    %16 = vector.load %arg7[%c1, %c0_13, %c0_14] : memref<18x18x8xbf16, #tpu.memory_space<vmem>>, vector<16x1x8xbf16>
    tpu.vector_store %arg7[%c1, %c0_13, %c0_14], %15 {strides = array<i32>} : memref<18x18x8xbf16, #tpu.memory_space<vmem>>, vector<16x1x8xbf16>,
    %c1_15 = arith.constant 1 : index
    %c17_16 = arith.constant 17 : index
    %c0_17 = arith.constant 0 : index
    %17 = vector.load %arg7[%c1_15, %c17_16, %c0_17] : memref<18x18x8xbf16, #tpu.memory_space<vmem>>, vector<16x1x8xbf16>
    tpu.vector_store %arg7[%c1_15, %c17_16, %c0_17], %15 {strides = array<i32>} : memref<18x18x8xbf16, #tpu.memory_space<vmem>>, vector<16x1x8xbf16>,
    %c1_18 = arith.constant 1 : index
    %c1_19 = arith.constant 1 : index
    %c0_20 = arith.constant 0 : index
    %18 = vector.load %arg7[%c1_18, %c1_19, %c0_20] : memref<18x18x8xbf16, #tpu.memory_space<vmem>>, vector<16x16x8xbf16>
    tpu.vector_store %arg7[%c1_18, %c1_19, %c0_20], %11 {strides = array<i32>} : memref<18x18x8xbf16, #tpu.memory_space<vmem>>, vector<16x16x8xbf16>,
    %c0_21 = arith.constant 0 : index
    %c0_22 = arith.constant 0 : index
    %c0_23 = arith.constant 0 : index
    %19 = vector.load %arg7[%c0_21, %c0_22, %c0_23] : memref<18x18x8xbf16, #tpu.memory_space<vmem>>, vector<16x16x8xbf16>
    %20 = vector.shape_cast %19 : vector<16x16x8xbf16> to vector<256x8xbf16>
    %c0_24 = arith.constant 0 : index
    %c1_25 = arith.constant 1 : index
    %c0_26 = arith.constant 0 : index
    %21 = vector.load %arg7[%c0_24, %c1_25, %c0_26] : memref<18x18x8xbf16, #tpu.memory_space<vmem>>, vector<16x16x8xbf16>
    %22 = vector.shape_cast %21 : vector<16x16x8xbf16> to vector<256x8xbf16>
    %c0_27 = arith.constant 0 : index
    %c2 = arith.constant 2 : index
    %c0_28 = arith.constant 0 : index
    %23 = vector.load %arg7[%c0_27, %c2, %c0_28] : memref<18x18x8xbf16, #tpu.memory_space<vmem>>, vector<16x16x8xbf16>
    %24 = vector.shape_cast %23 : vector<16x16x8xbf16> to vector<256x8xbf16>
    %c1_29 = arith.constant 1 : index
    %c0_30 = arith.constant 0 : index
    %c0_31 = arith.constant 0 : index
    %25 = vector.load %arg7[%c1_29, %c0_30, %c0_31] : memref<18x18x8xbf16, #tpu.memory_space<vmem>>, vector<16x16x8xbf16>
    %26 = vector.shape_cast %25 : vector<16x16x8xbf16> to vector<256x8xbf16>
    %c1_32 = arith.constant 1 : index
    %c1_33 = arith.constant 1 : index
    %c0_34 = arith.constant 0 : index
    %27 = vector.load %arg7[%c1_32, %c1_33, %c0_34] : memref<18x18x8xbf16, #tpu.memory_space<vmem>>, vector<16x16x8xbf16>
    %28 = vector.shape_cast %27 : vector<16x16x8xbf16> to vector<256x8xbf16>
    %c1_35 = arith.constant 1 : index
    %c2_36 = arith.constant 2 : index
    %c0_37 = arith.constant 0 : index
    %29 = vector.load %arg7[%c1_35, %c2_36, %c0_37] : memref<18x18x8xbf16, #tpu.memory_space<vmem>>, vector<16x16x8xbf16>
    %30 = vector.shape_cast %29 : vector<16x16x8xbf16> to vector<256x8xbf16>
    %c2_38 = arith.constant 2 : index
    %c0_39 = arith.constant 0 : index
    %c0_40 = arith.constant 0 : index
    %31 = vector.load %arg7[%c2_38, %c0_39, %c0_40] : memref<18x18x8xbf16, #tpu.memory_space<vmem>>, vector<16x16x8xbf16>
    %32 = vector.shape_cast %31 : vector<16x16x8xbf16> to vector<256x8xbf16>
    %c2_41 = arith.constant 2 : index
    %c1_42 = arith.constant 1 : index
    %c0_43 = arith.constant 0 : index
    %33 = vector.load %arg7[%c2_41, %c1_42, %c0_43] : memref<18x18x8xbf16, #tpu.memory_space<vmem>>, vector<16x16x8xbf16>
    %34 = vector.shape_cast %33 : vector<16x16x8xbf16> to vector<256x8xbf16>
    %c2_44 = arith.constant 2 : index
    %c2_45 = arith.constant 2 : index
    %c0_46 = arith.constant 0 : index
    %35 = vector.load %arg7[%c2_44, %c2_45, %c0_46] : memref<18x18x8xbf16, #tpu.memory_space<vmem>>, vector<16x16x8xbf16>
    %36 = vector.shape_cast %35 : vector<16x16x8xbf16> to vector<256x8xbf16>
    %37 = tpu.concatenate %20, %22, %24, %26, %28, %30, %32, %34, %36 in 1 : vector<256x8xbf16>, vector<256x8xbf16>, vector<256x8xbf16>, vector<256x8xbf16>, vector<256x8xbf16>, vector<256x8xbf16>, vector<256x8xbf16>, vector<256x8xbf16>, vector<256x8xbf16> -> vector<256x72xbf16>
    %c0_47 = arith.constant 0 : index
    %c0_48 = arith.constant 0 : index
    %38 = vector.load %arg4[%c0_47, %c0_48] : memref<72x8xbf16, #tpu.memory_space<vmem>>, vector<72x8xbf16>
    %cst_49 = arith.constant dense<0.000000e+00> : vector<256x8xf32>
    %39 = tpu.matmul %37, %38, %cst_49 {dimension_numbers = #tpu.dot_dimension_numbers<[1], [0], [0], [1], [0, 0, 1, 1], [], []>} : vector<256x72xbf16>, vector<72x8xbf16>, vector<256x8xf32> -> vector<256x8xf32>
    %c0_50 = arith.constant 0 : index
    %c0_51 = arith.constant 0 : index
    %c0_52 = arith.constant 0 : index
    %40 = vector.load %arg5[%c0_50, %c0_51, %c0_52] : memref<1x256x8xf32, #tpu.memory_space<vmem>>, vector<1x256x8xf32>
    %41 = vector.shape_cast %40 : vector<1x256x8xf32> to vector<256x8xf32>
    %42 = vector.shape_cast %39 : vector<256x8xf32> to vector<1x256x8xf32>
    tpu.vector_store %arg5[%c0_50, %c0_51, %c0_52], %42 {strides = array<i32>} : memref<1x256x8xf32, #tpu.memory_space<vmem>>, vector<1x256x8xf32>,
    %cst_53 = arith.constant dense<0.000000e+00> : vector<8xf32>
    %43 = vector.multi_reduction <add>, %39, %cst_53 [0] : vector<256x8xf32> to vector<8xf32>
    %44 = vector.shape_cast %43 : vector<8xf32> to vector<1x8xf32>
    %cst_54 = arith.constant 3.906250e-03 : f32
    %45 = vector.broadcast %cst_54 : f32 to vector<1x8xf32>
    %46 = arith.mulf %44, %45 : vector<1x8xf32>
    %c0_55 = arith.constant 0 : index
    %c0_56 = arith.constant 0 : index
    %c0_57 = arith.constant 0 : index
    %47 = vector.load %arg6[%c0_55, %c0_56, %c0_57] : memref<1x2x8xf32, #tpu.memory_space<vmem>>, vector<1x1x8xf32>
    %48 = vector.shape_cast %47 : vector<1x1x8xf32> to vector<1x8xf32>
    %49 = vector.shape_cast %44 : vector<1x8xf32> to vector<1x1x8xf32>
    tpu.vector_store %arg6[%c0_55, %c0_56, %c0_57], %49 {strides = array<i32>} : memref<1x2x8xf32, #tpu.memory_space<vmem>>, vector<1x1x8xf32>,
    %50 = vector.broadcast %46 : vector<1x8xf32> to vector<256x8xf32>
    %51 = arith.subf %39, %50 : vector<256x8xf32>
    %52 = arith.mulf %51, %51 : vector<256x8xf32>
    %cst_58 = arith.constant dense<0.000000e+00> : vector<8xf32>
    %53 = vector.multi_reduction <add>, %52, %cst_58 [0] : vector<256x8xf32> to vector<8xf32>
    %54 = vector.shape_cast %53 : vector<8xf32> to vector<1x8xf32>
    %c0_59 = arith.constant 0 : index
    %c1_60 = arith.constant 1 : index
    %c0_61 = arith.constant 0 : index
    %55 = vector.load %arg6[%c0_59, %c1_60, %c0_61] : memref<1x2x8xf32, #tpu.memory_space<vmem>>, vector<1x1x8xf32>
    %56 = vector.shape_cast %55 : vector<1x1x8xf32> to vector<1x8xf32>
    %57 = vector.shape_cast %54 : vector<1x8xf32> to vector<1x1x8xf32>
    tpu.vector_store %arg6[%c0_59, %c1_60, %c0_61], %57 {strides = array<i32>} : memref<1x2x8xf32, #tpu.memory_space<vmem>>, vector<1x1x8xf32>,
    return
  }
  func.func @transform_0(%arg0: i32) -> (i32, i32, i32) {
    %c0_i32 = arith.constant 0 : i32
    %c0_i32_0 = arith.constant 0 : i32
    %c0_i32_1 = arith.constant 0 : i32
    return %arg0, %c0_i32, %c0_i32_0 : i32, i32, i32
  }
  func.func @transform_1(%arg0: i32) -> (i32, i32) {
    %c0_i32 = arith.constant 0 : i32
    %c0_i32_0 = arith.constant 0 : i32
    %c0_i32_1 = arith.constant 0 : i32
    return %c0_i32, %c0_i32_0 : i32, i32
  }
  func.func @transform_2(%arg0: i32) -> (i32, i32) {
    %c0_i32 = arith.constant 0 : i32
    %c0_i32_0 = arith.constant 0 : i32
    %c0_i32_1 = arith.constant 0 : i32
    return %c0_i32, %c0_i32_0 : i32, i32
  }
  func.func @transform_3(%arg0: i32) -> (i32, i32) {
    %c0_i32 = arith.constant 0 : i32
    %c0_i32_0 = arith.constant 0 : i32
    %c0_i32_1 = arith.constant 0 : i32
    return %c0_i32, %c0_i32_0 : i32, i32
  }
  func.func @transform_4(%arg0: i32) -> (i32, i32, i32) {
    %c0_i32 = arith.constant 0 : i32
    %c0_i32_0 = arith.constant 0 : i32
    %c0_i32_1 = arith.constant 0 : i32
    return %arg0, %c0_i32, %c0_i32_0 : i32, i32, i32
  }
  func.func @transform_5(%arg0: i32) -> (i32, i32, i32) {
    %c0_i32 = arith.constant 0 : i32
    %c0_i32_0 = arith.constant 0 : i32
    %c0_i32_1 = arith.constant 0 : i32
    return %arg0, %c0_i32, %c0_i32_0 : i32, i32, i32
  }
}

module attributes {stable_mosaic.version = 11 : i64} {
  func.func @_combine_kernel(%arg0: i32, %arg1: memref<1x256x8xf32, #tpu.memory_space<vmem>>, %arg2: memref<1x8xf32, #tpu.memory_space<vmem>>, %arg3: memref<1x8xf32, #tpu.memory_space<vmem>>, %arg4: memref<1x256x8xf32, #tpu.memory_space<vmem>>, %arg5: memref<1x8xf32, #tpu.memory_space<vmem>>, %arg6: memref<1x8xf32, #tpu.memory_space<vmem>>, %arg7: memref<1x256x8xf32, #tpu.memory_space<vmem>>) attributes {dimension_semantics = [#tpu.dimension_semantics<parallel>], iteration_bounds = array<i64: 2>, scalar_prefetch = 0 : i64, scratch_operands = 0 : i64, tpu.core_type = #tpu.core_type<tc>, window_params = [{transform_indices = @transform_0, window_bounds = array<i64: 1, 256, 8>}, {pipeline_mode = #tpu.pipeline_mode<synchronous>, transform_indices = @transform_1, window_bounds = array<i64: 1, 8>}, {pipeline_mode = #tpu.pipeline_mode<synchronous>, transform_indices = @transform_2, window_bounds = array<i64: 1, 8>}, {transform_indices = @transform_3, window_bounds = array<i64: 1, 256, 8>}, {pipeline_mode = #tpu.pipeline_mode<synchronous>, transform_indices = @transform_4, window_bounds = array<i64: 1, 8>}, {pipeline_mode = #tpu.pipeline_mode<synchronous>, transform_indices = @transform_5, window_bounds = array<i64: 1, 8>}, {transform_indices = @transform_6, window_bounds = array<i64: 1, 256, 8>}]} {
    %c0 = arith.constant 0 : index
    %c0_0 = arith.constant 0 : index
    %c0_1 = arith.constant 0 : index
    %0 = vector.load %arg4[%c0, %c0_0, %c0_1] : memref<1x256x8xf32, #tpu.memory_space<vmem>>, vector<1x256x8xf32>
    %1 = vector.shape_cast %0 : vector<1x256x8xf32> to vector<256x8xf32>
    %c0_2 = arith.constant 0 : index
    %c0_3 = arith.constant 0 : index
    %2 = vector.load %arg5[%c0_2, %c0_3] : memref<1x8xf32, #tpu.memory_space<vmem>>, vector<1x8xf32>
    %3 = vector.broadcast %2 : vector<1x8xf32> to vector<256x8xf32>
    %4 = arith.mulf %1, %3 : vector<256x8xf32>
    %c0_4 = arith.constant 0 : index
    %c0_5 = arith.constant 0 : index
    %5 = vector.load %arg6[%c0_4, %c0_5] : memref<1x8xf32, #tpu.memory_space<vmem>>, vector<1x8xf32>
    %6 = vector.broadcast %5 : vector<1x8xf32> to vector<256x8xf32>
    %7 = arith.addf %4, %6 : vector<256x8xf32>
    %c0_6 = arith.constant 0 : index
    %c0_7 = arith.constant 0 : index
    %c0_8 = arith.constant 0 : index
    %8 = vector.load %arg1[%c0_6, %c0_7, %c0_8] : memref<1x256x8xf32, #tpu.memory_space<vmem>>, vector<1x256x8xf32>
    %9 = vector.shape_cast %8 : vector<1x256x8xf32> to vector<256x8xf32>
    %c0_9 = arith.constant 0 : index
    %c0_10 = arith.constant 0 : index
    %10 = vector.load %arg2[%c0_9, %c0_10] : memref<1x8xf32, #tpu.memory_space<vmem>>, vector<1x8xf32>
    %11 = vector.broadcast %10 : vector<1x8xf32> to vector<256x8xf32>
    %12 = arith.mulf %9, %11 : vector<256x8xf32>
    %c0_11 = arith.constant 0 : index
    %c0_12 = arith.constant 0 : index
    %13 = vector.load %arg3[%c0_11, %c0_12] : memref<1x8xf32, #tpu.memory_space<vmem>>, vector<1x8xf32>
    %14 = vector.broadcast %13 : vector<1x8xf32> to vector<256x8xf32>
    %15 = arith.addf %12, %14 : vector<256x8xf32>
    %16 = arith.addf %15, %7 : vector<256x8xf32>
    %cst = arith.constant 0.000000e+00 : f32
    %17 = vector.broadcast %cst : f32 to vector<256x8xf32>
    %18 = arith.maximumf %16, %17 : vector<256x8xf32>
    %c0_13 = arith.constant 0 : index
    %c0_14 = arith.constant 0 : index
    %c0_15 = arith.constant 0 : index
    %19 = vector.load %arg7[%c0_13, %c0_14, %c0_15] : memref<1x256x8xf32, #tpu.memory_space<vmem>>, vector<1x256x8xf32>
    %20 = vector.shape_cast %19 : vector<1x256x8xf32> to vector<256x8xf32>
    %21 = vector.shape_cast %18 : vector<256x8xf32> to vector<1x256x8xf32>
    tpu.vector_store %arg7[%c0_13, %c0_14, %c0_15], %21 {strides = array<i32>} : memref<1x256x8xf32, #tpu.memory_space<vmem>>, vector<1x256x8xf32>,
    return
  }
  func.func @transform_0(%arg0: i32) -> (i32, i32, i32) {
    %c0_i32 = arith.constant 0 : i32
    %c0_i32_0 = arith.constant 0 : i32
    %c0_i32_1 = arith.constant 0 : i32
    return %arg0, %c0_i32, %c0_i32_0 : i32, i32, i32
  }
  func.func @transform_1(%arg0: i32) -> (i32, i32) {
    %c0_i32 = arith.constant 0 : i32
    %c0_i32_0 = arith.constant 0 : i32
    %c0_i32_1 = arith.constant 0 : i32
    return %c0_i32, %c0_i32_0 : i32, i32
  }
  func.func @transform_2(%arg0: i32) -> (i32, i32) {
    %c0_i32 = arith.constant 0 : i32
    %c0_i32_0 = arith.constant 0 : i32
    %c0_i32_1 = arith.constant 0 : i32
    return %c0_i32, %c0_i32_0 : i32, i32
  }
  func.func @transform_3(%arg0: i32) -> (i32, i32, i32) {
    %c0_i32 = arith.constant 0 : i32
    %c0_i32_0 = arith.constant 0 : i32
    %c0_i32_1 = arith.constant 0 : i32
    return %arg0, %c0_i32, %c0_i32_0 : i32, i32, i32
  }
  func.func @transform_4(%arg0: i32) -> (i32, i32) {
    %c0_i32 = arith.constant 0 : i32
    %c0_i32_0 = arith.constant 0 : i32
    %c0_i32_1 = arith.constant 0 : i32
    return %c0_i32, %c0_i32_0 : i32, i32
  }
  func.func @transform_5(%arg0: i32) -> (i32, i32) {
    %c0_i32 = arith.constant 0 : i32
    %c0_i32_0 = arith.constant 0 : i32
    %c0_i32_1 = arith.constant 0 : i32
    return %c0_i32, %c0_i32_0 : i32, i32
  }
  func.func @transform_6(%arg0: i32) -> (i32, i32, i32) {
    %c0_i32 = arith.constant 0 : i32
    %c0_i32_0 = arith.constant 0 : i32
    %c0_i32_1 = arith.constant 0 : i32
    return %arg0, %c0_i32, %c0_i32_0 : i32, i32, i32
  }
}

</mosaic_0001>

<llo_original>
// kernel: basic_block_forward.5
$region0: #{basic_block_forward.5}
  #allocation0 [shape = 'u32[]', space=smem, size = 0x4, offset = 0x4, fixed_abs, tag = 'smem constant byte address 0x4 - core index']
  #allocation1 [shape = 'u32[144,128]{1,0:T(1,128)}', space=vmem, size = 0x12000, scoped, tag = 'internal scratch']
  %s0 = inlined_call_operand.vmem [shape: f32[2,256,8], index: 0, kind: input, shape index: {}]
  %s1 = inlined_call_operand.vmem [shape: f32[1,8], index: 1, kind: input, shape index: {}]
  %s2 = inlined_call_operand.vmem [shape: f32[1,8], index: 2, kind: input, shape index: {}]
  %s3 = inlined_call_operand.vmem [shape: f32[2,256,8], index: 3, kind: input, shape index: {}]
  %s4 = inlined_call_operand.vmem [shape: f32[1,8], index: 4, kind: input, shape index: {}]
  %s5 = inlined_call_operand.vmem [shape: f32[1,8], index: 5, kind: input, shape index: {}]
  %s6 = inlined_call_operand.vmem [shape: f32[2,256,8], index: 6, kind: output, shape index: {}]
  %s7 = sld [smem:[#allocation0]]
  $region57: #{basic_block_forward.5} parent=0
    _
  %s9 = ssub.s32 1, %s7
  %s10 = scalar_select 0, %s9, %s7
  loop: start=0, step=1, limit=4
  $region2: #{basic_block_forward.5} parent=0 // loop_pre_header
    _
  $region3: #{basic_block_forward.5} parent=0 // loop_header
    %s12 = sphi 0, %s16
    %p13 = scmp.ge.s32.totalorder %s12, 4
    %s22 = sphi 0, %s24
    %s25 = sphi 0, %s22
    %s26 = sphi 0, %s25
    %s42 = sphi 0, %s26
    %s46 = sphi 0, %s46
    %s48 = sphi 0, %s46
    %s49 = sphi 0, %s48
    %s63 = sphi 0, %s49
    %s67 = sphi 0, %s67
    %s69 = sphi 0, %s67
    %s70 = sphi 0, %s69
    %s84 = sphi 0, %s70
    %s90 = sphi 0, %s92
    %s93 = sphi 0, %s90
    %s94 = sphi 0, %s93
    %s110 = sphi 0, %s94
    %s114 = sphi 0, %s114
    %s116 = sphi 0, %s114
    %s117 = sphi 0, %s116
    %s131 = sphi 0, %s117
    %s135 = sphi 0, %s135
    %s137 = sphi 0, %s135
    %s138 = sphi 0, %s137
    %s152 = sphi 0, %s138
    %s158 = sphi 0, %s160
    %s161 = sphi 0, %s158
    %s162 = sphi 0, %s161
    %s178 = sphi 0, %s162
  $region4: #{basic_block_forward.5} parent=0 // loop_header_branch
    %15 = sbr.rel (%p13) target = $region8
  $region5: #{basic_block_forward.5} parent=0 // loop_body
    %s17 = ssub.s32 %s12, 1
    %s18 = ssub.s32 %s12, 2
    %s19 = sadd.s32 %s12, 1
    %s20 = ssub.s32 %s12, %s19
    %p21 = scmp.eq.s32.totalorder %s20, 0
    %s23 = sadd.s32 %s22, 1
    %s24 = scalar_select %p21, %s22, %s23
    %p27 = pneg %p21
    %p28 = scmp.eq.s32.totalorder %s12, 1
    %p29 = por %p27, %p28
    %p30 = scmp.ne.s32.totalorder %s22, %s25
    %p31 = scmp.eq.s32.totalorder %s12, 0
    %p32 = por %p30, %p31
    %p33 = scmp.ne.s32.totalorder %s22, %s25
    %p34 = scmp.eq.s32.totalorder %s17, 1
    %p35 = por %p33, %p34
    %p36 = scmp.ne.s32.totalorder %s25, %s26
    %p37 = scmp.eq.s32.totalorder %s17, 0
    %p38 = por %p36, %p37
    %p39 = scmp.ne.s32.totalorder %s25, %s26
    %p40 = scmp.eq.s32.totalorder %s18, 1
    %p41 = por %p39, %p40
    %p43 = scmp.ne.s32.totalorder %s26, %s42
    %p44 = scmp.eq.s32.totalorder %s18, 0
    %p45 = por %p43, %p44
    %s47 = sadd.s32 %s46, 1
    %p50 = scmp.eq.s32.totalorder %s12, 1
    %p51 = scmp.ne.s32.totalorder %s46, %s48
    %p52 = scmp.eq.s32.totalorder %s12, 0
    %p53 = por %p51, %p52
    %p54 = scmp.ne.s32.totalorder %s46, %s48
    %p55 = scmp.eq.s32.totalorder %s17, 1
    %p56 = por %p54, %p55
    %p57 = scmp.ne.s32.totalorder %s48, %s49
    %p58 = scmp.eq.s32.totalorder %s17, 0
    %p59 = por %p57, %p58
    %p60 = scmp.ne.s32.totalorder %s48, %s49
    %p61 = scmp.eq.s32.totalorder %s18, 1
    %p62 = por %p60, %p61
    %p64 = scmp.ne.s32.totalorder %s49, %s63
    %p65 = scmp.eq.s32.totalorder %s18, 0
    %p66 = por %p64, %p65
    %s68 = sadd.s32 %s67, 1
    %p71 = scmp.eq.s32.totalorder %s12, 1
    %p72 = scmp.ne.s32.totalorder %s67, %s69
    %p73 = scmp.eq.s32.totalorder %s12, 0
    %p74 = por %p72, %p73
    %p75 = scmp.ne.s32.totalorder %s67, %s69
    %p76 = scmp.eq.s32.totalorder %s17, 1
    %p77 = por %p75, %p76
    %p78 = scmp.ne.s32.totalorder %s69, %s70
    %p79 = scmp.eq.s32.totalorder %s17, 0
    %p80 = por %p78, %p79
    %p81 = scmp.ne.s32.totalorder %s69, %s70
    %p82 = scmp.eq.s32.totalorder %s18, 1
    %p83 = por %p81, %p82
    %p85 = scmp.ne.s32.totalorder %s70, %s84
    %p86 = scmp.eq.s32.totalorder %s18, 0
    %p87 = por %p85, %p86
    %s88 = ssub.s32 %s12, %s19
    %p89 = scmp.eq.s32.totalorder %s88, 0
    %s91 = sadd.s32 %s90, 1
    %s92 = scalar_select %p89, %s90, %s91
    %p95 = pneg %p89
    %p96 = scmp.eq.s32.totalorder %s12, 1
    %p97 = por %p95, %p96
    %p98 = scmp.ne.s32.totalorder %s90, %s93
    %p99 = scmp.eq.s32.totalorder %s12, 0
    %p100 = por %p98, %p99
    %p101 = scmp.ne.s32.totalorder %s90, %s93
    %p102 = scmp.eq.s32.totalorder %s17, 1
    %p103 = por %p101, %p102
    %p104 = scmp.ne.s32.totalorder %s93, %s94
    %p105 = scmp.eq.s32.totalorder %s17, 0
    %p106 = por %p104, %p105
    %p107 = scmp.ne.s32.totalorder %s93, %s94
    %p108 = scmp.eq.s32.totalorder %s18, 1
    %p109 = por %p107, %p108
    %p111 = scmp.ne.s32.totalorder %s94, %s110
    %p112 = scmp.eq.s32.totalorder %s18, 0
    %p113 = por %p111, %p112
    %s115 = sadd.s32 %s114, 1
    %p118 = scmp.eq.s32.totalorder %s12, 1
    %p119 = scmp.ne.s32.totalorder %s114, %s116
    %p120 = scmp.eq.s32.totalorder %s12, 0
    %p121 = por %p119, %p120
    %p122 = scmp.ne.s32.totalorder %s114, %s116
    %p123 = scmp.eq.s32.totalorder %s17, 1
    %p124 = por %p122, %p123
    %p125 = scmp.ne.s32.totalorder %s116, %s117
    %p126 = scmp.eq.s32.totalorder %s17, 0
    %p127 = por %p125, %p126
    %p128 = scmp.ne.s32.totalorder %s116, %s117
    %p129 = scmp.eq.s32.totalorder %s18, 1
    %p130 = por %p128, %p129
    %p132 = scmp.ne.s32.totalorder %s117, %s131
    %p133 = scmp.eq.s32.totalorder %s18, 0
    %p134 = por %p132, %p133
    %s136 = sadd.s32 %s135, 1
    %p139 = scmp.eq.s32.totalorder %s12, 1
    %p140 = scmp.ne.s32.totalorder %s135, %s137
    %p141 = scmp.eq.s32.totalorder %s12, 0
    %p142 = por %p140, %p141
    %p143 = scmp.ne.s32.totalorder %s135, %s137
    %p144 = scmp.eq.s32.totalorder %s17, 1
    %p145 = por %p143, %p144
    %p146 = scmp.ne.s32.totalorder %s137, %s138
    %p147 = scmp.eq.s32.totalorder %s17, 0
    %p148 = por %p146, %p147
    %p149 = scmp.ne.s32.totalorder %s137, %s138
    %p150 = scmp.eq.s32.totalorder %s18, 1
    %p151 = por %p149, %p150
    %p153 = scmp.ne.s32.totalorder %s138, %s152
    %p154 = scmp.eq.s32.totalorder %s18, 0
    %p155 = por %p153, %p154
    %s156 = ssub.s32 %s12, %s19
    %p157 = scmp.eq.s32.totalorder %s156, 0
    %s159 = sadd.s32 %s158, 1
    %s160 = scalar_select %p157, %s158, %s159
    %p163 = pneg %p157
    %p164 = scmp.eq.s32.totalorder %s12, 1
    %p165 = por %p163, %p164
    %p166 = scmp.ne.s32.totalorder %s158, %s161
    %p167 = scmp.eq.s32.totalorder %s12, 0
    %p168 = por %p166, %p167
    %p169 = scmp.ne.s32.totalorder %s158, %s161
    %p170 = scmp.eq.s32.totalorder %s17, 1
    %p171 = por %p169, %p170
    %p172 = scmp.ne.s32.totalorder %s161, %s162
    %p173 = scmp.eq.s32.totalorder %s17, 0
    %p174 = por %p172, %p173
    %p175 = scmp.ne.s32.totalorder %s161, %s162
    %p176 = scmp.eq.s32.totalorder %s18, 1
    %p177 = por %p175, %p176
    %p179 = scmp.ne.s32.totalorder %s162, %s178
    %p180 = scmp.eq.s32.totalorder %s18, 0
    %p181 = por %p179, %p180
    %p182 = scmp.le.s32.totalorder 1, %s12
    %p183 = scmp.lt.s32.totalorder %s12, 3
    %p184 = pnand %p182, %p183
    %p185 = pneg %p184
    // Predicated region
    $region9: #{basic_block_forward.5} parent=5 // pred_check
      _
    $region10: #{basic_block_forward.5} parent=5 // pred_check_branch
      %187 = sbr.rel (%p184) target = $region12
    $region11: #{basic_block_forward.5} parent=5 // pred_region
      %s188 = ssub.s32 %s12, 1
      // Predicated region
      $region13: #{basic_block_forward.5} parent=11 // pred_check
        %p189 = pneg %p59
      $region14: #{basic_block_forward.5} parent=11 // pred_check_branch
        %191 = sbr.rel (%p189) target = $region16
      $region15: #{basic_block_forward.5} parent=11 // pred_region
        _
      $region16: #{basic_block_forward.5} parent=11 // pred_fallthru
        _
      // Predicated region
      $region17: #{basic_block_forward.5} parent=11 // pred_check
        %p192 = pneg %p80
      $region18: #{basic_block_forward.5} parent=11 // pred_check_branch
        %194 = sbr.rel (%p192) target = $region20
      $region19: #{basic_block_forward.5} parent=11 // pred_region
        _
      $region20: #{basic_block_forward.5} parent=11 // pred_fallthru
        _
      // Predicated region
      $region21: #{basic_block_forward.5} parent=11 // pred_check
        %p195 = pneg %p127
      $region22: #{basic_block_forward.5} parent=11 // pred_check_branch
        %197 = sbr.rel (%p195) target = $region24
      $region23: #{basic_block_forward.5} parent=11 // pred_region
        _
      $region24: #{basic_block_forward.5} parent=11 // pred_fallthru
        _
      // Predicated region
      $region25: #{basic_block_forward.5} parent=11 // pred_check
        %p198 = pneg %p148
      $region26: #{basic_block_forward.5} parent=11 // pred_check_branch
        %200 = sbr.rel (%p198) target = $region28
      $region27: #{basic_block_forward.5} parent=11 // pred_region
        _
      $region28: #{basic_block_forward.5} parent=11 // pred_fallthru
        _
    $region12: #{basic_block_forward.5} parent=5 // pred_fallthru
      _
    %p201 = scmp.lt.s32.totalorder %s12, 2
    // Predicated region
    $region29: #{basic_block_forward.5} parent=5 // pred_check
      %p202 = pneg %p201
    $region30: #{basic_block_forward.5} parent=5 // pred_check_branch
      %204 = sbr.rel (%p202) target = $region32
    $region31: #{basic_block_forward.5} parent=5 // pred_region
      // Predicated region
      $region33: #{basic_block_forward.5} parent=31 // pred_check
        %p205 = pneg %p32
      $region34: #{basic_block_forward.5} parent=31 // pred_check_branch
        %207 = sbr.rel (%p205) target = $region36
      $region35: #{basic_block_forward.5} parent=31 // pred_region
        %p208 = scmp.lt.s32.totalorder %s12, 1
        %s209 = scalar_select %p208, %s12, 1
        %s210 = smul.addr %s209, 32
        %s211 = smul.addr %s210, 8
        %s212 = scalar_lea.vmem %s0, %s211
      $region36: #{basic_block_forward.5} parent=31 // pred_fallthru
        _
      // Predicated region
      $region37: #{basic_block_forward.5} parent=31 // pred_check
        %p213 = pneg %p100
      $region38: #{basic_block_forward.5} parent=31 // pred_check_branch
        %215 = sbr.rel (%p213) target = $region40
      $region39: #{basic_block_forward.5} parent=31 // pred_region
        %p216 = scmp.lt.s32.totalorder %s12, 1
        %s217 = scalar_select %p216, %s12, 1
        %s218 = smul.addr %s217, 32
        %s219 = smul.addr %s218, 8
        %s220 = scalar_lea.vmem %s3, %s219
      $region40: #{basic_block_forward.5} parent=31 // pred_fallthru
        _
    $region32: #{basic_block_forward.5} parent=5 // pred_fallthru
      _
    %p221 = scmp.le.s32.totalorder 1, %s12
    %p222 = scmp.lt.s32.totalorder %s12, 3
    %p223 = pnand %p221, %p222
    %p224 = pneg %p223
    // Predicated region
    $region41: #{basic_block_forward.5} parent=5 // pred_check
      _
    $region42: #{basic_block_forward.5} parent=5 // pred_check_branch
      %226 = sbr.rel (%p223) target = $region44
    $region43: #{basic_block_forward.5} parent=5 // pred_region
      %s227 = ssub.s32 %s12, 1
      %p228 = scmp.lt.s32.totalorder %s17, 1
      %s229 = scalar_select %p228, %s17, 1
      %s230 = smul.addr %s229, 32
      %s231 = smul.addr %s230, 8
      %s232 = scalar_lea.vmem %s0, %s231
      %p233 = pneg %p38
      %p234 = pneg %p35
      %p235 = pneg %p59
      %p236 = pneg %p56
      %p237 = pneg %p80
      %p238 = pneg %p77
      %p239 = scmp.lt.s32.totalorder %s17, 1
      %s240 = scalar_select %p239, %s17, 1
      %s241 = smul.addr %s240, 32
      %s242 = smul.addr %s241, 8
      %s243 = scalar_lea.vmem %s3, %s242
      %p244 = pneg %p106
      %p245 = pneg %p103
      %p246 = pneg %p127
      %p247 = pneg %p124
      %p248 = pneg %p148
      %p249 = pneg %p145
      %p250 = pneg %p174
      %p251 = pneg %p171
      %p252 = scmp.lt.s32.totalorder %s17, 1
      %s253 = scalar_select %p252, %s17, 1
      %s254 = smul.addr %s253, 32
      %s255 = smul.addr %s254, 8
      %s256 = scalar_lea.vmem %s6, %s255
      %p257 = scmp.lt.s32.totalorder %s17, 1
      %s258 = scalar_select %p257, %s17, 1
      %s259 = smul.addr %s258, 32
      %s260 = smul.addr %s259, 8
      %s261 = scalar_lea.vmem %s0, %s260
      %p262 = scmp.lt.s32.totalorder %s17, 1
      %s263 = scalar_select %p262, %s17, 1
      %s264 = smul.addr %s263, 32
      %s265 = smul.addr %s264, 8
      %s266 = scalar_lea.vmem %s3, %s265
      %p267 = scmp.lt.s32.totalorder %s17, 1
      %s268 = scalar_select %p267, %s17, 1
      %s269 = smul.addr %s268, 32
      %s270 = smul.addr %s269, 8
      %s271 = scalar_lea.vmem %s6, %s270
      %v272 = vld [vmem:[%s266] sm:$0xff]
      %v273 = vld [vmem:[%s266 + $0x8] sm:$0xff]
      %v274 = vld [vmem:[%s266 + $0x10] sm:$0xff]
      %v275 = vld [vmem:[%s266 + $0x18] sm:$0xff]
      %v276 = vld [vmem:[%s266 + $0x20] sm:$0xff]
      %v277 = vld [vmem:[%s266 + $0x28] sm:$0xff]
      %v278 = vld [vmem:[%s266 + $0x30] sm:$0xff]
      %v279 = vld [vmem:[%s266 + $0x38] sm:$0xff]
      %v280 = vld [vmem:[%s266 + $0x40] sm:$0xff]
      %v281 = vld [vmem:[%s266 + $0x48] sm:$0xff]
      %v282 = vld [vmem:[%s266 + $0x50] sm:$0xff]
      %v283 = vld [vmem:[%s266 + $0x58] sm:$0xff]
      %v284 = vld [vmem:[%s266 + $0x60] sm:$0xff]
      %v285 = vld [vmem:[%s266 + $0x68] sm:$0xff]
      %v286 = vld [vmem:[%s266 + $0x70] sm:$0xff]
      %v287 = vld [vmem:[%s266 + $0x78] sm:$0xff]
      %v288 = vld [vmem:[%s266 + $0x80] sm:$0xff]
      %v289 = vld [vmem:[%s266 + $0x88] sm:$0xff]
      %v290 = vld [vmem:[%s266 + $0x90] sm:$0xff]
      %v291 = vld [vmem:[%s266 + $0x98] sm:$0xff]
      %v292 = vld [vmem:[%s266 + $0xa0] sm:$0xff]
      %v293 = vld [vmem:[%s266 + $0xa8] sm:$0xff]
      %v294 = vld [vmem:[%s266 + $0xb0] sm:$0xff]
      %v295 = vld [vmem:[%s266 + $0xb8] sm:$0xff]
      %v296 = vld [vmem:[%s266 + $0xc0] sm:$0xff]
      %v297 = vld [vmem:[%s266 + $0xc8] sm:$0xff]
      %v298 = vld [vmem:[%s266 + $0xd0] sm:$0xff]
      %v299 = vld [vmem:[%s266 + $0xd8] sm:$0xff]
      %v300 = vld [vmem:[%s266 + $0xe0] sm:$0xff]
      %v301 = vld [vmem:[%s266 + $0xe8] sm:$0xff]
      %v302 = vld [vmem:[%s266 + $0xf0] sm:$0xff]
      %v303 = vld [vmem:[%s266 + $0xf8] sm:$0xff]
      %v304 = vld [vmem:[%s4] sm:$0x1]
      %v306 = vlaneseq
      %v307 = vshrl.u32 %v306, 7
      %v308 = vsub.s32 0, %v307
      %v309 = vrot.slane %v304, %v308
      %v311 = vmul.f32 %v272, %v309
      %v312 = vmul.f32 %v273, %v309
      %v313 = vmul.f32 %v274, %v309
      %v314 = vmul.f32 %v275, %v309
      %v315 = vmul.f32 %v276, %v309
      %v316 = vmul.f32 %v277, %v309
      %v317 = vmul.f32 %v278, %v309
      %v318 = vmul.f32 %v279, %v309
      %v319 = vmul.f32 %v280, %v309
      %v320 = vmul.f32 %v281, %v309
      %v321 = vmul.f32 %v282, %v309
      %v322 = vmul.f32 %v283, %v309
      %v323 = vmul.f32 %v284, %v309
      %v324 = vmul.f32 %v285, %v309
      %v325 = vmul.f32 %v286, %v309
      %v326 = vmul.f32 %v287, %v309
      %v327 = vmul.f32 %v288, %v309
      %v328 = vmul.f32 %v289, %v309
      %v329 = vmul.f32 %v290, %v309
      %v330 = vmul.f32 %v291, %v309
      %v331 = vmul.f32 %v292, %v309
      %v332 = vmul.f32 %v293, %v309
      %v333 = vmul.f32 %v294, %v309
      %v334 = vmul.f32 %v295, %v309
      %v335 = vmul.f32 %v296, %v309
      %v336 = vmul.f32 %v297, %v309
      %v337 = vmul.f32 %v298, %v309
      %v338 = vmul.f32 %v299, %v309
      %v339 = vmul.f32 %v300, %v309
      %v340 = vmul.f32 %v301, %v309
      %v341 = vmul.f32 %v302, %v309
      %v342 = vmul.f32 %v303, %v309
      %v343 = vld [vmem:[%s5] sm:$0x1]
      %v345 = vlaneseq
      %v346 = vshrl.u32 %v345, 7
      %v347 = vsub.s32 0, %v346
      %v348 = vrot.slane %v343, %v347
      %v350 = vadd.f32 %v311, %v348
      %v351 = vadd.f32 %v312, %v348
      %v352 = vadd.f32 %v313, %v348
      %v353 = vadd.f32 %v314, %v348
      %v354 = vadd.f32 %v315, %v348
      %v355 = vadd.f32 %v316, %v348
      %v356 = vadd.f32 %v317, %v348
      %v357 = vadd.f32 %v318, %v348
      %v358 = vadd.f32 %v319, %v348
      %v359 = vadd.f32 %v320, %v348
      %v360 = vadd.f32 %v321, %v348
      %v361 = vadd.f32 %v322, %v348
      %v362 = vadd.f32 %v323, %v348
      %v363 = vadd.f32 %v324, %v348
      %v364 = vadd.f32 %v325, %v348
      %v365 = vadd.f32 %v326, %v348
      %v366 = vadd.f32 %v327, %v348
      %v367 = vadd.f32 %v328, %v348
      %v368 = vadd.f32 %v329, %v348
      %v369 = vadd.f32 %v330, %v348
      %v370 = vadd.f32 %v331, %v348
      %v371 = vadd.f32 %v332, %v348
      %v372 = vadd.f32 %v333, %v348
      %v373 = vadd.f32 %v334, %v348
      %v374 = vadd.f32 %v335, %v348
      %v375 = vadd.f32 %v336, %v348
      %v376 = vadd.f32 %v337, %v348
      %v377 = vadd.f32 %v338, %v348
      %v378 = vadd.f32 %v339, %v348
      %v379 = vadd.f32 %v340, %v348
      %v380 = vadd.f32 %v341, %v348
      %v381 = vadd.f32 %v342, %v348
      %v382 = vld [vmem:[%s261] sm:$0xff]
      %v383 = vld [vmem:[%s261 + $0x8] sm:$0xff]
      %v384 = vld [vmem:[%s261 + $0x10] sm:$0xff]
      %v385 = vld [vmem:[%s261 + $0x18] sm:$0xff]
      %v386 = vld [vmem:[%s261 + $0x20] sm:$0xff]
      %v387 = vld [vmem:[%s261 + $0x28] sm:$0xff]
      %v388 = vld [vmem:[%s261 + $0x30] sm:$0xff]
      %v389 = vld [vmem:[%s261 + $0x38] sm:$0xff]
      %v390 = vld [vmem:[%s261 + $0x40] sm:$0xff]
      %v391 = vld [vmem:[%s261 + $0x48] sm:$0xff]
      %v392 = vld [vmem:[%s261 + $0x50] sm:$0xff]
      %v393 = vld [vmem:[%s261 + $0x58] sm:$0xff]
      %v394 = vld [vmem:[%s261 + $0x60] sm:$0xff]
      %v395 = vld [vmem:[%s261 + $0x68] sm:$0xff]
      %v396 = vld [vmem:[%s261 + $0x70] sm:$0xff]
      %v397 = vld [vmem:[%s261 + $0x78] sm:$0xff]
      %v398 = vld [vmem:[%s261 + $0x80] sm:$0xff]
      %v399 = vld [vmem:[%s261 + $0x88] sm:$0xff]
      %v400 = vld [vmem:[%s261 + $0x90] sm:$0xff]
      %v401 = vld [vmem:[%s261 + $0x98] sm:$0xff]
      %v402 = vld [vmem:[%s261 + $0xa0] sm:$0xff]
      %v403 = vld [vmem:[%s261 + $0xa8] sm:$0xff]
      %v404 = vld [vmem:[%s261 + $0xb0] sm:$0xff]
      %v405 = vld [vmem:[%s261 + $0xb8] sm:$0xff]
      %v406 = vld [vmem:[%s261 + $0xc0] sm:$0xff]
      %v407 = vld [vmem:[%s261 + $0xc8] sm:$0xff]
      %v408 = vld [vmem:[%s261 + $0xd0] sm:$0xff]
      %v409 = vld [vmem:[%s261 + $0xd8] sm:$0xff]
      %v410 = vld [vmem:[%s261 + $0xe0] sm:$0xff]
      %v411 = vld [vmem:[%s261 + $0xe8] sm:$0xff]
      %v412 = vld [vmem:[%s261 + $0xf0] sm:$0xff]
      %v413 = vld [vmem:[%s261 + $0xf8] sm:$0xff]
      %v414 = vld [vmem:[%s1] sm:$0x1]
      %v416 = vlaneseq
      %v417 = vshrl.u32 %v416, 7
      %v418 = vsub.s32 0, %v417
      %v419 = vrot.slane %v414, %v418
      %v421 = vmul.f32 %v382, %v419
      %v422 = vmul.f32 %v383, %v419
      %v423 = vmul.f32 %v384, %v419
      %v424 = vmul.f32 %v385, %v419
      %v425 = vmul.f32 %v386, %v419
      %v426 = vmul.f32 %v387, %v419
      %v427 = vmul.f32 %v388, %v419
      %v428 = vmul.f32 %v389, %v419
      %v429 = vmul.f32 %v390, %v419
      %v430 = vmul.f32 %v391, %v419
      %v431 = vmul.f32 %v392, %v419
      %v432 = vmul.f32 %v393, %v419
      %v433 = vmul.f32 %v394, %v419
      %v434 = vmul.f32 %v395, %v419
      %v435 = vmul.f32 %v396, %v419
      %v436 = vmul.f32 %v397, %v419
      %v437 = vmul.f32 %v398, %v419
      %v438 = vmul.f32 %v399, %v419
      %v439 = vmul.f32 %v400, %v419
      %v440 = vmul.f32 %v401, %v419
      %v441 = vmul.f32 %v402, %v419
      %v442 = vmul.f32 %v403, %v419
      %v443 = vmul.f32 %v404, %v419
      %v444 = vmul.f32 %v405, %v419
      %v445 = vmul.f32 %v406, %v419
      %v446 = vmul.f32 %v407, %v419
      %v447 = vmul.f32 %v408, %v419
      %v448 = vmul.f32 %v409, %v419
      %v449 = vmul.f32 %v410, %v419
      %v450 = vmul.f32 %v411, %v419
      %v451 = vmul.f32 %v412, %v419
      %v452 = vmul.f32 %v413, %v419
      %v453 = vld [vmem:[%s2] sm:$0x1]
      %v455 = vlaneseq
      %v456 = vshrl.u32 %v455, 7
      %v457 = vsub.s32 0, %v456
      %v458 = vrot.slane %v453, %v457
      %v460 = vadd.f32 %v421, %v458
      %v461 = vadd.f32 %v422, %v458
      %v462 = vadd.f32 %v423, %v458
      %v463 = vadd.f32 %v424, %v458
      %v464 = vadd.f32 %v425, %v458
      %v465 = vadd.f32 %v426, %v458
      %v466 = vadd.f32 %v427, %v458
      %v467 = vadd.f32 %v428, %v458
      %v468 = vadd.f32 %v429, %v458
      %v469 = vadd.f32 %v430, %v458
      %v470 = vadd.f32 %v431, %v458
      %v471 = vadd.f32 %v432, %v458
      %v472 = vadd.f32 %v433, %v458
      %v473 = vadd.f32 %v434, %v458
      %v474 = vadd.f32 %v435, %v458
      %v475 = vadd.f32 %v436, %v458
      %v476 = vadd.f32 %v437, %v458
      %v477 = vadd.f32 %v438, %v458
      %v478 = vadd.f32 %v439, %v458
      %v479 = vadd.f32 %v440, %v458
      %v480 = vadd.f32 %v441, %v458
      %v481 = vadd.f32 %v442, %v458
      %v482 = vadd.f32 %v443, %v458
      %v483 = vadd.f32 %v444, %v458
      %v484 = vadd.f32 %v445, %v458
      %v485 = vadd.f32 %v446, %v458
      %v486 = vadd.f32 %v447, %v458
      %v487 = vadd.f32 %v448, %v458
      %v488 = vadd.f32 %v449, %v458
      %v489 = vadd.f32 %v450, %v458
      %v490 = vadd.f32 %v451, %v458
      %v491 = vadd.f32 %v452, %v458
      %v492 = vadd.f32 %v460, %v350
      %v493 = vadd.f32 %v461, %v351
      %v494 = vadd.f32 %v462, %v352
      %v495 = vadd.f32 %v463, %v353
      %v496 = vadd.f32 %v464, %v354
      %v497 = vadd.f32 %v465, %v355
      %v498 = vadd.f32 %v466, %v356
      %v499 = vadd.f32 %v467, %v357
      %v500 = vadd.f32 %v468, %v358
      %v501 = vadd.f32 %v469, %v359
      %v502 = vadd.f32 %v470, %v360
      %v503 = vadd.f32 %v471, %v361
      %v504 = vadd.f32 %v472, %v362
      %v505 = vadd.f32 %v473, %v363
      %v506 = vadd.f32 %v474, %v364
      %v507 = vadd.f32 %v475, %v365
      %v508 = vadd.f32 %v476, %v366
      %v509 = vadd.f32 %v477, %v367
      %v510 = vadd.f32 %v478, %v368
      %v511 = vadd.f32 %v479, %v369
      %v512 = vadd.f32 %v480, %v370
      %v513 = vadd.f32 %v481, %v371
      %v514 = vadd.f32 %v482, %v372
      %v515 = vadd.f32 %v483, %v373
      %v516 = vadd.f32 %v484, %v374
      %v517 = vadd.f32 %v485, %v375
      %v518 = vadd.f32 %v486, %v376
      %v519 = vadd.f32 %v487, %v377
      %v520 = vadd.f32 %v488, %v378
      %v521 = vadd.f32 %v489, %v379
      %v522 = vadd.f32 %v490, %v380
      %v523 = vadd.f32 %v491, %v381
      %v524 = vmax.f32 %v492, 0.0
      %v525 = vmax.f32 %v493, 0.0
      %v526 = vmax.f32 %v494, 0.0
      %v527 = vmax.f32 %v495, 0.0
      %v528 = vmax.f32 %v496, 0.0
      %v529 = vmax.f32 %v497, 0.0
      %v530 = vmax.f32 %v498, 0.0
      %v531 = vmax.f32 %v499, 0.0
      %v532 = vmax.f32 %v500, 0.0
      %v533 = vmax.f32 %v501, 0.0
      %v534 = vmax.f32 %v502, 0.0
      %v535 = vmax.f32 %v503, 0.0
      %v536 = vmax.f32 %v504, 0.0
      %v537 = vmax.f32 %v505, 0.0
      %v538 = vmax.f32 %v506, 0.0
      %v539 = vmax.f32 %v507, 0.0
      %v540 = vmax.f32 %v508, 0.0
      %v541 = vmax.f32 %v509, 0.0
      %v542 = vmax.f32 %v510, 0.0
      %v543 = vmax.f32 %v511, 0.0
      %v544 = vmax.f32 %v512, 0.0
      %v545 = vmax.f32 %v513, 0.0
      %v546 = vmax.f32 %v514, 0.0
      %v547 = vmax.f32 %v515, 0.0
      %v548 = vmax.f32 %v516, 0.0
      %v549 = vmax.f32 %v517, 0.0
      %v550 = vmax.f32 %v518, 0.0
      %v551 = vmax.f32 %v519, 0.0
      %v552 = vmax.f32 %v520, 0.0
      %v553 = vmax.f32 %v521, 0.0
      %v554 = vmax.f32 %v522, 0.0
      %v555 = vmax.f32 %v523, 0.0
      %vm556 = vcmask 64512
      %557 = vst.msk [vmem:[%s271] sm:$0xff] %vm556, %v524
      %558 = vst.msk [vmem:[%s271 + $0x8] sm:$0xff] %vm556, %v525
      %559 = vst.msk [vmem:[%s271 + $0x10] sm:$0xff] %vm556, %v526
      %560 = vst.msk [vmem:[%s271 + $0x18] sm:$0xff] %vm556, %v527
      %561 = vst.msk [vmem:[%s271 + $0x20] sm:$0xff] %vm556, %v528
      %562 = vst.msk [vmem:[%s271 + $0x28] sm:$0xff] %vm556, %v529
      %563 = vst.msk [vmem:[%s271 + $0x30] sm:$0xff] %vm556, %v530
      %564 = vst.msk [vmem:[%s271 + $0x38] sm:$0xff] %vm556, %v531
      %565 = vst.msk [vmem:[%s271 + $0x40] sm:$0xff] %vm556, %v532
      %566 = vst.msk [vmem:[%s271 + $0x48] sm:$0xff] %vm556, %v533
      %567 = vst.msk [vmem:[%s271 + $0x50] sm:$0xff] %vm556, %v534
      %568 = vst.msk [vmem:[%s271 + $0x58] sm:$0xff] %vm556, %v535
      %569 = vst.msk [vmem:[%s271 + $0x60] sm:$0xff] %vm556, %v536
      %570 = vst.msk [vmem:[%s271 + $0x68] sm:$0xff] %vm556, %v537
      %571 = vst.msk [vmem:[%s271 + $0x70] sm:$0xff] %vm556, %v538
      %572 = vst.msk [vmem:[%s271 + $0x78] sm:$0xff] %vm556, %v539
      %573 = vst.msk [vmem:[%s271 + $0x80] sm:$0xff] %vm556, %v540
      %574 = vst.msk [vmem:[%s271 + $0x88] sm:$0xff] %vm556, %v541
      %575 = vst.msk [vmem:[%s271 + $0x90] sm:$0xff] %vm556, %v542
      %576 = vst.msk [vmem:[%s271 + $0x98] sm:$0xff] %vm556, %v543
      %577 = vst.msk [vmem:[%s271 + $0xa0] sm:$0xff] %vm556, %v544
      %578 = vst.msk [vmem:[%s271 + $0xa8] sm:$0xff] %vm556, %v545
      %579 = vst.msk [vmem:[%s271 + $0xb0] sm:$0xff] %vm556, %v546
      %580 = vst.msk [vmem:[%s271 + $0xb8] sm:$0xff] %vm556, %v547
      %581 = vst.msk [vmem:[%s271 + $0xc0] sm:$0xff] %vm556, %v548
      %582 = vst.msk [vmem:[%s271 + $0xc8] sm:$0xff] %vm556, %v549
      %583 = vst.msk [vmem:[%s271 + $0xd0] sm:$0xff] %vm556, %v550
      %584 = vst.msk [vmem:[%s271 + $0xd8] sm:$0xff] %vm556, %v551
      %585 = vst.msk [vmem:[%s271 + $0xe0] sm:$0xff] %vm556, %v552
      %586 = vst.msk [vmem:[%s271 + $0xe8] sm:$0xff] %vm556, %v553
      %587 = vst.msk [vmem:[%s271 + $0xf0] sm:$0xff] %vm556, %v554
      %588 = vst.msk [vmem:[%s271 + $0xf8] sm:$0xff] %vm556, %v555
      %p589 = scmp.lt.s32.totalorder %s17, 1
      %s590 = scalar_select %p589, %s17, 1
      %s591 = smul.addr %s590, 32
      %s592 = smul.addr %s591, 8
      %s593 = scalar_lea.vmem %s6, %s592
      // Predicated region
      $region45: #{basic_block_forward.5} parent=43 // pred_check
        %p594 = pneg %p171
      $region46: #{basic_block_forward.5} parent=43 // pred_check_branch
        %596 = sbr.rel (%p594) target = $region48
      $region47: #{basic_block_forward.5} parent=43 // pred_region
        _
      $region48: #{basic_block_forward.5} parent=43 // pred_fallthru
        _
    $region44: #{basic_block_forward.5} parent=5 // pred_fallthru
      _
    %p597 = scmp.le.s32.totalorder 2, %s12
    // Predicated region
    $region49: #{basic_block_forward.5} parent=5 // pred_check
      %p598 = pneg %p597
    $region50: #{basic_block_forward.5} parent=5 // pred_check_branch
      %600 = sbr.rel (%p598) target = $region52
    $region51: #{basic_block_forward.5} parent=5 // pred_region
      %s601 = ssub.s32 %s12, 2
      // Predicated region
      $region53: #{basic_block_forward.5} parent=51 // pred_check
        %p602 = pneg %p177
      $region54: #{basic_block_forward.5} parent=51 // pred_check_branch
        %604 = sbr.rel (%p602) target = $region56
      $region55: #{basic_block_forward.5} parent=51 // pred_region
        %p605 = scmp.lt.s32.totalorder %s18, 1
        %s606 = scalar_select %p605, %s18, 1
        %s607 = smul.addr %s606, 32
        %s608 = smul.addr %s607, 8
        %s609 = scalar_lea.vmem %s6, %s608
      $region56: #{basic_block_forward.5} parent=51 // pred_fallthru
        _
    $region52: #{basic_block_forward.5} parent=5 // pred_fallthru
      _
  $region6: #{basic_block_forward.5} parent=0 // loop_footer
    %s16 = sadd.s32 1, %s12
  $region7: #{basic_block_forward.5} parent=0 // loop_footer_branch
    %11 = sbr.rel target = $region3
  $region8: #{basic_block_forward.5} parent=0 // loop_exit
    _

// kernel: basic_block_forward.3
$region0: #{basic_block_forward.3}
  #allocation0 [shape = 'u32[]', space=smem, size = 0x4, offset = 0x4, fixed_abs, tag = 'smem constant byte address 0x4 - core index']
  #allocation1 [shape = 'u32[144,128]{1,0:T(1,128)}', space=vmem, size = 0x12000, scoped, tag = 'internal scratch']
  %s0 = inlined_call_operand.vmem [shape: bf16[2,18,18,4], index: 0, kind: input, shape index: {}]
  %s1 = inlined_call_operand.vmem [shape: bf16[36,8], index: 1, kind: input, shape index: {}]
  %s2 = inlined_call_operand.vmem [shape: bf16[4,8], index: 2, kind: input, shape index: {}]
  %s3 = inlined_call_operand.vmem [shape: f32[2,256,8], index: 3, kind: output, shape index: {0}]
  %s4 = inlined_call_operand.vmem [shape: f32[2,2,8], index: 4, kind: output, shape index: {1}]
  %s5 = inlined_call_operand.vmem [shape: f32[2,256,8], index: 5, kind: output, shape index: {2}]
  %s6 = inlined_call_operand.vmem [shape: f32[2,2,8], index: 6, kind: output, shape index: {3}]
  %7 = xla_tuple %s3, %s4, %s5, %s6
  %s8 = sld [smem:[#allocation0]]
  $region69: #{basic_block_forward.3} parent=0
    _
  %s10 = ssub.s32 1, %s8
  %s11 = scalar_select 0, %s10, %s8
  loop: start=0, step=1, limit=4
  $region2: #{basic_block_forward.3} parent=0 // loop_pre_header
    _
  $region3: #{basic_block_forward.3} parent=0 // loop_header
    %s13 = sphi 0, %s17
    %p14 = scmp.ge.s32.totalorder %s13, 4
    %s23 = sphi 0, %s25
    %s26 = sphi 0, %s23
    %s27 = sphi 0, %s26
    %s43 = sphi 0, %s27
    %s47 = sphi 0, %s47
    %s49 = sphi 0, %s47
    %s50 = sphi 0, %s49
    %s64 = sphi 0, %s50
    %s68 = sphi 0, %s68
    %s70 = sphi 0, %s68
    %s71 = sphi 0, %s70
    %s85 = sphi 0, %s71
    %s91 = sphi 0, %s93
    %s94 = sphi 0, %s91
    %s95 = sphi 0, %s94
    %s111 = sphi 0, %s95
    %s117 = sphi 0, %s119
    %s120 = sphi 0, %s117
    %s121 = sphi 0, %s120
    %s137 = sphi 0, %s121
    %s143 = sphi 0, %s145
    %s146 = sphi 0, %s143
    %s147 = sphi 0, %s146
    %s163 = sphi 0, %s147
    %s169 = sphi 0, %s171
    %s172 = sphi 0, %s169
    %s173 = sphi 0, %s172
    %s189 = sphi 0, %s173
  $region4: #{basic_block_forward.3} parent=0 // loop_header_branch
    %16 = sbr.rel (%p14) target = $region8
  $region5: #{basic_block_forward.3} parent=0 // loop_body
    %s18 = ssub.s32 %s13, 1
    %s19 = ssub.s32 %s13, 2
    %s20 = sadd.s32 %s13, 1
    %s21 = ssub.s32 %s13, %s20
    %p22 = scmp.eq.s32.totalorder %s21, 0
    %s24 = sadd.s32 %s23, 1
    %s25 = scalar_select %p22, %s23, %s24
    %p28 = pneg %p22
    %p29 = scmp.eq.s32.totalorder %s13, 1
    %p30 = por %p28, %p29
    %p31 = scmp.ne.s32.totalorder %s23, %s26
    %p32 = scmp.eq.s32.totalorder %s13, 0
    %p33 = por %p31, %p32
    %p34 = scmp.ne.s32.totalorder %s23, %s26
    %p35 = scmp.eq.s32.totalorder %s18, 1
    %p36 = por %p34, %p35
    %p37 = scmp.ne.s32.totalorder %s26, %s27
    %p38 = scmp.eq.s32.totalorder %s18, 0
    %p39 = por %p37, %p38
    %p40 = scmp.ne.s32.totalorder %s26, %s27
    %p41 = scmp.eq.s32.totalorder %s19, 1
    %p42 = por %p40, %p41
    %p44 = scmp.ne.s32.totalorder %s27, %s43
    %p45 = scmp.eq.s32.totalorder %s19, 0
    %p46 = por %p44, %p45
    %s48 = sadd.s32 %s47, 1
    %p51 = scmp.eq.s32.totalorder %s13, 1
    %p52 = scmp.ne.s32.totalorder %s47, %s49
    %p53 = scmp.eq.s32.totalorder %s13, 0
    %p54 = por %p52, %p53
    %p55 = scmp.ne.s32.totalorder %s47, %s49
    %p56 = scmp.eq.s32.totalorder %s18, 1
    %p57 = por %p55, %p56
    %p58 = scmp.ne.s32.totalorder %s49, %s50
    %p59 = scmp.eq.s32.totalorder %s18, 0
    %p60 = por %p58, %p59
    %p61 = scmp.ne.s32.totalorder %s49, %s50
    %p62 = scmp.eq.s32.totalorder %s19, 1
    %p63 = por %p61, %p62
    %p65 = scmp.ne.s32.totalorder %s50, %s64
    %p66 = scmp.eq.s32.totalorder %s19, 0
    %p67 = por %p65, %p66
    %s69 = sadd.s32 %s68, 1
    %p72 = scmp.eq.s32.totalorder %s13, 1
    %p73 = scmp.ne.s32.totalorder %s68, %s70
    %p74 = scmp.eq.s32.totalorder %s13, 0
    %p75 = por %p73, %p74
    %p76 = scmp.ne.s32.totalorder %s68, %s70
    %p77 = scmp.eq.s32.totalorder %s18, 1
    %p78 = por %p76, %p77
    %p79 = scmp.ne.s32.totalorder %s70, %s71
    %p80 = scmp.eq.s32.totalorder %s18, 0
    %p81 = por %p79, %p80
    %p82 = scmp.ne.s32.totalorder %s70, %s71
    %p83 = scmp.eq.s32.totalorder %s19, 1
    %p84 = por %p82, %p83
    %p86 = scmp.ne.s32.totalorder %s71, %s85
    %p87 = scmp.eq.s32.totalorder %s19, 0
    %p88 = por %p86, %p87
    %s89 = ssub.s32 %s13, %s20
    %p90 = scmp.eq.s32.totalorder %s89, 0
    %s92 = sadd.s32 %s91, 1
    %s93 = scalar_select %p90, %s91, %s92
    %p96 = pneg %p90
    %p97 = scmp.eq.s32.totalorder %s13, 1
    %p98 = por %p96, %p97
    %p99 = scmp.ne.s32.totalorder %s91, %s94
    %p100 = scmp.eq.s32.totalorder %s13, 0
    %p101 = por %p99, %p100
    %p102 = scmp.ne.s32.totalorder %s91, %s94
    %p103 = scmp.eq.s32.totalorder %s18, 1
    %p104 = por %p102, %p103
    %p105 = scmp.ne.s32.totalorder %s94, %s95
    %p106 = scmp.eq.s32.totalorder %s18, 0
    %p107 = por %p105, %p106
    %p108 = scmp.ne.s32.totalorder %s94, %s95
    %p109 = scmp.eq.s32.totalorder %s19, 1
    %p110 = por %p108, %p109
    %p112 = scmp.ne.s32.totalorder %s95, %s111
    %p113 = scmp.eq.s32.totalorder %s19, 0
    %p114 = por %p112, %p113
    %s115 = ssub.s32 %s13, %s20
    %p116 = scmp.eq.s32.totalorder %s115, 0
    %s118 = sadd.s32 %s117, 1
    %s119 = scalar_select %p116, %s117, %s118
    %p122 = pneg %p116
    %p123 = scmp.eq.s32.totalorder %s13, 1
    %p124 = por %p122, %p123
    %p125 = scmp.ne.s32.totalorder %s117, %s120
    %p126 = scmp.eq.s32.totalorder %s13, 0
    %p127 = por %p125, %p126
    %p128 = scmp.ne.s32.totalorder %s117, %s120
    %p129 = scmp.eq.s32.totalorder %s18, 1
    %p130 = por %p128, %p129
    %p131 = scmp.ne.s32.totalorder %s120, %s121
    %p132 = scmp.eq.s32.totalorder %s18, 0
    %p133 = por %p131, %p132
    %p134 = scmp.ne.s32.totalorder %s120, %s121
    %p135 = scmp.eq.s32.totalorder %s19, 1
    %p136 = por %p134, %p135
    %p138 = scmp.ne.s32.totalorder %s121, %s137
    %p139 = scmp.eq.s32.totalorder %s19, 0
    %p140 = por %p138, %p139
    %s141 = ssub.s32 %s13, %s20
    %p142 = scmp.eq.s32.totalorder %s141, 0
    %s144 = sadd.s32 %s143, 1
    %s145 = scalar_select %p142, %s143, %s144
    %p148 = pneg %p142
    %p149 = scmp.eq.s32.totalorder %s13, 1
    %p150 = por %p148, %p149
    %p151 = scmp.ne.s32.totalorder %s143, %s146
    %p152 = scmp.eq.s32.totalorder %s13, 0
    %p153 = por %p151, %p152
    %p154 = scmp.ne.s32.totalorder %s143, %s146
    %p155 = scmp.eq.s32.totalorder %s18, 1
    %p156 = por %p154, %p155
    %p157 = scmp.ne.s32.totalorder %s146, %s147
    %p158 = scmp.eq.s32.totalorder %s18, 0
    %p159 = por %p157, %p158
    %p160 = scmp.ne.s32.totalorder %s146, %s147
    %p161 = scmp.eq.s32.totalorder %s19, 1
    %p162 = por %p160, %p161
    %p164 = scmp.ne.s32.totalorder %s147, %s163
    %p165 = scmp.eq.s32.totalorder %s19, 0
    %p166 = por %p164, %p165
    %s167 = ssub.s32 %s13, %s20
    %p168 = scmp.eq.s32.totalorder %s167, 0
    %s170 = sadd.s32 %s169, 1
    %s171 = scalar_select %p168, %s169, %s170
    %p174 = pneg %p168
    %p175 = scmp.eq.s32.totalorder %s13, 1
    %p176 = por %p174, %p175
    %p177 = scmp.ne.s32.totalorder %s169, %s172
    %p178 = scmp.eq.s32.totalorder %s13, 0
    %p179 = por %p177, %p178
    %p180 = scmp.ne.s32.totalorder %s169, %s172
    %p181 = scmp.eq.s32.totalorder %s18, 1
    %p182 = por %p180, %p181
    %p183 = scmp.ne.s32.totalorder %s172, %s173
    %p184 = scmp.eq.s32.totalorder %s18, 0
    %p185 = por %p183, %p184
    %p186 = scmp.ne.s32.totalorder %s172, %s173
    %p187 = scmp.eq.s32.totalorder %s19, 1
    %p188 = por %p186, %p187
    %p190 = scmp.ne.s32.totalorder %s173, %s189
    %p191 = scmp.eq.s32.totalorder %s19, 0
    %p192 = por %p190, %p191
    %p193 = scmp.le.s32.totalorder 1, %s13
    %p194 = scmp.lt.s32.totalorder %s13, 3
    %p195 = pnand %p193, %p194
    %p196 = pneg %p195
    // Predicated region
    $region9: #{basic_block_forward.3} parent=5 // pred_check
      _
    $region10: #{basic_block_forward.3} parent=5 // pred_check_branch
      %198 = sbr.rel (%p195) target = $region12
    $region11: #{basic_block_forward.3} parent=5 // pred_region
      %s199 = ssub.s32 %s13, 1
      // Predicated region
      $region13: #{basic_block_forward.3} parent=11 // pred_check
        %p200 = pneg %p60
      $region14: #{basic_block_forward.3} parent=11 // pred_check_branch
        %202 = sbr.rel (%p200) target = $region16
      $region15: #{basic_block_forward.3} parent=11 // pred_region
        _
      $region16: #{basic_block_forward.3} parent=11 // pred_fallthru
        _
      // Predicated region
      $region17: #{basic_block_forward.3} parent=11 // pred_check
        %p203 = pneg %p81
      $region18: #{basic_block_forward.3} parent=11 // pred_check_branch
        %205 = sbr.rel (%p203) target = $region20
      $region19: #{basic_block_forward.3} parent=11 // pred_region
        _
      $region20: #{basic_block_forward.3} parent=11 // pred_fallthru
        _
    $region12: #{basic_block_forward.3} parent=5 // pred_fallthru
      _
    %p206 = scmp.lt.s32.totalorder %s13, 2
    // Predicated region
    $region21: #{basic_block_forward.3} parent=5 // pred_check
      %p207 = pneg %p206
    $region22: #{basic_block_forward.3} parent=5 // pred_check_branch
      %209 = sbr.rel (%p207) target = $region24
    $region23: #{basic_block_forward.3} parent=5 // pred_region
      // Predicated region
      $region25: #{basic_block_forward.3} parent=23 // pred_check
        %p210 = pneg %p33
      $region26: #{basic_block_forward.3} parent=23 // pred_check_branch
        %212 = sbr.rel (%p210) target = $region28
      $region27: #{basic_block_forward.3} parent=23 // pred_region
        %p213 = scmp.lt.s32.totalorder %s13, 1
        %s214 = scalar_select %p213, %s13, 1
        %s215 = smul.addr %s214, 54
        %s216 = smul.addr %s215, 4
        %s217 = scalar_lea.vmem %s0, %s216
      $region28: #{basic_block_forward.3} parent=23 // pred_fallthru
        _
    $region24: #{basic_block_forward.3} parent=5 // pred_fallthru
      _
    %p218 = scmp.le.s32.totalorder 1, %s13
    %p219 = scmp.lt.s32.totalorder %s13, 3
    %p220 = pnand %p218, %p219
    %p221 = pneg %p220
    // Predicated region
    $region29: #{basic_block_forward.3} parent=5 // pred_check
      _
    $region30: #{basic_block_forward.3} parent=5 // pred_check_branch
      %223 = sbr.rel (%p220) target = $region32
    $region31: #{basic_block_forward.3} parent=5 // pred_region
      %s224 = ssub.s32 %s13, 1
      %p225 = scmp.lt.s32.totalorder %s18, 1
      %s226 = scalar_select %p225, %s18, 1
      %s227 = smul.addr %s226, 54
      %s228 = smul.addr %s227, 4
      %s229 = scalar_lea.vmem %s0, %s228
      %p230 = pneg %p39
      %p231 = pneg %p36
      %p232 = pneg %p60
      %p233 = pneg %p57
      %p234 = pneg %p81
      %p235 = pneg %p78
      %p236 = pneg %p107
      %p237 = pneg %p104
      %p238 = scmp.lt.s32.totalorder %s18, 1
      %s239 = scalar_select %p238, %s18, 1
      %s240 = smul.addr %s239, 32
      %s241 = smul.addr %s240, 8
      %s242 = scalar_lea.vmem %s3, %s241
      %p243 = pneg %p133
      %p244 = pneg %p130
      %p245 = scmp.lt.s32.totalorder %s18, 1
      %s246 = scalar_select %p245, %s18, 1
      %s247 = smul.addr %s246, 2
      %s248 = scalar_lea.vmem %s4, %s247
      %p249 = pneg %p159
      %p250 = pneg %p156
      %p251 = scmp.lt.s32.totalorder %s18, 1
      %s252 = scalar_select %p251, %s18, 1
      %s253 = smul.addr %s252, 32
      %s254 = smul.addr %s253, 8
      %s255 = scalar_lea.vmem %s5, %s254
      %p256 = pneg %p185
      %p257 = pneg %p182
      %p258 = scmp.lt.s32.totalorder %s18, 1
      %s259 = scalar_select %p258, %s18, 1
      %s260 = smul.addr %s259, 2
      %s261 = scalar_lea.vmem %s6, %s260
      %p262 = scmp.lt.s32.totalorder %s18, 1
      %s263 = scalar_select %p262, %s18, 1
      %s264 = smul.addr %s263, 54
      %s265 = smul.addr %s264, 4
      %s266 = scalar_lea.vmem %s0, %s265
      %p267 = scmp.lt.s32.totalorder %s18, 1
      %s268 = scalar_select %p267, %s18, 1
      %s269 = smul.addr %s268, 32
      %s270 = smul.addr %s269, 8
      %s271 = scalar_lea.vmem %s3, %s270
      %p272 = scmp.lt.s32.totalorder %s18, 1
      %s273 = scalar_select %p272, %s18, 1
      %s274 = smul.addr %s273, 2
      %s275 = scalar_lea.vmem %s4, %s274
      %p276 = scmp.lt.s32.totalorder %s18, 1
      %s277 = scalar_select %p276, %s18, 1
      %s278 = smul.addr %s277, 32
      %s279 = smul.addr %s278, 8
      %s280 = scalar_lea.vmem %s5, %s279
      %p281 = scmp.lt.s32.totalorder %s18, 1
      %s282 = scalar_select %p281, %s18, 1
      %s283 = smul.addr %s282, 2
      %s284 = scalar_lea.vmem %s6, %s283
      %v286 = vld [vmem:[%s266] sm:$0xf]
      %v287 = vld [vmem:[%s266 + $0x4] sm:$0xf]
      %v288 = vld [vmem:[%s266 + $0xc] sm:$0xf]
      %v289 = vld [vmem:[%s266 + $0x10] sm:$0xf]
      %v290 = vld [vmem:[%s266 + $0x18] sm:$0xf]
      %v291 = vld [vmem:[%s266 + $0x1c] sm:$0xf]
      %v292 = vld [vmem:[%s266 + $0x24] sm:$0xf]
      %v293 = vld [vmem:[%s266 + $0x28] sm:$0xf]
      %v294 = vld [vmem:[%s266 + $0x30] sm:$0xf]
      %v295 = vld [vmem:[%s266 + $0x34] sm:$0xf]
      %v296 = vld [vmem:[%s266 + $0x3c] sm:$0xf]
      %v297 = vld [vmem:[%s266 + $0x40] sm:$0xf]
      %v298 = vld [vmem:[%s266 + $0x48] sm:$0xf]
      %v299 = vld [vmem:[%s266 + $0x4c] sm:$0xf]
      %v300 = vld [vmem:[%s266 + $0x54] sm:$0xf]
      %v301 = vld [vmem:[%s266 + $0x58] sm:$0xf]
      %v302 = vld [vmem:[%s266 + $0x60] sm:$0xf]
      %v303 = vld [vmem:[%s266 + $0x64] sm:$0xf]
      %v304 = vld [vmem:[%s266 + $0x6c] sm:$0xf]
      %v305 = vld [vmem:[%s266 + $0x70] sm:$0xf]
      %v306 = vld [vmem:[%s266 + $0x78] sm:$0xf]
      %v307 = vld [vmem:[%s266 + $0x7c] sm:$0xf]
      %v308 = vld [vmem:[%s266 + $0x84] sm:$0xf]
      %v309 = vld [vmem:[%s266 + $0x88] sm:$0xf]
      %v310 = vld [vmem:[%s266 + $0x90] sm:$0xf]
      %v311 = vld [vmem:[%s266 + $0x94] sm:$0xf]
      %v312 = vld [vmem:[%s266 + $0x9c] sm:$0xf]
      %v313 = vld [vmem:[%s266 + $0xa0] sm:$0xf]
      %v314 = vld [vmem:[%s266 + $0xa8] sm:$0xf]
      %v315 = vld [vmem:[%s266 + $0xac] sm:$0xf]
      %v316 = vld [vmem:[%s266 + $0xb4] sm:$0xf]
      %v317 = vld [vmem:[%s266 + $0xb8] sm:$0xf]
      %v318 = vld [vmem:[%s266 + $0x8] sm:$0x1]
      %v319 = vld [vmem:[%s266 + $0x14] sm:$0x1]
      %v320 = vld [vmem:[%s266 + $0x20] sm:$0x1]
      %v321 = vld [vmem:[%s266 + $0x2c] sm:$0x1]
      %v322 = vld [vmem:[%s266 + $0x38] sm:$0x1]
      %v323 = vld [vmem:[%s266 + $0x44] sm:$0x1]
      %v324 = vld [vmem:[%s266 + $0x50] sm:$0x1]
      %v325 = vld [vmem:[%s266 + $0x5c] sm:$0x1]
      %v326 = vld [vmem:[%s266 + $0x68] sm:$0x1]
      %v327 = vld [vmem:[%s266 + $0x74] sm:$0x1]
      %v328 = vld [vmem:[%s266 + $0x80] sm:$0x1]
      %v329 = vld [vmem:[%s266 + $0x8c] sm:$0x1]
      %v330 = vld [vmem:[%s266 + $0x98] sm:$0x1]
      %v331 = vld [vmem:[%s266 + $0xa4] sm:$0x1]
      %v332 = vld [vmem:[%s266 + $0xb0] sm:$0x1]
      %v333 = vld [vmem:[%s266 + $0xbc] sm:$0x1]
      %vm334 = vsmask.f32 3328
      %vm335 = vsmask.f32 7440
      %vm336 = vmor %vm334, %vm335
      %v338 = vshrl.u32 %v286, 16
      %v340 = vrot.slane %v338, 4
      %v341 = vshll.u32 %v286, 16
      %v343 = vrot.slane %v341, 5
      %v344 = vor.u32 %v340, %v343
      %v345 = vrot.slane %v344, 4
      %v347 = vshll.u32 %v287, 16
      %v349 = vrot.slane %v347, 5
      %v350 = vsel %vm336, %v345, %v349
      %v351 = vshrl.u32 %v287, 16
      %v353 = vrot.slane %v351, 4
      %v354 = vor.u32 %v353, %v349
      %v355 = vrot.slane %v354, 4
      %v357 = vshll.u32 %v318, 16
      %v359 = vrot.slane %v357, 5
      %v360 = vsel %vm336, %v355, %v359
      %v362 = vshrl.u32 %v288, 16
      %v364 = vrot.slane %v362, 4
      %v365 = vshll.u32 %v288, 16
      %v367 = vrot.slane %v365, 5
      %v368 = vor.u32 %v364, %v367
      %v369 = vrot.slane %v368, 4
      %v371 = vshll.u32 %v289, 16
      %v373 = vrot.slane %v371, 5
      %v374 = vsel %vm336, %v369, %v373
      %v375 = vshrl.u32 %v289, 16
      %v377 = vrot.slane %v375, 4
      %v378 = vor.u32 %v377, %v373
      %v379 = vrot.slane %v378, 4
      %v381 = vshll.u32 %v319, 16
      %v383 = vrot.slane %v381, 5
      %v384 = vsel %vm336, %v379, %v383
      %v386 = vshrl.u32 %v290, 16
      %v388 = vrot.slane %v386, 4
      %v389 = vshll.u32 %v290, 16
      %v391 = vrot.slane %v389, 5
      %v392 = vor.u32 %v388, %v391
      %v393 = vrot.slane %v392, 4
      %v395 = vshll.u32 %v291, 16
      %v397 = vrot.slane %v395, 5
      %v398 = vsel %vm336, %v393, %v397
      %v399 = vshrl.u32 %v291, 16
      %v401 = vrot.slane %v399, 4
      %v402 = vor.u32 %v401, %v397
      %v403 = vrot.slane %v402, 4
      %v405 = vshll.u32 %v320, 16
      %v407 = vrot.slane %v405, 5
      %v408 = vsel %vm336, %v403, %v407
      %v410 = vshrl.u32 %v292, 16
      %v412 = vrot.slane %v410, 4
      %v413 = vshll.u32 %v292, 16
      %v415 = vrot.slane %v413, 5
      %v416 = vor.u32 %v412, %v415
      %v417 = vrot.slane %v416, 4
      %v419 = vshll.u32 %v293, 16
      %v421 = vrot.slane %v419, 5
      %v422 = vsel %vm336, %v417, %v421
      %v423 = vshrl.u32 %v293, 16
      %v425 = vrot.slane %v423, 4
      %v426 = vor.u32 %v425, %v421
      %v427 = vrot.slane %v426, 4
      %v429 = vshll.u32 %v321, 16
      %v431 = vrot.slane %v429, 5
      %v432 = vsel %vm336, %v427, %v431
      %v434 = vshrl.u32 %v294, 16
      %v436 = vrot.slane %v434, 4
      %v437 = vshll.u32 %v294, 16
      %v439 = vrot.slane %v437, 5
      %v440 = vor.u32 %v436, %v439
      %v441 = vrot.slane %v440, 4
      %v443 = vshll.u32 %v295, 16
      %v445 = vrot.slane %v443, 5
      %v446 = vsel %vm336, %v441, %v445
      %v447 = vshrl.u32 %v295, 16
      %v449 = vrot.slane %v447, 4
      %v450 = vor.u32 %v449, %v445
      %v451 = vrot.slane %v450, 4
      %v453 = vshll.u32 %v322, 16
      %v455 = vrot.slane %v453, 5
      %v456 = vsel %vm336, %v451, %v455
      %v458 = vshrl.u32 %v296, 16
      %v460 = vrot.slane %v458, 4
      %v461 = vshll.u32 %v296, 16
      %v463 = vrot.slane %v461, 5
      %v464 = vor.u32 %v460, %v463
      %v465 = vrot.slane %v464, 4
      %v467 = vshll.u32 %v297, 16
      %v469 = vrot.slane %v467, 5
      %v470 = vsel %vm336, %v465, %v469
      %v471 = vshrl.u32 %v297, 16
      %v473 = vrot.slane %v471, 4
      %v474 = vor.u32 %v473, %v469
      %v475 = vrot.slane %v474, 4
      %v477 = vshll.u32 %v323, 16
      %v479 = vrot.slane %v477, 5
      %v480 = vsel %vm336, %v475, %v479
      %v482 = vshrl.u32 %v298, 16
      %v484 = vrot.slane %v482, 4
      %v485 = vshll.u32 %v298, 16
      %v487 = vrot.slane %v485, 5
      %v488 = vor.u32 %v484, %v487
      %v489 = vrot.slane %v488, 4
      %v491 = vshll.u32 %v299, 16
      %v493 = vrot.slane %v491, 5
      %v494 = vsel %vm336, %v489, %v493
      %v495 = vshrl.u32 %v299, 16
      %v497 = vrot.slane %v495, 4
      %v498 = vor.u32 %v497, %v493
      %v499 = vrot.slane %v498, 4
      %v501 = vshll.u32 %v324, 16
      %v503 = vrot.slane %v501, 5
      %v504 = vsel %vm336, %v499, %v503
      %v506 = vshrl.u32 %v300, 16
      %v508 = vrot.slane %v506, 4
      %v509 = vshll.u32 %v300, 16
      %v511 = vrot.slane %v509, 5
      %v512 = vor.u32 %v508, %v511
      %v513 = vrot.slane %v512, 4
      %v515 = vshll.u32 %v301, 16
      %v517 = vrot.slane %v515, 5
      %v518 = vsel %vm336, %v513, %v517
      %v519 = vshrl.u32 %v301, 16
      %v521 = vrot.slane %v519, 4
      %v522 = vor.u32 %v521, %v517
      %v523 = vrot.slane %v522, 4
      %v525 = vshll.u32 %v325, 16
      %v527 = vrot.slane %v525, 5
      %v528 = vsel %vm336, %v523, %v527
      %v530 = vshrl.u32 %v302, 16
      %v532 = vrot.slane %v530, 4
      %v533 = vshll.u32 %v302, 16
      %v535 = vrot.slane %v533, 5
      %v536 = vor.u32 %v532, %v535
      %v537 = vrot.slane %v536, 4
      %v539 = vshll.u32 %v303, 16
      %v541 = vrot.slane %v539, 5
      %v542 = vsel %vm336, %v537, %v541
      %v543 = vshrl.u32 %v303, 16
      %v545 = vrot.slane %v543, 4
      %v546 = vor.u32 %v545, %v541
      %v547 = vrot.slane %v546, 4
      %v549 = vshll.u32 %v326, 16
      %v551 = vrot.slane %v549, 5
      %v552 = vsel %vm336, %v547, %v551
      %v554 = vshrl.u32 %v304, 16
      %v556 = vrot.slane %v554, 4
      %v557 = vshll.u32 %v304, 16
      %v559 = vrot.slane %v557, 5
      %v560 = vor.u32 %v556, %v559
      %v561 = vrot.slane %v560, 4
      %v563 = vshll.u32 %v305, 16
      %v565 = vrot.slane %v563, 5
      %v566 = vsel %vm336, %v561, %v565
      %v567 = vshrl.u32 %v305, 16
      %v569 = vrot.slane %v567, 4
      %v570 = vor.u32 %v569, %v565
      %v571 = vrot.slane %v570, 4
      %v573 = vshll.u32 %v327, 16
      %v575 = vrot.slane %v573, 5
      %v576 = vsel %vm336, %v571, %v575
      %v578 = vshrl.u32 %v306, 16
      %v580 = vrot.slane %v578, 4
      %v581 = vshll.u32 %v306, 16
      %v583 = vrot.slane %v581, 5
      %v584 = vor.u32 %v580, %v583
      %v585 = vrot.slane %v584, 4
      %v587 = vshll.u32 %v307, 16
      %v589 = vrot.slane %v587, 5
      %v590 = vsel %vm336, %v585, %v589
      %v591 = vshrl.u32 %v307, 16
      %v593 = vrot.slane %v591, 4
      %v594 = vor.u32 %v593, %v589
      %v595 = vrot.slane %v594, 4
      %v597 = vshll.u32 %v328, 16
      %v599 = vrot.slane %v597, 5
      %v600 = vsel %vm336, %v595, %v599
      %v602 = vshrl.u32 %v308, 16
      %v604 = vrot.slane %v602, 4
      %v605 = vshll.u32 %v308, 16
      %v607 = vrot.slane %v605, 5
      %v608 = vor.u32 %v604, %v607
      %v609 = vrot.slane %v608, 4
      %v611 = vshll.u32 %v309, 16
      %v613 = vrot.slane %v611, 5
      %v614 = vsel %vm336, %v609, %v613
      %v615 = vshrl.u32 %v309, 16
      %v617 = vrot.slane %v615, 4
      %v618 = vor.u32 %v617, %v613
      %v619 = vrot.slane %v618, 4
      %v621 = vshll.u32 %v329, 16
      %v623 = vrot.slane %v621, 5
      %v624 = vsel %vm336, %v619, %v623
      %v626 = vshrl.u32 %v310, 16
      %v628 = vrot.slane %v626, 4
      %v629 = vshll.u32 %v310, 16
      %v631 = vrot.slane %v629, 5
      %v632 = vor.u32 %v628, %v631
      %v633 = vrot.slane %v632, 4
      %v635 = vshll.u32 %v311, 16
      %v637 = vrot.slane %v635, 5
      %v638 = vsel %vm336, %v633, %v637
      %v639 = vshrl.u32 %v311, 16
      %v641 = vrot.slane %v639, 4
      %v642 = vor.u32 %v641, %v637
      %v643 = vrot.slane %v642, 4
      %v645 = vshll.u32 %v330, 16
      %v647 = vrot.slane %v645, 5
      %v648 = vsel %vm336, %v643, %v647
      %v650 = vshrl.u32 %v312, 16
      %v652 = vrot.slane %v650, 4
      %v653 = vshll.u32 %v312, 16
      %v655 = vrot.slane %v653, 5
      %v656 = vor.u32 %v652, %v655
      %v657 = vrot.slane %v656, 4
      %v659 = vshll.u32 %v313, 16
      %v661 = vrot.slane %v659, 5
      %v662 = vsel %vm336, %v657, %v661
      %v663 = vshrl.u32 %v313, 16
      %v665 = vrot.slane %v663, 4
      %v666 = vor.u32 %v665, %v661
      %v667 = vrot.slane %v666, 4
      %v669 = vshll.u32 %v331, 16
      %v671 = vrot.slane %v669, 5
      %v672 = vsel %vm336, %v667, %v671
      %v674 = vshrl.u32 %v314, 16
      %v676 = vrot.slane %v674, 4
      %v677 = vshll.u32 %v314, 16
      %v679 = vrot.slane %v677, 5
      %v680 = vor.u32 %v676, %v679
      %v681 = vrot.slane %v680, 4
      %v683 = vshll.u32 %v315, 16
      %v685 = vrot.slane %v683, 5
      %v686 = vsel %vm336, %v681, %v685
      %v687 = vshrl.u32 %v315, 16
      %v689 = vrot.slane %v687, 4
      %v690 = vor.u32 %v689, %v685
      %v691 = vrot.slane %v690, 4
      %v693 = vshll.u32 %v332, 16
      %v695 = vrot.slane %v693, 5
      %v696 = vsel %vm336, %v691, %v695
      %v698 = vshrl.u32 %v316, 16
      %v700 = vrot.slane %v698, 4
      %v701 = vshll.u32 %v316, 16
      %v703 = vrot.slane %v701, 5
      %v704 = vor.u32 %v700, %v703
      %v705 = vrot.slane %v704, 4
      %v707 = vshll.u32 %v317, 16
      %v709 = vrot.slane %v707, 5
      %v710 = vsel %vm336, %v705, %v709
      %v711 = vshrl.u32 %v317, 16
      %v713 = vrot.slane %v711, 4
      %v714 = vor.u32 %v713, %v709
      %v715 = vrot.slane %v714, 4
      %v717 = vshll.u32 %v333, 16
      %v719 = vrot.slane %v717, 5
      %v720 = vsel %vm336, %v715, %v719
      %v721 = vld [vmem:[%s266] sm:$0xe]
      %v722 = vld [vmem:[%s266 + $0xc] sm:$0xe]
      %v723 = vld [vmem:[%s266 + $0x18] sm:$0xe]
      %v724 = vld [vmem:[%s266 + $0x24] sm:$0xe]
      %v725 = vld [vmem:[%s266 + $0x30] sm:$0xe]
      %v726 = vld [vmem:[%s266 + $0x3c] sm:$0xe]
      %v727 = vld [vmem:[%s266 + $0x48] sm:$0xe]
      %v728 = vld [vmem:[%s266 + $0x54] sm:$0xe]
      %v729 = vld [vmem:[%s266 + $0x60] sm:$0xe]
      %v730 = vld [vmem:[%s266 + $0x6c] sm:$0xe]
      %v731 = vld [vmem:[%s266 + $0x78] sm:$0xe]
      %v732 = vld [vmem:[%s266 + $0x84] sm:$0xe]
      %v733 = vld [vmem:[%s266 + $0x90] sm:$0xe]
      %v734 = vld [vmem:[%s266 + $0x9c] sm:$0xe]
      %v735 = vld [vmem:[%s266 + $0xa8] sm:$0xe]
      %v736 = vld [vmem:[%s266 + $0xb4] sm:$0xe]
      %vm785 = vcmask 1042432
      %vm786 = vcmask 1046532
      %vm787 = vmor %vm785, %vm786
      %v788 = vrot.slane %v721, 5
      %v789 = vrot.slane %v788, 4
      %v790 = vrot.slane %v287, 5
      %v791 = vsel %vm787, %v789, %v790
      %v792 = vrot.slane %v790, 4
      %v793 = vrot.slane %v318, 5
      %v794 = vsel %vm787, %v792, %v793
      %v795 = vrot.slane %v722, 5
      %v796 = vrot.slane %v795, 4
      %v797 = vrot.slane %v289, 5
      %v798 = vsel %vm787, %v796, %v797
      %v799 = vrot.slane %v797, 4
      %v800 = vrot.slane %v319, 5
      %v801 = vsel %vm787, %v799, %v800
      %v802 = vrot.slane %v723, 5
      %v803 = vrot.slane %v802, 4
      %v804 = vrot.slane %v291, 5
      %v805 = vsel %vm787, %v803, %v804
      %v806 = vrot.slane %v804, 4
      %v807 = vrot.slane %v320, 5
      %v808 = vsel %vm787, %v806, %v807
      %v809 = vrot.slane %v724, 5
      %v810 = vrot.slane %v809, 4
      %v811 = vrot.slane %v293, 5
      %v812 = vsel %vm787, %v810, %v811
      %v813 = vrot.slane %v811, 4
      %v814 = vrot.slane %v321, 5
      %v815 = vsel %vm787, %v813, %v814
      %v816 = vrot.slane %v725, 5
      %v817 = vrot.slane %v816, 4
      %v818 = vrot.slane %v295, 5
      %v819 = vsel %vm787, %v817, %v818
      %v820 = vrot.slane %v818, 4
      %v821 = vrot.slane %v322, 5
      %v822 = vsel %vm787, %v820, %v821
      %v823 = vrot.slane %v726, 5
      %v824 = vrot.slane %v823, 4
      %v825 = vrot.slane %v297, 5
      %v826 = vsel %vm787, %v824, %v825
      %v827 = vrot.slane %v825, 4
      %v828 = vrot.slane %v323, 5
      %v829 = vsel %vm787, %v827, %v828
      %v830 = vrot.slane %v727, 5
      %v831 = vrot.slane %v830, 4
      %v832 = vrot.slane %v299, 5
      %v833 = vsel %vm787, %v831, %v832
      %v834 = vrot.slane %v832, 4
      %v835 = vrot.slane %v324, 5
      %v836 = vsel %vm787, %v834, %v835
      %v837 = vrot.slane %v728, 5
      %v838 = vrot.slane %v837, 4
      %v839 = vrot.slane %v301, 5
      %v840 = vsel %vm787, %v838, %v839
      %v841 = vrot.slane %v839, 4
      %v842 = vrot.slane %v325, 5
      %v843 = vsel %vm787, %v841, %v842
      %v844 = vrot.slane %v729, 5
      %v845 = vrot.slane %v844, 4
      %v846 = vrot.slane %v303, 5
      %v847 = vsel %vm787, %v845, %v846
      %v848 = vrot.slane %v846, 4
      %v849 = vrot.slane %v326, 5
      %v850 = vsel %vm787, %v848, %v849
      %v851 = vrot.slane %v730, 5
      %v852 = vrot.slane %v851, 4
      %v853 = vrot.slane %v305, 5
      %v854 = vsel %vm787, %v852, %v853
      %v855 = vrot.slane %v853, 4
      %v856 = vrot.slane %v327, 5
      %v857 = vsel %vm787, %v855, %v856
      %v858 = vrot.slane %v731, 5
      %v859 = vrot.slane %v858, 4
      %v860 = vrot.slane %v307, 5
      %v861 = vsel %vm787, %v859, %v860
      %v862 = vrot.slane %v860, 4
      %v863 = vrot.slane %v328, 5
      %v864 = vsel %vm787, %v862, %v863
      %v865 = vrot.slane %v732, 5
      %v866 = vrot.slane %v865, 4
      %v867 = vrot.slane %v309, 5
      %v868 = vsel %vm787, %v866, %v867
      %v869 = vrot.slane %v867, 4
      %v870 = vrot.slane %v329, 5
      %v871 = vsel %vm787, %v869, %v870
      %v872 = vrot.slane %v733, 5
      %v873 = vrot.slane %v872, 4
      %v874 = vrot.slane %v311, 5
      %v875 = vsel %vm787, %v873, %v874
      %v876 = vrot.slane %v874, 4
      %v877 = vrot.slane %v330, 5
      %v878 = vsel %vm787, %v876, %v877
      %v879 = vrot.slane %v734, 5
      %v880 = vrot.slane %v879, 4
      %v881 = vrot.slane %v313, 5
      %v882 = vsel %vm787, %v880, %v881
      %v883 = vrot.slane %v881, 4
      %v884 = vrot.slane %v331, 5
      %v885 = vsel %vm787, %v883, %v884
      %v886 = vrot.slane %v735, 5
      %v887 = vrot.slane %v886, 4
      %v888 = vrot.slane %v315, 5
      %v889 = vsel %vm787, %v887, %v888
      %v890 = vrot.slane %v888, 4
      %v891 = vrot.slane %v332, 5
      %v892 = vsel %vm787, %v890, %v891
      %v893 = vrot.slane %v736, 5
      %v894 = vrot.slane %v893, 4
      %v895 = vrot.slane %v317, 5
      %v896 = vsel %vm787, %v894, %v895
      %v897 = vrot.slane %v895, 4
      %v898 = vrot.slane %v333, 5
      %v899 = vsel %vm787, %v897, %v898
      %s900 = scalar_lea.vmem %s266, 12
      %v901 = vld [vmem:[%s900] sm:$0xf]
      %v902 = vld [vmem:[%s900 + $0x4] sm:$0xf]
      %v903 = vld [vmem:[%s900 + $0xc] sm:$0xf]
      %v904 = vld [vmem:[%s900 + $0x10] sm:$0xf]
      %v905 = vld [vmem:[%s900 + $0x18] sm:$0xf]
      %v906 = vld [vmem:[%s900 + $0x1c] sm:$0xf]
      %v907 = vld [vmem:[%s900 + $0x24] sm:$0xf]
      %v908 = vld [vmem:[%s900 + $0x28] sm:$0xf]
      %v909 = vld [vmem:[%s900 + $0x30] sm:$0xf]
      %v910 = vld [vmem:[%s900 + $0x34] sm:$0xf]
      %v911 = vld [vmem:[%s900 + $0x3c] sm:$0xf]
      %v912 = vld [vmem:[%s900 + $0x40] sm:$0xf]
      %v913 = vld [vmem:[%s900 + $0x48] sm:$0xf]
      %v914 = vld [vmem:[%s900 + $0x4c] sm:$0xf]
      %v915 = vld [vmem:[%s900 + $0x54] sm:$0xf]
      %v916 = vld [vmem:[%s900 + $0x58] sm:$0xf]
      %v917 = vld [vmem:[%s900 + $0x60] sm:$0xf]
      %v918 = vld [vmem:[%s900 + $0x64] sm:$0xf]
      %v919 = vld [vmem:[%s900 + $0x6c] sm:$0xf]
      %v920 = vld [vmem:[%s900 + $0x70] sm:$0xf]
      %v921 = vld [vmem:[%s900 + $0x78] sm:$0xf]
      %v922 = vld [vmem:[%s900 + $0x7c] sm:$0xf]
      %v923 = vld [vmem:[%s900 + $0x84] sm:$0xf]
      %v924 = vld [vmem:[%s900 + $0x88] sm:$0xf]
      %v925 = vld [vmem:[%s900 + $0x90] sm:$0xf]
      %v926 = vld [vmem:[%s900 + $0x94] sm:$0xf]
      %v927 = vld [vmem:[%s900 + $0x9c] sm:$0xf]
      %v928 = vld [vmem:[%s900 + $0xa0] sm:$0xf]
      %v929 = vld [vmem:[%s900 + $0xa8] sm:$0xf]
      %v930 = vld [vmem:[%s900 + $0xac] sm:$0xf]
      %v931 = vld [vmem:[%s900 + $0xb4] sm:$0xf]
      %v932 = vld [vmem:[%s900 + $0xb8] sm:$0xf]
      %v933 = vld [vmem:[%s900 + $0x8] sm:$0x1]
      %v934 = vld [vmem:[%s900 + $0x14] sm:$0x1]
      %v935 = vld [vmem:[%s900 + $0x20] sm:$0x1]
      %v936 = vld [vmem:[%s900 + $0x2c] sm:$0x1]
      %v937 = vld [vmem:[%s900 + $0x38] sm:$0x1]
      %v938 = vld [vmem:[%s900 + $0x44] sm:$0x1]
      %v939 = vld [vmem:[%s900 + $0x50] sm:$0x1]
      %v940 = vld [vmem:[%s900 + $0x5c] sm:$0x1]
      %v941 = vld [vmem:[%s900 + $0x68] sm:$0x1]
      %v942 = vld [vmem:[%s900 + $0x74] sm:$0x1]
      %v943 = vld [vmem:[%s900 + $0x80] sm:$0x1]
      %v944 = vld [vmem:[%s900 + $0x8c] sm:$0x1]
      %v945 = vld [vmem:[%s900 + $0x98] sm:$0x1]
      %v946 = vld [vmem:[%s900 + $0xa4] sm:$0x1]
      %v947 = vld [vmem:[%s900 + $0xb0] sm:$0x1]
      %v948 = vld [vmem:[%s900 + $0xbc] sm:$0x1]
      %v950 = vshrl.u32 %v901, 16
      %v952 = vrot.slane %v950, 4
      %v953 = vshll.u32 %v901, 16
      %v955 = vrot.slane %v953, 5
      %v956 = vor.u32 %v952, %v955
      %v957 = vrot.slane %v956, 4
      %v959 = vshll.u32 %v902, 16
      %v961 = vrot.slane %v959, 5
      %v962 = vsel %vm336, %v957, %v961
      %v963 = vshrl.u32 %v902, 16
      %v965 = vrot.slane %v963, 4
      %v966 = vor.u32 %v965, %v961
      %v967 = vrot.slane %v966, 4
      %v969 = vshll.u32 %v933, 16
      %v971 = vrot.slane %v969, 5
      %v972 = vsel %vm336, %v967, %v971
      %v974 = vshrl.u32 %v903, 16
      %v976 = vrot.slane %v974, 4
      %v977 = vshll.u32 %v903, 16
      %v979 = vrot.slane %v977, 5
      %v980 = vor.u32 %v976, %v979
      %v981 = vrot.slane %v980, 4
      %v983 = vshll.u32 %v904, 16
      %v985 = vrot.slane %v983, 5
      %v986 = vsel %vm336, %v981, %v985
      %v987 = vshrl.u32 %v904, 16
      %v989 = vrot.slane %v987, 4
      %v990 = vor.u32 %v989, %v985
      %v991 = vrot.slane %v990, 4
      %v993 = vshll.u32 %v934, 16
      %v995 = vrot.slane %v993, 5
      %v996 = vsel %vm336, %v991, %v995
      %v998 = vshrl.u32 %v905, 16
      %v1000 = vrot.slane %v998, 4
      %v1001 = vshll.u32 %v905, 16
      %v1003 = vrot.slane %v1001, 5
      %v1004 = vor.u32 %v1000, %v1003
      %v1005 = vrot.slane %v1004, 4
      %v1007 = vshll.u32 %v906, 16
      %v1009 = vrot.slane %v1007, 5
      %v1010 = vsel %vm336, %v1005, %v1009
      %v1011 = vshrl.u32 %v906, 16
      %v1013 = vrot.slane %v1011, 4
      %v1014 = vor.u32 %v1013, %v1009
      %v1015 = vrot.slane %v1014, 4
      %v1017 = vshll.u32 %v935, 16
      %v1019 = vrot.slane %v1017, 5
      %v1020 = vsel %vm336, %v1015, %v1019
      %v1022 = vshrl.u32 %v907, 16
      %v1024 = vrot.slane %v1022, 4
      %v1025 = vshll.u32 %v907, 16
      %v1027 = vrot.slane %v1025, 5
      %v1028 = vor.u32 %v1024, %v1027
      %v1029 = vrot.slane %v1028, 4
      %v1031 = vshll.u32 %v908, 16
      %v1033 = vrot.slane %v1031, 5
      %v1034 = vsel %vm336, %v1029, %v1033
      %v1035 = vshrl.u32 %v908, 16
      %v1037 = vrot.slane %v1035, 4
      %v1038 = vor.u32 %v1037, %v1033
      %v1039 = vrot.slane %v1038, 4
      %v1041 = vshll.u32 %v936, 16
      %v1043 = vrot.slane %v1041, 5
      %v1044 = vsel %vm336, %v1039, %v1043
      %v1046 = vshrl.u32 %v909, 16
      %v1048 = vrot.slane %v1046, 4
      %v1049 = vshll.u32 %v909, 16
      %v1051 = vrot.slane %v1049, 5
      %v1052 = vor.u32 %v1048, %v1051
      %v1053 = vrot.slane %v1052, 4
      %v1055 = vshll.u32 %v910, 16
      %v1057 = vrot.slane %v1055, 5
      %v1058 = vsel %vm336, %v1053, %v1057
      %v1059 = vshrl.u32 %v910, 16
      %v1061 = vrot.slane %v1059, 4
      %v1062 = vor.u32 %v1061, %v1057
      %v1063 = vrot.slane %v1062, 4
      %v1065 = vshll.u32 %v937, 16
      %v1067 = vrot.slane %v1065, 5
      %v1068 = vsel %vm336, %v1063, %v1067
      %v1070 = vshrl.u32 %v911, 16
      %v1072 = vrot.slane %v1070, 4
      %v1073 = vshll.u32 %v911, 16
      %v1075 = vrot.slane %v1073, 5
      %v1076 = vor.u32 %v1072, %v1075
      %v1077 = vrot.slane %v1076, 4
      %v1079 = vshll.u32 %v912, 16
      %v1081 = vrot.slane %v1079, 5
      %v1082 = vsel %vm336, %v1077, %v1081
      %v1083 = vshrl.u32 %v912, 16
      %v1085 = vrot.slane %v1083, 4
      %v1086 = vor.u32 %v1085, %v1081
      %v1087 = vrot.slane %v1086, 4
      %v1089 = vshll.u32 %v938, 16
      %v1091 = vrot.slane %v1089, 5
      %v1092 = vsel %vm336, %v1087, %v1091
      %v1094 = vshrl.u32 %v913, 16
      %v1096 = vrot.slane %v1094, 4
      %v1097 = vshll.u32 %v913, 16
      %v1099 = vrot.slane %v1097, 5
      %v1100 = vor.u32 %v1096, %v1099
      %v1101 = vrot.slane %v1100, 4
      %v1103 = vshll.u32 %v914, 16
      %v1105 = vrot.slane %v1103, 5
      %v1106 = vsel %vm336, %v1101, %v1105
      %v1107 = vshrl.u32 %v914, 16
      %v1109 = vrot.slane %v1107, 4
      %v1110 = vor.u32 %v1109, %v1105
      %v1111 = vrot.slane %v1110, 4
      %v1113 = vshll.u32 %v939, 16
      %v1115 = vrot.slane %v1113, 5
      %v1116 = vsel %vm336, %v1111, %v1115
      %v1118 = vshrl.u32 %v915, 16
      %v1120 = vrot.slane %v1118, 4
      %v1121 = vshll.u32 %v915, 16
      %v1123 = vrot.slane %v1121, 5
      %v1124 = vor.u32 %v1120, %v1123
      %v1125 = vrot.slane %v1124, 4
      %v1127 = vshll.u32 %v916, 16
      %v1129 = vrot.slane %v1127, 5
      %v1130 = vsel %vm336, %v1125, %v1129
      %v1131 = vshrl.u32 %v916, 16
      %v1133 = vrot.slane %v1131, 4
      %v1134 = vor.u32 %v1133, %v1129
      %v1135 = vrot.slane %v1134, 4
      %v1137 = vshll.u32 %v940, 16
      %v1139 = vrot.slane %v1137, 5
      %v1140 = vsel %vm336, %v1135, %v1139
      %v1142 = vshrl.u32 %v917, 16
      %v1144 = vrot.slane %v1142, 4
      %v1145 = vshll.u32 %v917, 16
      %v1147 = vrot.slane %v1145, 5
      %v1148 = vor.u32 %v1144, %v1147
      %v1149 = vrot.slane %v1148, 4
      %v1151 = vshll.u32 %v918, 16
      %v1153 = vrot.slane %v1151, 5
      %v1154 = vsel %vm336, %v1149, %v1153
      %v1155 = vshrl.u32 %v918, 16
      %v1157 = vrot.slane %v1155, 4
      %v1158 = vor.u32 %v1157, %v1153
      %v1159 = vrot.slane %v1158, 4
      %v1161 = vshll.u32 %v941, 16
      %v1163 = vrot.slane %v1161, 5
      %v1164 = vsel %vm336, %v1159, %v1163
      %v1166 = vshrl.u32 %v919, 16
      %v1168 = vrot.slane %v1166, 4
      %v1169 = vshll.u32 %v919, 16
      %v1171 = vrot.slane %v1169, 5
      %v1172 = vor.u32 %v1168, %v1171
      %v1173 = vrot.slane %v1172, 4
      %v1175 = vshll.u32 %v920, 16
      %v1177 = vrot.slane %v1175, 5
      %v1178 = vsel %vm336, %v1173, %v1177
      %v1179 = vshrl.u32 %v920, 16
      %v1181 = vrot.slane %v1179, 4
      %v1182 = vor.u32 %v1181, %v1177
      %v1183 = vrot.slane %v1182, 4
      %v1185 = vshll.u32 %v942, 16
      %v1187 = vrot.slane %v1185, 5
      %v1188 = vsel %vm336, %v1183, %v1187
      %v1190 = vshrl.u32 %v921, 16
      %v1192 = vrot.slane %v1190, 4
      %v1193 = vshll.u32 %v921, 16
      %v1195 = vrot.slane %v1193, 5
      %v1196 = vor.u32 %v1192, %v1195
      %v1197 = vrot.slane %v1196, 4
      %v1199 = vshll.u32 %v922, 16
      %v1201 = vrot.slane %v1199, 5
      %v1202 = vsel %vm336, %v1197, %v1201
      %v1203 = vshrl.u32 %v922, 16
      %v1205 = vrot.slane %v1203, 4
      %v1206 = vor.u32 %v1205, %v1201
      %v1207 = vrot.slane %v1206, 4
      %v1209 = vshll.u32 %v943, 16
      %v1211 = vrot.slane %v1209, 5
      %v1212 = vsel %vm336, %v1207, %v1211
      %v1214 = vshrl.u32 %v923, 16
      %v1216 = vrot.slane %v1214, 4
      %v1217 = vshll.u32 %v923, 16
      %v1219 = vrot.slane %v1217, 5
      %v1220 = vor.u32 %v1216, %v1219
      %v1221 = vrot.slane %v1220, 4
      %v1223 = vshll.u32 %v924, 16
      %v1225 = vrot.slane %v1223, 5
      %v1226 = vsel %vm336, %v1221, %v1225
      %v1227 = vshrl.u32 %v924, 16
      %v1229 = vrot.slane %v1227, 4
      %v1230 = vor.u32 %v1229, %v1225
      %v1231 = vrot.slane %v1230, 4
      %v1233 = vshll.u32 %v944, 16
      %v1235 = vrot.slane %v1233, 5
      %v1236 = vsel %vm336, %v1231, %v1235
      %v1238 = vshrl.u32 %v925, 16
      %v1240 = vrot.slane %v1238, 4
      %v1241 = vshll.u32 %v925, 16
      %v1243 = vrot.slane %v1241, 5
      %v1244 = vor.u32 %v1240, %v1243
      %v1245 = vrot.slane %v1244, 4
      %v1247 = vshll.u32 %v926, 16
      %v1249 = vrot.slane %v1247, 5
      %v1250 = vsel %vm336, %v1245, %v1249
      %v1251 = vshrl.u32 %v926, 16
      %v1253 = vrot.slane %v1251, 4
      %v1254 = vor.u32 %v1253, %v1249
      %v1255 = vrot.slane %v1254, 4
      %v1257 = vshll.u32 %v945, 16
      %v1259 = vrot.slane %v1257, 5
      %v1260 = vsel %vm336, %v1255, %v1259
      %v1262 = vshrl.u32 %v927, 16
      %v1264 = vrot.slane %v1262, 4
      %v1265 = vshll.u32 %v927, 16
      %v1267 = vrot.slane %v1265, 5
      %v1268 = vor.u32 %v1264, %v1267
      %v1269 = vrot.slane %v1268, 4
      %v1271 = vshll.u32 %v928, 16
      %v1273 = vrot.slane %v1271, 5
      %v1274 = vsel %vm336, %v1269, %v1273
      %v1275 = vshrl.u32 %v928, 16
      %v1277 = vrot.slane %v1275, 4
      %v1278 = vor.u32 %v1277, %v1273
      %v1279 = vrot.slane %v1278, 4
      %v1281 = vshll.u32 %v946, 16
      %v1283 = vrot.slane %v1281, 5
      %v1284 = vsel %vm336, %v1279, %v1283
      %v1286 = vshrl.u32 %v929, 16
      %v1288 = vrot.slane %v1286, 4
      %v1289 = vshll.u32 %v929, 16
      %v1291 = vrot.slane %v1289, 5
      %v1292 = vor.u32 %v1288, %v1291
      %v1293 = vrot.slane %v1292, 4
      %v1295 = vshll.u32 %v930, 16
      %v1297 = vrot.slane %v1295, 5
      %v1298 = vsel %vm336, %v1293, %v1297
      %v1299 = vshrl.u32 %v930, 16
      %v1301 = vrot.slane %v1299, 4
      %v1302 = vor.u32 %v1301, %v1297
      %v1303 = vrot.slane %v1302, 4
      %v1305 = vshll.u32 %v947, 16
      %v1307 = vrot.slane %v1305, 5
      %v1308 = vsel %vm336, %v1303, %v1307
      %v1310 = vshrl.u32 %v931, 16
      %v1312 = vrot.slane %v1310, 4
      %v1313 = vshll.u32 %v931, 16
      %v1315 = vrot.slane %v1313, 5
      %v1316 = vor.u32 %v1312, %v1315
      %v1317 = vrot.slane %v1316, 4
      %v1319 = vshll.u32 %v932, 16
      %v1321 = vrot.slane %v1319, 5
      %v1322 = vsel %vm336, %v1317, %v1321
      %v1323 = vshrl.u32 %v932, 16
      %v1325 = vrot.slane %v1323, 4
      %v1326 = vor.u32 %v1325, %v1321
      %v1327 = vrot.slane %v1326, 4
      %v1329 = vshll.u32 %v948, 16
      %v1331 = vrot.slane %v1329, 5
      %v1332 = vsel %vm336, %v1327, %v1331
      %v1333 = vld [vmem:[%s900] sm:$0xe]
      %v1334 = vld [vmem:[%s900 + $0xc] sm:$0xe]
      %v1335 = vld [vmem:[%s900 + $0x18] sm:$0xe]
      %v1336 = vld [vmem:[%s900 + $0x24] sm:$0xe]
      %v1337 = vld [vmem:[%s900 + $0x30] sm:$0xe]
      %v1338 = vld [vmem:[%s900 + $0x3c] sm:$0xe]
      %v1339 = vld [vmem:[%s900 + $0x48] sm:$0xe]
      %v1340 = vld [vmem:[%s900 + $0x54] sm:$0xe]
      %v1341 = vld [vmem:[%s900 + $0x60] sm:$0xe]
      %v1342 = vld [vmem:[%s900 + $0x6c] sm:$0xe]
      %v1343 = vld [vmem:[%s900 + $0x78] sm:$0xe]
      %v1344 = vld [vmem:[%s900 + $0x84] sm:$0xe]
      %v1345 = vld [vmem:[%s900 + $0x90] sm:$0xe]
      %v1346 = vld [vmem:[%s900 + $0x9c] sm:$0xe]
      %v1347 = vld [vmem:[%s900 + $0xa8] sm:$0xe]
      %v1348 = vld [vmem:[%s900 + $0xb4] sm:$0xe]
      %v1397 = vrot.slane %v1333, 5
      %v1398 = vrot.slane %v1397, 4
      %v1399 = vrot.slane %v902, 5
      %v1400 = vsel %vm787, %v1398, %v1399
      %v1401 = vrot.slane %v1399, 4
      %v1402 = vrot.slane %v933, 5
      %v1403 = vsel %vm787, %v1401, %v1402
      %v1404 = vrot.slane %v1334, 5
      %v1405 = vrot.slane %v1404, 4
      %v1406 = vrot.slane %v904, 5
      %v1407 = vsel %vm787, %v1405, %v1406
      %v1408 = vrot.slane %v1406, 4
      %v1409 = vrot.slane %v934, 5
      %v1410 = vsel %vm787, %v1408, %v1409
      %v1411 = vrot.slane %v1335, 5
      %v1412 = vrot.slane %v1411, 4
      %v1413 = vrot.slane %v906, 5
      %v1414 = vsel %vm787, %v1412, %v1413
      %v1415 = vrot.slane %v1413, 4
      %v1416 = vrot.slane %v935, 5
      %v1417 = vsel %vm787, %v1415, %v1416
      %v1418 = vrot.slane %v1336, 5
      %v1419 = vrot.slane %v1418, 4
      %v1420 = vrot.slane %v908, 5
      %v1421 = vsel %vm787, %v1419, %v1420
      %v1422 = vrot.slane %v1420, 4
      %v1423 = vrot.slane %v936, 5
      %v1424 = vsel %vm787, %v1422, %v1423
      %v1425 = vrot.slane %v1337, 5
      %v1426 = vrot.slane %v1425, 4
      %v1427 = vrot.slane %v910, 5
      %v1428 = vsel %vm787, %v1426, %v1427
      %v1429 = vrot.slane %v1427, 4
      %v1430 = vrot.slane %v937, 5
      %v1431 = vsel %vm787, %v1429, %v1430
      %v1432 = vrot.slane %v1338, 5
      %v1433 = vrot.slane %v1432, 4
      %v1434 = vrot.slane %v912, 5
      %v1435 = vsel %vm787, %v1433, %v1434
      %v1436 = vrot.slane %v1434, 4
      %v1437 = vrot.slane %v938, 5
      %v1438 = vsel %vm787, %v1436, %v1437
      %v1439 = vrot.slane %v1339, 5
      %v1440 = vrot.slane %v1439, 4
      %v1441 = vrot.slane %v914, 5
      %v1442 = vsel %vm787, %v1440, %v1441
      %v1443 = vrot.slane %v1441, 4
      %v1444 = vrot.slane %v939, 5
      %v1445 = vsel %vm787, %v1443, %v1444
      %v1446 = vrot.slane %v1340, 5
      %v1447 = vrot.slane %v1446, 4
      %v1448 = vrot.slane %v916, 5
      %v1449 = vsel %vm787, %v1447, %v1448
      %v1450 = vrot.slane %v1448, 4
      %v1451 = vrot.slane %v940, 5
      %v1452 = vsel %vm787, %v1450, %v1451
      %v1453 = vrot.slane %v1341, 5
      %v1454 = vrot.slane %v1453, 4
      %v1455 = vrot.slane %v918, 5
      %v1456 = vsel %vm787, %v1454, %v1455
      %v1457 = vrot.slane %v1455, 4
      %v1458 = vrot.slane %v941, 5
      %v1459 = vsel %vm787, %v1457, %v1458
      %v1460 = vrot.slane %v1342, 5
      %v1461 = vrot.slane %v1460, 4
      %v1462 = vrot.slane %v920, 5
      %v1463 = vsel %vm787, %v1461, %v1462
      %v1464 = vrot.slane %v1462, 4
      %v1465 = vrot.slane %v942, 5
      %v1466 = vsel %vm787, %v1464, %v1465
      %v1467 = vrot.slane %v1343, 5
      %v1468 = vrot.slane %v1467, 4
      %v1469 = vrot.slane %v922, 5
      %v1470 = vsel %vm787, %v1468, %v1469
      %v1471 = vrot.slane %v1469, 4
      %v1472 = vrot.slane %v943, 5
      %v1473 = vsel %vm787, %v1471, %v1472
      %v1474 = vrot.slane %v1344, 5
      %v1475 = vrot.slane %v1474, 4
      %v1476 = vrot.slane %v924, 5
      %v1477 = vsel %vm787, %v1475, %v1476
      %v1478 = vrot.slane %v1476, 4
      %v1479 = vrot.slane %v944, 5
      %v1480 = vsel %vm787, %v1478, %v1479
      %v1481 = vrot.slane %v1345, 5
      %v1482 = vrot.slane %v1481, 4
      %v1483 = vrot.slane %v926, 5
      %v1484 = vsel %vm787, %v1482, %v1483
      %v1485 = vrot.slane %v1483, 4
      %v1486 = vrot.slane %v945, 5
      %v1487 = vsel %vm787, %v1485, %v1486
      %v1488 = vrot.slane %v1346, 5
      %v1489 = vrot.slane %v1488, 4
      %v1490 = vrot.slane %v928, 5
      %v1491 = vsel %vm787, %v1489, %v1490
      %v1492 = vrot.slane %v1490, 4
      %v1493 = vrot.slane %v946, 5
      %v1494 = vsel %vm787, %v1492, %v1493
      %v1495 = vrot.slane %v1347, 5
      %v1496 = vrot.slane %v1495, 4
      %v1497 = vrot.slane %v930, 5
      %v1498 = vsel %vm787, %v1496, %v1497
      %v1499 = vrot.slane %v1497, 4
      %v1500 = vrot.slane %v947, 5
      %v1501 = vsel %vm787, %v1499, %v1500
      %v1502 = vrot.slane %v1348, 5
      %v1503 = vrot.slane %v1502, 4
      %v1504 = vrot.slane %v932, 5
      %v1505 = vsel %vm787, %v1503, %v1504
      %v1506 = vrot.slane %v1504, 4
      %v1507 = vrot.slane %v948, 5
      %v1508 = vsel %vm787, %v1506, %v1507
      %s1509 = scalar_lea.vmem %s266, 24
      %v1510 = vld [vmem:[%s1509] sm:$0xf]
      %v1511 = vld [vmem:[%s1509 + $0x4] sm:$0xf]
      %v1512 = vld [vmem:[%s1509 + $0xc] sm:$0xf]
      %v1513 = vld [vmem:[%s1509 + $0x10] sm:$0xf]
      %v1514 = vld [vmem:[%s1509 + $0x18] sm:$0xf]
      %v1515 = vld [vmem:[%s1509 + $0x1c] sm:$0xf]
      %v1516 = vld [vmem:[%s1509 + $0x24] sm:$0xf]
      %v1517 = vld [vmem:[%s1509 + $0x28] sm:$0xf]
      %v1518 = vld [vmem:[%s1509 + $0x30] sm:$0xf]
      %v1519 = vld [vmem:[%s1509 + $0x34] sm:$0xf]
      %v1520 = vld [vmem:[%s1509 + $0x3c] sm:$0xf]
      %v1521 = vld [vmem:[%s1509 + $0x40] sm:$0xf]
      %v1522 = vld [vmem:[%s1509 + $0x48] sm:$0xf]
      %v1523 = vld [vmem:[%s1509 + $0x4c] sm:$0xf]
      %v1524 = vld [vmem:[%s1509 + $0x54] sm:$0xf]
      %v1525 = vld [vmem:[%s1509 + $0x58] sm:$0xf]
      %v1526 = vld [vmem:[%s1509 + $0x60] sm:$0xf]
      %v1527 = vld [vmem:[%s1509 + $0x64] sm:$0xf]
      %v1528 = vld [vmem:[%s1509 + $0x6c] sm:$0xf]
      %v1529 = vld [vmem:[%s1509 + $0x70] sm:$0xf]
      %v1530 = vld [vmem:[%s1509 + $0x78] sm:$0xf]
      %v1531 = vld [vmem:[%s1509 + $0x7c] sm:$0xf]
      %v1532 = vld [vmem:[%s1509 + $0x84] sm:$0xf]
      %v1533 = vld [vmem:[%s1509 + $0x88] sm:$0xf]
      %v1534 = vld [vmem:[%s1509 + $0x90] sm:$0xf]
      %v1535 = vld [vmem:[%s1509 + $0x94] sm:$0xf]
      %v1536 = vld [vmem:[%s1509 + $0x9c] sm:$0xf]
      %v1537 = vld [vmem:[%s1509 + $0xa0] sm:$0xf]
      %v1538 = vld [vmem:[%s1509 + $0xa8] sm:$0xf]
      %v1539 = vld [vmem:[%s1509 + $0xac] sm:$0xf]
      %v1540 = vld [vmem:[%s1509 + $0xb4] sm:$0xf]
      %v1541 = vld [vmem:[%s1509 + $0xb8] sm:$0xf]
      %v1542 = vld [vmem:[%s1509 + $0x8] sm:$0x1]
      %v1543 = vld [vmem:[%s1509 + $0x14] sm:$0x1]
      %v1544 = vld [vmem:[%s1509 + $0x20] sm:$0x1]
      %v1545 = vld [vmem:[%s1509 + $0x2c] sm:$0x1]
      %v1546 = vld [vmem:[%s1509 + $0x38] sm:$0x1]
      %v1547 = vld [vmem:[%s1509 + $0x44] sm:$0x1]
      %v1548 = vld [vmem:[%s1509 + $0x50] sm:$0x1]
      %v1549 = vld [vmem:[%s1509 + $0x5c] sm:$0x1]
      %v1550 = vld [vmem:[%s1509 + $0x68] sm:$0x1]
      %v1551 = vld [vmem:[%s1509 + $0x74] sm:$0x1]
      %v1552 = vld [vmem:[%s1509 + $0x80] sm:$0x1]
      %v1553 = vld [vmem:[%s1509 + $0x8c] sm:$0x1]
      %v1554 = vld [vmem:[%s1509 + $0x98] sm:$0x1]
      %v1555 = vld [vmem:[%s1509 + $0xa4] sm:$0x1]
      %v1556 = vld [vmem:[%s1509 + $0xb0] sm:$0x1]
      %v1557 = vld [vmem:[%s1509 + $0xbc] sm:$0x1]
      %v1559 = vshrl.u32 %v1510, 16
      %v1561 = vrot.slane %v1559, 4
      %v1562 = vshll.u32 %v1510, 16
      %v1564 = vrot.slane %v1562, 5
      %v1565 = vor.u32 %v1561, %v1564
      %v1566 = vrot.slane %v1565, 4
      %v1568 = vshll.u32 %v1511, 16
      %v1570 = vrot.slane %v1568, 5
      %v1571 = vsel %vm336, %v1566, %v1570
      %v1572 = vshrl.u32 %v1511, 16
      %v1574 = vrot.slane %v1572, 4
      %v1575 = vor.u32 %v1574, %v1570
      %v1576 = vrot.slane %v1575, 4
      %v1578 = vshll.u32 %v1542, 16
      %v1580 = vrot.slane %v1578, 5
      %v1581 = vsel %vm336, %v1576, %v1580
      %v1583 = vshrl.u32 %v1512, 16
      %v1585 = vrot.slane %v1583, 4
      %v1586 = vshll.u32 %v1512, 16
      %v1588 = vrot.slane %v1586, 5
      %v1589 = vor.u32 %v1585, %v1588
      %v1590 = vrot.slane %v1589, 4
      %v1592 = vshll.u32 %v1513, 16
      %v1594 = vrot.slane %v1592, 5
      %v1595 = vsel %vm336, %v1590, %v1594
      %v1596 = vshrl.u32 %v1513, 16
      %v1598 = vrot.slane %v1596, 4
      %v1599 = vor.u32 %v1598, %v1594
      %v1600 = vrot.slane %v1599, 4
      %v1602 = vshll.u32 %v1543, 16
      %v1604 = vrot.slane %v1602, 5
      %v1605 = vsel %vm336, %v1600, %v1604
      %v1607 = vshrl.u32 %v1514, 16
      %v1609 = vrot.slane %v1607, 4
      %v1610 = vshll.u32 %v1514, 16
      %v1612 = vrot.slane %v1610, 5
      %v1613 = vor.u32 %v1609, %v1612
      %v1614 = vrot.slane %v1613, 4
      %v1616 = vshll.u32 %v1515, 16
      %v1618 = vrot.slane %v1616, 5
      %v1619 = vsel %vm336, %v1614, %v1618
      %v1620 = vshrl.u32 %v1515, 16
      %v1622 = vrot.slane %v1620, 4
      %v1623 = vor.u32 %v1622, %v1618
      %v1624 = vrot.slane %v1623, 4
      %v1626 = vshll.u32 %v1544, 16
      %v1628 = vrot.slane %v1626, 5
      %v1629 = vsel %vm336, %v1624, %v1628
      %v1631 = vshrl.u32 %v1516, 16
      %v1633 = vrot.slane %v1631, 4
      %v1634 = vshll.u32 %v1516, 16
      %v1636 = vrot.slane %v1634, 5
      %v1637 = vor.u32 %v1633, %v1636
      %v1638 = vrot.slane %v1637, 4
      %v1640 = vshll.u32 %v1517, 16
      %v1642 = vrot.slane %v1640, 5
      %v1643 = vsel %vm336, %v1638, %v1642
      %v1644 = vshrl.u32 %v1517, 16
      %v1646 = vrot.slane %v1644, 4
      %v1647 = vor.u32 %v1646, %v1642
      %v1648 = vrot.slane %v1647, 4
      %v1650 = vshll.u32 %v1545, 16
      %v1652 = vrot.slane %v1650, 5
      %v1653 = vsel %vm336, %v1648, %v1652
      %v1655 = vshrl.u32 %v1518, 16
      %v1657 = vrot.slane %v1655, 4
      %v1658 = vshll.u32 %v1518, 16
      %v1660 = vrot.slane %v1658, 5
      %v1661 = vor.u32 %v1657, %v1660
      %v1662 = vrot.slane %v1661, 4
      %v1664 = vshll.u32 %v1519, 16
      %v1666 = vrot.slane %v1664, 5
      %v1667 = vsel %vm336, %v1662, %v1666
      %v1668 = vshrl.u32 %v1519, 16
      %v1670 = vrot.slane %v1668, 4
      %v1671 = vor.u32 %v1670, %v1666
      %v1672 = vrot.slane %v1671, 4
      %v1674 = vshll.u32 %v1546, 16
      %v1676 = vrot.slane %v1674, 5
      %v1677 = vsel %vm336, %v1672, %v1676
      %v1679 = vshrl.u32 %v1520, 16
      %v1681 = vrot.slane %v1679, 4
      %v1682 = vshll.u32 %v1520, 16
      %v1684 = vrot.slane %v1682, 5
      %v1685 = vor.u32 %v1681, %v1684
      %v1686 = vrot.slane %v1685, 4
      %v1688 = vshll.u32 %v1521, 16
      %v1690 = vrot.slane %v1688, 5
      %v1691 = vsel %vm336, %v1686, %v1690
      %v1692 = vshrl.u32 %v1521, 16
      %v1694 = vrot.slane %v1692, 4
      %v1695 = vor.u32 %v1694, %v1690
      %v1696 = vrot.slane %v1695, 4
      %v1698 = vshll.u32 %v1547, 16
      %v1700 = vrot.slane %v1698, 5
      %v1701 = vsel %vm336, %v1696, %v1700
      %v1703 = vshrl.u32 %v1522, 16
      %v1705 = vrot.slane %v1703, 4
      %v1706 = vshll.u32 %v1522, 16
      %v1708 = vrot.slane %v1706, 5
      %v1709 = vor.u32 %v1705, %v1708
      %v1710 = vrot.slane %v1709, 4
      %v1712 = vshll.u32 %v1523, 16
      %v1714 = vrot.slane %v1712, 5
      %v1715 = vsel %vm336, %v1710, %v1714
      %v1716 = vshrl.u32 %v1523, 16
      %v1718 = vrot.slane %v1716, 4
      %v1719 = vor.u32 %v1718, %v1714
      %v1720 = vrot.slane %v1719, 4
      %v1722 = vshll.u32 %v1548, 16
      %v1724 = vrot.slane %v1722, 5
      %v1725 = vsel %vm336, %v1720, %v1724
      %v1727 = vshrl.u32 %v1524, 16
      %v1729 = vrot.slane %v1727, 4
      %v1730 = vshll.u32 %v1524, 16
      %v1732 = vrot.slane %v1730, 5
      %v1733 = vor.u32 %v1729, %v1732
      %v1734 = vrot.slane %v1733, 4
      %v1736 = vshll.u32 %v1525, 16
      %v1738 = vrot.slane %v1736, 5
      %v1739 = vsel %vm336, %v1734, %v1738
      %v1740 = vshrl.u32 %v1525, 16
      %v1742 = vrot.slane %v1740, 4
      %v1743 = vor.u32 %v1742, %v1738
      %v1744 = vrot.slane %v1743, 4
      %v1746 = vshll.u32 %v1549, 16
      %v1748 = vrot.slane %v1746, 5
      %v1749 = vsel %vm336, %v1744, %v1748
      %v1751 = vshrl.u32 %v1526, 16
      %v1753 = vrot.slane %v1751, 4
      %v1754 = vshll.u32 %v1526, 16
      %v1756 = vrot.slane %v1754, 5
      %v1757 = vor.u32 %v1753, %v1756
      %v1758 = vrot.slane %v1757, 4
      %v1760 = vshll.u32 %v1527, 16
      %v1762 = vrot.slane %v1760, 5
      %v1763 = vsel %vm336, %v1758, %v1762
      %v1764 = vshrl.u32 %v1527, 16
      %v1766 = vrot.slane %v1764, 4
      %v1767 = vor.u32 %v1766, %v1762
      %v1768 = vrot.slane %v1767, 4
      %v1770 = vshll.u32 %v1550, 16
      %v1772 = vrot.slane %v1770, 5
      %v1773 = vsel %vm336, %v1768, %v1772
      %v1775 = vshrl.u32 %v1528, 16
      %v1777 = vrot.slane %v1775, 4
      %v1778 = vshll.u32 %v1528, 16
      %v1780 = vrot.slane %v1778, 5
      %v1781 = vor.u32 %v1777, %v1780
      %v1782 = vrot.slane %v1781, 4
      %v1784 = vshll.u32 %v1529, 16
      %v1786 = vrot.slane %v1784, 5
      %v1787 = vsel %vm336, %v1782, %v1786
      %v1788 = vshrl.u32 %v1529, 16
      %v1790 = vrot.slane %v1788, 4
      %v1791 = vor.u32 %v1790, %v1786
      %v1792 = vrot.slane %v1791, 4
      %v1794 = vshll.u32 %v1551, 16
      %v1796 = vrot.slane %v1794, 5
      %v1797 = vsel %vm336, %v1792, %v1796
      %v1799 = vshrl.u32 %v1530, 16
      %v1801 = vrot.slane %v1799, 4
      %v1802 = vshll.u32 %v1530, 16
      %v1804 = vrot.slane %v1802, 5
      %v1805 = vor.u32 %v1801, %v1804
      %v1806 = vrot.slane %v1805, 4
      %v1808 = vshll.u32 %v1531, 16
      %v1810 = vrot.slane %v1808, 5
      %v1811 = vsel %vm336, %v1806, %v1810
      %v1812 = vshrl.u32 %v1531, 16
      %v1814 = vrot.slane %v1812, 4
      %v1815 = vor.u32 %v1814, %v1810
      %v1816 = vrot.slane %v1815, 4
      %v1818 = vshll.u32 %v1552, 16
      %v1820 = vrot.slane %v1818, 5
      %v1821 = vsel %vm336, %v1816, %v1820
      %v1823 = vshrl.u32 %v1532, 16
      %v1825 = vrot.slane %v1823, 4
      %v1826 = vshll.u32 %v1532, 16
      %v1828 = vrot.slane %v1826, 5
      %v1829 = vor.u32 %v1825, %v1828
      %v1830 = vrot.slane %v1829, 4
      %v1832 = vshll.u32 %v1533, 16
      %v1834 = vrot.slane %v1832, 5
      %v1835 = vsel %vm336, %v1830, %v1834
      %v1836 = vshrl.u32 %v1533, 16
      %v1838 = vrot.slane %v1836, 4
      %v1839 = vor.u32 %v1838, %v1834
      %v1840 = vrot.slane %v1839, 4
      %v1842 = vshll.u32 %v1553, 16
      %v1844 = vrot.slane %v1842, 5
      %v1845 = vsel %vm336, %v1840, %v1844
      %v1847 = vshrl.u32 %v1534, 16
      %v1849 = vrot.slane %v1847, 4
      %v1850 = vshll.u32 %v1534, 16
      %v1852 = vrot.slane %v1850, 5
      %v1853 = vor.u32 %v1849, %v1852
      %v1854 = vrot.slane %v1853, 4
      %v1856 = vshll.u32 %v1535, 16
      %v1858 = vrot.slane %v1856, 5
      %v1859 = vsel %vm336, %v1854, %v1858
      %v1860 = vshrl.u32 %v1535, 16
      %v1862 = vrot.slane %v1860, 4
      %v1863 = vor.u32 %v1862, %v1858
      %v1864 = vrot.slane %v1863, 4
      %v1866 = vshll.u32 %v1554, 16
      %v1868 = vrot.slane %v1866, 5
      %v1869 = vsel %vm336, %v1864, %v1868
      %v1871 = vshrl.u32 %v1536, 16
      %v1873 = vrot.slane %v1871, 4
      %v1874 = vshll.u32 %v1536, 16
      %v1876 = vrot.slane %v1874, 5
      %v1877 = vor.u32 %v1873, %v1876
      %v1878 = vrot.slane %v1877, 4
      %v1880 = vshll.u32 %v1537, 16
      %v1882 = vrot.slane %v1880, 5
      %v1883 = vsel %vm336, %v1878, %v1882
      %v1884 = vshrl.u32 %v1537, 16
      %v1886 = vrot.slane %v1884, 4
      %v1887 = vor.u32 %v1886, %v1882
      %v1888 = vrot.slane %v1887, 4
      %v1890 = vshll.u32 %v1555, 16
      %v1892 = vrot.slane %v1890, 5
      %v1893 = vsel %vm336, %v1888, %v1892
      %v1895 = vshrl.u32 %v1538, 16
      %v1897 = vrot.slane %v1895, 4
      %v1898 = vshll.u32 %v1538, 16
      %v1900 = vrot.slane %v1898, 5
      %v1901 = vor.u32 %v1897, %v1900
      %v1902 = vrot.slane %v1901, 4
      %v1904 = vshll.u32 %v1539, 16
      %v1906 = vrot.slane %v1904, 5
      %v1907 = vsel %vm336, %v1902, %v1906
      %v1908 = vshrl.u32 %v1539, 16
      %v1910 = vrot.slane %v1908, 4
      %v1911 = vor.u32 %v1910, %v1906
      %v1912 = vrot.slane %v1911, 4
      %v1914 = vshll.u32 %v1556, 16
      %v1916 = vrot.slane %v1914, 5
      %v1917 = vsel %vm336, %v1912, %v1916
      %v1919 = vshrl.u32 %v1540, 16
      %v1921 = vrot.slane %v1919, 4
      %v1922 = vshll.u32 %v1540, 16
      %v1924 = vrot.slane %v1922, 5
      %v1925 = vor.u32 %v1921, %v1924
      %v1926 = vrot.slane %v1925, 4
      %v1928 = vshll.u32 %v1541, 16
      %v1930 = vrot.slane %v1928, 5
      %v1931 = vsel %vm336, %v1926, %v1930
      %v1932 = vshrl.u32 %v1541, 16
      %v1934 = vrot.slane %v1932, 4
      %v1935 = vor.u32 %v1934, %v1930
      %v1936 = vrot.slane %v1935, 4
      %v1938 = vshll.u32 %v1557, 16
      %v1940 = vrot.slane %v1938, 5
      %v1941 = vsel %vm336, %v1936, %v1940
      %v1942 = vld [vmem:[%s1509] sm:$0xe]
      %v1943 = vld [vmem:[%s1509 + $0xc] sm:$0xe]
      %v1944 = vld [vmem:[%s1509 + $0x18] sm:$0xe]
      %v1945 = vld [vmem:[%s1509 + $0x24] sm:$0xe]
      %v1946 = vld [vmem:[%s1509 + $0x30] sm:$0xe]
      %v1947 = vld [vmem:[%s1509 + $0x3c] sm:$0xe]
      %v1948 = vld [vmem:[%s1509 + $0x48] sm:$0xe]
      %v1949 = vld [vmem:[%s1509 + $0x54] sm:$0xe]
      %v1950 = vld [vmem:[%s1509 + $0x60] sm:$0xe]
      %v1951 = vld [vmem:[%s1509 + $0x6c] sm:$0xe]
      %v1952 = vld [vmem:[%s1509 + $0x78] sm:$0xe]
      %v1953 = vld [vmem:[%s1509 + $0x84] sm:$0xe]
      %v1954 = vld [vmem:[%s1509 + $0x90] sm:$0xe]
      %v1955 = vld [vmem:[%s1509 + $0x9c] sm:$0xe]
      %v1956 = vld [vmem:[%s1509 + $0xa8] sm:$0xe]
      %v1957 = vld [vmem:[%s1509 + $0xb4] sm:$0xe]
      %v2006 = vrot.slane %v1942, 5
      %v2007 = vrot.slane %v2006, 4
      %v2008 = vrot.slane %v1511, 5
      %v2009 = vsel %vm787, %v2007, %v2008
      %v2010 = vrot.slane %v2008, 4
      %v2011 = vrot.slane %v1542, 5
      %v2012 = vsel %vm787, %v2010, %v2011
      %v2013 = vrot.slane %v1943, 5
      %v2014 = vrot.slane %v2013, 4
      %v2015 = vrot.slane %v1513, 5
      %v2016 = vsel %vm787, %v2014, %v2015
      %v2017 = vrot.slane %v2015, 4
      %v2018 = vrot.slane %v1543, 5
      %v2019 = vsel %vm787, %v2017, %v2018
      %v2020 = vrot.slane %v1944, 5
      %v2021 = vrot.slane %v2020, 4
      %v2022 = vrot.slane %v1515, 5
      %v2023 = vsel %vm787, %v2021, %v2022
      %v2024 = vrot.slane %v2022, 4
      %v2025 = vrot.slane %v1544, 5
      %v2026 = vsel %vm787, %v2024, %v2025
      %v2027 = vrot.slane %v1945, 5
      %v2028 = vrot.slane %v2027, 4
      %v2029 = vrot.slane %v1517, 5
      %v2030 = vsel %vm787, %v2028, %v2029
      %v2031 = vrot.slane %v2029, 4
      %v2032 = vrot.slane %v1545, 5
      %v2033 = vsel %vm787, %v2031, %v2032
      %v2034 = vrot.slane %v1946, 5
      %v2035 = vrot.slane %v2034, 4
      %v2036 = vrot.slane %v1519, 5
      %v2037 = vsel %vm787, %v2035, %v2036
      %v2038 = vrot.slane %v2036, 4
      %v2039 = vrot.slane %v1546, 5
      %v2040 = vsel %vm787, %v2038, %v2039
      %v2041 = vrot.slane %v1947, 5
      %v2042 = vrot.slane %v2041, 4
      %v2043 = vrot.slane %v1521, 5
      %v2044 = vsel %vm787, %v2042, %v2043
      %v2045 = vrot.slane %v2043, 4
      %v2046 = vrot.slane %v1547, 5
      %v2047 = vsel %vm787, %v2045, %v2046
      %v2048 = vrot.slane %v1948, 5
      %v2049 = vrot.slane %v2048, 4
      %v2050 = vrot.slane %v1523, 5
      %v2051 = vsel %vm787, %v2049, %v2050
      %v2052 = vrot.slane %v2050, 4
      %v2053 = vrot.slane %v1548, 5
      %v2054 = vsel %vm787, %v2052, %v2053
      %v2055 = vrot.slane %v1949, 5
      %v2056 = vrot.slane %v2055, 4
      %v2057 = vrot.slane %v1525, 5
      %v2058 = vsel %vm787, %v2056, %v2057
      %v2059 = vrot.slane %v2057, 4
      %v2060 = vrot.slane %v1549, 5
      %v2061 = vsel %vm787, %v2059, %v2060
      %v2062 = vrot.slane %v1950, 5
      %v2063 = vrot.slane %v2062, 4
      %v2064 = vrot.slane %v1527, 5
      %v2065 = vsel %vm787, %v2063, %v2064
      %v2066 = vrot.slane %v2064, 4
      %v2067 = vrot.slane %v1550, 5
      %v2068 = vsel %vm787, %v2066, %v2067
      %v2069 = vrot.slane %v1951, 5
      %v2070 = vrot.slane %v2069, 4
      %v2071 = vrot.slane %v1529, 5
      %v2072 = vsel %vm787, %v2070, %v2071
      %v2073 = vrot.slane %v2071, 4
      %v2074 = vrot.slane %v1551, 5
      %v2075 = vsel %vm787, %v2073, %v2074
      %v2076 = vrot.slane %v1952, 5
      %v2077 = vrot.slane %v2076, 4
      %v2078 = vrot.slane %v1531, 5
      %v2079 = vsel %vm787, %v2077, %v2078
      %v2080 = vrot.slane %v2078, 4
      %v2081 = vrot.slane %v1552, 5
      %v2082 = vsel %vm787, %v2080, %v2081
      %v2083 = vrot.slane %v1953, 5
      %v2084 = vrot.slane %v2083, 4
      %v2085 = vrot.slane %v1533, 5
      %v2086 = vsel %vm787, %v2084, %v2085
      %v2087 = vrot.slane %v2085, 4
      %v2088 = vrot.slane %v1553, 5
      %v2089 = vsel %vm787, %v2087, %v2088
      %v2090 = vrot.slane %v1954, 5
      %v2091 = vrot.slane %v2090, 4
      %v2092 = vrot.slane %v1535, 5
      %v2093 = vsel %vm787, %v2091, %v2092
      %v2094 = vrot.slane %v2092, 4
      %v2095 = vrot.slane %v1554, 5
      %v2096 = vsel %vm787, %v2094, %v2095
      %v2097 = vrot.slane %v1955, 5
      %v2098 = vrot.slane %v2097, 4
      %v2099 = vrot.slane %v1537, 5
      %v2100 = vsel %vm787, %v2098, %v2099
      %v2101 = vrot.slane %v2099, 4
      %v2102 = vrot.slane %v1555, 5
      %v2103 = vsel %vm787, %v2101, %v2102
      %v2104 = vrot.slane %v1956, 5
      %v2105 = vrot.slane %v2104, 4
      %v2106 = vrot.slane %v1539, 5
      %v2107 = vsel %vm787, %v2105, %v2106
      %v2108 = vrot.slane %v2106, 4
      %v2109 = vrot.slane %v1556, 5
      %v2110 = vsel %vm787, %v2108, %v2109
      %v2111 = vrot.slane %v1957, 5
      %v2112 = vrot.slane %v2111, 4
      %v2113 = vrot.slane %v1541, 5
      %v2114 = vsel %vm787, %v2112, %v2113
      %v2115 = vrot.slane %v2113, 4
      %v2116 = vrot.slane %v1557, 5
      %v2117 = vsel %vm787, %v2115, %v2116
      %v2134 = vunpack.c.l.b16 %v286
      %v2135 = vunpack.c.l.b16 %v287
      %v2136 = vunpack.c.l.b16 %v288
      %v2137 = vunpack.c.l.b16 %v289
      %v2138 = vunpack.c.l.b16 %v290
      %v2139 = vunpack.c.l.b16 %v291
      %v2140 = vunpack.c.l.b16 %v292
      %v2141 = vunpack.c.l.b16 %v293
      %v2142 = vunpack.c.l.b16 %v294
      %v2143 = vunpack.c.l.b16 %v295
      %v2144 = vunpack.c.l.b16 %v296
      %v2145 = vunpack.c.l.b16 %v297
      %v2146 = vunpack.c.l.b16 %v298
      %v2147 = vunpack.c.l.b16 %v299
      %v2148 = vunpack.c.l.b16 %v300
      %v2149 = vunpack.c.l.b16 %v301
      %v2150 = vunpack.c.l.b16 %v302
      %v2151 = vunpack.c.l.b16 %v303
      %v2152 = vunpack.c.l.b16 %v304
      %v2153 = vunpack.c.l.b16 %v305
      %v2154 = vunpack.c.l.b16 %v306
      %v2155 = vunpack.c.l.b16 %v307
      %v2156 = vunpack.c.l.b16 %v308
      %v2157 = vunpack.c.l.b16 %v309
      %v2158 = vunpack.c.l.b16 %v310
      %v2159 = vunpack.c.l.b16 %v311
      %v2160 = vunpack.c.l.b16 %v312
      %v2161 = vunpack.c.l.b16 %v313
      %v2162 = vunpack.c.l.b16 %v314
      %v2163 = vunpack.c.l.b16 %v315
      %v2164 = vunpack.c.l.b16 %v316
      %v2165 = vunpack.c.l.b16 %v317
      %v2166 = vpack.c.b16 %v2135, %v2134
      %v2167 = vpack.c.b16 %v2137, %v2136
      %v2168 = vpack.c.b16 %v2139, %v2138
      %v2169 = vpack.c.b16 %v2141, %v2140
      %v2170 = vpack.c.b16 %v2143, %v2142
      %v2171 = vpack.c.b16 %v2145, %v2144
      %v2172 = vpack.c.b16 %v2147, %v2146
      %v2173 = vpack.c.b16 %v2149, %v2148
      %v2174 = vpack.c.b16 %v2151, %v2150
      %v2175 = vpack.c.b16 %v2153, %v2152
      %v2176 = vpack.c.b16 %v2155, %v2154
      %v2177 = vpack.c.b16 %v2157, %v2156
      %v2178 = vpack.c.b16 %v2159, %v2158
      %v2179 = vpack.c.b16 %v2161, %v2160
      %v2180 = vpack.c.b16 %v2163, %v2162
      %v2181 = vpack.c.b16 %v2165, %v2164
      %v2182 = vunpack.c.l.b16 %v350
      %v2183 = vunpack.c.l.b16 %v360
      %v2184 = vunpack.c.l.b16 %v374
      %v2185 = vunpack.c.l.b16 %v384
      %v2186 = vunpack.c.l.b16 %v398
      %v2187 = vunpack.c.l.b16 %v408
      %v2188 = vunpack.c.l.b16 %v422
      %v2189 = vunpack.c.l.b16 %v432
      %v2190 = vunpack.c.l.b16 %v446
      %v2191 = vunpack.c.l.b16 %v456
      %v2192 = vunpack.c.l.b16 %v470
      %v2193 = vunpack.c.l.b16 %v480
      %v2194 = vunpack.c.l.b16 %v494
      %v2195 = vunpack.c.l.b16 %v504
      %v2196 = vunpack.c.l.b16 %v518
      %v2197 = vunpack.c.l.b16 %v528
      %v2198 = vunpack.c.l.b16 %v542
      %v2199 = vunpack.c.l.b16 %v552
      %v2200 = vunpack.c.l.b16 %v566
      %v2201 = vunpack.c.l.b16 %v576
      %v2202 = vunpack.c.l.b16 %v590
      %v2203 = vunpack.c.l.b16 %v600
      %v2204 = vunpack.c.l.b16 %v614
      %v2205 = vunpack.c.l.b16 %v624
      %v2206 = vunpack.c.l.b16 %v638
      %v2207 = vunpack.c.l.b16 %v648
      %v2208 = vunpack.c.l.b16 %v662
      %v2209 = vunpack.c.l.b16 %v672
      %v2210 = vunpack.c.l.b16 %v686
      %v2211 = vunpack.c.l.b16 %v696
      %v2212 = vunpack.c.l.b16 %v710
      %v2213 = vunpack.c.l.b16 %v720
      %v2214 = vpack.c.b16 %v2183, %v2182
      %v2215 = vpack.c.b16 %v2185, %v2184
      %v2216 = vpack.c.b16 %v2187, %v2186
      %v2217 = vpack.c.b16 %v2189, %v2188
      %v2218 = vpack.c.b16 %v2191, %v2190
      %v2219 = vpack.c.b16 %v2193, %v2192
      %v2220 = vpack.c.b16 %v2195, %v2194
      %v2221 = vpack.c.b16 %v2197, %v2196
      %v2222 = vpack.c.b16 %v2199, %v2198
      %v2223 = vpack.c.b16 %v2201, %v2200
      %v2224 = vpack.c.b16 %v2203, %v2202
      %v2225 = vpack.c.b16 %v2205, %v2204
      %v2226 = vpack.c.b16 %v2207, %v2206
      %v2227 = vpack.c.b16 %v2209, %v2208
      %v2228 = vpack.c.b16 %v2211, %v2210
      %v2229 = vpack.c.b16 %v2213, %v2212
      %2230 = vrot.lane.b32.xlu0 %v2214, 4
      %v2231 = vpop.permute.xlu0 %2230
      %2232 = vrot.lane.b32.xlu0 %v2215, 4
      %v2233 = vpop.permute.xlu0 %2232
      %2234 = vrot.lane.b32.xlu0 %v2216, 4
      %v2235 = vpop.permute.xlu0 %2234
      %2236 = vrot.lane.b32.xlu0 %v2217, 4
      %v2237 = vpop.permute.xlu0 %2236
      %2238 = vrot.lane.b32.xlu0 %v2218, 4
      %v2239 = vpop.permute.xlu0 %2238
      %2240 = vrot.lane.b32.xlu0 %v2219, 4
      %v2241 = vpop.permute.xlu0 %2240
      %2242 = vrot.lane.b32.xlu0 %v2220, 4
      %v2243 = vpop.permute.xlu0 %2242
      %2244 = vrot.lane.b32.xlu0 %v2221, 4
      %v2245 = vpop.permute.xlu0 %2244
      %2246 = vrot.lane.b32.xlu0 %v2222, 4
      %v2247 = vpop.permute.xlu0 %2246
      %2248 = vrot.lane.b32.xlu0 %v2223, 4
      %v2249 = vpop.permute.xlu0 %2248
      %2250 = vrot.lane.b32.xlu0 %v2224, 4
      %v2251 = vpop.permute.xlu0 %2250
      %2252 = vrot.lane.b32.xlu0 %v2225, 4
      %v2253 = vpop.permute.xlu0 %2252
      %2254 = vrot.lane.b32.xlu0 %v2226, 4
      %v2255 = vpop.permute.xlu0 %2254
      %2256 = vrot.lane.b32.xlu0 %v2227, 4
      %v2257 = vpop.permute.xlu0 %2256
      %2258 = vrot.lane.b32.xlu0 %v2228, 4
      %v2259 = vpop.permute.xlu0 %2258
      %2260 = vrot.lane.b32.xlu0 %v2229, 4
      %v2261 = vpop.permute.xlu0 %2260
      %v2262 = vunpack.c.l.b16 %v791
      %v2263 = vunpack.c.l.b16 %v794
      %v2264 = vunpack.c.l.b16 %v798
      %v2265 = vunpack.c.l.b16 %v801
      %v2266 = vunpack.c.l.b16 %v805
      %v2267 = vunpack.c.l.b16 %v808
      %v2268 = vunpack.c.l.b16 %v812
      %v2269 = vunpack.c.l.b16 %v815
      %v2270 = vunpack.c.l.b16 %v819
      %v2271 = vunpack.c.l.b16 %v822
      %v2272 = vunpack.c.l.b16 %v826
      %v2273 = vunpack.c.l.b16 %v829
      %v2274 = vunpack.c.l.b16 %v833
      %v2275 = vunpack.c.l.b16 %v836
      %v2276 = vunpack.c.l.b16 %v840
      %v2277 = vunpack.c.l.b16 %v843
      %v2278 = vunpack.c.l.b16 %v847
      %v2279 = vunpack.c.l.b16 %v850
      %v2280 = vunpack.c.l.b16 %v854
      %v2281 = vunpack.c.l.b16 %v857
      %v2282 = vunpack.c.l.b16 %v861
      %v2283 = vunpack.c.l.b16 %v864
      %v2284 = vunpack.c.l.b16 %v868
      %v2285 = vunpack.c.l.b16 %v871
      %v2286 = vunpack.c.l.b16 %v875
      %v2287 = vunpack.c.l.b16 %v878
      %v2288 = vunpack.c.l.b16 %v882
      %v2289 = vunpack.c.l.b16 %v885
      %v2290 = vunpack.c.l.b16 %v889
      %v2291 = vunpack.c.l.b16 %v892
      %v2292 = vunpack.c.l.b16 %v896
      %v2293 = vunpack.c.l.b16 %v899
      %v2294 = vpack.c.b16 %v2263, %v2262
      %v2295 = vpack.c.b16 %v2265, %v2264
      %v2296 = vpack.c.b16 %v2267, %v2266
      %v2297 = vpack.c.b16 %v2269, %v2268
      %v2298 = vpack.c.b16 %v2271, %v2270
      %v2299 = vpack.c.b16 %v2273, %v2272
      %v2300 = vpack.c.b16 %v2275, %v2274
      %v2301 = vpack.c.b16 %v2277, %v2276
      %v2302 = vpack.c.b16 %v2279, %v2278
      %v2303 = vpack.c.b16 %v2281, %v2280
      %v2304 = vpack.c.b16 %v2283, %v2282
      %v2305 = vpack.c.b16 %v2285, %v2284
      %v2306 = vpack.c.b16 %v2287, %v2286
      %v2307 = vpack.c.b16 %v2289, %v2288
      %v2308 = vpack.c.b16 %v2291, %v2290
      %v2309 = vpack.c.b16 %v2293, %v2292
      %2310 = vrot.lane.b32.xlu0 %v2294, 8
      %v2311 = vpop.permute.xlu0 %2310
      %2312 = vrot.lane.b32.xlu0 %v2295, 8
      %v2313 = vpop.permute.xlu0 %2312
      %2314 = vrot.lane.b32.xlu0 %v2296, 8
      %v2315 = vpop.permute.xlu0 %2314
      %2316 = vrot.lane.b32.xlu0 %v2297, 8
      %v2317 = vpop.permute.xlu0 %2316
      %2318 = vrot.lane.b32.xlu0 %v2298, 8
      %v2319 = vpop.permute.xlu0 %2318
      %2320 = vrot.lane.b32.xlu0 %v2299, 8
      %v2321 = vpop.permute.xlu0 %2320
      %2322 = vrot.lane.b32.xlu0 %v2300, 8
      %v2323 = vpop.permute.xlu0 %2322
      %2324 = vrot.lane.b32.xlu0 %v2301, 8
      %v2325 = vpop.permute.xlu0 %2324
      %2326 = vrot.lane.b32.xlu0 %v2302, 8
      %v2327 = vpop.permute.xlu0 %2326
      %2328 = vrot.lane.b32.xlu0 %v2303, 8
      %v2329 = vpop.permute.xlu0 %2328
      %2330 = vrot.lane.b32.xlu0 %v2304, 8
      %v2331 = vpop.permute.xlu0 %2330
      %2332 = vrot.lane.b32.xlu0 %v2305, 8
      %v2333 = vpop.permute.xlu0 %2332
      %2334 = vrot.lane.b32.xlu0 %v2306, 8
      %v2335 = vpop.permute.xlu0 %2334
      %2336 = vrot.lane.b32.xlu0 %v2307, 8
      %v2337 = vpop.permute.xlu0 %2336
      %2338 = vrot.lane.b32.xlu0 %v2308, 8
      %v2339 = vpop.permute.xlu0 %2338
      %2340 = vrot.lane.b32.xlu0 %v2309, 8
      %v2341 = vpop.permute.xlu0 %2340
      %v2358 = vunpack.c.l.b16 %v901
      %v2359 = vunpack.c.l.b16 %v902
      %v2360 = vunpack.c.l.b16 %v903
      %v2361 = vunpack.c.l.b16 %v904
      %v2362 = vunpack.c.l.b16 %v905
      %v2363 = vunpack.c.l.b16 %v906
      %v2364 = vunpack.c.l.b16 %v907
      %v2365 = vunpack.c.l.b16 %v908
      %v2366 = vunpack.c.l.b16 %v909
      %v2367 = vunpack.c.l.b16 %v910
      %v2368 = vunpack.c.l.b16 %v911
      %v2369 = vunpack.c.l.b16 %v912
      %v2370 = vunpack.c.l.b16 %v913
      %v2371 = vunpack.c.l.b16 %v914
      %v2372 = vunpack.c.l.b16 %v915
      %v2373 = vunpack.c.l.b16 %v916
      %v2374 = vunpack.c.l.b16 %v917
      %v2375 = vunpack.c.l.b16 %v918
      %v2376 = vunpack.c.l.b16 %v919
      %v2377 = vunpack.c.l.b16 %v920
      %v2378 = vunpack.c.l.b16 %v921
      %v2379 = vunpack.c.l.b16 %v922
      %v2380 = vunpack.c.l.b16 %v923
      %v2381 = vunpack.c.l.b16 %v924
      %v2382 = vunpack.c.l.b16 %v925
      %v2383 = vunpack.c.l.b16 %v926
      %v2384 = vunpack.c.l.b16 %v927
      %v2385 = vunpack.c.l.b16 %v928
      %v2386 = vunpack.c.l.b16 %v929
      %v2387 = vunpack.c.l.b16 %v930
      %v2388 = vunpack.c.l.b16 %v931
      %v2389 = vunpack.c.l.b16 %v932
      %v2390 = vpack.c.b16 %v2359, %v2358
      %v2391 = vpack.c.b16 %v2361, %v2360
      %v2392 = vpack.c.b16 %v2363, %v2362
      %v2393 = vpack.c.b16 %v2365, %v2364
      %v2394 = vpack.c.b16 %v2367, %v2366
      %v2395 = vpack.c.b16 %v2369, %v2368
      %v2396 = vpack.c.b16 %v2371, %v2370
      %v2397 = vpack.c.b16 %v2373, %v2372
      %v2398 = vpack.c.b16 %v2375, %v2374
      %v2399 = vpack.c.b16 %v2377, %v2376
      %v2400 = vpack.c.b16 %v2379, %v2378
      %v2401 = vpack.c.b16 %v2381, %v2380
      %v2402 = vpack.c.b16 %v2383, %v2382
      %v2403 = vpack.c.b16 %v2385, %v2384
      %v2404 = vpack.c.b16 %v2387, %v2386
      %v2405 = vpack.c.b16 %v2389, %v2388
      %2406 = vrot.lane.b32.xlu0 %v2390, 12
      %v2407 = vpop.permute.xlu0 %2406
      %2408 = vrot.lane.b32.xlu0 %v2391, 12
      %v2409 = vpop.permute.xlu0 %2408
      %2410 = vrot.lane.b32.xlu0 %v2392, 12
      %v2411 = vpop.permute.xlu0 %2410
      %2412 = vrot.lane.b32.xlu0 %v2393, 12
      %v2413 = vpop.permute.xlu0 %2412
      %2414 = vrot.lane.b32.xlu0 %v2394, 12
      %v2415 = vpop.permute.xlu0 %2414
      %2416 = vrot.lane.b32.xlu0 %v2395, 12
      %v2417 = vpop.permute.xlu0 %2416
      %2418 = vrot.lane.b32.xlu0 %v2396, 12
      %v2419 = vpop.permute.xlu0 %2418
      %2420 = vrot.lane.b32.xlu0 %v2397, 12
      %v2421 = vpop.permute.xlu0 %2420
      %2422 = vrot.lane.b32.xlu0 %v2398, 12
      %v2423 = vpop.permute.xlu0 %2422
      %2424 = vrot.lane.b32.xlu0 %v2399, 12
      %v2425 = vpop.permute.xlu0 %2424
      %2426 = vrot.lane.b32.xlu0 %v2400, 12
      %v2427 = vpop.permute.xlu0 %2426
      %2428 = vrot.lane.b32.xlu0 %v2401, 12
      %v2429 = vpop.permute.xlu0 %2428
      %2430 = vrot.lane.b32.xlu0 %v2402, 12
      %v2431 = vpop.permute.xlu0 %2430
      %2432 = vrot.lane.b32.xlu0 %v2403, 12
      %v2433 = vpop.permute.xlu0 %2432
      %2434 = vrot.lane.b32.xlu0 %v2404, 12
      %v2435 = vpop.permute.xlu0 %2434
      %2436 = vrot.lane.b32.xlu0 %v2405, 12
      %v2437 = vpop.permute.xlu0 %2436
      %v2438 = vunpack.c.l.b16 %v962
      %v2439 = vunpack.c.l.b16 %v972
      %v2440 = vunpack.c.l.b16 %v986
      %v2441 = vunpack.c.l.b16 %v996
      %v2442 = vunpack.c.l.b16 %v1010
      %v2443 = vunpack.c.l.b16 %v1020
      %v2444 = vunpack.c.l.b16 %v1034
      %v2445 = vunpack.c.l.b16 %v1044
      %v2446 = vunpack.c.l.b16 %v1058
      %v2447 = vunpack.c.l.b16 %v1068
      %v2448 = vunpack.c.l.b16 %v1082
      %v2449 = vunpack.c.l.b16 %v1092
      %v2450 = vunpack.c.l.b16 %v1106
      %v2451 = vunpack.c.l.b16 %v1116
      %v2452 = vunpack.c.l.b16 %v1130
      %v2453 = vunpack.c.l.b16 %v1140
      %v2454 = vunpack.c.l.b16 %v1154
      %v2455 = vunpack.c.l.b16 %v1164
      %v2456 = vunpack.c.l.b16 %v1178
      %v2457 = vunpack.c.l.b16 %v1188
      %v2458 = vunpack.c.l.b16 %v1202
      %v2459 = vunpack.c.l.b16 %v1212
      %v2460 = vunpack.c.l.b16 %v1226
      %v2461 = vunpack.c.l.b16 %v1236
      %v2462 = vunpack.c.l.b16 %v1250
      %v2463 = vunpack.c.l.b16 %v1260
      %v2464 = vunpack.c.l.b16 %v1274
      %v2465 = vunpack.c.l.b16 %v1284
      %v2466 = vunpack.c.l.b16 %v1298
      %v2467 = vunpack.c.l.b16 %v1308
      %v2468 = vunpack.c.l.b16 %v1322
      %v2469 = vunpack.c.l.b16 %v1332
      %v2470 = vpack.c.b16 %v2439, %v2438
      %v2471 = vpack.c.b16 %v2441, %v2440
      %v2472 = vpack.c.b16 %v2443, %v2442
      %v2473 = vpack.c.b16 %v2445, %v2444
      %v2474 = vpack.c.b16 %v2447, %v2446
      %v2475 = vpack.c.b16 %v2449, %v2448
      %v2476 = vpack.c.b16 %v2451, %v2450
      %v2477 = vpack.c.b16 %v2453, %v2452
      %v2478 = vpack.c.b16 %v2455, %v2454
      %v2479 = vpack.c.b16 %v2457, %v2456
      %v2480 = vpack.c.b16 %v2459, %v2458
      %v2481 = vpack.c.b16 %v2461, %v2460
      %v2482 = vpack.c.b16 %v2463, %v2462
      %v2483 = vpack.c.b16 %v2465, %v2464
      %v2484 = vpack.c.b16 %v2467, %v2466
      %v2485 = vpack.c.b16 %v2469, %v2468
      %2486 = vrot.lane.b32.xlu0 %v2470, 16
      %v2487 = vpop.permute.xlu0 %2486
      %2488 = vrot.lane.b32.xlu0 %v2471, 16
      %v2489 = vpop.permute.xlu0 %2488
      %2490 = vrot.lane.b32.xlu0 %v2472, 16
      %v2491 = vpop.permute.xlu0 %2490
      %2492 = vrot.lane.b32.xlu0 %v2473, 16
      %v2493 = vpop.permute.xlu0 %2492
      %2494 = vrot.lane.b32.xlu0 %v2474, 16
      %v2495 = vpop.permute.xlu0 %2494
      %2496 = vrot.lane.b32.xlu0 %v2475, 16
      %v2497 = vpop.permute.xlu0 %2496
      %2498 = vrot.lane.b32.xlu0 %v2476, 16
      %v2499 = vpop.permute.xlu0 %2498
      %2500 = vrot.lane.b32.xlu0 %v2477, 16
      %v2501 = vpop.permute.xlu0 %2500
      %2502 = vrot.lane.b32.xlu0 %v2478, 16
      %v2503 = vpop.permute.xlu0 %2502
      %2504 = vrot.lane.b32.xlu0 %v2479, 16
      %v2505 = vpop.permute.xlu0 %2504
      %2506 = vrot.lane.b32.xlu0 %v2480, 16
      %v2507 = vpop.permute.xlu0 %2506
      %2508 = vrot.lane.b32.xlu0 %v2481, 16
      %v2509 = vpop.permute.xlu0 %2508
      %2510 = vrot.lane.b32.xlu0 %v2482, 16
      %v2511 = vpop.permute.xlu0 %2510
      %2512 = vrot.lane.b32.xlu0 %v2483, 16
      %v2513 = vpop.permute.xlu0 %2512
      %2514 = vrot.lane.b32.xlu0 %v2484, 16
      %v2515 = vpop.permute.xlu0 %2514
      %2516 = vrot.lane.b32.xlu0 %v2485, 16
      %v2517 = vpop.permute.xlu0 %2516
      %v2518 = vunpack.c.l.b16 %v1400
      %v2519 = vunpack.c.l.b16 %v1403
      %v2520 = vunpack.c.l.b16 %v1407
      %v2521 = vunpack.c.l.b16 %v1410
      %v2522 = vunpack.c.l.b16 %v1414
      %v2523 = vunpack.c.l.b16 %v1417
      %v2524 = vunpack.c.l.b16 %v1421
      %v2525 = vunpack.c.l.b16 %v1424
      %v2526 = vunpack.c.l.b16 %v1428
      %v2527 = vunpack.c.l.b16 %v1431
      %v2528 = vunpack.c.l.b16 %v1435
      %v2529 = vunpack.c.l.b16 %v1438
      %v2530 = vunpack.c.l.b16 %v1442
      %v2531 = vunpack.c.l.b16 %v1445
      %v2532 = vunpack.c.l.b16 %v1449
      %v2533 = vunpack.c.l.b16 %v1452
      %v2534 = vunpack.c.l.b16 %v1456
      %v2535 = vunpack.c.l.b16 %v1459
      %v2536 = vunpack.c.l.b16 %v1463
      %v2537 = vunpack.c.l.b16 %v1466
      %v2538 = vunpack.c.l.b16 %v1470
      %v2539 = vunpack.c.l.b16 %v1473
      %v2540 = vunpack.c.l.b16 %v1477
      %v2541 = vunpack.c.l.b16 %v1480
      %v2542 = vunpack.c.l.b16 %v1484
      %v2543 = vunpack.c.l.b16 %v1487
      %v2544 = vunpack.c.l.b16 %v1491
      %v2545 = vunpack.c.l.b16 %v1494
      %v2546 = vunpack.c.l.b16 %v1498
      %v2547 = vunpack.c.l.b16 %v1501
      %v2548 = vunpack.c.l.b16 %v1505
      %v2549 = vunpack.c.l.b16 %v1508
      %v2550 = vpack.c.b16 %v2519, %v2518
      %v2551 = vpack.c.b16 %v2521, %v2520
      %v2552 = vpack.c.b16 %v2523, %v2522
      %v2553 = vpack.c.b16 %v2525, %v2524
      %v2554 = vpack.c.b16 %v2527, %v2526
      %v2555 = vpack.c.b16 %v2529, %v2528
      %v2556 = vpack.c.b16 %v2531, %v2530
      %v2557 = vpack.c.b16 %v2533, %v2532
      %v2558 = vpack.c.b16 %v2535, %v2534
      %v2559 = vpack.c.b16 %v2537, %v2536
      %v2560 = vpack.c.b16 %v2539, %v2538
      %v2561 = vpack.c.b16 %v2541, %v2540
      %v2562 = vpack.c.b16 %v2543, %v2542
      %v2563 = vpack.c.b16 %v2545, %v2544
      %v2564 = vpack.c.b16 %v2547, %v2546
      %v2565 = vpack.c.b16 %v2549, %v2548
      %2566 = vrot.lane.b32.xlu0 %v2550, 20
      %v2567 = vpop.permute.xlu0 %2566
      %2568 = vrot.lane.b32.xlu0 %v2551, 20
      %v2569 = vpop.permute.xlu0 %2568
      %2570 = vrot.lane.b32.xlu0 %v2552, 20
      %v2571 = vpop.permute.xlu0 %2570
      %2572 = vrot.lane.b32.xlu0 %v2553, 20
      %v2573 = vpop.permute.xlu0 %2572
      %2574 = vrot.lane.b32.xlu0 %v2554, 20
      %v2575 = vpop.permute.xlu0 %2574
      %2576 = vrot.lane.b32.xlu0 %v2555, 20
      %v2577 = vpop.permute.xlu0 %2576
      %2578 = vrot.lane.b32.xlu0 %v2556, 20
      %v2579 = vpop.permute.xlu0 %2578
      %2580 = vrot.lane.b32.xlu0 %v2557, 20
      %v2581 = vpop.permute.xlu0 %2580
      %2582 = vrot.lane.b32.xlu0 %v2558, 20
      %v2583 = vpop.permute.xlu0 %2582
      %2584 = vrot.lane.b32.xlu0 %v2559, 20
      %v2585 = vpop.permute.xlu0 %2584
      %2586 = vrot.lane.b32.xlu0 %v2560, 20
      %v2587 = vpop.permute.xlu0 %2586
      %2588 = vrot.lane.b32.xlu0 %v2561, 20
      %v2589 = vpop.permute.xlu0 %2588
      %2590 = vrot.lane.b32.xlu0 %v2562, 20
      %v2591 = vpop.permute.xlu0 %2590
      %2592 = vrot.lane.b32.xlu0 %v2563, 20
      %v2593 = vpop.permute.xlu0 %2592
      %2594 = vrot.lane.b32.xlu0 %v2564, 20
      %v2595 = vpop.permute.xlu0 %2594
      %2596 = vrot.lane.b32.xlu0 %v2565, 20
      %v2597 = vpop.permute.xlu0 %2596
      %v2614 = vunpack.c.l.b16 %v1510
      %v2615 = vunpack.c.l.b16 %v1511
      %v2616 = vunpack.c.l.b16 %v1512
      %v2617 = vunpack.c.l.b16 %v1513
      %v2618 = vunpack.c.l.b16 %v1514
      %v2619 = vunpack.c.l.b16 %v1515
      %v2620 = vunpack.c.l.b16 %v1516
      %v2621 = vunpack.c.l.b16 %v1517
      %v2622 = vunpack.c.l.b16 %v1518
      %v2623 = vunpack.c.l.b16 %v1519
      %v2624 = vunpack.c.l.b16 %v1520
      %v2625 = vunpack.c.l.b16 %v1521
      %v2626 = vunpack.c.l.b16 %v1522
      %v2627 = vunpack.c.l.b16 %v1523
      %v2628 = vunpack.c.l.b16 %v1524
      %v2629 = vunpack.c.l.b16 %v1525
      %v2630 = vunpack.c.l.b16 %v1526
      %v2631 = vunpack.c.l.b16 %v1527
      %v2632 = vunpack.c.l.b16 %v1528
      %v2633 = vunpack.c.l.b16 %v1529
      %v2634 = vunpack.c.l.b16 %v1530
      %v2635 = vunpack.c.l.b16 %v1531
      %v2636 = vunpack.c.l.b16 %v1532
      %v2637 = vunpack.c.l.b16 %v1533
      %v2638 = vunpack.c.l.b16 %v1534
      %v2639 = vunpack.c.l.b16 %v1535
      %v2640 = vunpack.c.l.b16 %v1536
      %v2641 = vunpack.c.l.b16 %v1537
      %v2642 = vunpack.c.l.b16 %v1538
      %v2643 = vunpack.c.l.b16 %v1539
      %v2644 = vunpack.c.l.b16 %v1540
      %v2645 = vunpack.c.l.b16 %v1541
      %v2646 = vpack.c.b16 %v2615, %v2614
      %v2647 = vpack.c.b16 %v2617, %v2616
      %v2648 = vpack.c.b16 %v2619, %v2618
      %v2649 = vpack.c.b16 %v2621, %v2620
      %v2650 = vpack.c.b16 %v2623, %v2622
      %v2651 = vpack.c.b16 %v2625, %v2624
      %v2652 = vpack.c.b16 %v2627, %v2626
      %v2653 = vpack.c.b16 %v2629, %v2628
      %v2654 = vpack.c.b16 %v2631, %v2630
      %v2655 = vpack.c.b16 %v2633, %v2632
      %v2656 = vpack.c.b16 %v2635, %v2634
      %v2657 = vpack.c.b16 %v2637, %v2636
      %v2658 = vpack.c.b16 %v2639, %v2638
      %v2659 = vpack.c.b16 %v2641, %v2640
      %v2660 = vpack.c.b16 %v2643, %v2642
      %v2661 = vpack.c.b16 %v2645, %v2644
      %2662 = vrot.lane.b32.xlu0 %v2646, 24
      %v2663 = vpop.permute.xlu0 %2662
      %2664 = vrot.lane.b32.xlu0 %v2647, 24
      %v2665 = vpop.permute.xlu0 %2664
      %2666 = vrot.lane.b32.xlu0 %v2648, 24
      %v2667 = vpop.permute.xlu0 %2666
      %2668 = vrot.lane.b32.xlu0 %v2649, 24
      %v2669 = vpop.permute.xlu0 %2668
      %2670 = vrot.lane.b32.xlu0 %v2650, 24
      %v2671 = vpop.permute.xlu0 %2670
      %2672 = vrot.lane.b32.xlu0 %v2651, 24
      %v2673 = vpop.permute.xlu0 %2672
      %2674 = vrot.lane.b32.xlu0 %v2652, 24
      %v2675 = vpop.permute.xlu0 %2674
      %2676 = vrot.lane.b32.xlu0 %v2653, 24
      %v2677 = vpop.permute.xlu0 %2676
      %2678 = vrot.lane.b32.xlu0 %v2654, 24
      %v2679 = vpop.permute.xlu0 %2678
      %2680 = vrot.lane.b32.xlu0 %v2655, 24
      %v2681 = vpop.permute.xlu0 %2680
      %2682 = vrot.lane.b32.xlu0 %v2656, 24
      %v2683 = vpop.permute.xlu0 %2682
      %2684 = vrot.lane.b32.xlu0 %v2657, 24
      %v2685 = vpop.permute.xlu0 %2684
      %2686 = vrot.lane.b32.xlu0 %v2658, 24
      %v2687 = vpop.permute.xlu0 %2686
      %2688 = vrot.lane.b32.xlu0 %v2659, 24
      %v2689 = vpop.permute.xlu0 %2688
      %2690 = vrot.lane.b32.xlu0 %v2660, 24
      %v2691 = vpop.permute.xlu0 %2690
      %2692 = vrot.lane.b32.xlu0 %v2661, 24
      %v2693 = vpop.permute.xlu0 %2692
      %v2694 = vunpack.c.l.b16 %v1571
      %v2695 = vunpack.c.l.b16 %v1581
      %v2696 = vunpack.c.l.b16 %v1595
      %v2697 = vunpack.c.l.b16 %v1605
      %v2698 = vunpack.c.l.b16 %v1619
      %v2699 = vunpack.c.l.b16 %v1629
      %v2700 = vunpack.c.l.b16 %v1643
      %v2701 = vunpack.c.l.b16 %v1653
      %v2702 = vunpack.c.l.b16 %v1667
      %v2703 = vunpack.c.l.b16 %v1677
      %v2704 = vunpack.c.l.b16 %v1691
      %v2705 = vunpack.c.l.b16 %v1701
      %v2706 = vunpack.c.l.b16 %v1715
      %v2707 = vunpack.c.l.b16 %v1725
      %v2708 = vunpack.c.l.b16 %v1739
      %v2709 = vunpack.c.l.b16 %v1749
      %v2710 = vunpack.c.l.b16 %v1763
      %v2711 = vunpack.c.l.b16 %v1773
      %v2712 = vunpack.c.l.b16 %v1787
      %v2713 = vunpack.c.l.b16 %v1797
      %v2714 = vunpack.c.l.b16 %v1811
      %v2715 = vunpack.c.l.b16 %v1821
      %v2716 = vunpack.c.l.b16 %v1835
      %v2717 = vunpack.c.l.b16 %v1845
      %v2718 = vunpack.c.l.b16 %v1859
      %v2719 = vunpack.c.l.b16 %v1869
      %v2720 = vunpack.c.l.b16 %v1883
      %v2721 = vunpack.c.l.b16 %v1893
      %v2722 = vunpack.c.l.b16 %v1907
      %v2723 = vunpack.c.l.b16 %v1917
      %v2724 = vunpack.c.l.b16 %v1931
      %v2725 = vunpack.c.l.b16 %v1941
      %v2726 = vpack.c.b16 %v2695, %v2694
      %v2727 = vpack.c.b16 %v2697, %v2696
      %v2728 = vpack.c.b16 %v2699, %v2698
      %v2729 = vpack.c.b16 %v2701, %v2700
      %v2730 = vpack.c.b16 %v2703, %v2702
      %v2731 = vpack.c.b16 %v2705, %v2704
      %v2732 = vpack.c.b16 %v2707, %v2706
      %v2733 = vpack.c.b16 %v2709, %v2708
      %v2734 = vpack.c.b16 %v2711, %v2710
      %v2735 = vpack.c.b16 %v2713, %v2712
      %v2736 = vpack.c.b16 %v2715, %v2714
      %v2737 = vpack.c.b16 %v2717, %v2716
      %v2738 = vpack.c.b16 %v2719, %v2718
      %v2739 = vpack.c.b16 %v2721, %v2720
      %v2740 = vpack.c.b16 %v2723, %v2722
      %v2741 = vpack.c.b16 %v2725, %v2724
      %2742 = vrot.lane.b32.xlu0 %v2726, 28
      %v2743 = vpop.permute.xlu0 %2742
      %2744 = vrot.lane.b32.xlu0 %v2727, 28
      %v2745 = vpop.permute.xlu0 %2744
      %2746 = vrot.lane.b32.xlu0 %v2728, 28
      %v2747 = vpop.permute.xlu0 %2746
      %2748 = vrot.lane.b32.xlu0 %v2729, 28
      %v2749 = vpop.permute.xlu0 %2748
      %2750 = vrot.lane.b32.xlu0 %v2730, 28
      %v2751 = vpop.permute.xlu0 %2750
      %2752 = vrot.lane.b32.xlu0 %v2731, 28
      %v2753 = vpop.permute.xlu0 %2752
      %2754 = vrot.lane.b32.xlu0 %v2732, 28
      %v2755 = vpop.permute.xlu0 %2754
      %2756 = vrot.lane.b32.xlu0 %v2733, 28
      %v2757 = vpop.permute.xlu0 %2756
      %2758 = vrot.lane.b32.xlu0 %v2734, 28
      %v2759 = vpop.permute.xlu0 %2758
      %2760 = vrot.lane.b32.xlu0 %v2735, 28
      %v2761 = vpop.permute.xlu0 %2760
      %2762 = vrot.lane.b32.xlu0 %v2736, 28
      %v2763 = vpop.permute.xlu0 %2762
      %2764 = vrot.lane.b32.xlu0 %v2737, 28
      %v2765 = vpop.permute.xlu0 %2764
      %2766 = vrot.lane.b32.xlu0 %v2738, 28
      %v2767 = vpop.permute.xlu0 %2766
      %2768 = vrot.lane.b32.xlu0 %v2739, 28
      %v2769 = vpop.permute.xlu0 %2768
      %2770 = vrot.lane.b32.xlu0 %v2740, 28
      %v2771 = vpop.permute.xlu0 %2770
      %2772 = vrot.lane.b32.xlu0 %v2741, 28
      %v2773 = vpop.permute.xlu0 %2772
      %v2774 = vunpack.c.l.b16 %v2009
      %v2775 = vunpack.c.l.b16 %v2012
      %v2776 = vunpack.c.l.b16 %v2016
      %v2777 = vunpack.c.l.b16 %v2019
      %v2778 = vunpack.c.l.b16 %v2023
      %v2779 = vunpack.c.l.b16 %v2026
      %v2780 = vunpack.c.l.b16 %v2030
      %v2781 = vunpack.c.l.b16 %v2033
      %v2782 = vunpack.c.l.b16 %v2037
      %v2783 = vunpack.c.l.b16 %v2040
      %v2784 = vunpack.c.l.b16 %v2044
      %v2785 = vunpack.c.l.b16 %v2047
      %v2786 = vunpack.c.l.b16 %v2051
      %v2787 = vunpack.c.l.b16 %v2054
      %v2788 = vunpack.c.l.b16 %v2058
      %v2789 = vunpack.c.l.b16 %v2061
      %v2790 = vunpack.c.l.b16 %v2065
      %v2791 = vunpack.c.l.b16 %v2068
      %v2792 = vunpack.c.l.b16 %v2072
      %v2793 = vunpack.c.l.b16 %v2075
      %v2794 = vunpack.c.l.b16 %v2079
      %v2795 = vunpack.c.l.b16 %v2082
      %v2796 = vunpack.c.l.b16 %v2086
      %v2797 = vunpack.c.l.b16 %v2089
      %v2798 = vunpack.c.l.b16 %v2093
      %v2799 = vunpack.c.l.b16 %v2096
      %v2800 = vunpack.c.l.b16 %v2100
      %v2801 = vunpack.c.l.b16 %v2103
      %v2802 = vunpack.c.l.b16 %v2107
      %v2803 = vunpack.c.l.b16 %v2110
      %v2804 = vunpack.c.l.b16 %v2114
      %v2805 = vunpack.c.l.b16 %v2117
      %v2806 = vpack.c.b16 %v2775, %v2774
      %v2807 = vpack.c.b16 %v2777, %v2776
      %v2808 = vpack.c.b16 %v2779, %v2778
      %v2809 = vpack.c.b16 %v2781, %v2780
      %v2810 = vpack.c.b16 %v2783, %v2782
      %v2811 = vpack.c.b16 %v2785, %v2784
      %v2812 = vpack.c.b16 %v2787, %v2786
      %v2813 = vpack.c.b16 %v2789, %v2788
      %v2814 = vpack.c.b16 %v2791, %v2790
      %v2815 = vpack.c.b16 %v2793, %v2792
      %v2816 = vpack.c.b16 %v2795, %v2794
      %v2817 = vpack.c.b16 %v2797, %v2796
      %v2818 = vpack.c.b16 %v2799, %v2798
      %v2819 = vpack.c.b16 %v2801, %v2800
      %v2820 = vpack.c.b16 %v2803, %v2802
      %v2821 = vpack.c.b16 %v2805, %v2804
      %2822 = vrot.lane.b32.xlu0 %v2806, 32
      %v2823 = vpop.permute.xlu0 %2822
      %2824 = vrot.lane.b32.xlu0 %v2807, 32
      %v2825 = vpop.permute.xlu0 %2824
      %2826 = vrot.lane.b32.xlu0 %v2808, 32
      %v2827 = vpop.permute.xlu0 %2826
      %2828 = vrot.lane.b32.xlu0 %v2809, 32
      %v2829 = vpop.permute.xlu0 %2828
      %2830 = vrot.lane.b32.xlu0 %v2810, 32
      %v2831 = vpop.permute.xlu0 %2830
      %2832 = vrot.lane.b32.xlu0 %v2811, 32
      %v2833 = vpop.permute.xlu0 %2832
      %2834 = vrot.lane.b32.xlu0 %v2812, 32
      %v2835 = vpop.permute.xlu0 %2834
      %2836 = vrot.lane.b32.xlu0 %v2813, 32
      %v2837 = vpop.permute.xlu0 %2836
      %2838 = vrot.lane.b32.xlu0 %v2814, 32
      %v2839 = vpop.permute.xlu0 %2838
      %2840 = vrot.lane.b32.xlu0 %v2815, 32
      %v2841 = vpop.permute.xlu0 %2840
      %2842 = vrot.lane.b32.xlu0 %v2816, 32
      %v2843 = vpop.permute.xlu0 %2842
      %2844 = vrot.lane.b32.xlu0 %v2817, 32
      %v2845 = vpop.permute.xlu0 %2844
      %2846 = vrot.lane.b32.xlu0 %v2818, 32
      %v2847 = vpop.permute.xlu0 %2846
      %2848 = vrot.lane.b32.xlu0 %v2819, 32
      %v2849 = vpop.permute.xlu0 %2848
      %2850 = vrot.lane.b32.xlu0 %v2820, 32
      %v2851 = vpop.permute.xlu0 %2850
      %2852 = vrot.lane.b32.xlu0 %v2821, 32
      %v2853 = vpop.permute.xlu0 %2852
      %vm2854 = vcmask 31744
      %v2857 = vsel %vm2854, %v2166, %v2231
      %v2860 = vsel %vm2854, %v2167, %v2233
      %v2863 = vsel %vm2854, %v2168, %v2235
      %v2866 = vsel %vm2854, %v2169, %v2237
      %v2869 = vsel %vm2854, %v2170, %v2239
      %v2872 = vsel %vm2854, %v2171, %v2241
      %v2875 = vsel %vm2854, %v2172, %v2243
      %v2878 = vsel %vm2854, %v2173, %v2245
      %v2881 = vsel %vm2854, %v2174, %v2247
      %v2884 = vsel %vm2854, %v2175, %v2249
      %v2887 = vsel %vm2854, %v2176, %v2251
      %v2890 = vsel %vm2854, %v2177, %v2253
      %v2893 = vsel %vm2854, %v2178, %v2255
      %v2896 = vsel %vm2854, %v2179, %v2257
      %v2899 = vsel %vm2854, %v2180, %v2259
      %v2902 = vsel %vm2854, %v2181, %v2261
      %vm2903 = vcmask 64512
      %v2905 = vsel %vm2903, %v2857, %v2311
      %v2907 = vsel %vm2903, %v2860, %v2313
      %v2909 = vsel %vm2903, %v2863, %v2315
      %v2911 = vsel %vm2903, %v2866, %v2317
      %v2913 = vsel %vm2903, %v2869, %v2319
      %v2915 = vsel %vm2903, %v2872, %v2321
      %v2917 = vsel %vm2903, %v2875, %v2323
      %v2919 = vsel %vm2903, %v2878, %v2325
      %v2921 = vsel %vm2903, %v2881, %v2327
      %v2923 = vsel %vm2903, %v2884, %v2329
      %v2925 = vsel %vm2903, %v2887, %v2331
      %v2927 = vsel %vm2903, %v2890, %v2333
      %v2929 = vsel %vm2903, %v2893, %v2335
      %v2931 = vsel %vm2903, %v2896, %v2337
      %v2933 = vsel %vm2903, %v2899, %v2339
      %v2935 = vsel %vm2903, %v2902, %v2341
      %vm2936 = vcmask 97280
      %v2938 = vsel %vm2936, %v2905, %v2407
      %v2940 = vsel %vm2936, %v2907, %v2409
      %v2942 = vsel %vm2936, %v2909, %v2411
      %v2944 = vsel %vm2936, %v2911, %v2413
      %v2946 = vsel %vm2936, %v2913, %v2415
      %v2948 = vsel %vm2936, %v2915, %v2417
      %v2950 = vsel %vm2936, %v2917, %v2419
      %v2952 = vsel %vm2936, %v2919, %v2421
      %v2954 = vsel %vm2936, %v2921, %v2423
      %v2956 = vsel %vm2936, %v2923, %v2425
      %v2958 = vsel %vm2936, %v2925, %v2427
      %v2960 = vsel %vm2936, %v2927, %v2429
      %v2962 = vsel %vm2936, %v2929, %v2431
      %v2964 = vsel %vm2936, %v2931, %v2433
      %v2966 = vsel %vm2936, %v2933, %v2435
      %v2968 = vsel %vm2936, %v2935, %v2437
      %vm2969 = vcmask 130048
      %v2971 = vsel %vm2969, %v2938, %v2487
      %v2973 = vsel %vm2969, %v2940, %v2489
      %v2975 = vsel %vm2969, %v2942, %v2491
      %v2977 = vsel %vm2969, %v2944, %v2493
      %v2979 = vsel %vm2969, %v2946, %v2495
      %v2981 = vsel %vm2969, %v2948, %v2497
      %v2983 = vsel %vm2969, %v2950, %v2499
      %v2985 = vsel %vm2969, %v2952, %v2501
      %v2987 = vsel %vm2969, %v2954, %v2503
      %v2989 = vsel %vm2969, %v2956, %v2505
      %v2991 = vsel %vm2969, %v2958, %v2507
      %v2993 = vsel %vm2969, %v2960, %v2509
      %v2995 = vsel %vm2969, %v2962, %v2511
      %v2997 = vsel %vm2969, %v2964, %v2513
      %v2999 = vsel %vm2969, %v2966, %v2515
      %v3001 = vsel %vm2969, %v2968, %v2517
      %vm3002 = vcmask 162816
      %v3004 = vsel %vm3002, %v2971, %v2567
      %v3006 = vsel %vm3002, %v2973, %v2569
      %v3008 = vsel %vm3002, %v2975, %v2571
      %v3010 = vsel %vm3002, %v2977, %v2573
      %v3012 = vsel %vm3002, %v2979, %v2575
      %v3014 = vsel %vm3002, %v2981, %v2577
      %v3016 = vsel %vm3002, %v2983, %v2579
      %v3018 = vsel %vm3002, %v2985, %v2581
      %v3020 = vsel %vm3002, %v2987, %v2583
      %v3022 = vsel %vm3002, %v2989, %v2585
      %v3024 = vsel %vm3002, %v2991, %v2587
      %v3026 = vsel %vm3002, %v2993, %v2589
      %v3028 = vsel %vm3002, %v2995, %v2591
      %v3030 = vsel %vm3002, %v2997, %v2593
      %v3032 = vsel %vm3002, %v2999, %v2595
      %v3034 = vsel %vm3002, %v3001, %v2597
      %vm3035 = vcmask 195584
      %v3037 = vsel %vm3035, %v3004, %v2663
      %v3039 = vsel %vm3035, %v3006, %v2665
      %v3041 = vsel %vm3035, %v3008, %v2667
      %v3043 = vsel %vm3035, %v3010, %v2669
      %v3045 = vsel %vm3035, %v3012, %v2671
      %v3047 = vsel %vm3035, %v3014, %v2673
      %v3049 = vsel %vm3035, %v3016, %v2675
      %v3051 = vsel %vm3035, %v3018, %v2677
      %v3053 = vsel %vm3035, %v3020, %v2679
      %v3055 = vsel %vm3035, %v3022, %v2681
      %v3057 = vsel %vm3035, %v3024, %v2683
      %v3059 = vsel %vm3035, %v3026, %v2685
      %v3061 = vsel %vm3035, %v3028, %v2687
      %v3063 = vsel %vm3035, %v3030, %v2689
      %v3065 = vsel %vm3035, %v3032, %v2691
      %v3067 = vsel %vm3035, %v3034, %v2693
      %vm3068 = vcmask 228352
      %v3070 = vsel %vm3068, %v3037, %v2743
      %v3072 = vsel %vm3068, %v3039, %v2745
      %v3074 = vsel %vm3068, %v3041, %v2747
      %v3076 = vsel %vm3068, %v3043, %v2749
      %v3078 = vsel %vm3068, %v3045, %v2751
      %v3080 = vsel %vm3068, %v3047, %v2753
      %v3082 = vsel %vm3068, %v3049, %v2755
      %v3084 = vsel %vm3068, %v3051, %v2757
      %v3086 = vsel %vm3068, %v3053, %v2759
      %v3088 = vsel %vm3068, %v3055, %v2761
      %v3090 = vsel %vm3068, %v3057, %v2763
      %v3092 = vsel %vm3068, %v3059, %v2765
      %v3094 = vsel %vm3068, %v3061, %v2767
      %v3096 = vsel %vm3068, %v3063, %v2769
      %v3098 = vsel %vm3068, %v3065, %v2771
      %v3100 = vsel %vm3068, %v3067, %v2773
      %vm3101 = vcmask 261120
      %v3103 = vsel %vm3101, %v3070, %v2823
      %v3105 = vsel %vm3101, %v3072, %v2825
      %v3107 = vsel %vm3101, %v3074, %v2827
      %v3109 = vsel %vm3101, %v3076, %v2829
      %v3111 = vsel %vm3101, %v3078, %v2831
      %v3113 = vsel %vm3101, %v3080, %v2833
      %v3115 = vsel %vm3101, %v3082, %v2835
      %v3117 = vsel %vm3101, %v3084, %v2837
      %v3119 = vsel %vm3101, %v3086, %v2839
      %v3121 = vsel %vm3101, %v3088, %v2841
      %v3123 = vsel %vm3101, %v3090, %v2843
      %v3125 = vsel %vm3101, %v3092, %v2845
      %v3127 = vsel %vm3101, %v3094, %v2847
      %v3129 = vsel %vm3101, %v3096, %v2849
      %v3131 = vsel %vm3101, %v3098, %v2851
      %v3133 = vsel %vm3101, %v3100, %v2853
      %v3134 = vld [vmem:[%s1] sm:$0xf]
      %v3135 = vld [vmem:[%s1 + $0x4] sm:$0xf]
      %v3136 = vld [vmem:[%s1 + $0x8] sm:$0xf]
      %v3137 = vld [vmem:[%s1 + $0xc] sm:$0xf]
      %v3138 = vld [vmem:[%s1 + $0x10] sm:$0x3]
      %v3144 = vunpack.c.l.b16 %v3134
      %v3145 = vunpack.c.l.b16 %v3135
      %v3146 = vunpack.c.l.b16 %v3136
      %v3147 = vunpack.c.l.b16 %v3137
      %v3148 = vunpack.c.l.b16 %v3138
      %v3149 = vpack.c.b16 %v3145, %v3144
      %v3150 = vpack.c.b16 %v3147, %v3146
      %v3151 = vpack.c.b16 %v3148, %v3148
      %vm3154 = vcmask 293888
      %v3155 = vsel %vm3154, %v3103, 0
      %v3157 = vsel %vm3154, %v3105, 0
      %v3159 = vsel %vm3154, %v3107, 0
      %v3161 = vsel %vm3154, %v3109, 0
      %v3163 = vsel %vm3154, %v3111, 0
      %v3165 = vsel %vm3154, %v3113, 0
      %v3167 = vsel %vm3154, %v3115, 0
      %v3169 = vsel %vm3154, %v3117, 0
      %v3171 = vsel %vm3154, %v3119, 0
      %v3173 = vsel %vm3154, %v3121, 0
      %v3175 = vsel %vm3154, %v3123, 0
      %v3177 = vsel %vm3154, %v3125, 0
      %v3179 = vsel %vm3154, %v3127, 0
      %v3181 = vsel %vm3154, %v3129, 0
      %v3183 = vsel %vm3154, %v3131, 0
      %v3185 = vsel %vm3154, %v3133, 0
      %vm3187 = vcmask 1041408
      %v3189 = vsel %vm3187, %v3151, 0
      %3191 = vmatprep.subr.bf16.mxu0 0
      %3192 = vmatpush1.bf16.msra.mxu0 0
      %3193 = vmatprep.subr.bf16.mxu0 0
      %3194 = vmatpush1.bf16.msra.mxu0 0
      %3195 = vmatprep.subr.bf16.mxu0 0
      %3196 = vmatpush1.bf16.msra.mxu0 0
      %3197 = vmatprep.subr.bf16.mxu0 0
      %3198 = vmatpush1.bf16.msra.mxu0 0
      %3199 = vmatprep.subr.bf16.mxu0 0
      %3200 = vmatpush1.bf16.msra.mxu0 0
      %3201 = vmatprep.subr.bf16.mxu0 0
      %3202 = vmatpush1.bf16.msra.mxu0 %v3189
      %3203 = vmatprep.subr.bf16.mxu0 0
      %3204 = vmatpush1.bf16.msra.mxu0 %v3150
      %3205 = vmatprep.subr.bf16.mxu0 0
      %3206 = vmatpush1.bf16.msra.mxu0 %v3149
      %3207 = vmatprep.subr.bf16.mxu0 0
      %3208 = vmatpush2.bf16.msra.mxu0 0
      %3209 = vmatprep.subr.bf16.mxu0 0
      %3210 = vmatpush2.bf16.msra.mxu0 0
      %3211 = vmatprep.subr.bf16.mxu0 0
      %3212 = vmatpush2.bf16.msra.mxu0 0
      %3213 = vmatprep.subr.bf16.mxu0 0
      %3214 = vmatpush2.bf16.msra.mxu0 0
      %3215 = vmatprep.subr.bf16.mxu0 0
      %3216 = vmatpush2.bf16.msra.mxu0 0
      %3217 = vmatprep.subr.bf16.mxu0 0
      %3218 = vmatpush2.bf16.msra.mxu0 0
      %3219 = vmatprep.subr.bf16.mxu0 0
      %3220 = vmatpush2.bf16.msra.mxu0 0
      %3221 = vmatprep.subr.bf16.mxu0 0
      %3222 = vmatpush2.bf16.msra.mxu0 0
      %3223 = vmatprep.mubr.bf16.mxu0 0
      %3224 = vmatmul.mubr.bf16.gmra.mxu0 %v3155
      %v3225 = vpop.f32.mrf.mxu0
      %v3226 = vadd.f32 0.0, %v3225
      %v3227 = vpop.f32.mrf.mxu0
      %v3228 = vpop.f32.mrf.mxu0
      %v3229 = vadd.f32 0.0, %v3228
      %v3230 = vpop.f32.mrf.mxu0
      %3231 = vmatprep.mubr.bf16.mxu0 0
      %3232 = vmatmul.mubr.bf16.gmra.mxu0 %v3157
      %v3233 = vpop.f32.mrf.mxu0
      %v3234 = vadd.f32 0.0, %v3233
      %v3235 = vpop.f32.mrf.mxu0
      %v3236 = vpop.f32.mrf.mxu0
      %v3237 = vadd.f32 0.0, %v3236
      %v3238 = vpop.f32.mrf.mxu0
      %3239 = vmatprep.mubr.bf16.mxu0 0
      %3240 = vmatmul.mubr.bf16.gmra.mxu0 %v3159
      %v3241 = vpop.f32.mrf.mxu0
      %v3242 = vadd.f32 0.0, %v3241
      %v3243 = vpop.f32.mrf.mxu0
      %v3244 = vpop.f32.mrf.mxu0
      %v3245 = vadd.f32 0.0, %v3244
      %v3246 = vpop.f32.mrf.mxu0
      %3247 = vmatprep.mubr.bf16.mxu0 0
      %3248 = vmatmul.mubr.bf16.gmra.mxu0 %v3161
      %v3249 = vpop.f32.mrf.mxu0
      %v3250 = vadd.f32 0.0, %v3249
      %v3251 = vpop.f32.mrf.mxu0
      %v3252 = vpop.f32.mrf.mxu0
      %v3253 = vadd.f32 0.0, %v3252
      %v3254 = vpop.f32.mrf.mxu0
      %3255 = vmatprep.mubr.bf16.mxu0 0
      %3256 = vmatmul.mubr.bf16.gmra.mxu0 %v3163
      %v3257 = vpop.f32.mrf.mxu0
      %v3258 = vadd.f32 0.0, %v3257
      %v3259 = vpop.f32.mrf.mxu0
      %v3260 = vpop.f32.mrf.mxu0
      %v3261 = vadd.f32 0.0, %v3260
      %v3262 = vpop.f32.mrf.mxu0
      %3263 = vmatprep.mubr.bf16.mxu0 0
      %3264 = vmatmul.mubr.bf16.gmra.mxu0 %v3165
      %v3265 = vpop.f32.mrf.mxu0
      %v3266 = vadd.f32 0.0, %v3265
      %v3267 = vpop.f32.mrf.mxu0
      %v3268 = vpop.f32.mrf.mxu0
      %v3269 = vadd.f32 0.0, %v3268
      %v3270 = vpop.f32.mrf.mxu0
      %3271 = vmatprep.mubr.bf16.mxu0 0
      %3272 = vmatmul.mubr.bf16.gmra.mxu0 %v3167
      %v3273 = vpop.f32.mrf.mxu0
      %v3274 = vadd.f32 0.0, %v3273
      %v3275 = vpop.f32.mrf.mxu0
      %v3276 = vpop.f32.mrf.mxu0
      %v3277 = vadd.f32 0.0, %v3276
      %v3278 = vpop.f32.mrf.mxu0
      %3279 = vmatprep.mubr.bf16.mxu0 0
      %3280 = vmatmul.mubr.bf16.gmra.mxu0 %v3169
      %v3281 = vpop.f32.mrf.mxu0
      %v3282 = vadd.f32 0.0, %v3281
      %v3283 = vpop.f32.mrf.mxu0
      %v3284 = vpop.f32.mrf.mxu0
      %v3285 = vadd.f32 0.0, %v3284
      %v3286 = vpop.f32.mrf.mxu0
      %3287 = vmatprep.mubr.bf16.mxu0 0
      %3288 = vmatmul.mubr.bf16.gmra.mxu0 %v3171
      %v3289 = vpop.f32.mrf.mxu0
      %v3290 = vadd.f32 0.0, %v3289
      %v3291 = vpop.f32.mrf.mxu0
      %v3292 = vpop.f32.mrf.mxu0
      %v3293 = vadd.f32 0.0, %v3292
      %v3294 = vpop.f32.mrf.mxu0
      %3295 = vmatprep.mubr.bf16.mxu0 0
      %3296 = vmatmul.mubr.bf16.gmra.mxu0 %v3173
      %v3297 = vpop.f32.mrf.mxu0
      %v3298 = vadd.f32 0.0, %v3297
      %v3299 = vpop.f32.mrf.mxu0
      %v3300 = vpop.f32.mrf.mxu0
      %v3301 = vadd.f32 0.0, %v3300
      %v3302 = vpop.f32.mrf.mxu0
      %3303 = vmatprep.mubr.bf16.mxu0 0
      %3304 = vmatmul.mubr.bf16.gmra.mxu0 %v3175
      %v3305 = vpop.f32.mrf.mxu0
      %v3306 = vadd.f32 0.0, %v3305
      %v3307 = vpop.f32.mrf.mxu0
      %v3308 = vpop.f32.mrf.mxu0
      %v3309 = vadd.f32 0.0, %v3308
      %v3310 = vpop.f32.mrf.mxu0
      %3311 = vmatprep.mubr.bf16.mxu0 0
      %3312 = vmatmul.mubr.bf16.gmra.mxu0 %v3177
      %v3313 = vpop.f32.mrf.mxu0
      %v3314 = vadd.f32 0.0, %v3313
      %v3315 = vpop.f32.mrf.mxu0
      %v3316 = vpop.f32.mrf.mxu0
      %v3317 = vadd.f32 0.0, %v3316
      %v3318 = vpop.f32.mrf.mxu0
      %3319 = vmatprep.mubr.bf16.mxu0 0
      %3320 = vmatmul.mubr.bf16.gmra.mxu0 %v3179
      %v3321 = vpop.f32.mrf.mxu0
      %v3322 = vadd.f32 0.0, %v3321
      %v3323 = vpop.f32.mrf.mxu0
      %v3324 = vpop.f32.mrf.mxu0
      %v3325 = vadd.f32 0.0, %v3324
      %v3326 = vpop.f32.mrf.mxu0
      %3327 = vmatprep.mubr.bf16.mxu0 0
      %3328 = vmatmul.mubr.bf16.gmra.mxu0 %v3181
      %v3329 = vpop.f32.mrf.mxu0
      %v3330 = vadd.f32 0.0, %v3329
      %v3331 = vpop.f32.mrf.mxu0
      %v3332 = vpop.f32.mrf.mxu0
      %v3333 = vadd.f32 0.0, %v3332
      %v3334 = vpop.f32.mrf.mxu0
      %3335 = vmatprep.mubr.bf16.mxu0 0
      %3336 = vmatmul.mubr.bf16.gmra.mxu0 %v3183
      %v3337 = vpop.f32.mrf.mxu0
      %v3338 = vadd.f32 0.0, %v3337
      %v3339 = vpop.f32.mrf.mxu0
      %v3340 = vpop.f32.mrf.mxu0
      %v3341 = vadd.f32 0.0, %v3340
      %v3342 = vpop.f32.mrf.mxu0
      %3343 = vmatprep.mubr.bf16.mxu0 0
      %3344 = vmatmul.mubr.bf16.gmra.mxu0 %v3185
      %v3345 = vpop.f32.mrf.mxu0
      %v3346 = vadd.f32 0.0, %v3345
      %v3347 = vpop.f32.mrf.mxu0
      %v3348 = vpop.f32.mrf.mxu0
      %v3349 = vadd.f32 0.0, %v3348
      %v3350 = vpop.f32.mrf.mxu0
      %3351 = vdwg.mxu0
      %3352 = vst.msk [vmem:[%s271] sm:$0xff] %vm2903, %v3226
      %3353 = vst.msk [vmem:[%s271 + $0x8] sm:$0xff] %vm2903, %v3229
      %3354 = vst.msk [vmem:[%s271 + $0x10] sm:$0xff] %vm2903, %v3234
      %3355 = vst.msk [vmem:[%s271 + $0x18] sm:$0xff] %vm2903, %v3237
      %3356 = vst.msk [vmem:[%s271 + $0x20] sm:$0xff] %vm2903, %v3242
      %3357 = vst.msk [vmem:[%s271 + $0x28] sm:$0xff] %vm2903, %v3245
      %3358 = vst.msk [vmem:[%s271 + $0x30] sm:$0xff] %vm2903, %v3250
      %3359 = vst.msk [vmem:[%s271 + $0x38] sm:$0xff] %vm2903, %v3253
      %3360 = vst.msk [vmem:[%s271 + $0x40] sm:$0xff] %vm2903, %v3258
      %3361 = vst.msk [vmem:[%s271 + $0x48] sm:$0xff] %vm2903, %v3261
      %3362 = vst.msk [vmem:[%s271 + $0x50] sm:$0xff] %vm2903, %v3266
      %3363 = vst.msk [vmem:[%s271 + $0x58] sm:$0xff] %vm2903, %v3269
      %3364 = vst.msk [vmem:[%s271 + $0x60] sm:$0xff] %vm2903, %v3274
      %3365 = vst.msk [vmem:[%s271 + $0x68] sm:$0xff] %vm2903, %v3277
      %3366 = vst.msk [vmem:[%s271 + $0x70] sm:$0xff] %vm2903, %v3282
      %3367 = vst.msk [vmem:[%s271 + $0x78] sm:$0xff] %vm2903, %v3285
      %3368 = vst.msk [vmem:[%s271 + $0x80] sm:$0xff] %vm2903, %v3290
      %3369 = vst.msk [vmem:[%s271 + $0x88] sm:$0xff] %vm2903, %v3293
      %3370 = vst.msk [vmem:[%s271 + $0x90] sm:$0xff] %vm2903, %v3298
      %3371 = vst.msk [vmem:[%s271 + $0x98] sm:$0xff] %vm2903, %v3301
      %3372 = vst.msk [vmem:[%s271 + $0xa0] sm:$0xff] %vm2903, %v3306
      %3373 = vst.msk [vmem:[%s271 + $0xa8] sm:$0xff] %vm2903, %v3309
      %3374 = vst.msk [vmem:[%s271 + $0xb0] sm:$0xff] %vm2903, %v3314
      %3375 = vst.msk [vmem:[%s271 + $0xb8] sm:$0xff] %vm2903, %v3317
      %3376 = vst.msk [vmem:[%s271 + $0xc0] sm:$0xff] %vm2903, %v3322
      %3377 = vst.msk [vmem:[%s271 + $0xc8] sm:$0xff] %vm2903, %v3325
      %3378 = vst.msk [vmem:[%s271 + $0xd0] sm:$0xff] %vm2903, %v3330
      %3379 = vst.msk [vmem:[%s271 + $0xd8] sm:$0xff] %vm2903, %v3333
      %3380 = vst.msk [vmem:[%s271 + $0xe0] sm:$0xff] %vm2903, %v3338
      %3381 = vst.msk [vmem:[%s271 + $0xe8] sm:$0xff] %vm2903, %v3341
      %3382 = vst.msk [vmem:[%s271 + $0xf0] sm:$0xff] %vm2903, %v3346
      %3383 = vst.msk [vmem:[%s271 + $0xf8] sm:$0xff] %vm2903, %v3349
      %v3384 = vsel %vm2903, %v3226, 0.0
      %v3385 = vsel %vm2903, %v3229, 0.0
      %v3386 = vadd.f32 %v3384, %v3385
      %v3387 = vsel %vm2903, %v3234, 0.0
      %v3388 = vadd.f32 %v3386, %v3387
      %v3389 = vsel %vm2903, %v3237, 0.0
      %v3390 = vadd.f32 %v3388, %v3389
      %v3391 = vsel %vm2903, %v3242, 0.0
      %v3392 = vadd.f32 %v3390, %v3391
      %v3393 = vsel %vm2903, %v3245, 0.0
      %v3394 = vadd.f32 %v3392, %v3393
      %v3395 = vsel %vm2903, %v3250, 0.0
      %v3396 = vadd.f32 %v3394, %v3395
      %v3397 = vsel %vm2903, %v3253, 0.0
      %v3398 = vadd.f32 %v3396, %v3397
      %v3399 = vsel %vm2903, %v3258, 0.0
      %v3400 = vadd.f32 %v3398, %v3399
      %v3401 = vsel %vm2903, %v3261, 0.0
      %v3402 = vadd.f32 %v3400, %v3401
      %v3403 = vsel %vm2903, %v3266, 0.0
      %v3404 = vadd.f32 %v3402, %v3403
      %v3405 = vsel %vm2903, %v3269, 0.0
      %v3406 = vadd.f32 %v3404, %v3405
      %v3407 = vsel %vm2903, %v3274, 0.0
      %v3408 = vadd.f32 %v3406, %v3407
      %v3409 = vsel %vm2903, %v3277, 0.0
      %v3410 = vadd.f32 %v3408, %v3409
      %v3411 = vsel %vm2903, %v3282, 0.0
      %v3412 = vadd.f32 %v3410, %v3411
      %v3413 = vsel %vm2903, %v3285, 0.0
      %v3414 = vadd.f32 %v3412, %v3413
      %v3415 = vsel %vm2903, %v3290, 0.0
      %v3416 = vadd.f32 %v3414, %v3415
      %v3417 = vsel %vm2903, %v3293, 0.0
      %v3418 = vadd.f32 %v3416, %v3417
      %v3419 = vsel %vm2903, %v3298, 0.0
      %v3420 = vadd.f32 %v3418, %v3419
      %v3421 = vsel %vm2903, %v3301, 0.0
      %v3422 = vadd.f32 %v3420, %v3421
      %v3423 = vsel %vm2903, %v3306, 0.0
      %v3424 = vadd.f32 %v3422, %v3423
      %v3425 = vsel %vm2903, %v3309, 0.0
      %v3426 = vadd.f32 %v3424, %v3425
      %v3427 = vsel %vm2903, %v3314, 0.0
      %v3428 = vadd.f32 %v3426, %v3427
      %v3429 = vsel %vm2903, %v3317, 0.0
      %v3430 = vadd.f32 %v3428, %v3429
      %v3431 = vsel %vm2903, %v3322, 0.0
      %v3432 = vadd.f32 %v3430, %v3431
      %v3433 = vsel %vm2903, %v3325, 0.0
      %v3434 = vadd.f32 %v3432, %v3433
      %v3435 = vsel %vm2903, %v3330, 0.0
      %v3436 = vadd.f32 %v3434, %v3435
      %v3437 = vsel %vm2903, %v3333, 0.0
      %v3438 = vadd.f32 %v3436, %v3437
      %v3439 = vsel %vm2903, %v3338, 0.0
      %v3440 = vadd.f32 %v3438, %v3439
      %v3441 = vsel %vm2903, %v3341, 0.0
      %v3442 = vadd.f32 %v3440, %v3441
      %v3443 = vsel %vm2903, %v3346, 0.0
      %v3444 = vadd.f32 %v3442, %v3443
      %v3445 = vsel %vm2903, %v3349, 0.0
      %v3446 = vadd.f32 %v3444, %v3445
      %v3447 = vrot.slane %v3446, 4
      %v3448 = vadd.f32 %v3446, %v3447
      %v3449 = vrot.slane %v3448, 2
      %v3450 = vadd.f32 %v3448, %v3449
      %v3451 = vrot.slane %v3450, 1
      %v3452 = vadd.f32 %v3450, %v3451
      %v3453 = vmul.f32 %v3452, 0.00390625
      %vm3454 = vcmask 57344
      %3455 = vst.msk [vmem:[%s275] sm:$0x1] %vm3454, %v3452
      %v3456 = vsub.f32 %v3226, %v3453
      %v3457 = vsub.f32 %v3229, %v3453
      %v3458 = vsub.f32 %v3234, %v3453
      %v3459 = vsub.f32 %v3237, %v3453
      %v3460 = vsub.f32 %v3242, %v3453
      %v3461 = vsub.f32 %v3245, %v3453
      %v3462 = vsub.f32 %v3250, %v3453
      %v3463 = vsub.f32 %v3253, %v3453
      %v3464 = vsub.f32 %v3258, %v3453
      %v3465 = vsub.f32 %v3261, %v3453
      %v3466 = vsub.f32 %v3266, %v3453
      %v3467 = vsub.f32 %v3269, %v3453
      %v3468 = vsub.f32 %v3274, %v3453
      %v3469 = vsub.f32 %v3277, %v3453
      %v3470 = vsub.f32 %v3282, %v3453
      %v3471 = vsub.f32 %v3285, %v3453
      %v3472 = vsub.f32 %v3290, %v3453
      %v3473 = vsub.f32 %v3293, %v3453
      %v3474 = vsub.f32 %v3298, %v3453
      %v3475 = vsub.f32 %v3301, %v3453
      %v3476 = vsub.f32 %v3306, %v3453
      %v3477 = vsub.f32 %v3309, %v3453
      %v3478 = vsub.f32 %v3314, %v3453
      %v3479 = vsub.f32 %v3317, %v3453
      %v3480 = vsub.f32 %v3322, %v3453
      %v3481 = vsub.f32 %v3325, %v3453
      %v3482 = vsub.f32 %v3330, %v3453
      %v3483 = vsub.f32 %v3333, %v3453
      %v3484 = vsub.f32 %v3338, %v3453
      %v3485 = vsub.f32 %v3341, %v3453
      %v3486 = vsub.f32 %v3346, %v3453
      %v3487 = vsub.f32 %v3349, %v3453
      %v3488 = vmul.f32 %v3456, %v3456
      %v3489 = vmul.f32 %v3457, %v3457
      %v3490 = vmul.f32 %v3458, %v3458
      %v3491 = vmul.f32 %v3459, %v3459
      %v3492 = vmul.f32 %v3460, %v3460
      %v3493 = vmul.f32 %v3461, %v3461
      %v3494 = vmul.f32 %v3462, %v3462
      %v3495 = vmul.f32 %v3463, %v3463
      %v3496 = vmul.f32 %v3464, %v3464
      %v3497 = vmul.f32 %v3465, %v3465
      %v3498 = vmul.f32 %v3466, %v3466
      %v3499 = vmul.f32 %v3467, %v3467
      %v3500 = vmul.f32 %v3468, %v3468
      %v3501 = vmul.f32 %v3469, %v3469
      %v3502 = vmul.f32 %v3470, %v3470
      %v3503 = vmul.f32 %v3471, %v3471
      %v3504 = vmul.f32 %v3472, %v3472
      %v3505 = vmul.f32 %v3473, %v3473
      %v3506 = vmul.f32 %v3474, %v3474
      %v3507 = vmul.f32 %v3475, %v3475
      %v3508 = vmul.f32 %v3476, %v3476
      %v3509 = vmul.f32 %v3477, %v3477
      %v3510 = vmul.f32 %v3478, %v3478
      %v3511 = vmul.f32 %v3479, %v3479
      %v3512 = vmul.f32 %v3480, %v3480
      %v3513 = vmul.f32 %v3481, %v3481
      %v3514 = vmul.f32 %v3482, %v3482
      %v3515 = vmul.f32 %v3483, %v3483
      %v3516 = vmul.f32 %v3484, %v3484
      %v3517 = vmul.f32 %v3485, %v3485
      %v3518 = vmul.f32 %v3486, %v3486
      %v3519 = vmul.f32 %v3487, %v3487
      %v3520 = vsel %vm2903, %v3488, 0.0
      %v3521 = vsel %vm2903, %v3489, 0.0
      %v3522 = vadd.f32 %v3520, %v3521
      %v3523 = vsel %vm2903, %v3490, 0.0
      %v3524 = vadd.f32 %v3522, %v3523
      %v3525 = vsel %vm2903, %v3491, 0.0
      %v3526 = vadd.f32 %v3524, %v3525
      %v3527 = vsel %vm2903, %v3492, 0.0
      %v3528 = vadd.f32 %v3526, %v3527
      %v3529 = vsel %vm2903, %v3493, 0.0
      %v3530 = vadd.f32 %v3528, %v3529
      %v3531 = vsel %vm2903, %v3494, 0.0
      %v3532 = vadd.f32 %v3530, %v3531
      %v3533 = vsel %vm2903, %v3495, 0.0
      %v3534 = vadd.f32 %v3532, %v3533
      %v3535 = vsel %vm2903, %v3496, 0.0
      %v3536 = vadd.f32 %v3534, %v3535
      %v3537 = vsel %vm2903, %v3497, 0.0
      %v3538 = vadd.f32 %v3536, %v3537
      %v3539 = vsel %vm2903, %v3498, 0.0
      %v3540 = vadd.f32 %v3538, %v3539
      %v3541 = vsel %vm2903, %v3499, 0.0
      %v3542 = vadd.f32 %v3540, %v3541
      %v3543 = vsel %vm2903, %v3500, 0.0
      %v3544 = vadd.f32 %v3542, %v3543
      %v3545 = vsel %vm2903, %v3501, 0.0
      %v3546 = vadd.f32 %v3544, %v3545
      %v3547 = vsel %vm2903, %v3502, 0.0
      %v3548 = vadd.f32 %v3546, %v3547
      %v3549 = vsel %vm2903, %v3503, 0.0
      %v3550 = vadd.f32 %v3548, %v3549
      %v3551 = vsel %vm2903, %v3504, 0.0
      %v3552 = vadd.f32 %v3550, %v3551
      %v3553 = vsel %vm2903, %v3505, 0.0
      %v3554 = vadd.f32 %v3552, %v3553
      %v3555 = vsel %vm2903, %v3506, 0.0
      %v3556 = vadd.f32 %v3554, %v3555
      %v3557 = vsel %vm2903, %v3507, 0.0
      %v3558 = vadd.f32 %v3556, %v3557
      %v3559 = vsel %vm2903, %v3508, 0.0
      %v3560 = vadd.f32 %v3558, %v3559
      %v3561 = vsel %vm2903, %v3509, 0.0
      %v3562 = vadd.f32 %v3560, %v3561
      %v3563 = vsel %vm2903, %v3510, 0.0
      %v3564 = vadd.f32 %v3562, %v3563
      %v3565 = vsel %vm2903, %v3511, 0.0
      %v3566 = vadd.f32 %v3564, %v3565
      %v3567 = vsel %vm2903, %v3512, 0.0
      %v3568 = vadd.f32 %v3566, %v3567
      %v3569 = vsel %vm2903, %v3513, 0.0
      %v3570 = vadd.f32 %v3568, %v3569
      %v3571 = vsel %vm2903, %v3514, 0.0
      %v3572 = vadd.f32 %v3570, %v3571
      %v3573 = vsel %vm2903, %v3515, 0.0
      %v3574 = vadd.f32 %v3572, %v3573
      %v3575 = vsel %vm2903, %v3516, 0.0
      %v3576 = vadd.f32 %v3574, %v3575
      %v3577 = vsel %vm2903, %v3517, 0.0
      %v3578 = vadd.f32 %v3576, %v3577
      %v3579 = vsel %vm2903, %v3518, 0.0
      %v3580 = vadd.f32 %v3578, %v3579
      %v3581 = vsel %vm2903, %v3519, 0.0
      %v3582 = vadd.f32 %v3580, %v3581
      %v3583 = vrot.slane %v3582, 4
      %v3584 = vadd.f32 %v3582, %v3583
      %v3585 = vrot.slane %v3584, 2
      %v3586 = vadd.f32 %v3584, %v3585
      %v3587 = vrot.slane %v3586, 1
      %v3588 = vadd.f32 %v3586, %v3587
      %3589 = vst.msk [vmem:[%s275 + $0x1] sm:$0x1] %vm3454, %v3588
      %v3590 = vld [vmem:[%s2] sm:$0x3]
      %v3592 = vsel %vm2854, %v2470, 0
      %v3595 = vsel %vm2854, %v2471, 0
      %v3598 = vsel %vm2854, %v2472, 0
      %v3601 = vsel %vm2854, %v2473, 0
      %v3604 = vsel %vm2854, %v2474, 0
      %v3607 = vsel %vm2854, %v2475, 0
      %v3610 = vsel %vm2854, %v2476, 0
      %v3613 = vsel %vm2854, %v2477, 0
      %v3616 = vsel %vm2854, %v2478, 0
      %v3619 = vsel %vm2854, %v2479, 0
      %v3622 = vsel %vm2854, %v2480, 0
      %v3625 = vsel %vm2854, %v2481, 0
      %v3628 = vsel %vm2854, %v2482, 0
      %v3631 = vsel %vm2854, %v2483, 0
      %v3634 = vsel %vm2854, %v2484, 0
      %v3637 = vsel %vm2854, %v2485, 0
      %v3640 = vsel %vm3187, %v3590, 0
      %3642 = vmatprep.subr.bf16.mxu0 0
      %3643 = vmatpush1.bf16.msra.mxu0 0
      %3644 = vmatprep.subr.bf16.mxu0 0
      %3645 = vmatpush1.bf16.msra.mxu0 0
      %3646 = vmatprep.subr.bf16.mxu0 0
      %3647 = vmatpush1.bf16.msra.mxu0 0
      %3648 = vmatprep.subr.bf16.mxu0 0
      %3649 = vmatpush1.bf16.msra.mxu0 0
      %3650 = vmatprep.subr.bf16.mxu0 0
      %3651 = vmatpush1.bf16.msra.mxu0 0
      %3652 = vmatprep.subr.bf16.mxu0 0
      %3653 = vmatpush1.bf16.msra.mxu0 0
      %3654 = vmatprep.subr.bf16.mxu0 0
      %3655 = vmatpush1.bf16.msra.mxu0 0
      %3656 = vmatprep.subr.bf16.mxu0 0
      %3657 = vmatpush1.bf16.msra.mxu0 %v3640
      %3658 = vmatprep.subr.bf16.mxu0 0
      %3659 = vmatpush2.bf16.msra.mxu0 0
      %3660 = vmatprep.subr.bf16.mxu0 0
      %3661 = vmatpush2.bf16.msra.mxu0 0
      %3662 = vmatprep.subr.bf16.mxu0 0
      %3663 = vmatpush2.bf16.msra.mxu0 0
      %3664 = vmatprep.subr.bf16.mxu0 0
      %3665 = vmatpush2.bf16.msra.mxu0 0
      %3666 = vmatprep.subr.bf16.mxu0 0
      %3667 = vmatpush2.bf16.msra.mxu0 0
      %3668 = vmatprep.subr.bf16.mxu0 0
      %3669 = vmatpush2.bf16.msra.mxu0 0
      %3670 = vmatprep.subr.bf16.mxu0 0
      %3671 = vmatpush2.bf16.msra.mxu0 0
      %3672 = vmatprep.subr.bf16.mxu0 0
      %3673 = vmatpush2.bf16.msra.mxu0 0
      %3674 = vmatprep.mubr.bf16.mxu0 0
      %3675 = vmatmul.mubr.bf16.gmra.mxu0 %v3592
      %v3676 = vpop.f32.mrf.mxu0
      %v3677 = vadd.f32 0.0, %v3676
      %v3678 = vpop.f32.mrf.mxu0
      %v3679 = vpop.f32.mrf.mxu0
      %v3680 = vadd.f32 0.0, %v3679
      %v3681 = vpop.f32.mrf.mxu0
      %3682 = vmatprep.mubr.bf16.mxu0 0
      %3683 = vmatmul.mubr.bf16.gmra.mxu0 %v3595
      %v3684 = vpop.f32.mrf.mxu0
      %v3685 = vadd.f32 0.0, %v3684
      %v3686 = vpop.f32.mrf.mxu0
      %v3687 = vpop.f32.mrf.mxu0
      %v3688 = vadd.f32 0.0, %v3687
      %v3689 = vpop.f32.mrf.mxu0
      %3690 = vmatprep.mubr.bf16.mxu0 0
      %3691 = vmatmul.mubr.bf16.gmra.mxu0 %v3598
      %v3692 = vpop.f32.mrf.mxu0
      %v3693 = vadd.f32 0.0, %v3692
      %v3694 = vpop.f32.mrf.mxu0
      %v3695 = vpop.f32.mrf.mxu0
      %v3696 = vadd.f32 0.0, %v3695
      %v3697 = vpop.f32.mrf.mxu0
      %3698 = vmatprep.mubr.bf16.mxu0 0
      %3699 = vmatmul.mubr.bf16.gmra.mxu0 %v3601
      %v3700 = vpop.f32.mrf.mxu0
      %v3701 = vadd.f32 0.0, %v3700
      %v3702 = vpop.f32.mrf.mxu0
      %v3703 = vpop.f32.mrf.mxu0
      %v3704 = vadd.f32 0.0, %v3703
      %v3705 = vpop.f32.mrf.mxu0
      %3706 = vmatprep.mubr.bf16.mxu0 0
      %3707 = vmatmul.mubr.bf16.gmra.mxu0 %v3604
      %v3708 = vpop.f32.mrf.mxu0
      %v3709 = vadd.f32 0.0, %v3708
      %v3710 = vpop.f32.mrf.mxu0
      %v3711 = vpop.f32.mrf.mxu0
      %v3712 = vadd.f32 0.0, %v3711
      %v3713 = vpop.f32.mrf.mxu0
      %3714 = vmatprep.mubr.bf16.mxu0 0
      %3715 = vmatmul.mubr.bf16.gmra.mxu0 %v3607
      %v3716 = vpop.f32.mrf.mxu0
      %v3717 = vadd.f32 0.0, %v3716
      %v3718 = vpop.f32.mrf.mxu0
      %v3719 = vpop.f32.mrf.mxu0
      %v3720 = vadd.f32 0.0, %v3719
      %v3721 = vpop.f32.mrf.mxu0
      %3722 = vmatprep.mubr.bf16.mxu0 0
      %3723 = vmatmul.mubr.bf16.gmra.mxu0 %v3610
      %v3724 = vpop.f32.mrf.mxu0
      %v3725 = vadd.f32 0.0, %v3724
      %v3726 = vpop.f32.mrf.mxu0
      %v3727 = vpop.f32.mrf.mxu0
      %v3728 = vadd.f32 0.0, %v3727
      %v3729 = vpop.f32.mrf.mxu0
      %3730 = vmatprep.mubr.bf16.mxu0 0
      %3731 = vmatmul.mubr.bf16.gmra.mxu0 %v3613
      %v3732 = vpop.f32.mrf.mxu0
      %v3733 = vadd.f32 0.0, %v3732
      %v3734 = vpop.f32.mrf.mxu0
      %v3735 = vpop.f32.mrf.mxu0
      %v3736 = vadd.f32 0.0, %v3735
      %v3737 = vpop.f32.mrf.mxu0
      %3738 = vmatprep.mubr.bf16.mxu0 0
      %3739 = vmatmul.mubr.bf16.gmra.mxu0 %v3616
      %v3740 = vpop.f32.mrf.mxu0
      %v3741 = vadd.f32 0.0, %v3740
      %v3742 = vpop.f32.mrf.mxu0
      %v3743 = vpop.f32.mrf.mxu0
      %v3744 = vadd.f32 0.0, %v3743
      %v3745 = vpop.f32.mrf.mxu0
      %3746 = vmatprep.mubr.bf16.mxu0 0
      %3747 = vmatmul.mubr.bf16.gmra.mxu0 %v3619
      %v3748 = vpop.f32.mrf.mxu0
      %v3749 = vadd.f32 0.0, %v3748
      %v3750 = vpop.f32.mrf.mxu0
      %v3751 = vpop.f32.mrf.mxu0
      %v3752 = vadd.f32 0.0, %v3751
      %v3753 = vpop.f32.mrf.mxu0
      %3754 = vmatprep.mubr.bf16.mxu0 0
      %3755 = vmatmul.mubr.bf16.gmra.mxu0 %v3622
      %v3756 = vpop.f32.mrf.mxu0
      %v3757 = vadd.f32 0.0, %v3756
      %v3758 = vpop.f32.mrf.mxu0
      %v3759 = vpop.f32.mrf.mxu0
      %v3760 = vadd.f32 0.0, %v3759
      %v3761 = vpop.f32.mrf.mxu0
      %3762 = vmatprep.mubr.bf16.mxu0 0
      %3763 = vmatmul.mubr.bf16.gmra.mxu0 %v3625
      %v3764 = vpop.f32.mrf.mxu0
      %v3765 = vadd.f32 0.0, %v3764
      %v3766 = vpop.f32.mrf.mxu0
      %v3767 = vpop.f32.mrf.mxu0
      %v3768 = vadd.f32 0.0, %v3767
      %v3769 = vpop.f32.mrf.mxu0
      %3770 = vmatprep.mubr.bf16.mxu0 0
      %3771 = vmatmul.mubr.bf16.gmra.mxu0 %v3628
      %v3772 = vpop.f32.mrf.mxu0
      %v3773 = vadd.f32 0.0, %v3772
      %v3774 = vpop.f32.mrf.mxu0
      %v3775 = vpop.f32.mrf.mxu0
      %v3776 = vadd.f32 0.0, %v3775
      %v3777 = vpop.f32.mrf.mxu0
      %3778 = vmatprep.mubr.bf16.mxu0 0
      %3779 = vmatmul.mubr.bf16.gmra.mxu0 %v3631
      %v3780 = vpop.f32.mrf.mxu0
      %v3781 = vadd.f32 0.0, %v3780
      %v3782 = vpop.f32.mrf.mxu0
      %v3783 = vpop.f32.mrf.mxu0
      %v3784 = vadd.f32 0.0, %v3783
      %v3785 = vpop.f32.mrf.mxu0
      %3786 = vmatprep.mubr.bf16.mxu0 0
      %3787 = vmatmul.mubr.bf16.gmra.mxu0 %v3634
      %v3788 = vpop.f32.mrf.mxu0
      %v3789 = vadd.f32 0.0, %v3788
      %v3790 = vpop.f32.mrf.mxu0
      %v3791 = vpop.f32.mrf.mxu0
      %v3792 = vadd.f32 0.0, %v3791
      %v3793 = vpop.f32.mrf.mxu0
      %3794 = vmatprep.mubr.bf16.mxu0 0
      %3795 = vmatmul.mubr.bf16.gmra.mxu0 %v3637
      %v3796 = vpop.f32.mrf.mxu0
      %v3797 = vadd.f32 0.0, %v3796
      %v3798 = vpop.f32.mrf.mxu0
      %v3799 = vpop.f32.mrf.mxu0
      %v3800 = vadd.f32 0.0, %v3799
      %v3801 = vpop.f32.mrf.mxu0
      %3802 = vdwg.mxu0
      %3803 = vst.msk [vmem:[%s280] sm:$0xff] %vm2903, %v3677
      %3804 = vst.msk [vmem:[%s280 + $0x8] sm:$0xff] %vm2903, %v3680
      %3805 = vst.msk [vmem:[%s280 + $0x10] sm:$0xff] %vm2903, %v3685
      %3806 = vst.msk [vmem:[%s280 + $0x18] sm:$0xff] %vm2903, %v3688
      %3807 = vst.msk [vmem:[%s280 + $0x20] sm:$0xff] %vm2903, %v3693
      %3808 = vst.msk [vmem:[%s280 + $0x28] sm:$0xff] %vm2903, %v3696
      %3809 = vst.msk [vmem:[%s280 + $0x30] sm:$0xff] %vm2903, %v3701
      %3810 = vst.msk [vmem:[%s280 + $0x38] sm:$0xff] %vm2903, %v3704
      %3811 = vst.msk [vmem:[%s280 + $0x40] sm:$0xff] %vm2903, %v3709
      %3812 = vst.msk [vmem:[%s280 + $0x48] sm:$0xff] %vm2903, %v3712
      %3813 = vst.msk [vmem:[%s280 + $0x50] sm:$0xff] %vm2903, %v3717
      %3814 = vst.msk [vmem:[%s280 + $0x58] sm:$0xff] %vm2903, %v3720
      %3815 = vst.msk [vmem:[%s280 + $0x60] sm:$0xff] %vm2903, %v3725
      %3816 = vst.msk [vmem:[%s280 + $0x68] sm:$0xff] %vm2903, %v3728
      %3817 = vst.msk [vmem:[%s280 + $0x70] sm:$0xff] %vm2903, %v3733
      %3818 = vst.msk [vmem:[%s280 + $0x78] sm:$0xff] %vm2903, %v3736
      %3819 = vst.msk [vmem:[%s280 + $0x80] sm:$0xff] %vm2903, %v3741
      %3820 = vst.msk [vmem:[%s280 + $0x88] sm:$0xff] %vm2903, %v3744
      %3821 = vst.msk [vmem:[%s280 + $0x90] sm:$0xff] %vm2903, %v3749
      %3822 = vst.msk [vmem:[%s280 + $0x98] sm:$0xff] %vm2903, %v3752
      %3823 = vst.msk [vmem:[%s280 + $0xa0] sm:$0xff] %vm2903, %v3757
      %3824 = vst.msk [vmem:[%s280 + $0xa8] sm:$0xff] %vm2903, %v3760
      %3825 = vst.msk [vmem:[%s280 + $0xb0] sm:$0xff] %vm2903, %v3765
      %3826 = vst.msk [vmem:[%s280 + $0xb8] sm:$0xff] %vm2903, %v3768
      %3827 = vst.msk [vmem:[%s280 + $0xc0] sm:$0xff] %vm2903, %v3773
      %3828 = vst.msk [vmem:[%s280 + $0xc8] sm:$0xff] %vm2903, %v3776
      %3829 = vst.msk [vmem:[%s280 + $0xd0] sm:$0xff] %vm2903, %v3781
      %3830 = vst.msk [vmem:[%s280 + $0xd8] sm:$0xff] %vm2903, %v3784
      %3831 = vst.msk [vmem:[%s280 + $0xe0] sm:$0xff] %vm2903, %v3789
      %3832 = vst.msk [vmem:[%s280 + $0xe8] sm:$0xff] %vm2903, %v3792
      %3833 = vst.msk [vmem:[%s280 + $0xf0] sm:$0xff] %vm2903, %v3797
      %3834 = vst.msk [vmem:[%s280 + $0xf8] sm:$0xff] %vm2903, %v3800
      %v3835 = vsel %vm2903, %v3677, 0.0
      %v3836 = vsel %vm2903, %v3680, 0.0
      %v3837 = vadd.f32 %v3835, %v3836
      %v3838 = vsel %vm2903, %v3685, 0.0
      %v3839 = vadd.f32 %v3837, %v3838
      %v3840 = vsel %vm2903, %v3688, 0.0
      %v3841 = vadd.f32 %v3839, %v3840
      %v3842 = vsel %vm2903, %v3693, 0.0
      %v3843 = vadd.f32 %v3841, %v3842
      %v3844 = vsel %vm2903, %v3696, 0.0
      %v3845 = vadd.f32 %v3843, %v3844
      %v3846 = vsel %vm2903, %v3701, 0.0
      %v3847 = vadd.f32 %v3845, %v3846
      %v3848 = vsel %vm2903, %v3704, 0.0
      %v3849 = vadd.f32 %v3847, %v3848
      %v3850 = vsel %vm2903, %v3709, 0.0
      %v3851 = vadd.f32 %v3849, %v3850
      %v3852 = vsel %vm2903, %v3712, 0.0
      %v3853 = vadd.f32 %v3851, %v3852
      %v3854 = vsel %vm2903, %v3717, 0.0
      %v3855 = vadd.f32 %v3853, %v3854
      %v3856 = vsel %vm2903, %v3720, 0.0
      %v3857 = vadd.f32 %v3855, %v3856
      %v3858 = vsel %vm2903, %v3725, 0.0
      %v3859 = vadd.f32 %v3857, %v3858
      %v3860 = vsel %vm2903, %v3728, 0.0
      %v3861 = vadd.f32 %v3859, %v3860
      %v3862 = vsel %vm2903, %v3733, 0.0
      %v3863 = vadd.f32 %v3861, %v3862
      %v3864 = vsel %vm2903, %v3736, 0.0
      %v3865 = vadd.f32 %v3863, %v3864
      %v3866 = vsel %vm2903, %v3741, 0.0
      %v3867 = vadd.f32 %v3865, %v3866
      %v3868 = vsel %vm2903, %v3744, 0.0
      %v3869 = vadd.f32 %v3867, %v3868
      %v3870 = vsel %vm2903, %v3749, 0.0
      %v3871 = vadd.f32 %v3869, %v3870
      %v3872 = vsel %vm2903, %v3752, 0.0
      %v3873 = vadd.f32 %v3871, %v3872
      %v3874 = vsel %vm2903, %v3757, 0.0
      %v3875 = vadd.f32 %v3873, %v3874
      %v3876 = vsel %vm2903, %v3760, 0.0
      %v3877 = vadd.f32 %v3875, %v3876
      %v3878 = vsel %vm2903, %v3765, 0.0
      %v3879 = vadd.f32 %v3877, %v3878
      %v3880 = vsel %vm2903, %v3768, 0.0
      %v3881 = vadd.f32 %v3879, %v3880
      %v3882 = vsel %vm2903, %v3773, 0.0
      %v3883 = vadd.f32 %v3881, %v3882
      %v3884 = vsel %vm2903, %v3776, 0.0
      %v3885 = vadd.f32 %v3883, %v3884
      %v3886 = vsel %vm2903, %v3781, 0.0
      %v3887 = vadd.f32 %v3885, %v3886
      %v3888 = vsel %vm2903, %v3784, 0.0
      %v3889 = vadd.f32 %v3887, %v3888
      %v3890 = vsel %vm2903, %v3789, 0.0
      %v3891 = vadd.f32 %v3889, %v3890
      %v3892 = vsel %vm2903, %v3792, 0.0
      %v3893 = vadd.f32 %v3891, %v3892
      %v3894 = vsel %vm2903, %v3797, 0.0
      %v3895 = vadd.f32 %v3893, %v3894
      %v3896 = vsel %vm2903, %v3800, 0.0
      %v3897 = vadd.f32 %v3895, %v3896
      %v3898 = vrot.slane %v3897, 4
      %v3899 = vadd.f32 %v3897, %v3898
      %v3900 = vrot.slane %v3899, 2
      %v3901 = vadd.f32 %v3899, %v3900
      %v3902 = vrot.slane %v3901, 1
      %v3903 = vadd.f32 %v3901, %v3902
      %v3904 = vmul.f32 %v3903, 0.00390625
      %3905 = vst.msk [vmem:[%s284] sm:$0x1] %vm3454, %v3903
      %v3906 = vsub.f32 %v3677, %v3904
      %v3907 = vsub.f32 %v3680, %v3904
      %v3908 = vsub.f32 %v3685, %v3904
      %v3909 = vsub.f32 %v3688, %v3904
      %v3910 = vsub.f32 %v3693, %v3904
      %v3911 = vsub.f32 %v3696, %v3904
      %v3912 = vsub.f32 %v3701, %v3904
      %v3913 = vsub.f32 %v3704, %v3904
      %v3914 = vsub.f32 %v3709, %v3904
      %v3915 = vsub.f32 %v3712, %v3904
      %v3916 = vsub.f32 %v3717, %v3904
      %v3917 = vsub.f32 %v3720, %v3904
      %v3918 = vsub.f32 %v3725, %v3904
      %v3919 = vsub.f32 %v3728, %v3904
      %v3920 = vsub.f32 %v3733, %v3904
      %v3921 = vsub.f32 %v3736, %v3904
      %v3922 = vsub.f32 %v3741, %v3904
      %v3923 = vsub.f32 %v3744, %v3904
      %v3924 = vsub.f32 %v3749, %v3904
      %v3925 = vsub.f32 %v3752, %v3904
      %v3926 = vsub.f32 %v3757, %v3904
      %v3927 = vsub.f32 %v3760, %v3904
      %v3928 = vsub.f32 %v3765, %v3904
      %v3929 = vsub.f32 %v3768, %v3904
      %v3930 = vsub.f32 %v3773, %v3904
      %v3931 = vsub.f32 %v3776, %v3904
      %v3932 = vsub.f32 %v3781, %v3904
      %v3933 = vsub.f32 %v3784, %v3904
      %v3934 = vsub.f32 %v3789, %v3904
      %v3935 = vsub.f32 %v3792, %v3904
      %v3936 = vsub.f32 %v3797, %v3904
      %v3937 = vsub.f32 %v3800, %v3904
      %v3938 = vmul.f32 %v3906, %v3906
      %v3939 = vmul.f32 %v3907, %v3907
      %v3940 = vmul.f32 %v3908, %v3908
      %v3941 = vmul.f32 %v3909, %v3909
      %v3942 = vmul.f32 %v3910, %v3910
      %v3943 = vmul.f32 %v3911, %v3911
      %v3944 = vmul.f32 %v3912, %v3912
      %v3945 = vmul.f32 %v3913, %v3913
      %v3946 = vmul.f32 %v3914, %v3914
      %v3947 = vmul.f32 %v3915, %v3915
      %v3948 = vmul.f32 %v3916, %v3916
      %v3949 = vmul.f32 %v3917, %v3917
      %v3950 = vmul.f32 %v3918, %v3918
      %v3951 = vmul.f32 %v3919, %v3919
      %v3952 = vmul.f32 %v3920, %v3920
      %v3953 = vmul.f32 %v3921, %v3921
      %v3954 = vmul.f32 %v3922, %v3922
      %v3955 = vmul.f32 %v3923, %v3923
      %v3956 = vmul.f32 %v3924, %v3924
      %v3957 = vmul.f32 %v3925, %v3925
      %v3958 = vmul.f32 %v3926, %v3926
      %v3959 = vmul.f32 %v3927, %v3927
      %v3960 = vmul.f32 %v3928, %v3928
      %v3961 = vmul.f32 %v3929, %v3929
      %v3962 = vmul.f32 %v3930, %v3930
      %v3963 = vmul.f32 %v3931, %v3931
      %v3964 = vmul.f32 %v3932, %v3932
      %v3965 = vmul.f32 %v3933, %v3933
      %v3966 = vmul.f32 %v3934, %v3934
      %v3967 = vmul.f32 %v3935, %v3935
      %v3968 = vmul.f32 %v3936, %v3936
      %v3969 = vmul.f32 %v3937, %v3937
      %v3970 = vsel %vm2903, %v3938, 0.0
      %v3971 = vsel %vm2903, %v3939, 0.0
      %v3972 = vadd.f32 %v3970, %v3971
      %v3973 = vsel %vm2903, %v3940, 0.0
      %v3974 = vadd.f32 %v3972, %v3973
      %v3975 = vsel %vm2903, %v3941, 0.0
      %v3976 = vadd.f32 %v3974, %v3975
      %v3977 = vsel %vm2903, %v3942, 0.0
      %v3978 = vadd.f32 %v3976, %v3977
      %v3979 = vsel %vm2903, %v3943, 0.0
      %v3980 = vadd.f32 %v3978, %v3979
      %v3981 = vsel %vm2903, %v3944, 0.0
      %v3982 = vadd.f32 %v3980, %v3981
      %v3983 = vsel %vm2903, %v3945, 0.0
      %v3984 = vadd.f32 %v3982, %v3983
      %v3985 = vsel %vm2903, %v3946, 0.0
      %v3986 = vadd.f32 %v3984, %v3985
      %v3987 = vsel %vm2903, %v3947, 0.0
      %v3988 = vadd.f32 %v3986, %v3987
      %v3989 = vsel %vm2903, %v3948, 0.0
      %v3990 = vadd.f32 %v3988, %v3989
      %v3991 = vsel %vm2903, %v3949, 0.0
      %v3992 = vadd.f32 %v3990, %v3991
      %v3993 = vsel %vm2903, %v3950, 0.0
      %v3994 = vadd.f32 %v3992, %v3993
      %v3995 = vsel %vm2903, %v3951, 0.0
      %v3996 = vadd.f32 %v3994, %v3995
      %v3997 = vsel %vm2903, %v3952, 0.0
      %v3998 = vadd.f32 %v3996, %v3997
      %v3999 = vsel %vm2903, %v3953, 0.0
      %v4000 = vadd.f32 %v3998, %v3999
      %v4001 = vsel %vm2903, %v3954, 0.0
      %v4002 = vadd.f32 %v4000, %v4001
      %v4003 = vsel %vm2903, %v3955, 0.0
      %v4004 = vadd.f32 %v4002, %v4003
      %v4005 = vsel %vm2903, %v3956, 0.0
      %v4006 = vadd.f32 %v4004, %v4005
      %v4007 = vsel %vm2903, %v3957, 0.0
      %v4008 = vadd.f32 %v4006, %v4007
      %v4009 = vsel %vm2903, %v3958, 0.0
      %v4010 = vadd.f32 %v4008, %v4009
      %v4011 = vsel %vm2903, %v3959, 0.0
      %v4012 = vadd.f32 %v4010, %v4011
      %v4013 = vsel %vm2903, %v3960, 0.0
      %v4014 = vadd.f32 %v4012, %v4013
      %v4015 = vsel %vm2903, %v3961, 0.0
      %v4016 = vadd.f32 %v4014, %v4015
      %v4017 = vsel %vm2903, %v3962, 0.0
      %v4018 = vadd.f32 %v4016, %v4017
      %v4019 = vsel %vm2903, %v3963, 0.0
      %v4020 = vadd.f32 %v4018, %v4019
      %v4021 = vsel %vm2903, %v3964, 0.0
      %v4022 = vadd.f32 %v4020, %v4021
      %v4023 = vsel %vm2903, %v3965, 0.0
      %v4024 = vadd.f32 %v4022, %v4023
      %v4025 = vsel %vm2903, %v3966, 0.0
      %v4026 = vadd.f32 %v4024, %v4025
      %v4027 = vsel %vm2903, %v3967, 0.0
      %v4028 = vadd.f32 %v4026, %v4027
      %v4029 = vsel %vm2903, %v3968, 0.0
      %v4030 = vadd.f32 %v4028, %v4029
      %v4031 = vsel %vm2903, %v3969, 0.0
      %v4032 = vadd.f32 %v4030, %v4031
      %v4033 = vrot.slane %v4032, 4
      %v4034 = vadd.f32 %v4032, %v4033
      %v4035 = vrot.slane %v4034, 2
      %v4036 = vadd.f32 %v4034, %v4035
      %v4037 = vrot.slane %v4036, 1
      %v4038 = vadd.f32 %v4036, %v4037
      %4039 = vst.msk [vmem:[%s284 + $0x1] sm:$0x1] %vm3454, %v4038
      %p4040 = scmp.lt.s32.totalorder %s18, 1
      %s4041 = scalar_select %p4040, %s18, 1
      %s4042 = smul.addr %s4041, 32
      %s4043 = smul.addr %s4042, 8
      %s4044 = scalar_lea.vmem %s3, %s4043
      %p4045 = scmp.lt.s32.totalorder %s18, 1
      %s4046 = scalar_select %p4045, %s18, 1
      %s4047 = smul.addr %s4046, 2
      %s4048 = scalar_lea.vmem %s4, %s4047
      %p4049 = scmp.lt.s32.totalorder %s18, 1
      %s4050 = scalar_select %p4049, %s18, 1
      %s4051 = smul.addr %s4050, 32
      %s4052 = smul.addr %s4051, 8
      %s4053 = scalar_lea.vmem %s5, %s4052
      %p4054 = scmp.lt.s32.totalorder %s18, 1
      %s4055 = scalar_select %p4054, %s18, 1
      %s4056 = smul.addr %s4055, 2
      %s4057 = scalar_lea.vmem %s6, %s4056
      // Predicated region
      $region33: #{basic_block_forward.3} parent=31 // pred_check
        %p4058 = pneg %p104
      $region34: #{basic_block_forward.3} parent=31 // pred_check_branch
        %4060 = sbr.rel (%p4058) target = $region36
      $region35: #{basic_block_forward.3} parent=31 // pred_region
        _
      $region36: #{basic_block_forward.3} parent=31 // pred_fallthru
        _
      // Predicated region
      $region37: #{basic_block_forward.3} parent=31 // pred_check
        %p4061 = pneg %p130
      $region38: #{basic_block_forward.3} parent=31 // pred_check_branch
        %4063 = sbr.rel (%p4061) target = $region40
      $region39: #{basic_block_forward.3} parent=31 // pred_region
        _
      $region40: #{basic_block_forward.3} parent=31 // pred_fallthru
        _
      // Predicated region
      $region41: #{basic_block_forward.3} parent=31 // pred_check
        %p4064 = pneg %p156
      $region42: #{basic_block_forward.3} parent=31 // pred_check_branch
        %4066 = sbr.rel (%p4064) target = $region44
      $region43: #{basic_block_forward.3} parent=31 // pred_region
        _
      $region44: #{basic_block_forward.3} parent=31 // pred_fallthru
        _
      // Predicated region
      $region45: #{basic_block_forward.3} parent=31 // pred_check
        %p4067 = pneg %p182
      $region46: #{basic_block_forward.3} parent=31 // pred_check_branch
        %4069 = sbr.rel (%p4067) target = $region48
      $region47: #{basic_block_forward.3} parent=31 // pred_region
        _
      $region48: #{basic_block_forward.3} parent=31 // pred_fallthru
        _
    $region32: #{basic_block_forward.3} parent=5 // pred_fallthru
      _
    %p4070 = scmp.le.s32.totalorder 2, %s13
    // Predicated region
    $region49: #{basic_block_forward.3} parent=5 // pred_check
      %p4071 = pneg %p4070
    $region50: #{basic_block_forward.3} parent=5 // pred_check_branch
      %4073 = sbr.rel (%p4071) target = $region52
    $region51: #{basic_block_forward.3} parent=5 // pred_region
      %s4074 = ssub.s32 %s13, 2
      // Predicated region
      $region53: #{basic_block_forward.3} parent=51 // pred_check
        %p4075 = pneg %p110
      $region54: #{basic_block_forward.3} parent=51 // pred_check_branch
        %4077 = sbr.rel (%p4075) target = $region56
      $region55: #{basic_block_forward.3} parent=51 // pred_region
        %p4078 = scmp.lt.s32.totalorder %s19, 1
        %s4079 = scalar_select %p4078, %s19, 1
        %s4080 = smul.addr %s4079, 32
        %s4081 = smul.addr %s4080, 8
        %s4082 = scalar_lea.vmem %s3, %s4081
      $region56: #{basic_block_forward.3} parent=51 // pred_fallthru
        _
      // Predicated region
      $region57: #{basic_block_forward.3} parent=51 // pred_check
        %p4083 = pneg %p136
      $region58: #{basic_block_forward.3} parent=51 // pred_check_branch
        %4085 = sbr.rel (%p4083) target = $region60
      $region59: #{basic_block_forward.3} parent=51 // pred_region
        %p4086 = scmp.lt.s32.totalorder %s19, 1
        %s4087 = scalar_select %p4086, %s19, 1
        %s4088 = smul.addr %s4087, 2
        %s4089 = scalar_lea.vmem %s4, %s4088
      $region60: #{basic_block_forward.3} parent=51 // pred_fallthru
        _
      // Predicated region
      $region61: #{basic_block_forward.3} parent=51 // pred_check
        %p4090 = pneg %p162
      $region62: #{basic_block_forward.3} parent=51 // pred_check_branch
        %4092 = sbr.rel (%p4090) target = $region64
      $region63: #{basic_block_forward.3} parent=51 // pred_region
        %p4093 = scmp.lt.s32.totalorder %s19, 1
        %s4094 = scalar_select %p4093, %s19, 1
        %s4095 = smul.addr %s4094, 32
        %s4096 = smul.addr %s4095, 8
        %s4097 = scalar_lea.vmem %s5, %s4096
      $region64: #{basic_block_forward.3} parent=51 // pred_fallthru
        _
      // Predicated region
      $region65: #{basic_block_forward.3} parent=51 // pred_check
        %p4098 = pneg %p188
      $region66: #{basic_block_forward.3} parent=51 // pred_check_branch
        %4100 = sbr.rel (%p4098) target = $region68
      $region67: #{basic_block_forward.3} parent=51 // pred_region
        %p4101 = scmp.lt.s32.totalorder %s19, 1
        %s4102 = scalar_select %p4101, %s19, 1
        %s4103 = smul.addr %s4102, 2
        %s4104 = scalar_lea.vmem %s6, %s4103
      $region68: #{basic_block_forward.3} parent=51 // pred_fallthru
        _
    $region52: #{basic_block_forward.3} parent=5 // pred_fallthru
      _
  $region6: #{basic_block_forward.3} parent=0 // loop_footer
    %s17 = sadd.s32 1, %s13
  $region7: #{basic_block_forward.3} parent=0 // loop_footer_branch
    %12 = sbr.rel target = $region3
  $region8: #{basic_block_forward.3} parent=0 // loop_exit
    _

// kernel: basic_block_forward.4
$region0: #{basic_block_forward.4}
  #allocation0 [shape = 'u32[]', space=smem, size = 0x4, offset = 0x4, fixed_abs, tag = 'smem constant byte address 0x4 - core index']
  #allocation1 [shape = 'u32[144,128]{1,0:T(1,128)}', space=vmem, size = 0x12000, scoped, tag = 'internal scratch']
  #allocation2 [shape = 'bf16[18,18,8]{2,1,0:T(8,128)(2,1)}', space=vmem, size = 0x1b000, scoped, tag = 'scratch operand']
  %s0 = inlined_call_operand.vmem [shape: f32[2,256,8], index: 0, kind: input, shape index: {}]
  %s1 = inlined_call_operand.vmem [shape: f32[1,8], index: 1, kind: input, shape index: {}]
  %s2 = inlined_call_operand.vmem [shape: f32[1,8], index: 2, kind: input, shape index: {}]
  %s3 = inlined_call_operand.vmem [shape: bf16[72,8], index: 3, kind: input, shape index: {}]
  %s4 = inlined_call_operand.vmem [shape: f32[2,256,8], index: 4, kind: output, shape index: {0}]
  %s5 = inlined_call_operand.vmem [shape: f32[2,2,8], index: 5, kind: output, shape index: {1}]
  %6 = xla_tuple %s4, %s5
  %s7 = sld [smem:[#allocation0]]
  $region57: #{basic_block_forward.4} parent=0
    _
  %s9 = ssub.s32 1, %s7
  %s10 = scalar_select 0, %s9, %s7
  loop: start=0, step=1, limit=4
  $region2: #{basic_block_forward.4} parent=0 // loop_pre_header
    _
  $region3: #{basic_block_forward.4} parent=0 // loop_header
    %s12 = sphi 0, %s16
    %p13 = scmp.ge.s32.totalorder %s12, 4
    %s22 = sphi 0, %s24
    %s25 = sphi 0, %s22
    %s26 = sphi 0, %s25
    %s42 = sphi 0, %s26
    %s46 = sphi 0, %s46
    %s48 = sphi 0, %s46
    %s49 = sphi 0, %s48
    %s63 = sphi 0, %s49
    %s67 = sphi 0, %s67
    %s69 = sphi 0, %s67
    %s70 = sphi 0, %s69
    %s84 = sphi 0, %s70
    %s88 = sphi 0, %s88
    %s90 = sphi 0, %s88
    %s91 = sphi 0, %s90
    %s105 = sphi 0, %s91
    %s111 = sphi 0, %s113
    %s114 = sphi 0, %s111
    %s115 = sphi 0, %s114
    %s131 = sphi 0, %s115
    %s137 = sphi 0, %s139
    %s140 = sphi 0, %s137
    %s141 = sphi 0, %s140
    %s157 = sphi 0, %s141
  $region4: #{basic_block_forward.4} parent=0 // loop_header_branch
    %15 = sbr.rel (%p13) target = $region8
  $region5: #{basic_block_forward.4} parent=0 // loop_body
    %s17 = ssub.s32 %s12, 1
    %s18 = ssub.s32 %s12, 2
    %s19 = sadd.s32 %s12, 1
    %s20 = ssub.s32 %s12, %s19
    %p21 = scmp.eq.s32.totalorder %s20, 0
    %s23 = sadd.s32 %s22, 1
    %s24 = scalar_select %p21, %s22, %s23
    %p27 = pneg %p21
    %p28 = scmp.eq.s32.totalorder %s12, 1
    %p29 = por %p27, %p28
    %p30 = scmp.ne.s32.totalorder %s22, %s25
    %p31 = scmp.eq.s32.totalorder %s12, 0
    %p32 = por %p30, %p31
    %p33 = scmp.ne.s32.totalorder %s22, %s25
    %p34 = scmp.eq.s32.totalorder %s17, 1
    %p35 = por %p33, %p34
    %p36 = scmp.ne.s32.totalorder %s25, %s26
    %p37 = scmp.eq.s32.totalorder %s17, 0
    %p38 = por %p36, %p37
    %p39 = scmp.ne.s32.totalorder %s25, %s26
    %p40 = scmp.eq.s32.totalorder %s18, 1
    %p41 = por %p39, %p40
    %p43 = scmp.ne.s32.totalorder %s26, %s42
    %p44 = scmp.eq.s32.totalorder %s18, 0
    %p45 = por %p43, %p44
    %s47 = sadd.s32 %s46, 1
    %p50 = scmp.eq.s32.totalorder %s12, 1
    %p51 = scmp.ne.s32.totalorder %s46, %s48
    %p52 = scmp.eq.s32.totalorder %s12, 0
    %p53 = por %p51, %p52
    %p54 = scmp.ne.s32.totalorder %s46, %s48
    %p55 = scmp.eq.s32.totalorder %s17, 1
    %p56 = por %p54, %p55
    %p57 = scmp.ne.s32.totalorder %s48, %s49
    %p58 = scmp.eq.s32.totalorder %s17, 0
    %p59 = por %p57, %p58
    %p60 = scmp.ne.s32.totalorder %s48, %s49
    %p61 = scmp.eq.s32.totalorder %s18, 1
    %p62 = por %p60, %p61
    %p64 = scmp.ne.s32.totalorder %s49, %s63
    %p65 = scmp.eq.s32.totalorder %s18, 0
    %p66 = por %p64, %p65
    %s68 = sadd.s32 %s67, 1
    %p71 = scmp.eq.s32.totalorder %s12, 1
    %p72 = scmp.ne.s32.totalorder %s67, %s69
    %p73 = scmp.eq.s32.totalorder %s12, 0
    %p74 = por %p72, %p73
    %p75 = scmp.ne.s32.totalorder %s67, %s69
    %p76 = scmp.eq.s32.totalorder %s17, 1
    %p77 = por %p75, %p76
    %p78 = scmp.ne.s32.totalorder %s69, %s70
    %p79 = scmp.eq.s32.totalorder %s17, 0
    %p80 = por %p78, %p79
    %p81 = scmp.ne.s32.totalorder %s69, %s70
    %p82 = scmp.eq.s32.totalorder %s18, 1
    %p83 = por %p81, %p82
    %p85 = scmp.ne.s32.totalorder %s70, %s84
    %p86 = scmp.eq.s32.totalorder %s18, 0
    %p87 = por %p85, %p86
    %s89 = sadd.s32 %s88, 1
    %p92 = scmp.eq.s32.totalorder %s12, 1
    %p93 = scmp.ne.s32.totalorder %s88, %s90
    %p94 = scmp.eq.s32.totalorder %s12, 0
    %p95 = por %p93, %p94
    %p96 = scmp.ne.s32.totalorder %s88, %s90
    %p97 = scmp.eq.s32.totalorder %s17, 1
    %p98 = por %p96, %p97
    %p99 = scmp.ne.s32.totalorder %s90, %s91
    %p100 = scmp.eq.s32.totalorder %s17, 0
    %p101 = por %p99, %p100
    %p102 = scmp.ne.s32.totalorder %s90, %s91
    %p103 = scmp.eq.s32.totalorder %s18, 1
    %p104 = por %p102, %p103
    %p106 = scmp.ne.s32.totalorder %s91, %s105
    %p107 = scmp.eq.s32.totalorder %s18, 0
    %p108 = por %p106, %p107
    %s109 = ssub.s32 %s12, %s19
    %p110 = scmp.eq.s32.totalorder %s109, 0
    %s112 = sadd.s32 %s111, 1
    %s113 = scalar_select %p110, %s111, %s112
    %p116 = pneg %p110
    %p117 = scmp.eq.s32.totalorder %s12, 1
    %p118 = por %p116, %p117
    %p119 = scmp.ne.s32.totalorder %s111, %s114
    %p120 = scmp.eq.s32.totalorder %s12, 0
    %p121 = por %p119, %p120
    %p122 = scmp.ne.s32.totalorder %s111, %s114
    %p123 = scmp.eq.s32.totalorder %s17, 1
    %p124 = por %p122, %p123
    %p125 = scmp.ne.s32.totalorder %s114, %s115
    %p126 = scmp.eq.s32.totalorder %s17, 0
    %p127 = por %p125, %p126
    %p128 = scmp.ne.s32.totalorder %s114, %s115
    %p129 = scmp.eq.s32.totalorder %s18, 1
    %p130 = por %p128, %p129
    %p132 = scmp.ne.s32.totalorder %s115, %s131
    %p133 = scmp.eq.s32.totalorder %s18, 0
    %p134 = por %p132, %p133
    %s135 = ssub.s32 %s12, %s19
    %p136 = scmp.eq.s32.totalorder %s135, 0
    %s138 = sadd.s32 %s137, 1
    %s139 = scalar_select %p136, %s137, %s138
    %p142 = pneg %p136
    %p143 = scmp.eq.s32.totalorder %s12, 1
    %p144 = por %p142, %p143
    %p145 = scmp.ne.s32.totalorder %s137, %s140
    %p146 = scmp.eq.s32.totalorder %s12, 0
    %p147 = por %p145, %p146
    %p148 = scmp.ne.s32.totalorder %s137, %s140
    %p149 = scmp.eq.s32.totalorder %s17, 1
    %p150 = por %p148, %p149
    %p151 = scmp.ne.s32.totalorder %s140, %s141
    %p152 = scmp.eq.s32.totalorder %s17, 0
    %p153 = por %p151, %p152
    %p154 = scmp.ne.s32.totalorder %s140, %s141
    %p155 = scmp.eq.s32.totalorder %s18, 1
    %p156 = por %p154, %p155
    %p158 = scmp.ne.s32.totalorder %s141, %s157
    %p159 = scmp.eq.s32.totalorder %s18, 0
    %p160 = por %p158, %p159
    %p161 = scmp.le.s32.totalorder 1, %s12
    %p162 = scmp.lt.s32.totalorder %s12, 3
    %p163 = pnand %p161, %p162
    %p164 = pneg %p163
    // Predicated region
    $region9: #{basic_block_forward.4} parent=5 // pred_check
      _
    $region10: #{basic_block_forward.4} parent=5 // pred_check_branch
      %166 = sbr.rel (%p163) target = $region12
    $region11: #{basic_block_forward.4} parent=5 // pred_region
      %s167 = ssub.s32 %s12, 1
      // Predicated region
      $region13: #{basic_block_forward.4} parent=11 // pred_check
        %p168 = pneg %p59
      $region14: #{basic_block_forward.4} parent=11 // pred_check_branch
        %170 = sbr.rel (%p168) target = $region16
      $region15: #{basic_block_forward.4} parent=11 // pred_region
        _
      $region16: #{basic_block_forward.4} parent=11 // pred_fallthru
        _
      // Predicated region
      $region17: #{basic_block_forward.4} parent=11 // pred_check
        %p171 = pneg %p80
      $region18: #{basic_block_forward.4} parent=11 // pred_check_branch
        %173 = sbr.rel (%p171) target = $region20
      $region19: #{basic_block_forward.4} parent=11 // pred_region
        _
      $region20: #{basic_block_forward.4} parent=11 // pred_fallthru
        _
      // Predicated region
      $region21: #{basic_block_forward.4} parent=11 // pred_check
        %p174 = pneg %p101
      $region22: #{basic_block_forward.4} parent=11 // pred_check_branch
        %176 = sbr.rel (%p174) target = $region24
      $region23: #{basic_block_forward.4} parent=11 // pred_region
        _
      $region24: #{basic_block_forward.4} parent=11 // pred_fallthru
        _
    $region12: #{basic_block_forward.4} parent=5 // pred_fallthru
      _
    %p177 = scmp.lt.s32.totalorder %s12, 2
    // Predicated region
    $region25: #{basic_block_forward.4} parent=5 // pred_check
      %p178 = pneg %p177
    $region26: #{basic_block_forward.4} parent=5 // pred_check_branch
      %180 = sbr.rel (%p178) target = $region28
    $region27: #{basic_block_forward.4} parent=5 // pred_region
      // Predicated region
      $region29: #{basic_block_forward.4} parent=27 // pred_check
        %p181 = pneg %p32
      $region30: #{basic_block_forward.4} parent=27 // pred_check_branch
        %183 = sbr.rel (%p181) target = $region32
      $region31: #{basic_block_forward.4} parent=27 // pred_region
        %p184 = scmp.lt.s32.totalorder %s12, 1
        %s185 = scalar_select %p184, %s12, 1
        %s186 = smul.addr %s185, 32
        %s187 = smul.addr %s186, 8
        %s188 = scalar_lea.vmem %s0, %s187
      $region32: #{basic_block_forward.4} parent=27 // pred_fallthru
        _
    $region28: #{basic_block_forward.4} parent=5 // pred_fallthru
      _
    %p189 = scmp.le.s32.totalorder 1, %s12
    %p190 = scmp.lt.s32.totalorder %s12, 3
    %p191 = pnand %p189, %p190
    %p192 = pneg %p191
    // Predicated region
    $region33: #{basic_block_forward.4} parent=5 // pred_check
      _
    $region34: #{basic_block_forward.4} parent=5 // pred_check_branch
      %194 = sbr.rel (%p191) target = $region36
    $region35: #{basic_block_forward.4} parent=5 // pred_region
      %s195 = ssub.s32 %s12, 1
      %p196 = scmp.lt.s32.totalorder %s17, 1
      %s197 = scalar_select %p196, %s17, 1
      %s198 = smul.addr %s197, 32
      %s199 = smul.addr %s198, 8
      %s200 = scalar_lea.vmem %s0, %s199
      %p201 = pneg %p38
      %p202 = pneg %p35
      %p203 = pneg %p59
      %p204 = pneg %p56
      %p205 = pneg %p80
      %p206 = pneg %p77
      %p207 = pneg %p101
      %p208 = pneg %p98
      %p209 = pneg %p127
      %p210 = pneg %p124
      %p211 = scmp.lt.s32.totalorder %s17, 1
      %s212 = scalar_select %p211, %s17, 1
      %s213 = smul.addr %s212, 32
      %s214 = smul.addr %s213, 8
      %s215 = scalar_lea.vmem %s4, %s214
      %p216 = pneg %p153
      %p217 = pneg %p150
      %p218 = scmp.lt.s32.totalorder %s17, 1
      %s219 = scalar_select %p218, %s17, 1
      %s220 = smul.addr %s219, 2
      %s221 = scalar_lea.vmem %s5, %s220
      %p222 = scmp.lt.s32.totalorder %s17, 1
      %s223 = scalar_select %p222, %s17, 1
      %s224 = smul.addr %s223, 32
      %s225 = smul.addr %s224, 8
      %s226 = scalar_lea.vmem %s0, %s225
      %p227 = scmp.lt.s32.totalorder %s17, 1
      %s228 = scalar_select %p227, %s17, 1
      %s229 = smul.addr %s228, 32
      %s230 = smul.addr %s229, 8
      %s231 = scalar_lea.vmem %s4, %s230
      %p232 = scmp.lt.s32.totalorder %s17, 1
      %s233 = scalar_select %p232, %s17, 1
      %s234 = smul.addr %s233, 2
      %s235 = scalar_lea.vmem %s5, %s234
      %v237 = vld [vmem:[%s226] sm:$0xff]
      %v238 = vld [vmem:[%s226 + $0x8] sm:$0xff]
      %v239 = vld [vmem:[%s226 + $0x10] sm:$0xff]
      %v240 = vld [vmem:[%s226 + $0x18] sm:$0xff]
      %v241 = vld [vmem:[%s226 + $0x20] sm:$0xff]
      %v242 = vld [vmem:[%s226 + $0x28] sm:$0xff]
      %v243 = vld [vmem:[%s226 + $0x30] sm:$0xff]
      %v244 = vld [vmem:[%s226 + $0x38] sm:$0xff]
      %v245 = vld [vmem:[%s226 + $0x40] sm:$0xff]
      %v246 = vld [vmem:[%s226 + $0x48] sm:$0xff]
      %v247 = vld [vmem:[%s226 + $0x50] sm:$0xff]
      %v248 = vld [vmem:[%s226 + $0x58] sm:$0xff]
      %v249 = vld [vmem:[%s226 + $0x60] sm:$0xff]
      %v250 = vld [vmem:[%s226 + $0x68] sm:$0xff]
      %v251 = vld [vmem:[%s226 + $0x70] sm:$0xff]
      %v252 = vld [vmem:[%s226 + $0x78] sm:$0xff]
      %v253 = vld [vmem:[%s226 + $0x80] sm:$0xff]
      %v254 = vld [vmem:[%s226 + $0x88] sm:$0xff]
      %v255 = vld [vmem:[%s226 + $0x90] sm:$0xff]
      %v256 = vld [vmem:[%s226 + $0x98] sm:$0xff]
      %v257 = vld [vmem:[%s226 + $0xa0] sm:$0xff]
      %v258 = vld [vmem:[%s226 + $0xa8] sm:$0xff]
      %v259 = vld [vmem:[%s226 + $0xb0] sm:$0xff]
      %v260 = vld [vmem:[%s226 + $0xb8] sm:$0xff]
      %v261 = vld [vmem:[%s226 + $0xc0] sm:$0xff]
      %v262 = vld [vmem:[%s226 + $0xc8] sm:$0xff]
      %v263 = vld [vmem:[%s226 + $0xd0] sm:$0xff]
      %v264 = vld [vmem:[%s226 + $0xd8] sm:$0xff]
      %v265 = vld [vmem:[%s226 + $0xe0] sm:$0xff]
      %v266 = vld [vmem:[%s226 + $0xe8] sm:$0xff]
      %v267 = vld [vmem:[%s226 + $0xf0] sm:$0xff]
      %v268 = vld [vmem:[%s226 + $0xf8] sm:$0xff]
      %v269 = vld [vmem:[%s1] sm:$0x1]
      %v271 = vlaneseq
      %v272 = vshrl.u32 %v271, 7
      %v273 = vsub.s32 0, %v272
      %v274 = vrot.slane %v269, %v273
      %v276 = vmul.f32 %v237, %v274
      %v277 = vmul.f32 %v238, %v274
      %v278 = vmul.f32 %v239, %v274
      %v279 = vmul.f32 %v240, %v274
      %v280 = vmul.f32 %v241, %v274
      %v281 = vmul.f32 %v242, %v274
      %v282 = vmul.f32 %v243, %v274
      %v283 = vmul.f32 %v244, %v274
      %v284 = vmul.f32 %v245, %v274
      %v285 = vmul.f32 %v246, %v274
      %v286 = vmul.f32 %v247, %v274
      %v287 = vmul.f32 %v248, %v274
      %v288 = vmul.f32 %v249, %v274
      %v289 = vmul.f32 %v250, %v274
      %v290 = vmul.f32 %v251, %v274
      %v291 = vmul.f32 %v252, %v274
      %v292 = vmul.f32 %v253, %v274
      %v293 = vmul.f32 %v254, %v274
      %v294 = vmul.f32 %v255, %v274
      %v295 = vmul.f32 %v256, %v274
      %v296 = vmul.f32 %v257, %v274
      %v297 = vmul.f32 %v258, %v274
      %v298 = vmul.f32 %v259, %v274
      %v299 = vmul.f32 %v260, %v274
      %v300 = vmul.f32 %v261, %v274
      %v301 = vmul.f32 %v262, %v274
      %v302 = vmul.f32 %v263, %v274
      %v303 = vmul.f32 %v264, %v274
      %v304 = vmul.f32 %v265, %v274
      %v305 = vmul.f32 %v266, %v274
      %v306 = vmul.f32 %v267, %v274
      %v307 = vmul.f32 %v268, %v274
      %v308 = vld [vmem:[%s2] sm:$0x1]
      %v310 = vlaneseq
      %v311 = vshrl.u32 %v310, 7
      %v312 = vsub.s32 0, %v311
      %v313 = vrot.slane %v308, %v312
      %v315 = vadd.f32 %v276, %v313
      %v316 = vadd.f32 %v277, %v313
      %v317 = vadd.f32 %v278, %v313
      %v318 = vadd.f32 %v279, %v313
      %v319 = vadd.f32 %v280, %v313
      %v320 = vadd.f32 %v281, %v313
      %v321 = vadd.f32 %v282, %v313
      %v322 = vadd.f32 %v283, %v313
      %v323 = vadd.f32 %v284, %v313
      %v324 = vadd.f32 %v285, %v313
      %v325 = vadd.f32 %v286, %v313
      %v326 = vadd.f32 %v287, %v313
      %v327 = vadd.f32 %v288, %v313
      %v328 = vadd.f32 %v289, %v313
      %v329 = vadd.f32 %v290, %v313
      %v330 = vadd.f32 %v291, %v313
      %v331 = vadd.f32 %v292, %v313
      %v332 = vadd.f32 %v293, %v313
      %v333 = vadd.f32 %v294, %v313
      %v334 = vadd.f32 %v295, %v313
      %v335 = vadd.f32 %v296, %v313
      %v336 = vadd.f32 %v297, %v313
      %v337 = vadd.f32 %v298, %v313
      %v338 = vadd.f32 %v299, %v313
      %v339 = vadd.f32 %v300, %v313
      %v340 = vadd.f32 %v301, %v313
      %v341 = vadd.f32 %v302, %v313
      %v342 = vadd.f32 %v303, %v313
      %v343 = vadd.f32 %v304, %v313
      %v344 = vadd.f32 %v305, %v313
      %v345 = vadd.f32 %v306, %v313
      %v346 = vadd.f32 %v307, %v313
      %v347 = vmax.f32 %v315, 0.0
      %v348 = vmax.f32 %v316, 0.0
      %v349 = vmax.f32 %v317, 0.0
      %v350 = vmax.f32 %v318, 0.0
      %v351 = vmax.f32 %v319, 0.0
      %v352 = vmax.f32 %v320, 0.0
      %v353 = vmax.f32 %v321, 0.0
      %v354 = vmax.f32 %v322, 0.0
      %v355 = vmax.f32 %v323, 0.0
      %v356 = vmax.f32 %v324, 0.0
      %v357 = vmax.f32 %v325, 0.0
      %v358 = vmax.f32 %v326, 0.0
      %v359 = vmax.f32 %v327, 0.0
      %v360 = vmax.f32 %v328, 0.0
      %v361 = vmax.f32 %v329, 0.0
      %v362 = vmax.f32 %v330, 0.0
      %v363 = vmax.f32 %v331, 0.0
      %v364 = vmax.f32 %v332, 0.0
      %v365 = vmax.f32 %v333, 0.0
      %v366 = vmax.f32 %v334, 0.0
      %v367 = vmax.f32 %v335, 0.0
      %v368 = vmax.f32 %v336, 0.0
      %v369 = vmax.f32 %v337, 0.0
      %v370 = vmax.f32 %v338, 0.0
      %v371 = vmax.f32 %v339, 0.0
      %v372 = vmax.f32 %v340, 0.0
      %v373 = vmax.f32 %v341, 0.0
      %v374 = vmax.f32 %v342, 0.0
      %v375 = vmax.f32 %v343, 0.0
      %v376 = vmax.f32 %v344, 0.0
      %v377 = vmax.f32 %v345, 0.0
      %v378 = vmax.f32 %v346, 0.0
      %v379 = vpack.c.bf16 %v348, %v347
      %v380 = vpack.c.bf16 %v350, %v349
      %v381 = vpack.c.bf16 %v352, %v351
      %v382 = vpack.c.bf16 %v354, %v353
      %v383 = vpack.c.bf16 %v356, %v355
      %v384 = vpack.c.bf16 %v358, %v357
      %v385 = vpack.c.bf16 %v360, %v359
      %v386 = vpack.c.bf16 %v362, %v361
      %v387 = vpack.c.bf16 %v364, %v363
      %v388 = vpack.c.bf16 %v366, %v365
      %v389 = vpack.c.bf16 %v368, %v367
      %v390 = vpack.c.bf16 %v370, %v369
      %v391 = vpack.c.bf16 %v372, %v371
      %v392 = vpack.c.bf16 %v374, %v373
      %v393 = vpack.c.bf16 %v376, %v375
      %v394 = vpack.c.bf16 %v378, %v377
      %vm395 = vcmask 60416
      %396 = vst.msk [vmem:[#allocation2] sm:$0xf] %vm395, 0
      %397 = vst.msk [vmem:[#allocation2 + $0x4] sm:$0xf] %vm395, 0
      %vm398 = vcmask 57344
      %399 = vst.msk [vmem:[#allocation2 + $0x8] sm:$0x1] %vm398, 0
      %s400 = scalar_lea.vmem [#allocation2], 204
      %401 = vst.msk [vmem:[%s400] sm:$0xf] %vm395, 0
      %402 = vst.msk [vmem:[%s400 + $0x4] sm:$0xf] %vm395, 0
      %403 = vst.msk [vmem:[%s400 + $0x8] sm:$0x1] %vm398, 0
      %s404 = scalar_lea.vmem [#allocation2], 12
      %vm405 = vcmask 57344
      %vm406 = vsmask.f32 256
      %vm407 = vmand %vm405, %vm406
      %v408 = vld [vmem:[%s404] sm:$0x1]
      %v409 = vsel %vm407, 0, %v408
      %410 = vst [vmem:[%s404] sm:$0x1] %v409
      %v411 = vld [vmem:[%s404 + $0xc] sm:$0x1]
      %v412 = vsel %vm407, 0, %v411
      %413 = vst [vmem:[%s404 + $0xc] sm:$0x1] %v412
      %v414 = vld [vmem:[%s404 + $0x18] sm:$0x1]
      %v415 = vsel %vm407, 0, %v414
      %416 = vst [vmem:[%s404 + $0x18] sm:$0x1] %v415
      %v417 = vld [vmem:[%s404 + $0x24] sm:$0x1]
      %v418 = vsel %vm407, 0, %v417
      %419 = vst [vmem:[%s404 + $0x24] sm:$0x1] %v418
      %v420 = vld [vmem:[%s404 + $0x30] sm:$0x1]
      %v421 = vsel %vm407, 0, %v420
      %422 = vst [vmem:[%s404 + $0x30] sm:$0x1] %v421
      %v423 = vld [vmem:[%s404 + $0x3c] sm:$0x1]
      %v424 = vsel %vm407, 0, %v423
      %425 = vst [vmem:[%s404 + $0x3c] sm:$0x1] %v424
      %v426 = vld [vmem:[%s404 + $0x48] sm:$0x1]
      %v427 = vsel %vm407, 0, %v426
      %428 = vst [vmem:[%s404 + $0x48] sm:$0x1] %v427
      %v429 = vld [vmem:[%s404 + $0x54] sm:$0x1]
      %v430 = vsel %vm407, 0, %v429
      %431 = vst [vmem:[%s404 + $0x54] sm:$0x1] %v430
      %v432 = vld [vmem:[%s404 + $0x60] sm:$0x1]
      %v433 = vsel %vm407, 0, %v432
      %434 = vst [vmem:[%s404 + $0x60] sm:$0x1] %v433
      %v435 = vld [vmem:[%s404 + $0x6c] sm:$0x1]
      %v436 = vsel %vm407, 0, %v435
      %437 = vst [vmem:[%s404 + $0x6c] sm:$0x1] %v436
      %v438 = vld [vmem:[%s404 + $0x78] sm:$0x1]
      %v439 = vsel %vm407, 0, %v438
      %440 = vst [vmem:[%s404 + $0x78] sm:$0x1] %v439
      %v441 = vld [vmem:[%s404 + $0x84] sm:$0x1]
      %v442 = vsel %vm407, 0, %v441
      %443 = vst [vmem:[%s404 + $0x84] sm:$0x1] %v442
      %v444 = vld [vmem:[%s404 + $0x90] sm:$0x1]
      %v445 = vsel %vm407, 0, %v444
      %446 = vst [vmem:[%s404 + $0x90] sm:$0x1] %v445
      %v447 = vld [vmem:[%s404 + $0x9c] sm:$0x1]
      %v448 = vsel %vm407, 0, %v447
      %449 = vst [vmem:[%s404 + $0x9c] sm:$0x1] %v448
      %v450 = vld [vmem:[%s404 + $0xa8] sm:$0x1]
      %v451 = vsel %vm407, 0, %v450
      %452 = vst [vmem:[%s404 + $0xa8] sm:$0x1] %v451
      %v453 = vld [vmem:[%s404 + $0xb4] sm:$0x1]
      %v454 = vsel %vm407, 0, %v453
      %455 = vst [vmem:[%s404 + $0xb4] sm:$0x1] %v454
      %vm456 = vsmask.f32 7938
      %vm457 = vmand %vm405, %vm456
      %v458 = vld [vmem:[%s404 + $0x8] sm:$0x1]
      %v459 = vsel %vm457, 0, %v458
      %460 = vst [vmem:[%s404 + $0x8] sm:$0x1] %v459
      %v461 = vld [vmem:[%s404 + $0x14] sm:$0x1]
      %v462 = vsel %vm457, 0, %v461
      %463 = vst [vmem:[%s404 + $0x14] sm:$0x1] %v462
      %v464 = vld [vmem:[%s404 + $0x20] sm:$0x1]
      %v465 = vsel %vm457, 0, %v464
      %466 = vst [vmem:[%s404 + $0x20] sm:$0x1] %v465
      %v467 = vld [vmem:[%s404 + $0x2c] sm:$0x1]
      %v468 = vsel %vm457, 0, %v467
      %469 = vst [vmem:[%s404 + $0x2c] sm:$0x1] %v468
      %v470 = vld [vmem:[%s404 + $0x38] sm:$0x1]
      %v471 = vsel %vm457, 0, %v470
      %472 = vst [vmem:[%s404 + $0x38] sm:$0x1] %v471
      %v473 = vld [vmem:[%s404 + $0x44] sm:$0x1]
      %v474 = vsel %vm457, 0, %v473
      %475 = vst [vmem:[%s404 + $0x44] sm:$0x1] %v474
      %v476 = vld [vmem:[%s404 + $0x50] sm:$0x1]
      %v477 = vsel %vm457, 0, %v476
      %478 = vst [vmem:[%s404 + $0x50] sm:$0x1] %v477
      %v479 = vld [vmem:[%s404 + $0x5c] sm:$0x1]
      %v480 = vsel %vm457, 0, %v479
      %481 = vst [vmem:[%s404 + $0x5c] sm:$0x1] %v480
      %v482 = vld [vmem:[%s404 + $0x68] sm:$0x1]
      %v483 = vsel %vm457, 0, %v482
      %484 = vst [vmem:[%s404 + $0x68] sm:$0x1] %v483
      %v485 = vld [vmem:[%s404 + $0x74] sm:$0x1]
      %v486 = vsel %vm457, 0, %v485
      %487 = vst [vmem:[%s404 + $0x74] sm:$0x1] %v486
      %v488 = vld [vmem:[%s404 + $0x80] sm:$0x1]
      %v489 = vsel %vm457, 0, %v488
      %490 = vst [vmem:[%s404 + $0x80] sm:$0x1] %v489
      %v491 = vld [vmem:[%s404 + $0x8c] sm:$0x1]
      %v492 = vsel %vm457, 0, %v491
      %493 = vst [vmem:[%s404 + $0x8c] sm:$0x1] %v492
      %v494 = vld [vmem:[%s404 + $0x98] sm:$0x1]
      %v495 = vsel %vm457, 0, %v494
      %496 = vst [vmem:[%s404 + $0x98] sm:$0x1] %v495
      %v497 = vld [vmem:[%s404 + $0xa4] sm:$0x1]
      %v498 = vsel %vm457, 0, %v497
      %499 = vst [vmem:[%s404 + $0xa4] sm:$0x1] %v498
      %v500 = vld [vmem:[%s404 + $0xb0] sm:$0x1]
      %v501 = vsel %vm457, 0, %v500
      %502 = vst [vmem:[%s404 + $0xb0] sm:$0x1] %v501
      %v503 = vld [vmem:[%s404 + $0xbc] sm:$0x1]
      %v504 = vsel %vm457, 0, %v503
      %505 = vst [vmem:[%s404 + $0xbc] sm:$0x1] %v504
      %v522 = vunpack.c.l.b16 %v379
      %v523 = vunpack.c.h.b16 %v379
      %v524 = vunpack.c.l.b16 %v380
      %v525 = vunpack.c.h.b16 %v380
      %v526 = vunpack.c.l.b16 %v381
      %v527 = vunpack.c.h.b16 %v381
      %v528 = vunpack.c.l.b16 %v382
      %v529 = vunpack.c.h.b16 %v382
      %v530 = vunpack.c.l.b16 %v383
      %v531 = vunpack.c.h.b16 %v383
      %v532 = vunpack.c.l.b16 %v384
      %v533 = vunpack.c.h.b16 %v384
      %v534 = vunpack.c.l.b16 %v385
      %v535 = vunpack.c.h.b16 %v385
      %v536 = vunpack.c.l.b16 %v386
      %v537 = vunpack.c.h.b16 %v386
      %v538 = vunpack.c.l.b16 %v387
      %v539 = vunpack.c.h.b16 %v387
      %v540 = vunpack.c.l.b16 %v388
      %v541 = vunpack.c.h.b16 %v388
      %v542 = vunpack.c.l.b16 %v389
      %v543 = vunpack.c.h.b16 %v389
      %v544 = vunpack.c.l.b16 %v390
      %v545 = vunpack.c.h.b16 %v390
      %v546 = vunpack.c.l.b16 %v391
      %v547 = vunpack.c.h.b16 %v391
      %v548 = vunpack.c.l.b16 %v392
      %v549 = vunpack.c.h.b16 %v392
      %v550 = vunpack.c.l.b16 %v393
      %v551 = vunpack.c.h.b16 %v393
      %v552 = vunpack.c.l.b16 %v394
      %v553 = vunpack.c.h.b16 %v394
      %v554 = vpack.c.b16 %v522, %v522
      %v555 = vpack.c.b16 %v523, %v523
      %v556 = vpack.c.b16 %v524, %v524
      %v557 = vpack.c.b16 %v525, %v525
      %v558 = vpack.c.b16 %v526, %v526
      %v559 = vpack.c.b16 %v527, %v527
      %v560 = vpack.c.b16 %v528, %v528
      %v561 = vpack.c.b16 %v529, %v529
      %v562 = vpack.c.b16 %v530, %v530
      %v563 = vpack.c.b16 %v531, %v531
      %v564 = vpack.c.b16 %v532, %v532
      %v565 = vpack.c.b16 %v533, %v533
      %v566 = vpack.c.b16 %v534, %v534
      %v567 = vpack.c.b16 %v535, %v535
      %v568 = vpack.c.b16 %v536, %v536
      %v569 = vpack.c.b16 %v537, %v537
      %v570 = vpack.c.b16 %v538, %v538
      %v571 = vpack.c.b16 %v539, %v539
      %v572 = vpack.c.b16 %v540, %v540
      %v573 = vpack.c.b16 %v541, %v541
      %v574 = vpack.c.b16 %v542, %v542
      %v575 = vpack.c.b16 %v543, %v543
      %v576 = vpack.c.b16 %v544, %v544
      %v577 = vpack.c.b16 %v545, %v545
      %v578 = vpack.c.b16 %v546, %v546
      %v579 = vpack.c.b16 %v547, %v547
      %v580 = vpack.c.b16 %v548, %v548
      %v581 = vpack.c.b16 %v549, %v549
      %v582 = vpack.c.b16 %v550, %v550
      %v583 = vpack.c.b16 %v551, %v551
      %v584 = vpack.c.b16 %v552, %v552
      %v585 = vpack.c.b16 %v553, %v553
      %vm586 = vsmask.f32 4368
      %vm587 = vmor %vm406, %vm586
      %v589 = vshrl.u32 %v554, 16
      %v591 = vrot.slane %v589, 7
      %v592 = vshll.u32 %v554, 16
      %v594 = vor.u32 %v591, %v592
      %v595 = vrot.slane %v591, 4
      %v597 = vshrl.u32 %v555, 16
      %v599 = vrot.slane %v597, 7
      %v600 = vshll.u32 %v555, 16
      %v602 = vor.u32 %v599, %v600
      %v603 = vsel %vm587, %v595, %v602
      %v604 = vrot.slane %v599, 4
      %v606 = vshrl.u32 %v556, 16
      %v608 = vrot.slane %v606, 7
      %v609 = vshll.u32 %v556, 16
      %v611 = vor.u32 %v608, %v609
      %v612 = vrot.slane %v608, 4
      %v614 = vshrl.u32 %v557, 16
      %v616 = vrot.slane %v614, 7
      %v617 = vshll.u32 %v557, 16
      %v619 = vor.u32 %v616, %v617
      %v620 = vsel %vm587, %v612, %v619
      %v621 = vrot.slane %v616, 4
      %v623 = vshrl.u32 %v558, 16
      %v625 = vrot.slane %v623, 7
      %v626 = vshll.u32 %v558, 16
      %v628 = vor.u32 %v625, %v626
      %v629 = vrot.slane %v625, 4
      %v631 = vshrl.u32 %v559, 16
      %v633 = vrot.slane %v631, 7
      %v634 = vshll.u32 %v559, 16
      %v636 = vor.u32 %v633, %v634
      %v637 = vsel %vm587, %v629, %v636
      %v638 = vrot.slane %v633, 4
      %v640 = vshrl.u32 %v560, 16
      %v642 = vrot.slane %v640, 7
      %v643 = vshll.u32 %v560, 16
      %v645 = vor.u32 %v642, %v643
      %v646 = vrot.slane %v642, 4
      %v648 = vshrl.u32 %v561, 16
      %v650 = vrot.slane %v648, 7
      %v651 = vshll.u32 %v561, 16
      %v653 = vor.u32 %v650, %v651
      %v654 = vsel %vm587, %v646, %v653
      %v655 = vrot.slane %v650, 4
      %v657 = vshrl.u32 %v562, 16
      %v659 = vrot.slane %v657, 7
      %v660 = vshll.u32 %v562, 16
      %v662 = vor.u32 %v659, %v660
      %v663 = vrot.slane %v659, 4
      %v665 = vshrl.u32 %v563, 16
      %v667 = vrot.slane %v665, 7
      %v668 = vshll.u32 %v563, 16
      %v670 = vor.u32 %v667, %v668
      %v671 = vsel %vm587, %v663, %v670
      %v672 = vrot.slane %v667, 4
      %v674 = vshrl.u32 %v564, 16
      %v676 = vrot.slane %v674, 7
      %v677 = vshll.u32 %v564, 16
      %v679 = vor.u32 %v676, %v677
      %v680 = vrot.slane %v676, 4
      %v682 = vshrl.u32 %v565, 16
      %v684 = vrot.slane %v682, 7
      %v685 = vshll.u32 %v565, 16
      %v687 = vor.u32 %v684, %v685
      %v688 = vsel %vm587, %v680, %v687
      %v689 = vrot.slane %v684, 4
      %v691 = vshrl.u32 %v566, 16
      %v693 = vrot.slane %v691, 7
      %v694 = vshll.u32 %v566, 16
      %v696 = vor.u32 %v693, %v694
      %v697 = vrot.slane %v693, 4
      %v699 = vshrl.u32 %v567, 16
      %v701 = vrot.slane %v699, 7
      %v702 = vshll.u32 %v567, 16
      %v704 = vor.u32 %v701, %v702
      %v705 = vsel %vm587, %v697, %v704
      %v706 = vrot.slane %v701, 4
      %v708 = vshrl.u32 %v568, 16
      %v710 = vrot.slane %v708, 7
      %v711 = vshll.u32 %v568, 16
      %v713 = vor.u32 %v710, %v711
      %v714 = vrot.slane %v710, 4
      %v716 = vshrl.u32 %v569, 16
      %v718 = vrot.slane %v716, 7
      %v719 = vshll.u32 %v569, 16
      %v721 = vor.u32 %v718, %v719
      %v722 = vsel %vm587, %v714, %v721
      %v723 = vrot.slane %v718, 4
      %v725 = vshrl.u32 %v570, 16
      %v727 = vrot.slane %v725, 7
      %v728 = vshll.u32 %v570, 16
      %v730 = vor.u32 %v727, %v728
      %v731 = vrot.slane %v727, 4
      %v733 = vshrl.u32 %v571, 16
      %v735 = vrot.slane %v733, 7
      %v736 = vshll.u32 %v571, 16
      %v738 = vor.u32 %v735, %v736
      %v739 = vsel %vm587, %v731, %v738
      %v740 = vrot.slane %v735, 4
      %v742 = vshrl.u32 %v572, 16
      %v744 = vrot.slane %v742, 7
      %v745 = vshll.u32 %v572, 16
      %v747 = vor.u32 %v744, %v745
      %v748 = vrot.slane %v744, 4
      %v750 = vshrl.u32 %v573, 16
      %v752 = vrot.slane %v750, 7
      %v753 = vshll.u32 %v573, 16
      %v755 = vor.u32 %v752, %v753
      %v756 = vsel %vm587, %v748, %v755
      %v757 = vrot.slane %v752, 4
      %v759 = vshrl.u32 %v574, 16
      %v761 = vrot.slane %v759, 7
      %v762 = vshll.u32 %v574, 16
      %v764 = vor.u32 %v761, %v762
      %v765 = vrot.slane %v761, 4
      %v767 = vshrl.u32 %v575, 16
      %v769 = vrot.slane %v767, 7
      %v770 = vshll.u32 %v575, 16
      %v772 = vor.u32 %v769, %v770
      %v773 = vsel %vm587, %v765, %v772
      %v774 = vrot.slane %v769, 4
      %v776 = vshrl.u32 %v576, 16
      %v778 = vrot.slane %v776, 7
      %v779 = vshll.u32 %v576, 16
      %v781 = vor.u32 %v778, %v779
      %v782 = vrot.slane %v778, 4
      %v784 = vshrl.u32 %v577, 16
      %v786 = vrot.slane %v784, 7
      %v787 = vshll.u32 %v577, 16
      %v789 = vor.u32 %v786, %v787
      %v790 = vsel %vm587, %v782, %v789
      %v791 = vrot.slane %v786, 4
      %v793 = vshrl.u32 %v578, 16
      %v795 = vrot.slane %v793, 7
      %v796 = vshll.u32 %v578, 16
      %v798 = vor.u32 %v795, %v796
      %v799 = vrot.slane %v795, 4
      %v801 = vshrl.u32 %v579, 16
      %v803 = vrot.slane %v801, 7
      %v804 = vshll.u32 %v579, 16
      %v806 = vor.u32 %v803, %v804
      %v807 = vsel %vm587, %v799, %v806
      %v808 = vrot.slane %v803, 4
      %v810 = vshrl.u32 %v580, 16
      %v812 = vrot.slane %v810, 7
      %v813 = vshll.u32 %v580, 16
      %v815 = vor.u32 %v812, %v813
      %v816 = vrot.slane %v812, 4
      %v818 = vshrl.u32 %v581, 16
      %v820 = vrot.slane %v818, 7
      %v821 = vshll.u32 %v581, 16
      %v823 = vor.u32 %v820, %v821
      %v824 = vsel %vm587, %v816, %v823
      %v825 = vrot.slane %v820, 4
      %v827 = vshrl.u32 %v582, 16
      %v829 = vrot.slane %v827, 7
      %v830 = vshll.u32 %v582, 16
      %v832 = vor.u32 %v829, %v830
      %v833 = vrot.slane %v829, 4
      %v835 = vshrl.u32 %v583, 16
      %v837 = vrot.slane %v835, 7
      %v838 = vshll.u32 %v583, 16
      %v840 = vor.u32 %v837, %v838
      %v841 = vsel %vm587, %v833, %v840
      %v842 = vrot.slane %v837, 4
      %v844 = vshrl.u32 %v584, 16
      %v846 = vrot.slane %v844, 7
      %v847 = vshll.u32 %v584, 16
      %v849 = vor.u32 %v846, %v847
      %v850 = vrot.slane %v846, 4
      %v852 = vshrl.u32 %v585, 16
      %v854 = vrot.slane %v852, 7
      %v855 = vshll.u32 %v585, 16
      %v857 = vor.u32 %v854, %v855
      %v858 = vsel %vm587, %v850, %v857
      %v859 = vrot.slane %v854, 4
      %vm908 = vcmask 60416
      %vm909 = vmand %vm908, %vm456
      %v910 = vld [vmem:[%s404] sm:$0xf]
      %v911 = vsel %vm909, %v594, %v910
      %912 = vst [vmem:[%s404] sm:$0xf] %v911
      %913 = vst.msk [vmem:[%s404 + $0x4] sm:$0xf] %vm395, %v603
      %v914 = vld [vmem:[%s404 + $0x8] sm:$0x1]
      %v915 = vsel %vm407, %v604, %v914
      %916 = vst [vmem:[%s404 + $0x8] sm:$0x1] %v915
      %v917 = vld [vmem:[%s404 + $0xc] sm:$0xf]
      %v918 = vsel %vm909, %v611, %v917
      %919 = vst [vmem:[%s404 + $0xc] sm:$0xf] %v918
      %920 = vst.msk [vmem:[%s404 + $0x10] sm:$0xf] %vm395, %v620
      %v921 = vld [vmem:[%s404 + $0x14] sm:$0x1]
      %v922 = vsel %vm407, %v621, %v921
      %923 = vst [vmem:[%s404 + $0x14] sm:$0x1] %v922
      %v924 = vld [vmem:[%s404 + $0x18] sm:$0xf]
      %v925 = vsel %vm909, %v628, %v924
      %926 = vst [vmem:[%s404 + $0x18] sm:$0xf] %v925
      %927 = vst.msk [vmem:[%s404 + $0x1c] sm:$0xf] %vm395, %v637
      %v928 = vld [vmem:[%s404 + $0x20] sm:$0x1]
      %v929 = vsel %vm407, %v638, %v928
      %930 = vst [vmem:[%s404 + $0x20] sm:$0x1] %v929
      %v931 = vld [vmem:[%s404 + $0x24] sm:$0xf]
      %v932 = vsel %vm909, %v645, %v931
      %933 = vst [vmem:[%s404 + $0x24] sm:$0xf] %v932
      %934 = vst.msk [vmem:[%s404 + $0x28] sm:$0xf] %vm395, %v654
      %v935 = vld [vmem:[%s404 + $0x2c] sm:$0x1]
      %v936 = vsel %vm407, %v655, %v935
      %937 = vst [vmem:[%s404 + $0x2c] sm:$0x1] %v936
      %v938 = vld [vmem:[%s404 + $0x30] sm:$0xf]
      %v939 = vsel %vm909, %v662, %v938
      %940 = vst [vmem:[%s404 + $0x30] sm:$0xf] %v939
      %941 = vst.msk [vmem:[%s404 + $0x34] sm:$0xf] %vm395, %v671
      %v942 = vld [vmem:[%s404 + $0x38] sm:$0x1]
      %v943 = vsel %vm407, %v672, %v942
      %944 = vst [vmem:[%s404 + $0x38] sm:$0x1] %v943
      %v945 = vld [vmem:[%s404 + $0x3c] sm:$0xf]
      %v946 = vsel %vm909, %v679, %v945
      %947 = vst [vmem:[%s404 + $0x3c] sm:$0xf] %v946
      %948 = vst.msk [vmem:[%s404 + $0x40] sm:$0xf] %vm395, %v688
      %v949 = vld [vmem:[%s404 + $0x44] sm:$0x1]
      %v950 = vsel %vm407, %v689, %v949
      %951 = vst [vmem:[%s404 + $0x44] sm:$0x1] %v950
      %v952 = vld [vmem:[%s404 + $0x48] sm:$0xf]
      %v953 = vsel %vm909, %v696, %v952
      %954 = vst [vmem:[%s404 + $0x48] sm:$0xf] %v953
      %955 = vst.msk [vmem:[%s404 + $0x4c] sm:$0xf] %vm395, %v705
      %v956 = vld [vmem:[%s404 + $0x50] sm:$0x1]
      %v957 = vsel %vm407, %v706, %v956
      %958 = vst [vmem:[%s404 + $0x50] sm:$0x1] %v957
      %v959 = vld [vmem:[%s404 + $0x54] sm:$0xf]
      %v960 = vsel %vm909, %v713, %v959
      %961 = vst [vmem:[%s404 + $0x54] sm:$0xf] %v960
      %962 = vst.msk [vmem:[%s404 + $0x58] sm:$0xf] %vm395, %v722
      %v963 = vld [vmem:[%s404 + $0x5c] sm:$0x1]
      %v964 = vsel %vm407, %v723, %v963
      %965 = vst [vmem:[%s404 + $0x5c] sm:$0x1] %v964
      %v966 = vld [vmem:[%s404 + $0x60] sm:$0xf]
      %v967 = vsel %vm909, %v730, %v966
      %968 = vst [vmem:[%s404 + $0x60] sm:$0xf] %v967
      %969 = vst.msk [vmem:[%s404 + $0x64] sm:$0xf] %vm395, %v739
      %v970 = vld [vmem:[%s404 + $0x68] sm:$0x1]
      %v971 = vsel %vm407, %v740, %v970
      %972 = vst [vmem:[%s404 + $0x68] sm:$0x1] %v971
      %v973 = vld [vmem:[%s404 + $0x6c] sm:$0xf]
      %v974 = vsel %vm909, %v747, %v973
      %975 = vst [vmem:[%s404 + $0x6c] sm:$0xf] %v974
      %976 = vst.msk [vmem:[%s404 + $0x70] sm:$0xf] %vm395, %v756
      %v977 = vld [vmem:[%s404 + $0x74] sm:$0x1]
      %v978 = vsel %vm407, %v757, %v977
      %979 = vst [vmem:[%s404 + $0x74] sm:$0x1] %v978
      %v980 = vld [vmem:[%s404 + $0x78] sm:$0xf]
      %v981 = vsel %vm909, %v764, %v980
      %982 = vst [vmem:[%s404 + $0x78] sm:$0xf] %v981
      %983 = vst.msk [vmem:[%s404 + $0x7c] sm:$0xf] %vm395, %v773
      %v984 = vld [vmem:[%s404 + $0x80] sm:$0x1]
      %v985 = vsel %vm407, %v774, %v984
      %986 = vst [vmem:[%s404 + $0x80] sm:$0x1] %v985
      %v987 = vld [vmem:[%s404 + $0x84] sm:$0xf]
      %v988 = vsel %vm909, %v781, %v987
      %989 = vst [vmem:[%s404 + $0x84] sm:$0xf] %v988
      %990 = vst.msk [vmem:[%s404 + $0x88] sm:$0xf] %vm395, %v790
      %v991 = vld [vmem:[%s404 + $0x8c] sm:$0x1]
      %v992 = vsel %vm407, %v791, %v991
      %993 = vst [vmem:[%s404 + $0x8c] sm:$0x1] %v992
      %v994 = vld [vmem:[%s404 + $0x90] sm:$0xf]
      %v995 = vsel %vm909, %v798, %v994
      %996 = vst [vmem:[%s404 + $0x90] sm:$0xf] %v995
      %997 = vst.msk [vmem:[%s404 + $0x94] sm:$0xf] %vm395, %v807
      %v998 = vld [vmem:[%s404 + $0x98] sm:$0x1]
      %v999 = vsel %vm407, %v808, %v998
      %1000 = vst [vmem:[%s404 + $0x98] sm:$0x1] %v999
      %v1001 = vld [vmem:[%s404 + $0x9c] sm:$0xf]
      %v1002 = vsel %vm909, %v815, %v1001
      %1003 = vst [vmem:[%s404 + $0x9c] sm:$0xf] %v1002
      %1004 = vst.msk [vmem:[%s404 + $0xa0] sm:$0xf] %vm395, %v824
      %v1005 = vld [vmem:[%s404 + $0xa4] sm:$0x1]
      %v1006 = vsel %vm407, %v825, %v1005
      %1007 = vst [vmem:[%s404 + $0xa4] sm:$0x1] %v1006
      %v1008 = vld [vmem:[%s404 + $0xa8] sm:$0xf]
      %v1009 = vsel %vm909, %v832, %v1008
      %1010 = vst [vmem:[%s404 + $0xa8] sm:$0xf] %v1009
      %1011 = vst.msk [vmem:[%s404 + $0xac] sm:$0xf] %vm395, %v841
      %v1012 = vld [vmem:[%s404 + $0xb0] sm:$0x1]
      %v1013 = vsel %vm407, %v842, %v1012
      %1014 = vst [vmem:[%s404 + $0xb0] sm:$0x1] %v1013
      %v1015 = vld [vmem:[%s404 + $0xb4] sm:$0xf]
      %v1016 = vsel %vm909, %v849, %v1015
      %1017 = vst [vmem:[%s404 + $0xb4] sm:$0xf] %v1016
      %1018 = vst.msk [vmem:[%s404 + $0xb8] sm:$0xf] %vm395, %v858
      %v1019 = vld [vmem:[%s404 + $0xbc] sm:$0x1]
      %v1020 = vsel %vm407, %v859, %v1019
      %1021 = vst [vmem:[%s404 + $0xbc] sm:$0x1] %v1020
      %v1022 = vld [vmem:[#allocation2] sm:$0xf]
      %v1023 = vld [vmem:[#allocation2 + $0x4] sm:$0xf]
      %v1024 = vld [vmem:[#allocation2 + $0xc] sm:$0xf]
      %v1025 = vld [vmem:[#allocation2 + $0x10] sm:$0xf]
      %v1026 = vld [vmem:[#allocation2 + $0x18] sm:$0xf]
      %v1027 = vld [vmem:[#allocation2 + $0x1c] sm:$0xf]
      %v1028 = vld [vmem:[#allocation2 + $0x24] sm:$0xf]
      %v1029 = vld [vmem:[#allocation2 + $0x28] sm:$0xf]
      %v1030 = vld [vmem:[#allocation2 + $0x30] sm:$0xf]
      %v1031 = vld [vmem:[#allocation2 + $0x34] sm:$0xf]
      %v1032 = vld [vmem:[#allocation2 + $0x3c] sm:$0xf]
      %v1033 = vld [vmem:[#allocation2 + $0x40] sm:$0xf]
      %v1034 = vld [vmem:[#allocation2 + $0x48] sm:$0xf]
      %v1035 = vld [vmem:[#allocation2 + $0x4c] sm:$0xf]
      %v1036 = vld [vmem:[#allocation2 + $0x54] sm:$0xf]
      %v1037 = vld [vmem:[#allocation2 + $0x58] sm:$0xf]
      %v1038 = vld [vmem:[#allocation2 + $0x60] sm:$0xf]
      %v1039 = vld [vmem:[#allocation2 + $0x64] sm:$0xf]
      %v1040 = vld [vmem:[#allocation2 + $0x6c] sm:$0xf]
      %v1041 = vld [vmem:[#allocation2 + $0x70] sm:$0xf]
      %v1042 = vld [vmem:[#allocation2 + $0x78] sm:$0xf]
      %v1043 = vld [vmem:[#allocation2 + $0x7c] sm:$0xf]
      %v1044 = vld [vmem:[#allocation2 + $0x84] sm:$0xf]
      %v1045 = vld [vmem:[#allocation2 + $0x88] sm:$0xf]
      %v1046 = vld [vmem:[#allocation2 + $0x90] sm:$0xf]
      %v1047 = vld [vmem:[#allocation2 + $0x94] sm:$0xf]
      %v1048 = vld [vmem:[#allocation2 + $0x9c] sm:$0xf]
      %v1049 = vld [vmem:[#allocation2 + $0xa0] sm:$0xf]
      %v1050 = vld [vmem:[#allocation2 + $0xa8] sm:$0xf]
      %v1051 = vld [vmem:[#allocation2 + $0xac] sm:$0xf]
      %v1052 = vld [vmem:[#allocation2 + $0xb4] sm:$0xf]
      %v1053 = vld [vmem:[#allocation2 + $0xb8] sm:$0xf]
      %v1054 = vld [vmem:[#allocation2 + $0x8] sm:$0x1]
      %v1055 = vld [vmem:[#allocation2 + $0x14] sm:$0x1]
      %v1056 = vld [vmem:[#allocation2 + $0x20] sm:$0x1]
      %v1057 = vld [vmem:[#allocation2 + $0x2c] sm:$0x1]
      %v1058 = vld [vmem:[#allocation2 + $0x38] sm:$0x1]
      %v1059 = vld [vmem:[#allocation2 + $0x44] sm:$0x1]
      %v1060 = vld [vmem:[#allocation2 + $0x50] sm:$0x1]
      %v1061 = vld [vmem:[#allocation2 + $0x5c] sm:$0x1]
      %v1062 = vld [vmem:[#allocation2 + $0x68] sm:$0x1]
      %v1063 = vld [vmem:[#allocation2 + $0x74] sm:$0x1]
      %v1064 = vld [vmem:[#allocation2 + $0x80] sm:$0x1]
      %v1065 = vld [vmem:[#allocation2 + $0x8c] sm:$0x1]
      %v1066 = vld [vmem:[#allocation2 + $0x98] sm:$0x1]
      %v1067 = vld [vmem:[#allocation2 + $0xa4] sm:$0x1]
      %v1068 = vld [vmem:[#allocation2 + $0xb0] sm:$0x1]
      %v1069 = vld [vmem:[#allocation2 + $0xbc] sm:$0x1]
      %vm1070 = vsmask.f32 3328
      %vm1071 = vsmask.f32 7440
      %vm1072 = vmor %vm1070, %vm1071
      %v1074 = vshrl.u32 %v1022, 16
      %v1076 = vrot.slane %v1074, 4
      %v1077 = vshll.u32 %v1022, 16
      %v1079 = vrot.slane %v1077, 5
      %v1080 = vor.u32 %v1076, %v1079
      %v1081 = vrot.slane %v1080, 4
      %v1083 = vshll.u32 %v1023, 16
      %v1085 = vrot.slane %v1083, 5
      %v1086 = vsel %vm1072, %v1081, %v1085
      %v1087 = vshrl.u32 %v1023, 16
      %v1089 = vrot.slane %v1087, 4
      %v1090 = vor.u32 %v1089, %v1085
      %v1091 = vrot.slane %v1090, 4
      %v1093 = vshll.u32 %v1054, 16
      %v1095 = vrot.slane %v1093, 5
      %v1096 = vsel %vm1072, %v1091, %v1095
      %v1098 = vshrl.u32 %v1024, 16
      %v1100 = vrot.slane %v1098, 4
      %v1101 = vshll.u32 %v1024, 16
      %v1103 = vrot.slane %v1101, 5
      %v1104 = vor.u32 %v1100, %v1103
      %v1105 = vrot.slane %v1104, 4
      %v1107 = vshll.u32 %v1025, 16
      %v1109 = vrot.slane %v1107, 5
      %v1110 = vsel %vm1072, %v1105, %v1109
      %v1111 = vshrl.u32 %v1025, 16
      %v1113 = vrot.slane %v1111, 4
      %v1114 = vor.u32 %v1113, %v1109
      %v1115 = vrot.slane %v1114, 4
      %v1117 = vshll.u32 %v1055, 16
      %v1119 = vrot.slane %v1117, 5
      %v1120 = vsel %vm1072, %v1115, %v1119
      %v1122 = vshrl.u32 %v1026, 16
      %v1124 = vrot.slane %v1122, 4
      %v1125 = vshll.u32 %v1026, 16
      %v1127 = vrot.slane %v1125, 5
      %v1128 = vor.u32 %v1124, %v1127
      %v1129 = vrot.slane %v1128, 4
      %v1131 = vshll.u32 %v1027, 16
      %v1133 = vrot.slane %v1131, 5
      %v1134 = vsel %vm1072, %v1129, %v1133
      %v1135 = vshrl.u32 %v1027, 16
      %v1137 = vrot.slane %v1135, 4
      %v1138 = vor.u32 %v1137, %v1133
      %v1139 = vrot.slane %v1138, 4
      %v1141 = vshll.u32 %v1056, 16
      %v1143 = vrot.slane %v1141, 5
      %v1144 = vsel %vm1072, %v1139, %v1143
      %v1146 = vshrl.u32 %v1028, 16
      %v1148 = vrot.slane %v1146, 4
      %v1149 = vshll.u32 %v1028, 16
      %v1151 = vrot.slane %v1149, 5
      %v1152 = vor.u32 %v1148, %v1151
      %v1153 = vrot.slane %v1152, 4
      %v1155 = vshll.u32 %v1029, 16
      %v1157 = vrot.slane %v1155, 5
      %v1158 = vsel %vm1072, %v1153, %v1157
      %v1159 = vshrl.u32 %v1029, 16
      %v1161 = vrot.slane %v1159, 4
      %v1162 = vor.u32 %v1161, %v1157
      %v1163 = vrot.slane %v1162, 4
      %v1165 = vshll.u32 %v1057, 16
      %v1167 = vrot.slane %v1165, 5
      %v1168 = vsel %vm1072, %v1163, %v1167
      %v1170 = vshrl.u32 %v1030, 16
      %v1172 = vrot.slane %v1170, 4
      %v1173 = vshll.u32 %v1030, 16
      %v1175 = vrot.slane %v1173, 5
      %v1176 = vor.u32 %v1172, %v1175
      %v1177 = vrot.slane %v1176, 4
      %v1179 = vshll.u32 %v1031, 16
      %v1181 = vrot.slane %v1179, 5
      %v1182 = vsel %vm1072, %v1177, %v1181
      %v1183 = vshrl.u32 %v1031, 16
      %v1185 = vrot.slane %v1183, 4
      %v1186 = vor.u32 %v1185, %v1181
      %v1187 = vrot.slane %v1186, 4
      %v1189 = vshll.u32 %v1058, 16
      %v1191 = vrot.slane %v1189, 5
      %v1192 = vsel %vm1072, %v1187, %v1191
      %v1194 = vshrl.u32 %v1032, 16
      %v1196 = vrot.slane %v1194, 4
      %v1197 = vshll.u32 %v1032, 16
      %v1199 = vrot.slane %v1197, 5
      %v1200 = vor.u32 %v1196, %v1199
      %v1201 = vrot.slane %v1200, 4
      %v1203 = vshll.u32 %v1033, 16
      %v1205 = vrot.slane %v1203, 5
      %v1206 = vsel %vm1072, %v1201, %v1205
      %v1207 = vshrl.u32 %v1033, 16
      %v1209 = vrot.slane %v1207, 4
      %v1210 = vor.u32 %v1209, %v1205
      %v1211 = vrot.slane %v1210, 4
      %v1213 = vshll.u32 %v1059, 16
      %v1215 = vrot.slane %v1213, 5
      %v1216 = vsel %vm1072, %v1211, %v1215
      %v1218 = vshrl.u32 %v1034, 16
      %v1220 = vrot.slane %v1218, 4
      %v1221 = vshll.u32 %v1034, 16
      %v1223 = vrot.slane %v1221, 5
      %v1224 = vor.u32 %v1220, %v1223
      %v1225 = vrot.slane %v1224, 4
      %v1227 = vshll.u32 %v1035, 16
      %v1229 = vrot.slane %v1227, 5
      %v1230 = vsel %vm1072, %v1225, %v1229
      %v1231 = vshrl.u32 %v1035, 16
      %v1233 = vrot.slane %v1231, 4
      %v1234 = vor.u32 %v1233, %v1229
      %v1235 = vrot.slane %v1234, 4
      %v1237 = vshll.u32 %v1060, 16
      %v1239 = vrot.slane %v1237, 5
      %v1240 = vsel %vm1072, %v1235, %v1239
      %v1242 = vshrl.u32 %v1036, 16
      %v1244 = vrot.slane %v1242, 4
      %v1245 = vshll.u32 %v1036, 16
      %v1247 = vrot.slane %v1245, 5
      %v1248 = vor.u32 %v1244, %v1247
      %v1249 = vrot.slane %v1248, 4
      %v1251 = vshll.u32 %v1037, 16
      %v1253 = vrot.slane %v1251, 5
      %v1254 = vsel %vm1072, %v1249, %v1253
      %v1255 = vshrl.u32 %v1037, 16
      %v1257 = vrot.slane %v1255, 4
      %v1258 = vor.u32 %v1257, %v1253
      %v1259 = vrot.slane %v1258, 4
      %v1261 = vshll.u32 %v1061, 16
      %v1263 = vrot.slane %v1261, 5
      %v1264 = vsel %vm1072, %v1259, %v1263
      %v1266 = vshrl.u32 %v1038, 16
      %v1268 = vrot.slane %v1266, 4
      %v1269 = vshll.u32 %v1038, 16
      %v1271 = vrot.slane %v1269, 5
      %v1272 = vor.u32 %v1268, %v1271
      %v1273 = vrot.slane %v1272, 4
      %v1275 = vshll.u32 %v1039, 16
      %v1277 = vrot.slane %v1275, 5
      %v1278 = vsel %vm1072, %v1273, %v1277
      %v1279 = vshrl.u32 %v1039, 16
      %v1281 = vrot.slane %v1279, 4
      %v1282 = vor.u32 %v1281, %v1277
      %v1283 = vrot.slane %v1282, 4
      %v1285 = vshll.u32 %v1062, 16
      %v1287 = vrot.slane %v1285, 5
      %v1288 = vsel %vm1072, %v1283, %v1287
      %v1290 = vshrl.u32 %v1040, 16
      %v1292 = vrot.slane %v1290, 4
      %v1293 = vshll.u32 %v1040, 16
      %v1295 = vrot.slane %v1293, 5
      %v1296 = vor.u32 %v1292, %v1295
      %v1297 = vrot.slane %v1296, 4
      %v1299 = vshll.u32 %v1041, 16
      %v1301 = vrot.slane %v1299, 5
      %v1302 = vsel %vm1072, %v1297, %v1301
      %v1303 = vshrl.u32 %v1041, 16
      %v1305 = vrot.slane %v1303, 4
      %v1306 = vor.u32 %v1305, %v1301
      %v1307 = vrot.slane %v1306, 4
      %v1309 = vshll.u32 %v1063, 16
      %v1311 = vrot.slane %v1309, 5
      %v1312 = vsel %vm1072, %v1307, %v1311
      %v1314 = vshrl.u32 %v1042, 16
      %v1316 = vrot.slane %v1314, 4
      %v1317 = vshll.u32 %v1042, 16
      %v1319 = vrot.slane %v1317, 5
      %v1320 = vor.u32 %v1316, %v1319
      %v1321 = vrot.slane %v1320, 4
      %v1323 = vshll.u32 %v1043, 16
      %v1325 = vrot.slane %v1323, 5
      %v1326 = vsel %vm1072, %v1321, %v1325
      %v1327 = vshrl.u32 %v1043, 16
      %v1329 = vrot.slane %v1327, 4
      %v1330 = vor.u32 %v1329, %v1325
      %v1331 = vrot.slane %v1330, 4
      %v1333 = vshll.u32 %v1064, 16
      %v1335 = vrot.slane %v1333, 5
      %v1336 = vsel %vm1072, %v1331, %v1335
      %v1338 = vshrl.u32 %v1044, 16
      %v1340 = vrot.slane %v1338, 4
      %v1341 = vshll.u32 %v1044, 16
      %v1343 = vrot.slane %v1341, 5
      %v1344 = vor.u32 %v1340, %v1343
      %v1345 = vrot.slane %v1344, 4
      %v1347 = vshll.u32 %v1045, 16
      %v1349 = vrot.slane %v1347, 5
      %v1350 = vsel %vm1072, %v1345, %v1349
      %v1351 = vshrl.u32 %v1045, 16
      %v1353 = vrot.slane %v1351, 4
      %v1354 = vor.u32 %v1353, %v1349
      %v1355 = vrot.slane %v1354, 4
      %v1357 = vshll.u32 %v1065, 16
      %v1359 = vrot.slane %v1357, 5
      %v1360 = vsel %vm1072, %v1355, %v1359
      %v1362 = vshrl.u32 %v1046, 16
      %v1364 = vrot.slane %v1362, 4
      %v1365 = vshll.u32 %v1046, 16
      %v1367 = vrot.slane %v1365, 5
      %v1368 = vor.u32 %v1364, %v1367
      %v1369 = vrot.slane %v1368, 4
      %v1371 = vshll.u32 %v1047, 16
      %v1373 = vrot.slane %v1371, 5
      %v1374 = vsel %vm1072, %v1369, %v1373
      %v1375 = vshrl.u32 %v1047, 16
      %v1377 = vrot.slane %v1375, 4
      %v1378 = vor.u32 %v1377, %v1373
      %v1379 = vrot.slane %v1378, 4
      %v1381 = vshll.u32 %v1066, 16
      %v1383 = vrot.slane %v1381, 5
      %v1384 = vsel %vm1072, %v1379, %v1383
      %v1386 = vshrl.u32 %v1048, 16
      %v1388 = vrot.slane %v1386, 4
      %v1389 = vshll.u32 %v1048, 16
      %v1391 = vrot.slane %v1389, 5
      %v1392 = vor.u32 %v1388, %v1391
      %v1393 = vrot.slane %v1392, 4
      %v1395 = vshll.u32 %v1049, 16
      %v1397 = vrot.slane %v1395, 5
      %v1398 = vsel %vm1072, %v1393, %v1397
      %v1399 = vshrl.u32 %v1049, 16
      %v1401 = vrot.slane %v1399, 4
      %v1402 = vor.u32 %v1401, %v1397
      %v1403 = vrot.slane %v1402, 4
      %v1405 = vshll.u32 %v1067, 16
      %v1407 = vrot.slane %v1405, 5
      %v1408 = vsel %vm1072, %v1403, %v1407
      %v1410 = vshrl.u32 %v1050, 16
      %v1412 = vrot.slane %v1410, 4
      %v1413 = vshll.u32 %v1050, 16
      %v1415 = vrot.slane %v1413, 5
      %v1416 = vor.u32 %v1412, %v1415
      %v1417 = vrot.slane %v1416, 4
      %v1419 = vshll.u32 %v1051, 16
      %v1421 = vrot.slane %v1419, 5
      %v1422 = vsel %vm1072, %v1417, %v1421
      %v1423 = vshrl.u32 %v1051, 16
      %v1425 = vrot.slane %v1423, 4
      %v1426 = vor.u32 %v1425, %v1421
      %v1427 = vrot.slane %v1426, 4
      %v1429 = vshll.u32 %v1068, 16
      %v1431 = vrot.slane %v1429, 5
      %v1432 = vsel %vm1072, %v1427, %v1431
      %v1434 = vshrl.u32 %v1052, 16
      %v1436 = vrot.slane %v1434, 4
      %v1437 = vshll.u32 %v1052, 16
      %v1439 = vrot.slane %v1437, 5
      %v1440 = vor.u32 %v1436, %v1439
      %v1441 = vrot.slane %v1440, 4
      %v1443 = vshll.u32 %v1053, 16
      %v1445 = vrot.slane %v1443, 5
      %v1446 = vsel %vm1072, %v1441, %v1445
      %v1447 = vshrl.u32 %v1053, 16
      %v1449 = vrot.slane %v1447, 4
      %v1450 = vor.u32 %v1449, %v1445
      %v1451 = vrot.slane %v1450, 4
      %v1453 = vshll.u32 %v1069, 16
      %v1455 = vrot.slane %v1453, 5
      %v1456 = vsel %vm1072, %v1451, %v1455
      %v1457 = vld [vmem:[#allocation2] sm:$0xe]
      %v1458 = vld [vmem:[#allocation2 + $0xc] sm:$0xe]
      %v1459 = vld [vmem:[#allocation2 + $0x18] sm:$0xe]
      %v1460 = vld [vmem:[#allocation2 + $0x24] sm:$0xe]
      %v1461 = vld [vmem:[#allocation2 + $0x30] sm:$0xe]
      %v1462 = vld [vmem:[#allocation2 + $0x3c] sm:$0xe]
      %v1463 = vld [vmem:[#allocation2 + $0x48] sm:$0xe]
      %v1464 = vld [vmem:[#allocation2 + $0x54] sm:$0xe]
      %v1465 = vld [vmem:[#allocation2 + $0x60] sm:$0xe]
      %v1466 = vld [vmem:[#allocation2 + $0x6c] sm:$0xe]
      %v1467 = vld [vmem:[#allocation2 + $0x78] sm:$0xe]
      %v1468 = vld [vmem:[#allocation2 + $0x84] sm:$0xe]
      %v1469 = vld [vmem:[#allocation2 + $0x90] sm:$0xe]
      %v1470 = vld [vmem:[#allocation2 + $0x9c] sm:$0xe]
      %v1471 = vld [vmem:[#allocation2 + $0xa8] sm:$0xe]
      %v1472 = vld [vmem:[#allocation2 + $0xb4] sm:$0xe]
      %vm1521 = vcmask 1042432
      %vm1522 = vcmask 1046532
      %vm1523 = vmor %vm1521, %vm1522
      %v1524 = vrot.slane %v1457, 5
      %v1525 = vrot.slane %v1524, 4
      %v1526 = vrot.slane %v1023, 5
      %v1527 = vsel %vm1523, %v1525, %v1526
      %v1528 = vrot.slane %v1526, 4
      %v1529 = vrot.slane %v1054, 5
      %v1530 = vsel %vm1523, %v1528, %v1529
      %v1531 = vrot.slane %v1458, 5
      %v1532 = vrot.slane %v1531, 4
      %v1533 = vrot.slane %v1025, 5
      %v1534 = vsel %vm1523, %v1532, %v1533
      %v1535 = vrot.slane %v1533, 4
      %v1536 = vrot.slane %v1055, 5
      %v1537 = vsel %vm1523, %v1535, %v1536
      %v1538 = vrot.slane %v1459, 5
      %v1539 = vrot.slane %v1538, 4
      %v1540 = vrot.slane %v1027, 5
      %v1541 = vsel %vm1523, %v1539, %v1540
      %v1542 = vrot.slane %v1540, 4
      %v1543 = vrot.slane %v1056, 5
      %v1544 = vsel %vm1523, %v1542, %v1543
      %v1545 = vrot.slane %v1460, 5
      %v1546 = vrot.slane %v1545, 4
      %v1547 = vrot.slane %v1029, 5
      %v1548 = vsel %vm1523, %v1546, %v1547
      %v1549 = vrot.slane %v1547, 4
      %v1550 = vrot.slane %v1057, 5
      %v1551 = vsel %vm1523, %v1549, %v1550
      %v1552 = vrot.slane %v1461, 5
      %v1553 = vrot.slane %v1552, 4
      %v1554 = vrot.slane %v1031, 5
      %v1555 = vsel %vm1523, %v1553, %v1554
      %v1556 = vrot.slane %v1554, 4
      %v1557 = vrot.slane %v1058, 5
      %v1558 = vsel %vm1523, %v1556, %v1557
      %v1559 = vrot.slane %v1462, 5
      %v1560 = vrot.slane %v1559, 4
      %v1561 = vrot.slane %v1033, 5
      %v1562 = vsel %vm1523, %v1560, %v1561
      %v1563 = vrot.slane %v1561, 4
      %v1564 = vrot.slane %v1059, 5
      %v1565 = vsel %vm1523, %v1563, %v1564
      %v1566 = vrot.slane %v1463, 5
      %v1567 = vrot.slane %v1566, 4
      %v1568 = vrot.slane %v1035, 5
      %v1569 = vsel %vm1523, %v1567, %v1568
      %v1570 = vrot.slane %v1568, 4
      %v1571 = vrot.slane %v1060, 5
      %v1572 = vsel %vm1523, %v1570, %v1571
      %v1573 = vrot.slane %v1464, 5
      %v1574 = vrot.slane %v1573, 4
      %v1575 = vrot.slane %v1037, 5
      %v1576 = vsel %vm1523, %v1574, %v1575
      %v1577 = vrot.slane %v1575, 4
      %v1578 = vrot.slane %v1061, 5
      %v1579 = vsel %vm1523, %v1577, %v1578
      %v1580 = vrot.slane %v1465, 5
      %v1581 = vrot.slane %v1580, 4
      %v1582 = vrot.slane %v1039, 5
      %v1583 = vsel %vm1523, %v1581, %v1582
      %v1584 = vrot.slane %v1582, 4
      %v1585 = vrot.slane %v1062, 5
      %v1586 = vsel %vm1523, %v1584, %v1585
      %v1587 = vrot.slane %v1466, 5
      %v1588 = vrot.slane %v1587, 4
      %v1589 = vrot.slane %v1041, 5
      %v1590 = vsel %vm1523, %v1588, %v1589
      %v1591 = vrot.slane %v1589, 4
      %v1592 = vrot.slane %v1063, 5
      %v1593 = vsel %vm1523, %v1591, %v1592
      %v1594 = vrot.slane %v1467, 5
      %v1595 = vrot.slane %v1594, 4
      %v1596 = vrot.slane %v1043, 5
      %v1597 = vsel %vm1523, %v1595, %v1596
      %v1598 = vrot.slane %v1596, 4
      %v1599 = vrot.slane %v1064, 5
      %v1600 = vsel %vm1523, %v1598, %v1599
      %v1601 = vrot.slane %v1468, 5
      %v1602 = vrot.slane %v1601, 4
      %v1603 = vrot.slane %v1045, 5
      %v1604 = vsel %vm1523, %v1602, %v1603
      %v1605 = vrot.slane %v1603, 4
      %v1606 = vrot.slane %v1065, 5
      %v1607 = vsel %vm1523, %v1605, %v1606
      %v1608 = vrot.slane %v1469, 5
      %v1609 = vrot.slane %v1608, 4
      %v1610 = vrot.slane %v1047, 5
      %v1611 = vsel %vm1523, %v1609, %v1610
      %v1612 = vrot.slane %v1610, 4
      %v1613 = vrot.slane %v1066, 5
      %v1614 = vsel %vm1523, %v1612, %v1613
      %v1615 = vrot.slane %v1470, 5
      %v1616 = vrot.slane %v1615, 4
      %v1617 = vrot.slane %v1049, 5
      %v1618 = vsel %vm1523, %v1616, %v1617
      %v1619 = vrot.slane %v1617, 4
      %v1620 = vrot.slane %v1067, 5
      %v1621 = vsel %vm1523, %v1619, %v1620
      %v1622 = vrot.slane %v1471, 5
      %v1623 = vrot.slane %v1622, 4
      %v1624 = vrot.slane %v1051, 5
      %v1625 = vsel %vm1523, %v1623, %v1624
      %v1626 = vrot.slane %v1624, 4
      %v1627 = vrot.slane %v1068, 5
      %v1628 = vsel %vm1523, %v1626, %v1627
      %v1629 = vrot.slane %v1472, 5
      %v1630 = vrot.slane %v1629, 4
      %v1631 = vrot.slane %v1053, 5
      %v1632 = vsel %vm1523, %v1630, %v1631
      %v1633 = vrot.slane %v1631, 4
      %v1634 = vrot.slane %v1069, 5
      %v1635 = vsel %vm1523, %v1633, %v1634
      %v1636 = vld [vmem:[%s404] sm:$0xf]
      %v1637 = vld [vmem:[%s404 + $0x4] sm:$0xf]
      %v1638 = vld [vmem:[%s404 + $0xc] sm:$0xf]
      %v1639 = vld [vmem:[%s404 + $0x10] sm:$0xf]
      %v1640 = vld [vmem:[%s404 + $0x18] sm:$0xf]
      %v1641 = vld [vmem:[%s404 + $0x1c] sm:$0xf]
      %v1642 = vld [vmem:[%s404 + $0x24] sm:$0xf]
      %v1643 = vld [vmem:[%s404 + $0x28] sm:$0xf]
      %v1644 = vld [vmem:[%s404 + $0x30] sm:$0xf]
      %v1645 = vld [vmem:[%s404 + $0x34] sm:$0xf]
      %v1646 = vld [vmem:[%s404 + $0x3c] sm:$0xf]
      %v1647 = vld [vmem:[%s404 + $0x40] sm:$0xf]
      %v1648 = vld [vmem:[%s404 + $0x48] sm:$0xf]
      %v1649 = vld [vmem:[%s404 + $0x4c] sm:$0xf]
      %v1650 = vld [vmem:[%s404 + $0x54] sm:$0xf]
      %v1651 = vld [vmem:[%s404 + $0x58] sm:$0xf]
      %v1652 = vld [vmem:[%s404 + $0x60] sm:$0xf]
      %v1653 = vld [vmem:[%s404 + $0x64] sm:$0xf]
      %v1654 = vld [vmem:[%s404 + $0x6c] sm:$0xf]
      %v1655 = vld [vmem:[%s404 + $0x70] sm:$0xf]
      %v1656 = vld [vmem:[%s404 + $0x78] sm:$0xf]
      %v1657 = vld [vmem:[%s404 + $0x7c] sm:$0xf]
      %v1658 = vld [vmem:[%s404 + $0x84] sm:$0xf]
      %v1659 = vld [vmem:[%s404 + $0x88] sm:$0xf]
      %v1660 = vld [vmem:[%s404 + $0x90] sm:$0xf]
      %v1661 = vld [vmem:[%s404 + $0x94] sm:$0xf]
      %v1662 = vld [vmem:[%s404 + $0x9c] sm:$0xf]
      %v1663 = vld [vmem:[%s404 + $0xa0] sm:$0xf]
      %v1664 = vld [vmem:[%s404 + $0xa8] sm:$0xf]
      %v1665 = vld [vmem:[%s404 + $0xac] sm:$0xf]
      %v1666 = vld [vmem:[%s404 + $0xb4] sm:$0xf]
      %v1667 = vld [vmem:[%s404 + $0xb8] sm:$0xf]
      %v1668 = vld [vmem:[%s404 + $0x8] sm:$0x1]
      %v1669 = vld [vmem:[%s404 + $0x14] sm:$0x1]
      %v1670 = vld [vmem:[%s404 + $0x20] sm:$0x1]
      %v1671 = vld [vmem:[%s404 + $0x2c] sm:$0x1]
      %v1672 = vld [vmem:[%s404 + $0x38] sm:$0x1]
      %v1673 = vld [vmem:[%s404 + $0x44] sm:$0x1]
      %v1674 = vld [vmem:[%s404 + $0x50] sm:$0x1]
      %v1675 = vld [vmem:[%s404 + $0x5c] sm:$0x1]
      %v1676 = vld [vmem:[%s404 + $0x68] sm:$0x1]
      %v1677 = vld [vmem:[%s404 + $0x74] sm:$0x1]
      %v1678 = vld [vmem:[%s404 + $0x80] sm:$0x1]
      %v1679 = vld [vmem:[%s404 + $0x8c] sm:$0x1]
      %v1680 = vld [vmem:[%s404 + $0x98] sm:$0x1]
      %v1681 = vld [vmem:[%s404 + $0xa4] sm:$0x1]
      %v1682 = vld [vmem:[%s404 + $0xb0] sm:$0x1]
      %v1683 = vld [vmem:[%s404 + $0xbc] sm:$0x1]
      %v1685 = vshrl.u32 %v1636, 16
      %v1687 = vrot.slane %v1685, 4
      %v1688 = vshll.u32 %v1636, 16
      %v1690 = vrot.slane %v1688, 5
      %v1691 = vor.u32 %v1687, %v1690
      %v1692 = vrot.slane %v1691, 4
      %v1694 = vshll.u32 %v1637, 16
      %v1696 = vrot.slane %v1694, 5
      %v1697 = vsel %vm1072, %v1692, %v1696
      %v1698 = vshrl.u32 %v1637, 16
      %v1700 = vrot.slane %v1698, 4
      %v1701 = vor.u32 %v1700, %v1696
      %v1702 = vrot.slane %v1701, 4
      %v1704 = vshll.u32 %v1668, 16
      %v1706 = vrot.slane %v1704, 5
      %v1707 = vsel %vm1072, %v1702, %v1706
      %v1709 = vshrl.u32 %v1638, 16
      %v1711 = vrot.slane %v1709, 4
      %v1712 = vshll.u32 %v1638, 16
      %v1714 = vrot.slane %v1712, 5
      %v1715 = vor.u32 %v1711, %v1714
      %v1716 = vrot.slane %v1715, 4
      %v1718 = vshll.u32 %v1639, 16
      %v1720 = vrot.slane %v1718, 5
      %v1721 = vsel %vm1072, %v1716, %v1720
      %v1722 = vshrl.u32 %v1639, 16
      %v1724 = vrot.slane %v1722, 4
      %v1725 = vor.u32 %v1724, %v1720
      %v1726 = vrot.slane %v1725, 4
      %v1728 = vshll.u32 %v1669, 16
      %v1730 = vrot.slane %v1728, 5
      %v1731 = vsel %vm1072, %v1726, %v1730
      %v1733 = vshrl.u32 %v1640, 16
      %v1735 = vrot.slane %v1733, 4
      %v1736 = vshll.u32 %v1640, 16
      %v1738 = vrot.slane %v1736, 5
      %v1739 = vor.u32 %v1735, %v1738
      %v1740 = vrot.slane %v1739, 4
      %v1742 = vshll.u32 %v1641, 16
      %v1744 = vrot.slane %v1742, 5
      %v1745 = vsel %vm1072, %v1740, %v1744
      %v1746 = vshrl.u32 %v1641, 16
      %v1748 = vrot.slane %v1746, 4
      %v1749 = vor.u32 %v1748, %v1744
      %v1750 = vrot.slane %v1749, 4
      %v1752 = vshll.u32 %v1670, 16
      %v1754 = vrot.slane %v1752, 5
      %v1755 = vsel %vm1072, %v1750, %v1754
      %v1757 = vshrl.u32 %v1642, 16
      %v1759 = vrot.slane %v1757, 4
      %v1760 = vshll.u32 %v1642, 16
      %v1762 = vrot.slane %v1760, 5
      %v1763 = vor.u32 %v1759, %v1762
      %v1764 = vrot.slane %v1763, 4
      %v1766 = vshll.u32 %v1643, 16
      %v1768 = vrot.slane %v1766, 5
      %v1769 = vsel %vm1072, %v1764, %v1768
      %v1770 = vshrl.u32 %v1643, 16
      %v1772 = vrot.slane %v1770, 4
      %v1773 = vor.u32 %v1772, %v1768
      %v1774 = vrot.slane %v1773, 4
      %v1776 = vshll.u32 %v1671, 16
      %v1778 = vrot.slane %v1776, 5
      %v1779 = vsel %vm1072, %v1774, %v1778
      %v1781 = vshrl.u32 %v1644, 16
      %v1783 = vrot.slane %v1781, 4
      %v1784 = vshll.u32 %v1644, 16
      %v1786 = vrot.slane %v1784, 5
      %v1787 = vor.u32 %v1783, %v1786
      %v1788 = vrot.slane %v1787, 4
      %v1790 = vshll.u32 %v1645, 16
      %v1792 = vrot.slane %v1790, 5
      %v1793 = vsel %vm1072, %v1788, %v1792
      %v1794 = vshrl.u32 %v1645, 16
      %v1796 = vrot.slane %v1794, 4
      %v1797 = vor.u32 %v1796, %v1792
      %v1798 = vrot.slane %v1797, 4
      %v1800 = vshll.u32 %v1672, 16
      %v1802 = vrot.slane %v1800, 5
      %v1803 = vsel %vm1072, %v1798, %v1802
      %v1805 = vshrl.u32 %v1646, 16
      %v1807 = vrot.slane %v1805, 4
      %v1808 = vshll.u32 %v1646, 16
      %v1810 = vrot.slane %v1808, 5
      %v1811 = vor.u32 %v1807, %v1810
      %v1812 = vrot.slane %v1811, 4
      %v1814 = vshll.u32 %v1647, 16
      %v1816 = vrot.slane %v1814, 5
      %v1817 = vsel %vm1072, %v1812, %v1816
      %v1818 = vshrl.u32 %v1647, 16
      %v1820 = vrot.slane %v1818, 4
      %v1821 = vor.u32 %v1820, %v1816
      %v1822 = vrot.slane %v1821, 4
      %v1824 = vshll.u32 %v1673, 16
      %v1826 = vrot.slane %v1824, 5
      %v1827 = vsel %vm1072, %v1822, %v1826
      %v1829 = vshrl.u32 %v1648, 16
      %v1831 = vrot.slane %v1829, 4
      %v1832 = vshll.u32 %v1648, 16
      %v1834 = vrot.slane %v1832, 5
      %v1835 = vor.u32 %v1831, %v1834
      %v1836 = vrot.slane %v1835, 4
      %v1838 = vshll.u32 %v1649, 16
      %v1840 = vrot.slane %v1838, 5
      %v1841 = vsel %vm1072, %v1836, %v1840
      %v1842 = vshrl.u32 %v1649, 16
      %v1844 = vrot.slane %v1842, 4
      %v1845 = vor.u32 %v1844, %v1840
      %v1846 = vrot.slane %v1845, 4
      %v1848 = vshll.u32 %v1674, 16
      %v1850 = vrot.slane %v1848, 5
      %v1851 = vsel %vm1072, %v1846, %v1850
      %v1853 = vshrl.u32 %v1650, 16
      %v1855 = vrot.slane %v1853, 4
      %v1856 = vshll.u32 %v1650, 16
      %v1858 = vrot.slane %v1856, 5
      %v1859 = vor.u32 %v1855, %v1858
      %v1860 = vrot.slane %v1859, 4
      %v1862 = vshll.u32 %v1651, 16
      %v1864 = vrot.slane %v1862, 5
      %v1865 = vsel %vm1072, %v1860, %v1864
      %v1866 = vshrl.u32 %v1651, 16
      %v1868 = vrot.slane %v1866, 4
      %v1869 = vor.u32 %v1868, %v1864
      %v1870 = vrot.slane %v1869, 4
      %v1872 = vshll.u32 %v1675, 16
      %v1874 = vrot.slane %v1872, 5
      %v1875 = vsel %vm1072, %v1870, %v1874
      %v1877 = vshrl.u32 %v1652, 16
      %v1879 = vrot.slane %v1877, 4
      %v1880 = vshll.u32 %v1652, 16
      %v1882 = vrot.slane %v1880, 5
      %v1883 = vor.u32 %v1879, %v1882
      %v1884 = vrot.slane %v1883, 4
      %v1886 = vshll.u32 %v1653, 16
      %v1888 = vrot.slane %v1886, 5
      %v1889 = vsel %vm1072, %v1884, %v1888
      %v1890 = vshrl.u32 %v1653, 16
      %v1892 = vrot.slane %v1890, 4
      %v1893 = vor.u32 %v1892, %v1888
      %v1894 = vrot.slane %v1893, 4
      %v1896 = vshll.u32 %v1676, 16
      %v1898 = vrot.slane %v1896, 5
      %v1899 = vsel %vm1072, %v1894, %v1898
      %v1901 = vshrl.u32 %v1654, 16
      %v1903 = vrot.slane %v1901, 4
      %v1904 = vshll.u32 %v1654, 16
      %v1906 = vrot.slane %v1904, 5
      %v1907 = vor.u32 %v1903, %v1906
      %v1908 = vrot.slane %v1907, 4
      %v1910 = vshll.u32 %v1655, 16
      %v1912 = vrot.slane %v1910, 5
      %v1913 = vsel %vm1072, %v1908, %v1912
      %v1914 = vshrl.u32 %v1655, 16
      %v1916 = vrot.slane %v1914, 4
      %v1917 = vor.u32 %v1916, %v1912
      %v1918 = vrot.slane %v1917, 4
      %v1920 = vshll.u32 %v1677, 16
      %v1922 = vrot.slane %v1920, 5
      %v1923 = vsel %vm1072, %v1918, %v1922
      %v1925 = vshrl.u32 %v1656, 16
      %v1927 = vrot.slane %v1925, 4
      %v1928 = vshll.u32 %v1656, 16
      %v1930 = vrot.slane %v1928, 5
      %v1931 = vor.u32 %v1927, %v1930
      %v1932 = vrot.slane %v1931, 4
      %v1934 = vshll.u32 %v1657, 16
      %v1936 = vrot.slane %v1934, 5
      %v1937 = vsel %vm1072, %v1932, %v1936
      %v1938 = vshrl.u32 %v1657, 16
      %v1940 = vrot.slane %v1938, 4
      %v1941 = vor.u32 %v1940, %v1936
      %v1942 = vrot.slane %v1941, 4
      %v1944 = vshll.u32 %v1678, 16
      %v1946 = vrot.slane %v1944, 5
      %v1947 = vsel %vm1072, %v1942, %v1946
      %v1949 = vshrl.u32 %v1658, 16
      %v1951 = vrot.slane %v1949, 4
      %v1952 = vshll.u32 %v1658, 16
      %v1954 = vrot.slane %v1952, 5
      %v1955 = vor.u32 %v1951, %v1954
      %v1956 = vrot.slane %v1955, 4
      %v1958 = vshll.u32 %v1659, 16
      %v1960 = vrot.slane %v1958, 5
      %v1961 = vsel %vm1072, %v1956, %v1960
      %v1962 = vshrl.u32 %v1659, 16
      %v1964 = vrot.slane %v1962, 4
      %v1965 = vor.u32 %v1964, %v1960
      %v1966 = vrot.slane %v1965, 4
      %v1968 = vshll.u32 %v1679, 16
      %v1970 = vrot.slane %v1968, 5
      %v1971 = vsel %vm1072, %v1966, %v1970
      %v1973 = vshrl.u32 %v1660, 16
      %v1975 = vrot.slane %v1973, 4
      %v1976 = vshll.u32 %v1660, 16
      %v1978 = vrot.slane %v1976, 5
      %v1979 = vor.u32 %v1975, %v1978
      %v1980 = vrot.slane %v1979, 4
      %v1982 = vshll.u32 %v1661, 16
      %v1984 = vrot.slane %v1982, 5
      %v1985 = vsel %vm1072, %v1980, %v1984
      %v1986 = vshrl.u32 %v1661, 16
      %v1988 = vrot.slane %v1986, 4
      %v1989 = vor.u32 %v1988, %v1984
      %v1990 = vrot.slane %v1989, 4
      %v1992 = vshll.u32 %v1680, 16
      %v1994 = vrot.slane %v1992, 5
      %v1995 = vsel %vm1072, %v1990, %v1994
      %v1997 = vshrl.u32 %v1662, 16
      %v1999 = vrot.slane %v1997, 4
      %v2000 = vshll.u32 %v1662, 16
      %v2002 = vrot.slane %v2000, 5
      %v2003 = vor.u32 %v1999, %v2002
      %v2004 = vrot.slane %v2003, 4
      %v2006 = vshll.u32 %v1663, 16
      %v2008 = vrot.slane %v2006, 5
      %v2009 = vsel %vm1072, %v2004, %v2008
      %v2010 = vshrl.u32 %v1663, 16
      %v2012 = vrot.slane %v2010, 4
      %v2013 = vor.u32 %v2012, %v2008
      %v2014 = vrot.slane %v2013, 4
      %v2016 = vshll.u32 %v1681, 16
      %v2018 = vrot.slane %v2016, 5
      %v2019 = vsel %vm1072, %v2014, %v2018
      %v2021 = vshrl.u32 %v1664, 16
      %v2023 = vrot.slane %v2021, 4
      %v2024 = vshll.u32 %v1664, 16
      %v2026 = vrot.slane %v2024, 5
      %v2027 = vor.u32 %v2023, %v2026
      %v2028 = vrot.slane %v2027, 4
      %v2030 = vshll.u32 %v1665, 16
      %v2032 = vrot.slane %v2030, 5
      %v2033 = vsel %vm1072, %v2028, %v2032
      %v2034 = vshrl.u32 %v1665, 16
      %v2036 = vrot.slane %v2034, 4
      %v2037 = vor.u32 %v2036, %v2032
      %v2038 = vrot.slane %v2037, 4
      %v2040 = vshll.u32 %v1682, 16
      %v2042 = vrot.slane %v2040, 5
      %v2043 = vsel %vm1072, %v2038, %v2042
      %v2045 = vshrl.u32 %v1666, 16
      %v2047 = vrot.slane %v2045, 4
      %v2048 = vshll.u32 %v1666, 16
      %v2050 = vrot.slane %v2048, 5
      %v2051 = vor.u32 %v2047, %v2050
      %v2052 = vrot.slane %v2051, 4
      %v2054 = vshll.u32 %v1667, 16
      %v2056 = vrot.slane %v2054, 5
      %v2057 = vsel %vm1072, %v2052, %v2056
      %v2058 = vshrl.u32 %v1667, 16
      %v2060 = vrot.slane %v2058, 4
      %v2061 = vor.u32 %v2060, %v2056
      %v2062 = vrot.slane %v2061, 4
      %v2064 = vshll.u32 %v1683, 16
      %v2066 = vrot.slane %v2064, 5
      %v2067 = vsel %vm1072, %v2062, %v2066
      %v2068 = vld [vmem:[%s404] sm:$0xe]
      %v2069 = vld [vmem:[%s404 + $0xc] sm:$0xe]
      %v2070 = vld [vmem:[%s404 + $0x18] sm:$0xe]
      %v2071 = vld [vmem:[%s404 + $0x24] sm:$0xe]
      %v2072 = vld [vmem:[%s404 + $0x30] sm:$0xe]
      %v2073 = vld [vmem:[%s404 + $0x3c] sm:$0xe]
      %v2074 = vld [vmem:[%s404 + $0x48] sm:$0xe]
      %v2075 = vld [vmem:[%s404 + $0x54] sm:$0xe]
      %v2076 = vld [vmem:[%s404 + $0x60] sm:$0xe]
      %v2077 = vld [vmem:[%s404 + $0x6c] sm:$0xe]
      %v2078 = vld [vmem:[%s404 + $0x78] sm:$0xe]
      %v2079 = vld [vmem:[%s404 + $0x84] sm:$0xe]
      %v2080 = vld [vmem:[%s404 + $0x90] sm:$0xe]
      %v2081 = vld [vmem:[%s404 + $0x9c] sm:$0xe]
      %v2082 = vld [vmem:[%s404 + $0xa8] sm:$0xe]
      %v2083 = vld [vmem:[%s404 + $0xb4] sm:$0xe]
      %v2132 = vrot.slane %v2068, 5
      %v2133 = vrot.slane %v2132, 4
      %v2134 = vrot.slane %v1637, 5
      %v2135 = vsel %vm1523, %v2133, %v2134
      %v2136 = vrot.slane %v2134, 4
      %v2137 = vrot.slane %v1668, 5
      %v2138 = vsel %vm1523, %v2136, %v2137
      %v2139 = vrot.slane %v2069, 5
      %v2140 = vrot.slane %v2139, 4
      %v2141 = vrot.slane %v1639, 5
      %v2142 = vsel %vm1523, %v2140, %v2141
      %v2143 = vrot.slane %v2141, 4
      %v2144 = vrot.slane %v1669, 5
      %v2145 = vsel %vm1523, %v2143, %v2144
      %v2146 = vrot.slane %v2070, 5
      %v2147 = vrot.slane %v2146, 4
      %v2148 = vrot.slane %v1641, 5
      %v2149 = vsel %vm1523, %v2147, %v2148
      %v2150 = vrot.slane %v2148, 4
      %v2151 = vrot.slane %v1670, 5
      %v2152 = vsel %vm1523, %v2150, %v2151
      %v2153 = vrot.slane %v2071, 5
      %v2154 = vrot.slane %v2153, 4
      %v2155 = vrot.slane %v1643, 5
      %v2156 = vsel %vm1523, %v2154, %v2155
      %v2157 = vrot.slane %v2155, 4
      %v2158 = vrot.slane %v1671, 5
      %v2159 = vsel %vm1523, %v2157, %v2158
      %v2160 = vrot.slane %v2072, 5
      %v2161 = vrot.slane %v2160, 4
      %v2162 = vrot.slane %v1645, 5
      %v2163 = vsel %vm1523, %v2161, %v2162
      %v2164 = vrot.slane %v2162, 4
      %v2165 = vrot.slane %v1672, 5
      %v2166 = vsel %vm1523, %v2164, %v2165
      %v2167 = vrot.slane %v2073, 5
      %v2168 = vrot.slane %v2167, 4
      %v2169 = vrot.slane %v1647, 5
      %v2170 = vsel %vm1523, %v2168, %v2169
      %v2171 = vrot.slane %v2169, 4
      %v2172 = vrot.slane %v1673, 5
      %v2173 = vsel %vm1523, %v2171, %v2172
      %v2174 = vrot.slane %v2074, 5
      %v2175 = vrot.slane %v2174, 4
      %v2176 = vrot.slane %v1649, 5
      %v2177 = vsel %vm1523, %v2175, %v2176
      %v2178 = vrot.slane %v2176, 4
      %v2179 = vrot.slane %v1674, 5
      %v2180 = vsel %vm1523, %v2178, %v2179
      %v2181 = vrot.slane %v2075, 5
      %v2182 = vrot.slane %v2181, 4
      %v2183 = vrot.slane %v1651, 5
      %v2184 = vsel %vm1523, %v2182, %v2183
      %v2185 = vrot.slane %v2183, 4
      %v2186 = vrot.slane %v1675, 5
      %v2187 = vsel %vm1523, %v2185, %v2186
      %v2188 = vrot.slane %v2076, 5
      %v2189 = vrot.slane %v2188, 4
      %v2190 = vrot.slane %v1653, 5
      %v2191 = vsel %vm1523, %v2189, %v2190
      %v2192 = vrot.slane %v2190, 4
      %v2193 = vrot.slane %v1676, 5
      %v2194 = vsel %vm1523, %v2192, %v2193
      %v2195 = vrot.slane %v2077, 5
      %v2196 = vrot.slane %v2195, 4
      %v2197 = vrot.slane %v1655, 5
      %v2198 = vsel %vm1523, %v2196, %v2197
      %v2199 = vrot.slane %v2197, 4
      %v2200 = vrot.slane %v1677, 5
      %v2201 = vsel %vm1523, %v2199, %v2200
      %v2202 = vrot.slane %v2078, 5
      %v2203 = vrot.slane %v2202, 4
      %v2204 = vrot.slane %v1657, 5
      %v2205 = vsel %vm1523, %v2203, %v2204
      %v2206 = vrot.slane %v2204, 4
      %v2207 = vrot.slane %v1678, 5
      %v2208 = vsel %vm1523, %v2206, %v2207
      %v2209 = vrot.slane %v2079, 5
      %v2210 = vrot.slane %v2209, 4
      %v2211 = vrot.slane %v1659, 5
      %v2212 = vsel %vm1523, %v2210, %v2211
      %v2213 = vrot.slane %v2211, 4
      %v2214 = vrot.slane %v1679, 5
      %v2215 = vsel %vm1523, %v2213, %v2214
      %v2216 = vrot.slane %v2080, 5
      %v2217 = vrot.slane %v2216, 4
      %v2218 = vrot.slane %v1661, 5
      %v2219 = vsel %vm1523, %v2217, %v2218
      %v2220 = vrot.slane %v2218, 4
      %v2221 = vrot.slane %v1680, 5
      %v2222 = vsel %vm1523, %v2220, %v2221
      %v2223 = vrot.slane %v2081, 5
      %v2224 = vrot.slane %v2223, 4
      %v2225 = vrot.slane %v1663, 5
      %v2226 = vsel %vm1523, %v2224, %v2225
      %v2227 = vrot.slane %v2225, 4
      %v2228 = vrot.slane %v1681, 5
      %v2229 = vsel %vm1523, %v2227, %v2228
      %v2230 = vrot.slane %v2082, 5
      %v2231 = vrot.slane %v2230, 4
      %v2232 = vrot.slane %v1665, 5
      %v2233 = vsel %vm1523, %v2231, %v2232
      %v2234 = vrot.slane %v2232, 4
      %v2235 = vrot.slane %v1682, 5
      %v2236 = vsel %vm1523, %v2234, %v2235
      %v2237 = vrot.slane %v2083, 5
      %v2238 = vrot.slane %v2237, 4
      %v2239 = vrot.slane %v1667, 5
      %v2240 = vsel %vm1523, %v2238, %v2239
      %v2241 = vrot.slane %v2239, 4
      %v2242 = vrot.slane %v1683, 5
      %v2243 = vsel %vm1523, %v2241, %v2242
      %s2244 = scalar_lea.vmem [#allocation2], 24
      %v2245 = vld [vmem:[%s2244] sm:$0xf]
      %v2246 = vld [vmem:[%s2244 + $0x4] sm:$0xf]
      %v2247 = vld [vmem:[%s2244 + $0xc] sm:$0xf]
      %v2248 = vld [vmem:[%s2244 + $0x10] sm:$0xf]
      %v2249 = vld [vmem:[%s2244 + $0x18] sm:$0xf]
      %v2250 = vld [vmem:[%s2244 + $0x1c] sm:$0xf]
      %v2251 = vld [vmem:[%s2244 + $0x24] sm:$0xf]
      %v2252 = vld [vmem:[%s2244 + $0x28] sm:$0xf]
      %v2253 = vld [vmem:[%s2244 + $0x30] sm:$0xf]
      %v2254 = vld [vmem:[%s2244 + $0x34] sm:$0xf]
      %v2255 = vld [vmem:[%s2244 + $0x3c] sm:$0xf]
      %v2256 = vld [vmem:[%s2244 + $0x40] sm:$0xf]
      %v2257 = vld [vmem:[%s2244 + $0x48] sm:$0xf]
      %v2258 = vld [vmem:[%s2244 + $0x4c] sm:$0xf]
      %v2259 = vld [vmem:[%s2244 + $0x54] sm:$0xf]
      %v2260 = vld [vmem:[%s2244 + $0x58] sm:$0xf]
      %v2261 = vld [vmem:[%s2244 + $0x60] sm:$0xf]
      %v2262 = vld [vmem:[%s2244 + $0x64] sm:$0xf]
      %v2263 = vld [vmem:[%s2244 + $0x6c] sm:$0xf]
      %v2264 = vld [vmem:[%s2244 + $0x70] sm:$0xf]
      %v2265 = vld [vmem:[%s2244 + $0x78] sm:$0xf]
      %v2266 = vld [vmem:[%s2244 + $0x7c] sm:$0xf]
      %v2267 = vld [vmem:[%s2244 + $0x84] sm:$0xf]
      %v2268 = vld [vmem:[%s2244 + $0x88] sm:$0xf]
      %v2269 = vld [vmem:[%s2244 + $0x90] sm:$0xf]
      %v2270 = vld [vmem:[%s2244 + $0x94] sm:$0xf]
      %v2271 = vld [vmem:[%s2244 + $0x9c] sm:$0xf]
      %v2272 = vld [vmem:[%s2244 + $0xa0] sm:$0xf]
      %v2273 = vld [vmem:[%s2244 + $0xa8] sm:$0xf]
      %v2274 = vld [vmem:[%s2244 + $0xac] sm:$0xf]
      %v2275 = vld [vmem:[%s2244 + $0xb4] sm:$0xf]
      %v2276 = vld [vmem:[%s2244 + $0xb8] sm:$0xf]
      %v2277 = vld [vmem:[%s2244 + $0x8] sm:$0x1]
      %v2278 = vld [vmem:[%s2244 + $0x14] sm:$0x1]
      %v2279 = vld [vmem:[%s2244 + $0x20] sm:$0x1]
      %v2280 = vld [vmem:[%s2244 + $0x2c] sm:$0x1]
      %v2281 = vld [vmem:[%s2244 + $0x38] sm:$0x1]
      %v2282 = vld [vmem:[%s2244 + $0x44] sm:$0x1]
      %v2283 = vld [vmem:[%s2244 + $0x50] sm:$0x1]
      %v2284 = vld [vmem:[%s2244 + $0x5c] sm:$0x1]
      %v2285 = vld [vmem:[%s2244 + $0x68] sm:$0x1]
      %v2286 = vld [vmem:[%s2244 + $0x74] sm:$0x1]
      %v2287 = vld [vmem:[%s2244 + $0x80] sm:$0x1]
      %v2288 = vld [vmem:[%s2244 + $0x8c] sm:$0x1]
      %v2289 = vld [vmem:[%s2244 + $0x98] sm:$0x1]
      %v2290 = vld [vmem:[%s2244 + $0xa4] sm:$0x1]
      %v2291 = vld [vmem:[%s2244 + $0xb0] sm:$0x1]
      %v2292 = vld [vmem:[%s2244 + $0xbc] sm:$0x1]
      %v2294 = vshrl.u32 %v2245, 16
      %v2296 = vrot.slane %v2294, 4
      %v2297 = vshll.u32 %v2245, 16
      %v2299 = vrot.slane %v2297, 5
      %v2300 = vor.u32 %v2296, %v2299
      %v2301 = vrot.slane %v2300, 4
      %v2303 = vshll.u32 %v2246, 16
      %v2305 = vrot.slane %v2303, 5
      %v2306 = vsel %vm1072, %v2301, %v2305
      %v2307 = vshrl.u32 %v2246, 16
      %v2309 = vrot.slane %v2307, 4
      %v2310 = vor.u32 %v2309, %v2305
      %v2311 = vrot.slane %v2310, 4
      %v2313 = vshll.u32 %v2277, 16
      %v2315 = vrot.slane %v2313, 5
      %v2316 = vsel %vm1072, %v2311, %v2315
      %v2318 = vshrl.u32 %v2247, 16
      %v2320 = vrot.slane %v2318, 4
      %v2321 = vshll.u32 %v2247, 16
      %v2323 = vrot.slane %v2321, 5
      %v2324 = vor.u32 %v2320, %v2323
      %v2325 = vrot.slane %v2324, 4
      %v2327 = vshll.u32 %v2248, 16
      %v2329 = vrot.slane %v2327, 5
      %v2330 = vsel %vm1072, %v2325, %v2329
      %v2331 = vshrl.u32 %v2248, 16
      %v2333 = vrot.slane %v2331, 4
      %v2334 = vor.u32 %v2333, %v2329
      %v2335 = vrot.slane %v2334, 4
      %v2337 = vshll.u32 %v2278, 16
      %v2339 = vrot.slane %v2337, 5
      %v2340 = vsel %vm1072, %v2335, %v2339
      %v2342 = vshrl.u32 %v2249, 16
      %v2344 = vrot.slane %v2342, 4
      %v2345 = vshll.u32 %v2249, 16
      %v2347 = vrot.slane %v2345, 5
      %v2348 = vor.u32 %v2344, %v2347
      %v2349 = vrot.slane %v2348, 4
      %v2351 = vshll.u32 %v2250, 16
      %v2353 = vrot.slane %v2351, 5
      %v2354 = vsel %vm1072, %v2349, %v2353
      %v2355 = vshrl.u32 %v2250, 16
      %v2357 = vrot.slane %v2355, 4
      %v2358 = vor.u32 %v2357, %v2353
      %v2359 = vrot.slane %v2358, 4
      %v2361 = vshll.u32 %v2279, 16
      %v2363 = vrot.slane %v2361, 5
      %v2364 = vsel %vm1072, %v2359, %v2363
      %v2366 = vshrl.u32 %v2251, 16
      %v2368 = vrot.slane %v2366, 4
      %v2369 = vshll.u32 %v2251, 16
      %v2371 = vrot.slane %v2369, 5
      %v2372 = vor.u32 %v2368, %v2371
      %v2373 = vrot.slane %v2372, 4
      %v2375 = vshll.u32 %v2252, 16
      %v2377 = vrot.slane %v2375, 5
      %v2378 = vsel %vm1072, %v2373, %v2377
      %v2379 = vshrl.u32 %v2252, 16
      %v2381 = vrot.slane %v2379, 4
      %v2382 = vor.u32 %v2381, %v2377
      %v2383 = vrot.slane %v2382, 4
      %v2385 = vshll.u32 %v2280, 16
      %v2387 = vrot.slane %v2385, 5
      %v2388 = vsel %vm1072, %v2383, %v2387
      %v2390 = vshrl.u32 %v2253, 16
      %v2392 = vrot.slane %v2390, 4
      %v2393 = vshll.u32 %v2253, 16
      %v2395 = vrot.slane %v2393, 5
      %v2396 = vor.u32 %v2392, %v2395
      %v2397 = vrot.slane %v2396, 4
      %v2399 = vshll.u32 %v2254, 16
      %v2401 = vrot.slane %v2399, 5
      %v2402 = vsel %vm1072, %v2397, %v2401
      %v2403 = vshrl.u32 %v2254, 16
      %v2405 = vrot.slane %v2403, 4
      %v2406 = vor.u32 %v2405, %v2401
      %v2407 = vrot.slane %v2406, 4
      %v2409 = vshll.u32 %v2281, 16
      %v2411 = vrot.slane %v2409, 5
      %v2412 = vsel %vm1072, %v2407, %v2411
      %v2414 = vshrl.u32 %v2255, 16
      %v2416 = vrot.slane %v2414, 4
      %v2417 = vshll.u32 %v2255, 16
      %v2419 = vrot.slane %v2417, 5
      %v2420 = vor.u32 %v2416, %v2419
      %v2421 = vrot.slane %v2420, 4
      %v2423 = vshll.u32 %v2256, 16
      %v2425 = vrot.slane %v2423, 5
      %v2426 = vsel %vm1072, %v2421, %v2425
      %v2427 = vshrl.u32 %v2256, 16
      %v2429 = vrot.slane %v2427, 4
      %v2430 = vor.u32 %v2429, %v2425
      %v2431 = vrot.slane %v2430, 4
      %v2433 = vshll.u32 %v2282, 16
      %v2435 = vrot.slane %v2433, 5
      %v2436 = vsel %vm1072, %v2431, %v2435
      %v2438 = vshrl.u32 %v2257, 16
      %v2440 = vrot.slane %v2438, 4
      %v2441 = vshll.u32 %v2257, 16
      %v2443 = vrot.slane %v2441, 5
      %v2444 = vor.u32 %v2440, %v2443
      %v2445 = vrot.slane %v2444, 4
      %v2447 = vshll.u32 %v2258, 16
      %v2449 = vrot.slane %v2447, 5
      %v2450 = vsel %vm1072, %v2445, %v2449
      %v2451 = vshrl.u32 %v2258, 16
      %v2453 = vrot.slane %v2451, 4
      %v2454 = vor.u32 %v2453, %v2449
      %v2455 = vrot.slane %v2454, 4
      %v2457 = vshll.u32 %v2283, 16
      %v2459 = vrot.slane %v2457, 5
      %v2460 = vsel %vm1072, %v2455, %v2459
      %v2462 = vshrl.u32 %v2259, 16
      %v2464 = vrot.slane %v2462, 4
      %v2465 = vshll.u32 %v2259, 16
      %v2467 = vrot.slane %v2465, 5
      %v2468 = vor.u32 %v2464, %v2467
      %v2469 = vrot.slane %v2468, 4
      %v2471 = vshll.u32 %v2260, 16
      %v2473 = vrot.slane %v2471, 5
      %v2474 = vsel %vm1072, %v2469, %v2473
      %v2475 = vshrl.u32 %v2260, 16
      %v2477 = vrot.slane %v2475, 4
      %v2478 = vor.u32 %v2477, %v2473
      %v2479 = vrot.slane %v2478, 4
      %v2481 = vshll.u32 %v2284, 16
      %v2483 = vrot.slane %v2481, 5
      %v2484 = vsel %vm1072, %v2479, %v2483
      %v2486 = vshrl.u32 %v2261, 16
      %v2488 = vrot.slane %v2486, 4
      %v2489 = vshll.u32 %v2261, 16
      %v2491 = vrot.slane %v2489, 5
      %v2492 = vor.u32 %v2488, %v2491
      %v2493 = vrot.slane %v2492, 4
      %v2495 = vshll.u32 %v2262, 16
      %v2497 = vrot.slane %v2495, 5
      %v2498 = vsel %vm1072, %v2493, %v2497
      %v2499 = vshrl.u32 %v2262, 16
      %v2501 = vrot.slane %v2499, 4
      %v2502 = vor.u32 %v2501, %v2497
      %v2503 = vrot.slane %v2502, 4
      %v2505 = vshll.u32 %v2285, 16
      %v2507 = vrot.slane %v2505, 5
      %v2508 = vsel %vm1072, %v2503, %v2507
      %v2510 = vshrl.u32 %v2263, 16
      %v2512 = vrot.slane %v2510, 4
      %v2513 = vshll.u32 %v2263, 16
      %v2515 = vrot.slane %v2513, 5
      %v2516 = vor.u32 %v2512, %v2515
      %v2517 = vrot.slane %v2516, 4
      %v2519 = vshll.u32 %v2264, 16
      %v2521 = vrot.slane %v2519, 5
      %v2522 = vsel %vm1072, %v2517, %v2521
      %v2523 = vshrl.u32 %v2264, 16
      %v2525 = vrot.slane %v2523, 4
      %v2526 = vor.u32 %v2525, %v2521
      %v2527 = vrot.slane %v2526, 4
      %v2529 = vshll.u32 %v2286, 16
      %v2531 = vrot.slane %v2529, 5
      %v2532 = vsel %vm1072, %v2527, %v2531
      %v2534 = vshrl.u32 %v2265, 16
      %v2536 = vrot.slane %v2534, 4
      %v2537 = vshll.u32 %v2265, 16
      %v2539 = vrot.slane %v2537, 5
      %v2540 = vor.u32 %v2536, %v2539
      %v2541 = vrot.slane %v2540, 4
      %v2543 = vshll.u32 %v2266, 16
      %v2545 = vrot.slane %v2543, 5
      %v2546 = vsel %vm1072, %v2541, %v2545
      %v2547 = vshrl.u32 %v2266, 16
      %v2549 = vrot.slane %v2547, 4
      %v2550 = vor.u32 %v2549, %v2545
      %v2551 = vrot.slane %v2550, 4
      %v2553 = vshll.u32 %v2287, 16
      %v2555 = vrot.slane %v2553, 5
      %v2556 = vsel %vm1072, %v2551, %v2555
      %v2558 = vshrl.u32 %v2267, 16
      %v2560 = vrot.slane %v2558, 4
      %v2561 = vshll.u32 %v2267, 16
      %v2563 = vrot.slane %v2561, 5
      %v2564 = vor.u32 %v2560, %v2563
      %v2565 = vrot.slane %v2564, 4
      %v2567 = vshll.u32 %v2268, 16
      %v2569 = vrot.slane %v2567, 5
      %v2570 = vsel %vm1072, %v2565, %v2569
      %v2571 = vshrl.u32 %v2268, 16
      %v2573 = vrot.slane %v2571, 4
      %v2574 = vor.u32 %v2573, %v2569
      %v2575 = vrot.slane %v2574, 4
      %v2577 = vshll.u32 %v2288, 16
      %v2579 = vrot.slane %v2577, 5
      %v2580 = vsel %vm1072, %v2575, %v2579
      %v2582 = vshrl.u32 %v2269, 16
      %v2584 = vrot.slane %v2582, 4
      %v2585 = vshll.u32 %v2269, 16
      %v2587 = vrot.slane %v2585, 5
      %v2588 = vor.u32 %v2584, %v2587
      %v2589 = vrot.slane %v2588, 4
      %v2591 = vshll.u32 %v2270, 16
      %v2593 = vrot.slane %v2591, 5
      %v2594 = vsel %vm1072, %v2589, %v2593
      %v2595 = vshrl.u32 %v2270, 16
      %v2597 = vrot.slane %v2595, 4
      %v2598 = vor.u32 %v2597, %v2593
      %v2599 = vrot.slane %v2598, 4
      %v2601 = vshll.u32 %v2289, 16
      %v2603 = vrot.slane %v2601, 5
      %v2604 = vsel %vm1072, %v2599, %v2603
      %v2606 = vshrl.u32 %v2271, 16
      %v2608 = vrot.slane %v2606, 4
      %v2609 = vshll.u32 %v2271, 16
      %v2611 = vrot.slane %v2609, 5
      %v2612 = vor.u32 %v2608, %v2611
      %v2613 = vrot.slane %v2612, 4
      %v2615 = vshll.u32 %v2272, 16
      %v2617 = vrot.slane %v2615, 5
      %v2618 = vsel %vm1072, %v2613, %v2617
      %v2619 = vshrl.u32 %v2272, 16
      %v2621 = vrot.slane %v2619, 4
      %v2622 = vor.u32 %v2621, %v2617
      %v2623 = vrot.slane %v2622, 4
      %v2625 = vshll.u32 %v2290, 16
      %v2627 = vrot.slane %v2625, 5
      %v2628 = vsel %vm1072, %v2623, %v2627
      %v2630 = vshrl.u32 %v2273, 16
      %v2632 = vrot.slane %v2630, 4
      %v2633 = vshll.u32 %v2273, 16
      %v2635 = vrot.slane %v2633, 5
      %v2636 = vor.u32 %v2632, %v2635
      %v2637 = vrot.slane %v2636, 4
      %v2639 = vshll.u32 %v2274, 16
      %v2641 = vrot.slane %v2639, 5
      %v2642 = vsel %vm1072, %v2637, %v2641
      %v2643 = vshrl.u32 %v2274, 16
      %v2645 = vrot.slane %v2643, 4
      %v2646 = vor.u32 %v2645, %v2641
      %v2647 = vrot.slane %v2646, 4
      %v2649 = vshll.u32 %v2291, 16
      %v2651 = vrot.slane %v2649, 5
      %v2652 = vsel %vm1072, %v2647, %v2651
      %v2654 = vshrl.u32 %v2275, 16
      %v2656 = vrot.slane %v2654, 4
      %v2657 = vshll.u32 %v2275, 16
      %v2659 = vrot.slane %v2657, 5
      %v2660 = vor.u32 %v2656, %v2659
      %v2661 = vrot.slane %v2660, 4
      %v2663 = vshll.u32 %v2276, 16
      %v2665 = vrot.slane %v2663, 5
      %v2666 = vsel %vm1072, %v2661, %v2665
      %v2667 = vshrl.u32 %v2276, 16
      %v2669 = vrot.slane %v2667, 4
      %v2670 = vor.u32 %v2669, %v2665
      %v2671 = vrot.slane %v2670, 4
      %v2673 = vshll.u32 %v2292, 16
      %v2675 = vrot.slane %v2673, 5
      %v2676 = vsel %vm1072, %v2671, %v2675
      %v2677 = vld [vmem:[%s2244] sm:$0xe]
      %v2678 = vld [vmem:[%s2244 + $0xc] sm:$0xe]
      %v2679 = vld [vmem:[%s2244 + $0x18] sm:$0xe]
      %v2680 = vld [vmem:[%s2244 + $0x24] sm:$0xe]
      %v2681 = vld [vmem:[%s2244 + $0x30] sm:$0xe]
      %v2682 = vld [vmem:[%s2244 + $0x3c] sm:$0xe]
      %v2683 = vld [vmem:[%s2244 + $0x48] sm:$0xe]
      %v2684 = vld [vmem:[%s2244 + $0x54] sm:$0xe]
      %v2685 = vld [vmem:[%s2244 + $0x60] sm:$0xe]
      %v2686 = vld [vmem:[%s2244 + $0x6c] sm:$0xe]
      %v2687 = vld [vmem:[%s2244 + $0x78] sm:$0xe]
      %v2688 = vld [vmem:[%s2244 + $0x84] sm:$0xe]
      %v2689 = vld [vmem:[%s2244 + $0x90] sm:$0xe]
      %v2690 = vld [vmem:[%s2244 + $0x9c] sm:$0xe]
      %v2691 = vld [vmem:[%s2244 + $0xa8] sm:$0xe]
      %v2692 = vld [vmem:[%s2244 + $0xb4] sm:$0xe]
      %v2741 = vrot.slane %v2677, 5
      %v2742 = vrot.slane %v2741, 4
      %v2743 = vrot.slane %v2246, 5
      %v2744 = vsel %vm1523, %v2742, %v2743
      %v2745 = vrot.slane %v2743, 4
      %v2746 = vrot.slane %v2277, 5
      %v2747 = vsel %vm1523, %v2745, %v2746
      %v2748 = vrot.slane %v2678, 5
      %v2749 = vrot.slane %v2748, 4
      %v2750 = vrot.slane %v2248, 5
      %v2751 = vsel %vm1523, %v2749, %v2750
      %v2752 = vrot.slane %v2750, 4
      %v2753 = vrot.slane %v2278, 5
      %v2754 = vsel %vm1523, %v2752, %v2753
      %v2755 = vrot.slane %v2679, 5
      %v2756 = vrot.slane %v2755, 4
      %v2757 = vrot.slane %v2250, 5
      %v2758 = vsel %vm1523, %v2756, %v2757
      %v2759 = vrot.slane %v2757, 4
      %v2760 = vrot.slane %v2279, 5
      %v2761 = vsel %vm1523, %v2759, %v2760
      %v2762 = vrot.slane %v2680, 5
      %v2763 = vrot.slane %v2762, 4
      %v2764 = vrot.slane %v2252, 5
      %v2765 = vsel %vm1523, %v2763, %v2764
      %v2766 = vrot.slane %v2764, 4
      %v2767 = vrot.slane %v2280, 5
      %v2768 = vsel %vm1523, %v2766, %v2767
      %v2769 = vrot.slane %v2681, 5
      %v2770 = vrot.slane %v2769, 4
      %v2771 = vrot.slane %v2254, 5
      %v2772 = vsel %vm1523, %v2770, %v2771
      %v2773 = vrot.slane %v2771, 4
      %v2774 = vrot.slane %v2281, 5
      %v2775 = vsel %vm1523, %v2773, %v2774
      %v2776 = vrot.slane %v2682, 5
      %v2777 = vrot.slane %v2776, 4
      %v2778 = vrot.slane %v2256, 5
      %v2779 = vsel %vm1523, %v2777, %v2778
      %v2780 = vrot.slane %v2778, 4
      %v2781 = vrot.slane %v2282, 5
      %v2782 = vsel %vm1523, %v2780, %v2781
      %v2783 = vrot.slane %v2683, 5
      %v2784 = vrot.slane %v2783, 4
      %v2785 = vrot.slane %v2258, 5
      %v2786 = vsel %vm1523, %v2784, %v2785
      %v2787 = vrot.slane %v2785, 4
      %v2788 = vrot.slane %v2283, 5
      %v2789 = vsel %vm1523, %v2787, %v2788
      %v2790 = vrot.slane %v2684, 5
      %v2791 = vrot.slane %v2790, 4
      %v2792 = vrot.slane %v2260, 5
      %v2793 = vsel %vm1523, %v2791, %v2792
      %v2794 = vrot.slane %v2792, 4
      %v2795 = vrot.slane %v2284, 5
      %v2796 = vsel %vm1523, %v2794, %v2795
      %v2797 = vrot.slane %v2685, 5
      %v2798 = vrot.slane %v2797, 4
      %v2799 = vrot.slane %v2262, 5
      %v2800 = vsel %vm1523, %v2798, %v2799
      %v2801 = vrot.slane %v2799, 4
      %v2802 = vrot.slane %v2285, 5
      %v2803 = vsel %vm1523, %v2801, %v2802
      %v2804 = vrot.slane %v2686, 5
      %v2805 = vrot.slane %v2804, 4
      %v2806 = vrot.slane %v2264, 5
      %v2807 = vsel %vm1523, %v2805, %v2806
      %v2808 = vrot.slane %v2806, 4
      %v2809 = vrot.slane %v2286, 5
      %v2810 = vsel %vm1523, %v2808, %v2809
      %v2811 = vrot.slane %v2687, 5
      %v2812 = vrot.slane %v2811, 4
      %v2813 = vrot.slane %v2266, 5
      %v2814 = vsel %vm1523, %v2812, %v2813
      %v2815 = vrot.slane %v2813, 4
      %v2816 = vrot.slane %v2287, 5
      %v2817 = vsel %vm1523, %v2815, %v2816
      %v2818 = vrot.slane %v2688, 5
      %v2819 = vrot.slane %v2818, 4
      %v2820 = vrot.slane %v2268, 5
      %v2821 = vsel %vm1523, %v2819, %v2820
      %v2822 = vrot.slane %v2820, 4
      %v2823 = vrot.slane %v2288, 5
      %v2824 = vsel %vm1523, %v2822, %v2823
      %v2825 = vrot.slane %v2689, 5
      %v2826 = vrot.slane %v2825, 4
      %v2827 = vrot.slane %v2270, 5
      %v2828 = vsel %vm1523, %v2826, %v2827
      %v2829 = vrot.slane %v2827, 4
      %v2830 = vrot.slane %v2289, 5
      %v2831 = vsel %vm1523, %v2829, %v2830
      %v2832 = vrot.slane %v2690, 5
      %v2833 = vrot.slane %v2832, 4
      %v2834 = vrot.slane %v2272, 5
      %v2835 = vsel %vm1523, %v2833, %v2834
      %v2836 = vrot.slane %v2834, 4
      %v2837 = vrot.slane %v2290, 5
      %v2838 = vsel %vm1523, %v2836, %v2837
      %v2839 = vrot.slane %v2691, 5
      %v2840 = vrot.slane %v2839, 4
      %v2841 = vrot.slane %v2274, 5
      %v2842 = vsel %vm1523, %v2840, %v2841
      %v2843 = vrot.slane %v2841, 4
      %v2844 = vrot.slane %v2291, 5
      %v2845 = vsel %vm1523, %v2843, %v2844
      %v2846 = vrot.slane %v2692, 5
      %v2847 = vrot.slane %v2846, 4
      %v2848 = vrot.slane %v2276, 5
      %v2849 = vsel %vm1523, %v2847, %v2848
      %v2850 = vrot.slane %v2848, 4
      %v2851 = vrot.slane %v2292, 5
      %v2852 = vsel %vm1523, %v2850, %v2851
      %v2869 = vunpack.c.l.b16 %v1022
      %v2870 = vunpack.c.l.b16 %v1023
      %v2871 = vunpack.c.l.b16 %v1024
      %v2872 = vunpack.c.l.b16 %v1025
      %v2873 = vunpack.c.l.b16 %v1026
      %v2874 = vunpack.c.l.b16 %v1027
      %v2875 = vunpack.c.l.b16 %v1028
      %v2876 = vunpack.c.l.b16 %v1029
      %v2877 = vunpack.c.l.b16 %v1030
      %v2878 = vunpack.c.l.b16 %v1031
      %v2879 = vunpack.c.l.b16 %v1032
      %v2880 = vunpack.c.l.b16 %v1033
      %v2881 = vunpack.c.l.b16 %v1034
      %v2882 = vunpack.c.l.b16 %v1035
      %v2883 = vunpack.c.l.b16 %v1036
      %v2884 = vunpack.c.l.b16 %v1037
      %v2885 = vunpack.c.l.b16 %v1038
      %v2886 = vunpack.c.l.b16 %v1039
      %v2887 = vunpack.c.l.b16 %v1040
      %v2888 = vunpack.c.l.b16 %v1041
      %v2889 = vunpack.c.l.b16 %v1042
      %v2890 = vunpack.c.l.b16 %v1043
      %v2891 = vunpack.c.l.b16 %v1044
      %v2892 = vunpack.c.l.b16 %v1045
      %v2893 = vunpack.c.l.b16 %v1046
      %v2894 = vunpack.c.l.b16 %v1047
      %v2895 = vunpack.c.l.b16 %v1048
      %v2896 = vunpack.c.l.b16 %v1049
      %v2897 = vunpack.c.l.b16 %v1050
      %v2898 = vunpack.c.l.b16 %v1051
      %v2899 = vunpack.c.l.b16 %v1052
      %v2900 = vunpack.c.l.b16 %v1053
      %v2901 = vpack.c.b16 %v2870, %v2869
      %v2902 = vpack.c.b16 %v2872, %v2871
      %v2903 = vpack.c.b16 %v2874, %v2873
      %v2904 = vpack.c.b16 %v2876, %v2875
      %v2905 = vpack.c.b16 %v2878, %v2877
      %v2906 = vpack.c.b16 %v2880, %v2879
      %v2907 = vpack.c.b16 %v2882, %v2881
      %v2908 = vpack.c.b16 %v2884, %v2883
      %v2909 = vpack.c.b16 %v2886, %v2885
      %v2910 = vpack.c.b16 %v2888, %v2887
      %v2911 = vpack.c.b16 %v2890, %v2889
      %v2912 = vpack.c.b16 %v2892, %v2891
      %v2913 = vpack.c.b16 %v2894, %v2893
      %v2914 = vpack.c.b16 %v2896, %v2895
      %v2915 = vpack.c.b16 %v2898, %v2897
      %v2916 = vpack.c.b16 %v2900, %v2899
      %v2917 = vunpack.c.l.b16 %v1086
      %v2918 = vunpack.c.l.b16 %v1096
      %v2919 = vunpack.c.l.b16 %v1110
      %v2920 = vunpack.c.l.b16 %v1120
      %v2921 = vunpack.c.l.b16 %v1134
      %v2922 = vunpack.c.l.b16 %v1144
      %v2923 = vunpack.c.l.b16 %v1158
      %v2924 = vunpack.c.l.b16 %v1168
      %v2925 = vunpack.c.l.b16 %v1182
      %v2926 = vunpack.c.l.b16 %v1192
      %v2927 = vunpack.c.l.b16 %v1206
      %v2928 = vunpack.c.l.b16 %v1216
      %v2929 = vunpack.c.l.b16 %v1230
      %v2930 = vunpack.c.l.b16 %v1240
      %v2931 = vunpack.c.l.b16 %v1254
      %v2932 = vunpack.c.l.b16 %v1264
      %v2933 = vunpack.c.l.b16 %v1278
      %v2934 = vunpack.c.l.b16 %v1288
      %v2935 = vunpack.c.l.b16 %v1302
      %v2936 = vunpack.c.l.b16 %v1312
      %v2937 = vunpack.c.l.b16 %v1326
      %v2938 = vunpack.c.l.b16 %v1336
      %v2939 = vunpack.c.l.b16 %v1350
      %v2940 = vunpack.c.l.b16 %v1360
      %v2941 = vunpack.c.l.b16 %v1374
      %v2942 = vunpack.c.l.b16 %v1384
      %v2943 = vunpack.c.l.b16 %v1398
      %v2944 = vunpack.c.l.b16 %v1408
      %v2945 = vunpack.c.l.b16 %v1422
      %v2946 = vunpack.c.l.b16 %v1432
      %v2947 = vunpack.c.l.b16 %v1446
      %v2948 = vunpack.c.l.b16 %v1456
      %v2949 = vpack.c.b16 %v2918, %v2917
      %v2950 = vpack.c.b16 %v2920, %v2919
      %v2951 = vpack.c.b16 %v2922, %v2921
      %v2952 = vpack.c.b16 %v2924, %v2923
      %v2953 = vpack.c.b16 %v2926, %v2925
      %v2954 = vpack.c.b16 %v2928, %v2927
      %v2955 = vpack.c.b16 %v2930, %v2929
      %v2956 = vpack.c.b16 %v2932, %v2931
      %v2957 = vpack.c.b16 %v2934, %v2933
      %v2958 = vpack.c.b16 %v2936, %v2935
      %v2959 = vpack.c.b16 %v2938, %v2937
      %v2960 = vpack.c.b16 %v2940, %v2939
      %v2961 = vpack.c.b16 %v2942, %v2941
      %v2962 = vpack.c.b16 %v2944, %v2943
      %v2963 = vpack.c.b16 %v2946, %v2945
      %v2964 = vpack.c.b16 %v2948, %v2947
      %2965 = vrot.lane.b32.xlu0 %v2949, 8
      %v2966 = vpop.permute.xlu0 %2965
      %2967 = vrot.lane.b32.xlu0 %v2950, 8
      %v2968 = vpop.permute.xlu0 %2967
      %2969 = vrot.lane.b32.xlu0 %v2951, 8
      %v2970 = vpop.permute.xlu0 %2969
      %2971 = vrot.lane.b32.xlu0 %v2952, 8
      %v2972 = vpop.permute.xlu0 %2971
      %2973 = vrot.lane.b32.xlu0 %v2953, 8
      %v2974 = vpop.permute.xlu0 %2973
      %2975 = vrot.lane.b32.xlu0 %v2954, 8
      %v2976 = vpop.permute.xlu0 %2975
      %2977 = vrot.lane.b32.xlu0 %v2955, 8
      %v2978 = vpop.permute.xlu0 %2977
      %2979 = vrot.lane.b32.xlu0 %v2956, 8
      %v2980 = vpop.permute.xlu0 %2979
      %2981 = vrot.lane.b32.xlu0 %v2957, 8
      %v2982 = vpop.permute.xlu0 %2981
      %2983 = vrot.lane.b32.xlu0 %v2958, 8
      %v2984 = vpop.permute.xlu0 %2983
      %2985 = vrot.lane.b32.xlu0 %v2959, 8
      %v2986 = vpop.permute.xlu0 %2985
      %2987 = vrot.lane.b32.xlu0 %v2960, 8
      %v2988 = vpop.permute.xlu0 %2987
      %2989 = vrot.lane.b32.xlu0 %v2961, 8
      %v2990 = vpop.permute.xlu0 %2989
      %2991 = vrot.lane.b32.xlu0 %v2962, 8
      %v2992 = vpop.permute.xlu0 %2991
      %2993 = vrot.lane.b32.xlu0 %v2963, 8
      %v2994 = vpop.permute.xlu0 %2993
      %2995 = vrot.lane.b32.xlu0 %v2964, 8
      %v2996 = vpop.permute.xlu0 %2995
      %v2997 = vunpack.c.l.b16 %v1527
      %v2998 = vunpack.c.l.b16 %v1530
      %v2999 = vunpack.c.l.b16 %v1534
      %v3000 = vunpack.c.l.b16 %v1537
      %v3001 = vunpack.c.l.b16 %v1541
      %v3002 = vunpack.c.l.b16 %v1544
      %v3003 = vunpack.c.l.b16 %v1548
      %v3004 = vunpack.c.l.b16 %v1551
      %v3005 = vunpack.c.l.b16 %v1555
      %v3006 = vunpack.c.l.b16 %v1558
      %v3007 = vunpack.c.l.b16 %v1562
      %v3008 = vunpack.c.l.b16 %v1565
      %v3009 = vunpack.c.l.b16 %v1569
      %v3010 = vunpack.c.l.b16 %v1572
      %v3011 = vunpack.c.l.b16 %v1576
      %v3012 = vunpack.c.l.b16 %v1579
      %v3013 = vunpack.c.l.b16 %v1583
      %v3014 = vunpack.c.l.b16 %v1586
      %v3015 = vunpack.c.l.b16 %v1590
      %v3016 = vunpack.c.l.b16 %v1593
      %v3017 = vunpack.c.l.b16 %v1597
      %v3018 = vunpack.c.l.b16 %v1600
      %v3019 = vunpack.c.l.b16 %v1604
      %v3020 = vunpack.c.l.b16 %v1607
      %v3021 = vunpack.c.l.b16 %v1611
      %v3022 = vunpack.c.l.b16 %v1614
      %v3023 = vunpack.c.l.b16 %v1618
      %v3024 = vunpack.c.l.b16 %v1621
      %v3025 = vunpack.c.l.b16 %v1625
      %v3026 = vunpack.c.l.b16 %v1628
      %v3027 = vunpack.c.l.b16 %v1632
      %v3028 = vunpack.c.l.b16 %v1635
      %v3029 = vpack.c.b16 %v2998, %v2997
      %v3030 = vpack.c.b16 %v3000, %v2999
      %v3031 = vpack.c.b16 %v3002, %v3001
      %v3032 = vpack.c.b16 %v3004, %v3003
      %v3033 = vpack.c.b16 %v3006, %v3005
      %v3034 = vpack.c.b16 %v3008, %v3007
      %v3035 = vpack.c.b16 %v3010, %v3009
      %v3036 = vpack.c.b16 %v3012, %v3011
      %v3037 = vpack.c.b16 %v3014, %v3013
      %v3038 = vpack.c.b16 %v3016, %v3015
      %v3039 = vpack.c.b16 %v3018, %v3017
      %v3040 = vpack.c.b16 %v3020, %v3019
      %v3041 = vpack.c.b16 %v3022, %v3021
      %v3042 = vpack.c.b16 %v3024, %v3023
      %v3043 = vpack.c.b16 %v3026, %v3025
      %v3044 = vpack.c.b16 %v3028, %v3027
      %3045 = vrot.lane.b32.xlu0 %v3029, 16
      %v3046 = vpop.permute.xlu0 %3045
      %3047 = vrot.lane.b32.xlu0 %v3030, 16
      %v3048 = vpop.permute.xlu0 %3047
      %3049 = vrot.lane.b32.xlu0 %v3031, 16
      %v3050 = vpop.permute.xlu0 %3049
      %3051 = vrot.lane.b32.xlu0 %v3032, 16
      %v3052 = vpop.permute.xlu0 %3051
      %3053 = vrot.lane.b32.xlu0 %v3033, 16
      %v3054 = vpop.permute.xlu0 %3053
      %3055 = vrot.lane.b32.xlu0 %v3034, 16
      %v3056 = vpop.permute.xlu0 %3055
      %3057 = vrot.lane.b32.xlu0 %v3035, 16
      %v3058 = vpop.permute.xlu0 %3057
      %3059 = vrot.lane.b32.xlu0 %v3036, 16
      %v3060 = vpop.permute.xlu0 %3059
      %3061 = vrot.lane.b32.xlu0 %v3037, 16
      %v3062 = vpop.permute.xlu0 %3061
      %3063 = vrot.lane.b32.xlu0 %v3038, 16
      %v3064 = vpop.permute.xlu0 %3063
      %3065 = vrot.lane.b32.xlu0 %v3039, 16
      %v3066 = vpop.permute.xlu0 %3065
      %3067 = vrot.lane.b32.xlu0 %v3040, 16
      %v3068 = vpop.permute.xlu0 %3067
      %3069 = vrot.lane.b32.xlu0 %v3041, 16
      %v3070 = vpop.permute.xlu0 %3069
      %3071 = vrot.lane.b32.xlu0 %v3042, 16
      %v3072 = vpop.permute.xlu0 %3071
      %3073 = vrot.lane.b32.xlu0 %v3043, 16
      %v3074 = vpop.permute.xlu0 %3073
      %3075 = vrot.lane.b32.xlu0 %v3044, 16
      %v3076 = vpop.permute.xlu0 %3075
      %v3093 = vunpack.c.l.b16 %v1636
      %v3094 = vunpack.c.l.b16 %v1637
      %v3095 = vunpack.c.l.b16 %v1638
      %v3096 = vunpack.c.l.b16 %v1639
      %v3097 = vunpack.c.l.b16 %v1640
      %v3098 = vunpack.c.l.b16 %v1641
      %v3099 = vunpack.c.l.b16 %v1642
      %v3100 = vunpack.c.l.b16 %v1643
      %v3101 = vunpack.c.l.b16 %v1644
      %v3102 = vunpack.c.l.b16 %v1645
      %v3103 = vunpack.c.l.b16 %v1646
      %v3104 = vunpack.c.l.b16 %v1647
      %v3105 = vunpack.c.l.b16 %v1648
      %v3106 = vunpack.c.l.b16 %v1649
      %v3107 = vunpack.c.l.b16 %v1650
      %v3108 = vunpack.c.l.b16 %v1651
      %v3109 = vunpack.c.l.b16 %v1652
      %v3110 = vunpack.c.l.b16 %v1653
      %v3111 = vunpack.c.l.b16 %v1654
      %v3112 = vunpack.c.l.b16 %v1655
      %v3113 = vunpack.c.l.b16 %v1656
      %v3114 = vunpack.c.l.b16 %v1657
      %v3115 = vunpack.c.l.b16 %v1658
      %v3116 = vunpack.c.l.b16 %v1659
      %v3117 = vunpack.c.l.b16 %v1660
      %v3118 = vunpack.c.l.b16 %v1661
      %v3119 = vunpack.c.l.b16 %v1662
      %v3120 = vunpack.c.l.b16 %v1663
      %v3121 = vunpack.c.l.b16 %v1664
      %v3122 = vunpack.c.l.b16 %v1665
      %v3123 = vunpack.c.l.b16 %v1666
      %v3124 = vunpack.c.l.b16 %v1667
      %v3125 = vpack.c.b16 %v3094, %v3093
      %v3126 = vpack.c.b16 %v3096, %v3095
      %v3127 = vpack.c.b16 %v3098, %v3097
      %v3128 = vpack.c.b16 %v3100, %v3099
      %v3129 = vpack.c.b16 %v3102, %v3101
      %v3130 = vpack.c.b16 %v3104, %v3103
      %v3131 = vpack.c.b16 %v3106, %v3105
      %v3132 = vpack.c.b16 %v3108, %v3107
      %v3133 = vpack.c.b16 %v3110, %v3109
      %v3134 = vpack.c.b16 %v3112, %v3111
      %v3135 = vpack.c.b16 %v3114, %v3113
      %v3136 = vpack.c.b16 %v3116, %v3115
      %v3137 = vpack.c.b16 %v3118, %v3117
      %v3138 = vpack.c.b16 %v3120, %v3119
      %v3139 = vpack.c.b16 %v3122, %v3121
      %v3140 = vpack.c.b16 %v3124, %v3123
      %3141 = vrot.lane.b32.xlu0 %v3125, 24
      %v3142 = vpop.permute.xlu0 %3141
      %3143 = vrot.lane.b32.xlu0 %v3126, 24
      %v3144 = vpop.permute.xlu0 %3143
      %3145 = vrot.lane.b32.xlu0 %v3127, 24
      %v3146 = vpop.permute.xlu0 %3145
      %3147 = vrot.lane.b32.xlu0 %v3128, 24
      %v3148 = vpop.permute.xlu0 %3147
      %3149 = vrot.lane.b32.xlu0 %v3129, 24
      %v3150 = vpop.permute.xlu0 %3149
      %3151 = vrot.lane.b32.xlu0 %v3130, 24
      %v3152 = vpop.permute.xlu0 %3151
      %3153 = vrot.lane.b32.xlu0 %v3131, 24
      %v3154 = vpop.permute.xlu0 %3153
      %3155 = vrot.lane.b32.xlu0 %v3132, 24
      %v3156 = vpop.permute.xlu0 %3155
      %3157 = vrot.lane.b32.xlu0 %v3133, 24
      %v3158 = vpop.permute.xlu0 %3157
      %3159 = vrot.lane.b32.xlu0 %v3134, 24
      %v3160 = vpop.permute.xlu0 %3159
      %3161 = vrot.lane.b32.xlu0 %v3135, 24
      %v3162 = vpop.permute.xlu0 %3161
      %3163 = vrot.lane.b32.xlu0 %v3136, 24
      %v3164 = vpop.permute.xlu0 %3163
      %3165 = vrot.lane.b32.xlu0 %v3137, 24
      %v3166 = vpop.permute.xlu0 %3165
      %3167 = vrot.lane.b32.xlu0 %v3138, 24
      %v3168 = vpop.permute.xlu0 %3167
      %3169 = vrot.lane.b32.xlu0 %v3139, 24
      %v3170 = vpop.permute.xlu0 %3169
      %3171 = vrot.lane.b32.xlu0 %v3140, 24
      %v3172 = vpop.permute.xlu0 %3171
      %v3173 = vunpack.c.l.b16 %v1697
      %v3174 = vunpack.c.l.b16 %v1707
      %v3175 = vunpack.c.l.b16 %v1721
      %v3176 = vunpack.c.l.b16 %v1731
      %v3177 = vunpack.c.l.b16 %v1745
      %v3178 = vunpack.c.l.b16 %v1755
      %v3179 = vunpack.c.l.b16 %v1769
      %v3180 = vunpack.c.l.b16 %v1779
      %v3181 = vunpack.c.l.b16 %v1793
      %v3182 = vunpack.c.l.b16 %v1803
      %v3183 = vunpack.c.l.b16 %v1817
      %v3184 = vunpack.c.l.b16 %v1827
      %v3185 = vunpack.c.l.b16 %v1841
      %v3186 = vunpack.c.l.b16 %v1851
      %v3187 = vunpack.c.l.b16 %v1865
      %v3188 = vunpack.c.l.b16 %v1875
      %v3189 = vunpack.c.l.b16 %v1889
      %v3190 = vunpack.c.l.b16 %v1899
      %v3191 = vunpack.c.l.b16 %v1913
      %v3192 = vunpack.c.l.b16 %v1923
      %v3193 = vunpack.c.l.b16 %v1937
      %v3194 = vunpack.c.l.b16 %v1947
      %v3195 = vunpack.c.l.b16 %v1961
      %v3196 = vunpack.c.l.b16 %v1971
      %v3197 = vunpack.c.l.b16 %v1985
      %v3198 = vunpack.c.l.b16 %v1995
      %v3199 = vunpack.c.l.b16 %v2009
      %v3200 = vunpack.c.l.b16 %v2019
      %v3201 = vunpack.c.l.b16 %v2033
      %v3202 = vunpack.c.l.b16 %v2043
      %v3203 = vunpack.c.l.b16 %v2057
      %v3204 = vunpack.c.l.b16 %v2067
      %v3205 = vpack.c.b16 %v3174, %v3173
      %v3206 = vpack.c.b16 %v3176, %v3175
      %v3207 = vpack.c.b16 %v3178, %v3177
      %v3208 = vpack.c.b16 %v3180, %v3179
      %v3209 = vpack.c.b16 %v3182, %v3181
      %v3210 = vpack.c.b16 %v3184, %v3183
      %v3211 = vpack.c.b16 %v3186, %v3185
      %v3212 = vpack.c.b16 %v3188, %v3187
      %v3213 = vpack.c.b16 %v3190, %v3189
      %v3214 = vpack.c.b16 %v3192, %v3191
      %v3215 = vpack.c.b16 %v3194, %v3193
      %v3216 = vpack.c.b16 %v3196, %v3195
      %v3217 = vpack.c.b16 %v3198, %v3197
      %v3218 = vpack.c.b16 %v3200, %v3199
      %v3219 = vpack.c.b16 %v3202, %v3201
      %v3220 = vpack.c.b16 %v3204, %v3203
      %3221 = vrot.lane.b32.xlu0 %v3205, 32
      %v3222 = vpop.permute.xlu0 %3221
      %3223 = vrot.lane.b32.xlu0 %v3206, 32
      %v3224 = vpop.permute.xlu0 %3223
      %3225 = vrot.lane.b32.xlu0 %v3207, 32
      %v3226 = vpop.permute.xlu0 %3225
      %3227 = vrot.lane.b32.xlu0 %v3208, 32
      %v3228 = vpop.permute.xlu0 %3227
      %3229 = vrot.lane.b32.xlu0 %v3209, 32
      %v3230 = vpop.permute.xlu0 %3229
      %3231 = vrot.lane.b32.xlu0 %v3210, 32
      %v3232 = vpop.permute.xlu0 %3231
      %3233 = vrot.lane.b32.xlu0 %v3211, 32
      %v3234 = vpop.permute.xlu0 %3233
      %3235 = vrot.lane.b32.xlu0 %v3212, 32
      %v3236 = vpop.permute.xlu0 %3235
      %3237 = vrot.lane.b32.xlu0 %v3213, 32
      %v3238 = vpop.permute.xlu0 %3237
      %3239 = vrot.lane.b32.xlu0 %v3214, 32
      %v3240 = vpop.permute.xlu0 %3239
      %3241 = vrot.lane.b32.xlu0 %v3215, 32
      %v3242 = vpop.permute.xlu0 %3241
      %3243 = vrot.lane.b32.xlu0 %v3216, 32
      %v3244 = vpop.permute.xlu0 %3243
      %3245 = vrot.lane.b32.xlu0 %v3217, 32
      %v3246 = vpop.permute.xlu0 %3245
      %3247 = vrot.lane.b32.xlu0 %v3218, 32
      %v3248 = vpop.permute.xlu0 %3247
      %3249 = vrot.lane.b32.xlu0 %v3219, 32
      %v3250 = vpop.permute.xlu0 %3249
      %3251 = vrot.lane.b32.xlu0 %v3220, 32
      %v3252 = vpop.permute.xlu0 %3251
      %v3253 = vunpack.c.l.b16 %v2135
      %v3254 = vunpack.c.l.b16 %v2138
      %v3255 = vunpack.c.l.b16 %v2142
      %v3256 = vunpack.c.l.b16 %v2145
      %v3257 = vunpack.c.l.b16 %v2149
      %v3258 = vunpack.c.l.b16 %v2152
      %v3259 = vunpack.c.l.b16 %v2156
      %v3260 = vunpack.c.l.b16 %v2159
      %v3261 = vunpack.c.l.b16 %v2163
      %v3262 = vunpack.c.l.b16 %v2166
      %v3263 = vunpack.c.l.b16 %v2170
      %v3264 = vunpack.c.l.b16 %v2173
      %v3265 = vunpack.c.l.b16 %v2177
      %v3266 = vunpack.c.l.b16 %v2180
      %v3267 = vunpack.c.l.b16 %v2184
      %v3268 = vunpack.c.l.b16 %v2187
      %v3269 = vunpack.c.l.b16 %v2191
      %v3270 = vunpack.c.l.b16 %v2194
      %v3271 = vunpack.c.l.b16 %v2198
      %v3272 = vunpack.c.l.b16 %v2201
      %v3273 = vunpack.c.l.b16 %v2205
      %v3274 = vunpack.c.l.b16 %v2208
      %v3275 = vunpack.c.l.b16 %v2212
      %v3276 = vunpack.c.l.b16 %v2215
      %v3277 = vunpack.c.l.b16 %v2219
      %v3278 = vunpack.c.l.b16 %v2222
      %v3279 = vunpack.c.l.b16 %v2226
      %v3280 = vunpack.c.l.b16 %v2229
      %v3281 = vunpack.c.l.b16 %v2233
      %v3282 = vunpack.c.l.b16 %v2236
      %v3283 = vunpack.c.l.b16 %v2240
      %v3284 = vunpack.c.l.b16 %v2243
      %v3285 = vpack.c.b16 %v3254, %v3253
      %v3286 = vpack.c.b16 %v3256, %v3255
      %v3287 = vpack.c.b16 %v3258, %v3257
      %v3288 = vpack.c.b16 %v3260, %v3259
      %v3289 = vpack.c.b16 %v3262, %v3261
      %v3290 = vpack.c.b16 %v3264, %v3263
      %v3291 = vpack.c.b16 %v3266, %v3265
      %v3292 = vpack.c.b16 %v3268, %v3267
      %v3293 = vpack.c.b16 %v3270, %v3269
      %v3294 = vpack.c.b16 %v3272, %v3271
      %v3295 = vpack.c.b16 %v3274, %v3273
      %v3296 = vpack.c.b16 %v3276, %v3275
      %v3297 = vpack.c.b16 %v3278, %v3277
      %v3298 = vpack.c.b16 %v3280, %v3279
      %v3299 = vpack.c.b16 %v3282, %v3281
      %v3300 = vpack.c.b16 %v3284, %v3283
      %3301 = vrot.lane.b32.xlu0 %v3285, 40
      %v3302 = vpop.permute.xlu0 %3301
      %3303 = vrot.lane.b32.xlu0 %v3286, 40
      %v3304 = vpop.permute.xlu0 %3303
      %3305 = vrot.lane.b32.xlu0 %v3287, 40
      %v3306 = vpop.permute.xlu0 %3305
      %3307 = vrot.lane.b32.xlu0 %v3288, 40
      %v3308 = vpop.permute.xlu0 %3307
      %3309 = vrot.lane.b32.xlu0 %v3289, 40
      %v3310 = vpop.permute.xlu0 %3309
      %3311 = vrot.lane.b32.xlu0 %v3290, 40
      %v3312 = vpop.permute.xlu0 %3311
      %3313 = vrot.lane.b32.xlu0 %v3291, 40
      %v3314 = vpop.permute.xlu0 %3313
      %3315 = vrot.lane.b32.xlu0 %v3292, 40
      %v3316 = vpop.permute.xlu0 %3315
      %3317 = vrot.lane.b32.xlu0 %v3293, 40
      %v3318 = vpop.permute.xlu0 %3317
      %3319 = vrot.lane.b32.xlu0 %v3294, 40
      %v3320 = vpop.permute.xlu0 %3319
      %3321 = vrot.lane.b32.xlu0 %v3295, 40
      %v3322 = vpop.permute.xlu0 %3321
      %3323 = vrot.lane.b32.xlu0 %v3296, 40
      %v3324 = vpop.permute.xlu0 %3323
      %3325 = vrot.lane.b32.xlu0 %v3297, 40
      %v3326 = vpop.permute.xlu0 %3325
      %3327 = vrot.lane.b32.xlu0 %v3298, 40
      %v3328 = vpop.permute.xlu0 %3327
      %3329 = vrot.lane.b32.xlu0 %v3299, 40
      %v3330 = vpop.permute.xlu0 %3329
      %3331 = vrot.lane.b32.xlu0 %v3300, 40
      %v3332 = vpop.permute.xlu0 %3331
      %v3349 = vunpack.c.l.b16 %v2245
      %v3350 = vunpack.c.l.b16 %v2246
      %v3351 = vunpack.c.l.b16 %v2247
      %v3352 = vunpack.c.l.b16 %v2248
      %v3353 = vunpack.c.l.b16 %v2249
      %v3354 = vunpack.c.l.b16 %v2250
      %v3355 = vunpack.c.l.b16 %v2251
      %v3356 = vunpack.c.l.b16 %v2252
      %v3357 = vunpack.c.l.b16 %v2253
      %v3358 = vunpack.c.l.b16 %v2254
      %v3359 = vunpack.c.l.b16 %v2255
      %v3360 = vunpack.c.l.b16 %v2256
      %v3361 = vunpack.c.l.b16 %v2257
      %v3362 = vunpack.c.l.b16 %v2258
      %v3363 = vunpack.c.l.b16 %v2259
      %v3364 = vunpack.c.l.b16 %v2260
      %v3365 = vunpack.c.l.b16 %v2261
      %v3366 = vunpack.c.l.b16 %v2262
      %v3367 = vunpack.c.l.b16 %v2263
      %v3368 = vunpack.c.l.b16 %v2264
      %v3369 = vunpack.c.l.b16 %v2265
      %v3370 = vunpack.c.l.b16 %v2266
      %v3371 = vunpack.c.l.b16 %v2267
      %v3372 = vunpack.c.l.b16 %v2268
      %v3373 = vunpack.c.l.b16 %v2269
      %v3374 = vunpack.c.l.b16 %v2270
      %v3375 = vunpack.c.l.b16 %v2271
      %v3376 = vunpack.c.l.b16 %v2272
      %v3377 = vunpack.c.l.b16 %v2273
      %v3378 = vunpack.c.l.b16 %v2274
      %v3379 = vunpack.c.l.b16 %v2275
      %v3380 = vunpack.c.l.b16 %v2276
      %v3381 = vpack.c.b16 %v3350, %v3349
      %v3382 = vpack.c.b16 %v3352, %v3351
      %v3383 = vpack.c.b16 %v3354, %v3353
      %v3384 = vpack.c.b16 %v3356, %v3355
      %v3385 = vpack.c.b16 %v3358, %v3357
      %v3386 = vpack.c.b16 %v3360, %v3359
      %v3387 = vpack.c.b16 %v3362, %v3361
      %v3388 = vpack.c.b16 %v3364, %v3363
      %v3389 = vpack.c.b16 %v3366, %v3365
      %v3390 = vpack.c.b16 %v3368, %v3367
      %v3391 = vpack.c.b16 %v3370, %v3369
      %v3392 = vpack.c.b16 %v3372, %v3371
      %v3393 = vpack.c.b16 %v3374, %v3373
      %v3394 = vpack.c.b16 %v3376, %v3375
      %v3395 = vpack.c.b16 %v3378, %v3377
      %v3396 = vpack.c.b16 %v3380, %v3379
      %3397 = vrot.lane.b32.xlu0 %v3381, 48
      %v3398 = vpop.permute.xlu0 %3397
      %3399 = vrot.lane.b32.xlu0 %v3382, 48
      %v3400 = vpop.permute.xlu0 %3399
      %3401 = vrot.lane.b32.xlu0 %v3383, 48
      %v3402 = vpop.permute.xlu0 %3401
      %3403 = vrot.lane.b32.xlu0 %v3384, 48
      %v3404 = vpop.permute.xlu0 %3403
      %3405 = vrot.lane.b32.xlu0 %v3385, 48
      %v3406 = vpop.permute.xlu0 %3405
      %3407 = vrot.lane.b32.xlu0 %v3386, 48
      %v3408 = vpop.permute.xlu0 %3407
      %3409 = vrot.lane.b32.xlu0 %v3387, 48
      %v3410 = vpop.permute.xlu0 %3409
      %3411 = vrot.lane.b32.xlu0 %v3388, 48
      %v3412 = vpop.permute.xlu0 %3411
      %3413 = vrot.lane.b32.xlu0 %v3389, 48
      %v3414 = vpop.permute.xlu0 %3413
      %3415 = vrot.lane.b32.xlu0 %v3390, 48
      %v3416 = vpop.permute.xlu0 %3415
      %3417 = vrot.lane.b32.xlu0 %v3391, 48
      %v3418 = vpop.permute.xlu0 %3417
      %3419 = vrot.lane.b32.xlu0 %v3392, 48
      %v3420 = vpop.permute.xlu0 %3419
      %3421 = vrot.lane.b32.xlu0 %v3393, 48
      %v3422 = vpop.permute.xlu0 %3421
      %3423 = vrot.lane.b32.xlu0 %v3394, 48
      %v3424 = vpop.permute.xlu0 %3423
      %3425 = vrot.lane.b32.xlu0 %v3395, 48
      %v3426 = vpop.permute.xlu0 %3425
      %3427 = vrot.lane.b32.xlu0 %v3396, 48
      %v3428 = vpop.permute.xlu0 %3427
      %v3429 = vunpack.c.l.b16 %v2306
      %v3430 = vunpack.c.l.b16 %v2316
      %v3431 = vunpack.c.l.b16 %v2330
      %v3432 = vunpack.c.l.b16 %v2340
      %v3433 = vunpack.c.l.b16 %v2354
      %v3434 = vunpack.c.l.b16 %v2364
      %v3435 = vunpack.c.l.b16 %v2378
      %v3436 = vunpack.c.l.b16 %v2388
      %v3437 = vunpack.c.l.b16 %v2402
      %v3438 = vunpack.c.l.b16 %v2412
      %v3439 = vunpack.c.l.b16 %v2426
      %v3440 = vunpack.c.l.b16 %v2436
      %v3441 = vunpack.c.l.b16 %v2450
      %v3442 = vunpack.c.l.b16 %v2460
      %v3443 = vunpack.c.l.b16 %v2474
      %v3444 = vunpack.c.l.b16 %v2484
      %v3445 = vunpack.c.l.b16 %v2498
      %v3446 = vunpack.c.l.b16 %v2508
      %v3447 = vunpack.c.l.b16 %v2522
      %v3448 = vunpack.c.l.b16 %v2532
      %v3449 = vunpack.c.l.b16 %v2546
      %v3450 = vunpack.c.l.b16 %v2556
      %v3451 = vunpack.c.l.b16 %v2570
      %v3452 = vunpack.c.l.b16 %v2580
      %v3453 = vunpack.c.l.b16 %v2594
      %v3454 = vunpack.c.l.b16 %v2604
      %v3455 = vunpack.c.l.b16 %v2618
      %v3456 = vunpack.c.l.b16 %v2628
      %v3457 = vunpack.c.l.b16 %v2642
      %v3458 = vunpack.c.l.b16 %v2652
      %v3459 = vunpack.c.l.b16 %v2666
      %v3460 = vunpack.c.l.b16 %v2676
      %v3461 = vpack.c.b16 %v3430, %v3429
      %v3462 = vpack.c.b16 %v3432, %v3431
      %v3463 = vpack.c.b16 %v3434, %v3433
      %v3464 = vpack.c.b16 %v3436, %v3435
      %v3465 = vpack.c.b16 %v3438, %v3437
      %v3466 = vpack.c.b16 %v3440, %v3439
      %v3467 = vpack.c.b16 %v3442, %v3441
      %v3468 = vpack.c.b16 %v3444, %v3443
      %v3469 = vpack.c.b16 %v3446, %v3445
      %v3470 = vpack.c.b16 %v3448, %v3447
      %v3471 = vpack.c.b16 %v3450, %v3449
      %v3472 = vpack.c.b16 %v3452, %v3451
      %v3473 = vpack.c.b16 %v3454, %v3453
      %v3474 = vpack.c.b16 %v3456, %v3455
      %v3475 = vpack.c.b16 %v3458, %v3457
      %v3476 = vpack.c.b16 %v3460, %v3459
      %3477 = vrot.lane.b32.xlu0 %v3461, 56
      %v3478 = vpop.permute.xlu0 %3477
      %3479 = vrot.lane.b32.xlu0 %v3462, 56
      %v3480 = vpop.permute.xlu0 %3479
      %3481 = vrot.lane.b32.xlu0 %v3463, 56
      %v3482 = vpop.permute.xlu0 %3481
      %3483 = vrot.lane.b32.xlu0 %v3464, 56
      %v3484 = vpop.permute.xlu0 %3483
      %3485 = vrot.lane.b32.xlu0 %v3465, 56
      %v3486 = vpop.permute.xlu0 %3485
      %3487 = vrot.lane.b32.xlu0 %v3466, 56
      %v3488 = vpop.permute.xlu0 %3487
      %3489 = vrot.lane.b32.xlu0 %v3467, 56
      %v3490 = vpop.permute.xlu0 %3489
      %3491 = vrot.lane.b32.xlu0 %v3468, 56
      %v3492 = vpop.permute.xlu0 %3491
      %3493 = vrot.lane.b32.xlu0 %v3469, 56
      %v3494 = vpop.permute.xlu0 %3493
      %3495 = vrot.lane.b32.xlu0 %v3470, 56
      %v3496 = vpop.permute.xlu0 %3495
      %3497 = vrot.lane.b32.xlu0 %v3471, 56
      %v3498 = vpop.permute.xlu0 %3497
      %3499 = vrot.lane.b32.xlu0 %v3472, 56
      %v3500 = vpop.permute.xlu0 %3499
      %3501 = vrot.lane.b32.xlu0 %v3473, 56
      %v3502 = vpop.permute.xlu0 %3501
      %3503 = vrot.lane.b32.xlu0 %v3474, 56
      %v3504 = vpop.permute.xlu0 %3503
      %3505 = vrot.lane.b32.xlu0 %v3475, 56
      %v3506 = vpop.permute.xlu0 %3505
      %3507 = vrot.lane.b32.xlu0 %v3476, 56
      %v3508 = vpop.permute.xlu0 %3507
      %v3509 = vunpack.c.l.b16 %v2744
      %v3510 = vunpack.c.l.b16 %v2747
      %v3511 = vunpack.c.l.b16 %v2751
      %v3512 = vunpack.c.l.b16 %v2754
      %v3513 = vunpack.c.l.b16 %v2758
      %v3514 = vunpack.c.l.b16 %v2761
      %v3515 = vunpack.c.l.b16 %v2765
      %v3516 = vunpack.c.l.b16 %v2768
      %v3517 = vunpack.c.l.b16 %v2772
      %v3518 = vunpack.c.l.b16 %v2775
      %v3519 = vunpack.c.l.b16 %v2779
      %v3520 = vunpack.c.l.b16 %v2782
      %v3521 = vunpack.c.l.b16 %v2786
      %v3522 = vunpack.c.l.b16 %v2789
      %v3523 = vunpack.c.l.b16 %v2793
      %v3524 = vunpack.c.l.b16 %v2796
      %v3525 = vunpack.c.l.b16 %v2800
      %v3526 = vunpack.c.l.b16 %v2803
      %v3527 = vunpack.c.l.b16 %v2807
      %v3528 = vunpack.c.l.b16 %v2810
      %v3529 = vunpack.c.l.b16 %v2814
      %v3530 = vunpack.c.l.b16 %v2817
      %v3531 = vunpack.c.l.b16 %v2821
      %v3532 = vunpack.c.l.b16 %v2824
      %v3533 = vunpack.c.l.b16 %v2828
      %v3534 = vunpack.c.l.b16 %v2831
      %v3535 = vunpack.c.l.b16 %v2835
      %v3536 = vunpack.c.l.b16 %v2838
      %v3537 = vunpack.c.l.b16 %v2842
      %v3538 = vunpack.c.l.b16 %v2845
      %v3539 = vunpack.c.l.b16 %v2849
      %v3540 = vunpack.c.l.b16 %v2852
      %v3541 = vpack.c.b16 %v3510, %v3509
      %v3542 = vpack.c.b16 %v3512, %v3511
      %v3543 = vpack.c.b16 %v3514, %v3513
      %v3544 = vpack.c.b16 %v3516, %v3515
      %v3545 = vpack.c.b16 %v3518, %v3517
      %v3546 = vpack.c.b16 %v3520, %v3519
      %v3547 = vpack.c.b16 %v3522, %v3521
      %v3548 = vpack.c.b16 %v3524, %v3523
      %v3549 = vpack.c.b16 %v3526, %v3525
      %v3550 = vpack.c.b16 %v3528, %v3527
      %v3551 = vpack.c.b16 %v3530, %v3529
      %v3552 = vpack.c.b16 %v3532, %v3531
      %v3553 = vpack.c.b16 %v3534, %v3533
      %v3554 = vpack.c.b16 %v3536, %v3535
      %v3555 = vpack.c.b16 %v3538, %v3537
      %v3556 = vpack.c.b16 %v3540, %v3539
      %3557 = vrot.lane.b32.xlu0 %v3541, 64
      %v3558 = vpop.permute.xlu0 %3557
      %3559 = vrot.lane.b32.xlu0 %v3542, 64
      %v3560 = vpop.permute.xlu0 %3559
      %3561 = vrot.lane.b32.xlu0 %v3543, 64
      %v3562 = vpop.permute.xlu0 %3561
      %3563 = vrot.lane.b32.xlu0 %v3544, 64
      %v3564 = vpop.permute.xlu0 %3563
      %3565 = vrot.lane.b32.xlu0 %v3545, 64
      %v3566 = vpop.permute.xlu0 %3565
      %3567 = vrot.lane.b32.xlu0 %v3546, 64
      %v3568 = vpop.permute.xlu0 %3567
      %3569 = vrot.lane.b32.xlu0 %v3547, 64
      %v3570 = vpop.permute.xlu0 %3569
      %3571 = vrot.lane.b32.xlu0 %v3548, 64
      %v3572 = vpop.permute.xlu0 %3571
      %3573 = vrot.lane.b32.xlu0 %v3549, 64
      %v3574 = vpop.permute.xlu0 %3573
      %3575 = vrot.lane.b32.xlu0 %v3550, 64
      %v3576 = vpop.permute.xlu0 %3575
      %3577 = vrot.lane.b32.xlu0 %v3551, 64
      %v3578 = vpop.permute.xlu0 %3577
      %3579 = vrot.lane.b32.xlu0 %v3552, 64
      %v3580 = vpop.permute.xlu0 %3579
      %3581 = vrot.lane.b32.xlu0 %v3553, 64
      %v3582 = vpop.permute.xlu0 %3581
      %3583 = vrot.lane.b32.xlu0 %v3554, 64
      %v3584 = vpop.permute.xlu0 %3583
      %3585 = vrot.lane.b32.xlu0 %v3555, 64
      %v3586 = vpop.permute.xlu0 %3585
      %3587 = vrot.lane.b32.xlu0 %v3556, 64
      %v3588 = vpop.permute.xlu0 %3587
      %vm3589 = vcmask 64512
      %v3592 = vsel %vm3589, %v2901, %v2966
      %v3595 = vsel %vm3589, %v2902, %v2968
      %v3598 = vsel %vm3589, %v2903, %v2970
      %v3601 = vsel %vm3589, %v2904, %v2972
      %v3604 = vsel %vm3589, %v2905, %v2974
      %v3607 = vsel %vm3589, %v2906, %v2976
      %v3610 = vsel %vm3589, %v2907, %v2978
      %v3613 = vsel %vm3589, %v2908, %v2980
      %v3616 = vsel %vm3589, %v2909, %v2982
      %v3619 = vsel %vm3589, %v2910, %v2984
      %v3622 = vsel %vm3589, %v2911, %v2986
      %v3625 = vsel %vm3589, %v2912, %v2988
      %v3628 = vsel %vm3589, %v2913, %v2990
      %v3631 = vsel %vm3589, %v2914, %v2992
      %v3634 = vsel %vm3589, %v2915, %v2994
      %v3637 = vsel %vm3589, %v2916, %v2996
      %vm3638 = vcmask 130048
      %v3640 = vsel %vm3638, %v3592, %v3046
      %v3642 = vsel %vm3638, %v3595, %v3048
      %v3644 = vsel %vm3638, %v3598, %v3050
      %v3646 = vsel %vm3638, %v3601, %v3052
      %v3648 = vsel %vm3638, %v3604, %v3054
      %v3650 = vsel %vm3638, %v3607, %v3056
      %v3652 = vsel %vm3638, %v3610, %v3058
      %v3654 = vsel %vm3638, %v3613, %v3060
      %v3656 = vsel %vm3638, %v3616, %v3062
      %v3658 = vsel %vm3638, %v3619, %v3064
      %v3660 = vsel %vm3638, %v3622, %v3066
      %v3662 = vsel %vm3638, %v3625, %v3068
      %v3664 = vsel %vm3638, %v3628, %v3070
      %v3666 = vsel %vm3638, %v3631, %v3072
      %v3668 = vsel %vm3638, %v3634, %v3074
      %v3670 = vsel %vm3638, %v3637, %v3076
      %vm3671 = vcmask 195584
      %v3673 = vsel %vm3671, %v3640, %v3142
      %v3675 = vsel %vm3671, %v3642, %v3144
      %v3677 = vsel %vm3671, %v3644, %v3146
      %v3679 = vsel %vm3671, %v3646, %v3148
      %v3681 = vsel %vm3671, %v3648, %v3150
      %v3683 = vsel %vm3671, %v3650, %v3152
      %v3685 = vsel %vm3671, %v3652, %v3154
      %v3687 = vsel %vm3671, %v3654, %v3156
      %v3689 = vsel %vm3671, %v3656, %v3158
      %v3691 = vsel %vm3671, %v3658, %v3160
      %v3693 = vsel %vm3671, %v3660, %v3162
      %v3695 = vsel %vm3671, %v3662, %v3164
      %v3697 = vsel %vm3671, %v3664, %v3166
      %v3699 = vsel %vm3671, %v3666, %v3168
      %v3701 = vsel %vm3671, %v3668, %v3170
      %v3703 = vsel %vm3671, %v3670, %v3172
      %vm3704 = vcmask 261120
      %v3706 = vsel %vm3704, %v3673, %v3222
      %v3708 = vsel %vm3704, %v3675, %v3224
      %v3710 = vsel %vm3704, %v3677, %v3226
      %v3712 = vsel %vm3704, %v3679, %v3228
      %v3714 = vsel %vm3704, %v3681, %v3230
      %v3716 = vsel %vm3704, %v3683, %v3232
      %v3718 = vsel %vm3704, %v3685, %v3234
      %v3720 = vsel %vm3704, %v3687, %v3236
      %v3722 = vsel %vm3704, %v3689, %v3238
      %v3724 = vsel %vm3704, %v3691, %v3240
      %v3726 = vsel %vm3704, %v3693, %v3242
      %v3728 = vsel %vm3704, %v3695, %v3244
      %v3730 = vsel %vm3704, %v3697, %v3246
      %v3732 = vsel %vm3704, %v3699, %v3248
      %v3734 = vsel %vm3704, %v3701, %v3250
      %v3736 = vsel %vm3704, %v3703, %v3252
      %vm3737 = vcmask 326656
      %v3739 = vsel %vm3737, %v3706, %v3302
      %v3741 = vsel %vm3737, %v3708, %v3304
      %v3743 = vsel %vm3737, %v3710, %v3306
      %v3745 = vsel %vm3737, %v3712, %v3308
      %v3747 = vsel %vm3737, %v3714, %v3310
      %v3749 = vsel %vm3737, %v3716, %v3312
      %v3751 = vsel %vm3737, %v3718, %v3314
      %v3753 = vsel %vm3737, %v3720, %v3316
      %v3755 = vsel %vm3737, %v3722, %v3318
      %v3757 = vsel %vm3737, %v3724, %v3320
      %v3759 = vsel %vm3737, %v3726, %v3322
      %v3761 = vsel %vm3737, %v3728, %v3324
      %v3763 = vsel %vm3737, %v3730, %v3326
      %v3765 = vsel %vm3737, %v3732, %v3328
      %v3767 = vsel %vm3737, %v3734, %v3330
      %v3769 = vsel %vm3737, %v3736, %v3332
      %vm3770 = vcmask 392192
      %v3772 = vsel %vm3770, %v3739, %v3398
      %v3774 = vsel %vm3770, %v3741, %v3400
      %v3776 = vsel %vm3770, %v3743, %v3402
      %v3778 = vsel %vm3770, %v3745, %v3404
      %v3780 = vsel %vm3770, %v3747, %v3406
      %v3782 = vsel %vm3770, %v3749, %v3408
      %v3784 = vsel %vm3770, %v3751, %v3410
      %v3786 = vsel %vm3770, %v3753, %v3412
      %v3788 = vsel %vm3770, %v3755, %v3414
      %v3790 = vsel %vm3770, %v3757, %v3416
      %v3792 = vsel %vm3770, %v3759, %v3418
      %v3794 = vsel %vm3770, %v3761, %v3420
      %v3796 = vsel %vm3770, %v3763, %v3422
      %v3798 = vsel %vm3770, %v3765, %v3424
      %v3800 = vsel %vm3770, %v3767, %v3426
      %v3802 = vsel %vm3770, %v3769, %v3428
      %vm3803 = vcmask 457728
      %v3805 = vsel %vm3803, %v3772, %v3478
      %v3807 = vsel %vm3803, %v3774, %v3480
      %v3809 = vsel %vm3803, %v3776, %v3482
      %v3811 = vsel %vm3803, %v3778, %v3484
      %v3813 = vsel %vm3803, %v3780, %v3486
      %v3815 = vsel %vm3803, %v3782, %v3488
      %v3817 = vsel %vm3803, %v3784, %v3490
      %v3819 = vsel %vm3803, %v3786, %v3492
      %v3821 = vsel %vm3803, %v3788, %v3494
      %v3823 = vsel %vm3803, %v3790, %v3496
      %v3825 = vsel %vm3803, %v3792, %v3498
      %v3827 = vsel %vm3803, %v3794, %v3500
      %v3829 = vsel %vm3803, %v3796, %v3502
      %v3831 = vsel %vm3803, %v3798, %v3504
      %v3833 = vsel %vm3803, %v3800, %v3506
      %v3835 = vsel %vm3803, %v3802, %v3508
      %vm3836 = vcmask 523264
      %v3838 = vsel %vm3836, %v3805, %v3558
      %v3840 = vsel %vm3836, %v3807, %v3560
      %v3842 = vsel %vm3836, %v3809, %v3562
      %v3844 = vsel %vm3836, %v3811, %v3564
      %v3846 = vsel %vm3836, %v3813, %v3566
      %v3848 = vsel %vm3836, %v3815, %v3568
      %v3850 = vsel %vm3836, %v3817, %v3570
      %v3852 = vsel %vm3836, %v3819, %v3572
      %v3854 = vsel %vm3836, %v3821, %v3574
      %v3856 = vsel %vm3836, %v3823, %v3576
      %v3858 = vsel %vm3836, %v3825, %v3578
      %v3860 = vsel %vm3836, %v3827, %v3580
      %v3862 = vsel %vm3836, %v3829, %v3582
      %v3864 = vsel %vm3836, %v3831, %v3584
      %v3866 = vsel %vm3836, %v3833, %v3586
      %v3868 = vsel %vm3836, %v3835, %v3588
      %v3869 = vld [vmem:[%s3] sm:$0xf]
      %v3870 = vld [vmem:[%s3 + $0x4] sm:$0xf]
      %v3871 = vld [vmem:[%s3 + $0x8] sm:$0xf]
      %v3872 = vld [vmem:[%s3 + $0xc] sm:$0xf]
      %v3873 = vld [vmem:[%s3 + $0x10] sm:$0xf]
      %v3874 = vld [vmem:[%s3 + $0x14] sm:$0xf]
      %v3875 = vld [vmem:[%s3 + $0x18] sm:$0xf]
      %v3876 = vld [vmem:[%s3 + $0x1c] sm:$0xf]
      %v3877 = vld [vmem:[%s3 + $0x20] sm:$0xf]
      %v3887 = vunpack.c.l.b16 %v3869
      %v3888 = vunpack.c.l.b16 %v3870
      %v3889 = vunpack.c.l.b16 %v3871
      %v3890 = vunpack.c.l.b16 %v3872
      %v3891 = vunpack.c.l.b16 %v3873
      %v3892 = vunpack.c.l.b16 %v3874
      %v3893 = vunpack.c.l.b16 %v3875
      %v3894 = vunpack.c.l.b16 %v3876
      %v3895 = vunpack.c.l.b16 %v3877
      %v3896 = vpack.c.b16 %v3888, %v3887
      %v3897 = vpack.c.b16 %v3890, %v3889
      %v3898 = vpack.c.b16 %v3892, %v3891
      %v3899 = vpack.c.b16 %v3894, %v3893
      %v3900 = vpack.c.b16 %v3895, %v3895
      %vm3905 = vcmask 588800
      %v3906 = vsel %vm3905, %v3838, 0
      %v3908 = vsel %vm3905, %v3840, 0
      %v3910 = vsel %vm3905, %v3842, 0
      %v3912 = vsel %vm3905, %v3844, 0
      %v3914 = vsel %vm3905, %v3846, 0
      %v3916 = vsel %vm3905, %v3848, 0
      %v3918 = vsel %vm3905, %v3850, 0
      %v3920 = vsel %vm3905, %v3852, 0
      %v3922 = vsel %vm3905, %v3854, 0
      %v3924 = vsel %vm3905, %v3856, 0
      %v3926 = vsel %vm3905, %v3858, 0
      %v3928 = vsel %vm3905, %v3860, 0
      %v3930 = vsel %vm3905, %v3862, 0
      %v3932 = vsel %vm3905, %v3864, 0
      %v3934 = vsel %vm3905, %v3866, 0
      %v3936 = vsel %vm3905, %v3868, 0
      %vm3938 = vcmask 1043456
      %v3940 = vsel %vm3938, %v3900, 0
      %3942 = vmatprep.subr.bf16.mxu0 0
      %3943 = vmatpush1.bf16.msra.mxu0 0
      %3944 = vmatprep.subr.bf16.mxu0 0
      %3945 = vmatpush1.bf16.msra.mxu0 0
      %3946 = vmatprep.subr.bf16.mxu0 0
      %3947 = vmatpush1.bf16.msra.mxu0 0
      %3948 = vmatprep.subr.bf16.mxu0 0
      %3949 = vmatpush1.bf16.msra.mxu0 %v3940
      %3950 = vmatprep.subr.bf16.mxu0 0
      %3951 = vmatpush1.bf16.msra.mxu0 %v3899
      %3952 = vmatprep.subr.bf16.mxu0 0
      %3953 = vmatpush1.bf16.msra.mxu0 %v3898
      %3954 = vmatprep.subr.bf16.mxu0 0
      %3955 = vmatpush1.bf16.msra.mxu0 %v3897
      %3956 = vmatprep.subr.bf16.mxu0 0
      %3957 = vmatpush1.bf16.msra.mxu0 %v3896
      %3958 = vmatprep.subr.bf16.mxu0 0
      %3959 = vmatpush2.bf16.msra.mxu0 0
      %3960 = vmatprep.subr.bf16.mxu0 0
      %3961 = vmatpush2.bf16.msra.mxu0 0
      %3962 = vmatprep.subr.bf16.mxu0 0
      %3963 = vmatpush2.bf16.msra.mxu0 0
      %3964 = vmatprep.subr.bf16.mxu0 0
      %3965 = vmatpush2.bf16.msra.mxu0 0
      %3966 = vmatprep.subr.bf16.mxu0 0
      %3967 = vmatpush2.bf16.msra.mxu0 0
      %3968 = vmatprep.subr.bf16.mxu0 0
      %3969 = vmatpush2.bf16.msra.mxu0 0
      %3970 = vmatprep.subr.bf16.mxu0 0
      %3971 = vmatpush2.bf16.msra.mxu0 0
      %3972 = vmatprep.subr.bf16.mxu0 0
      %3973 = vmatpush2.bf16.msra.mxu0 0
      %3974 = vmatprep.mubr.bf16.mxu0 0
      %3975 = vmatmul.mubr.bf16.gmra.mxu0 %v3906
      %v3976 = vpop.f32.mrf.mxu0
      %v3977 = vadd.f32 0.0, %v3976
      %v3978 = vpop.f32.mrf.mxu0
      %v3979 = vpop.f32.mrf.mxu0
      %v3980 = vadd.f32 0.0, %v3979
      %v3981 = vpop.f32.mrf.mxu0
      %3982 = vmatprep.mubr.bf16.mxu0 0
      %3983 = vmatmul.mubr.bf16.gmra.mxu0 %v3908
      %v3984 = vpop.f32.mrf.mxu0
      %v3985 = vadd.f32 0.0, %v3984
      %v3986 = vpop.f32.mrf.mxu0
      %v3987 = vpop.f32.mrf.mxu0
      %v3988 = vadd.f32 0.0, %v3987
      %v3989 = vpop.f32.mrf.mxu0
      %3990 = vmatprep.mubr.bf16.mxu0 0
      %3991 = vmatmul.mubr.bf16.gmra.mxu0 %v3910
      %v3992 = vpop.f32.mrf.mxu0
      %v3993 = vadd.f32 0.0, %v3992
      %v3994 = vpop.f32.mrf.mxu0
      %v3995 = vpop.f32.mrf.mxu0
      %v3996 = vadd.f32 0.0, %v3995
      %v3997 = vpop.f32.mrf.mxu0
      %3998 = vmatprep.mubr.bf16.mxu0 0
      %3999 = vmatmul.mubr.bf16.gmra.mxu0 %v3912
      %v4000 = vpop.f32.mrf.mxu0
      %v4001 = vadd.f32 0.0, %v4000
      %v4002 = vpop.f32.mrf.mxu0
      %v4003 = vpop.f32.mrf.mxu0
      %v4004 = vadd.f32 0.0, %v4003
      %v4005 = vpop.f32.mrf.mxu0
      %4006 = vmatprep.mubr.bf16.mxu0 0
      %4007 = vmatmul.mubr.bf16.gmra.mxu0 %v3914
      %v4008 = vpop.f32.mrf.mxu0
      %v4009 = vadd.f32 0.0, %v4008
      %v4010 = vpop.f32.mrf.mxu0
      %v4011 = vpop.f32.mrf.mxu0
      %v4012 = vadd.f32 0.0, %v4011
      %v4013 = vpop.f32.mrf.mxu0
      %4014 = vmatprep.mubr.bf16.mxu0 0
      %4015 = vmatmul.mubr.bf16.gmra.mxu0 %v3916
      %v4016 = vpop.f32.mrf.mxu0
      %v4017 = vadd.f32 0.0, %v4016
      %v4018 = vpop.f32.mrf.mxu0
      %v4019 = vpop.f32.mrf.mxu0
      %v4020 = vadd.f32 0.0, %v4019
      %v4021 = vpop.f32.mrf.mxu0
      %4022 = vmatprep.mubr.bf16.mxu0 0
      %4023 = vmatmul.mubr.bf16.gmra.mxu0 %v3918
      %v4024 = vpop.f32.mrf.mxu0
      %v4025 = vadd.f32 0.0, %v4024
      %v4026 = vpop.f32.mrf.mxu0
      %v4027 = vpop.f32.mrf.mxu0
      %v4028 = vadd.f32 0.0, %v4027
      %v4029 = vpop.f32.mrf.mxu0
      %4030 = vmatprep.mubr.bf16.mxu0 0
      %4031 = vmatmul.mubr.bf16.gmra.mxu0 %v3920
      %v4032 = vpop.f32.mrf.mxu0
      %v4033 = vadd.f32 0.0, %v4032
      %v4034 = vpop.f32.mrf.mxu0
      %v4035 = vpop.f32.mrf.mxu0
      %v4036 = vadd.f32 0.0, %v4035
      %v4037 = vpop.f32.mrf.mxu0
      %4038 = vmatprep.mubr.bf16.mxu0 0
      %4039 = vmatmul.mubr.bf16.gmra.mxu0 %v3922
      %v4040 = vpop.f32.mrf.mxu0
      %v4041 = vadd.f32 0.0, %v4040
      %v4042 = vpop.f32.mrf.mxu0
      %v4043 = vpop.f32.mrf.mxu0
      %v4044 = vadd.f32 0.0, %v4043
      %v4045 = vpop.f32.mrf.mxu0
      %4046 = vmatprep.mubr.bf16.mxu0 0
      %4047 = vmatmul.mubr.bf16.gmra.mxu0 %v3924
      %v4048 = vpop.f32.mrf.mxu0
      %v4049 = vadd.f32 0.0, %v4048
      %v4050 = vpop.f32.mrf.mxu0
      %v4051 = vpop.f32.mrf.mxu0
      %v4052 = vadd.f32 0.0, %v4051
      %v4053 = vpop.f32.mrf.mxu0
      %4054 = vmatprep.mubr.bf16.mxu0 0
      %4055 = vmatmul.mubr.bf16.gmra.mxu0 %v3926
      %v4056 = vpop.f32.mrf.mxu0
      %v4057 = vadd.f32 0.0, %v4056
      %v4058 = vpop.f32.mrf.mxu0
      %v4059 = vpop.f32.mrf.mxu0
      %v4060 = vadd.f32 0.0, %v4059
      %v4061 = vpop.f32.mrf.mxu0
      %4062 = vmatprep.mubr.bf16.mxu0 0
      %4063 = vmatmul.mubr.bf16.gmra.mxu0 %v3928
      %v4064 = vpop.f32.mrf.mxu0
      %v4065 = vadd.f32 0.0, %v4064
      %v4066 = vpop.f32.mrf.mxu0
      %v4067 = vpop.f32.mrf.mxu0
      %v4068 = vadd.f32 0.0, %v4067
      %v4069 = vpop.f32.mrf.mxu0
      %4070 = vmatprep.mubr.bf16.mxu0 0
      %4071 = vmatmul.mubr.bf16.gmra.mxu0 %v3930
      %v4072 = vpop.f32.mrf.mxu0
      %v4073 = vadd.f32 0.0, %v4072
      %v4074 = vpop.f32.mrf.mxu0
      %v4075 = vpop.f32.mrf.mxu0
      %v4076 = vadd.f32 0.0, %v4075
      %v4077 = vpop.f32.mrf.mxu0
      %4078 = vmatprep.mubr.bf16.mxu0 0
      %4079 = vmatmul.mubr.bf16.gmra.mxu0 %v3932
      %v4080 = vpop.f32.mrf.mxu0
      %v4081 = vadd.f32 0.0, %v4080
      %v4082 = vpop.f32.mrf.mxu0
      %v4083 = vpop.f32.mrf.mxu0
      %v4084 = vadd.f32 0.0, %v4083
      %v4085 = vpop.f32.mrf.mxu0
      %4086 = vmatprep.mubr.bf16.mxu0 0
      %4087 = vmatmul.mubr.bf16.gmra.mxu0 %v3934
      %v4088 = vpop.f32.mrf.mxu0
      %v4089 = vadd.f32 0.0, %v4088
      %v4090 = vpop.f32.mrf.mxu0
      %v4091 = vpop.f32.mrf.mxu0
      %v4092 = vadd.f32 0.0, %v4091
      %v4093 = vpop.f32.mrf.mxu0
      %4094 = vmatprep.mubr.bf16.mxu0 0
      %4095 = vmatmul.mubr.bf16.gmra.mxu0 %v3936
      %v4096 = vpop.f32.mrf.mxu0
      %v4097 = vadd.f32 0.0, %v4096
      %v4098 = vpop.f32.mrf.mxu0
      %v4099 = vpop.f32.mrf.mxu0
      %v4100 = vadd.f32 0.0, %v4099
      %v4101 = vpop.f32.mrf.mxu0
      %4102 = vdwg.mxu0
      %4103 = vst.msk [vmem:[%s231] sm:$0xff] %vm3589, %v3977
      %4104 = vst.msk [vmem:[%s231 + $0x8] sm:$0xff] %vm3589, %v3980
      %4105 = vst.msk [vmem:[%s231 + $0x10] sm:$0xff] %vm3589, %v3985
      %4106 = vst.msk [vmem:[%s231 + $0x18] sm:$0xff] %vm3589, %v3988
      %4107 = vst.msk [vmem:[%s231 + $0x20] sm:$0xff] %vm3589, %v3993
      %4108 = vst.msk [vmem:[%s231 + $0x28] sm:$0xff] %vm3589, %v3996
      %4109 = vst.msk [vmem:[%s231 + $0x30] sm:$0xff] %vm3589, %v4001
      %4110 = vst.msk [vmem:[%s231 + $0x38] sm:$0xff] %vm3589, %v4004
      %4111 = vst.msk [vmem:[%s231 + $0x40] sm:$0xff] %vm3589, %v4009
      %4112 = vst.msk [vmem:[%s231 + $0x48] sm:$0xff] %vm3589, %v4012
      %4113 = vst.msk [vmem:[%s231 + $0x50] sm:$0xff] %vm3589, %v4017
      %4114 = vst.msk [vmem:[%s231 + $0x58] sm:$0xff] %vm3589, %v4020
      %4115 = vst.msk [vmem:[%s231 + $0x60] sm:$0xff] %vm3589, %v4025
      %4116 = vst.msk [vmem:[%s231 + $0x68] sm:$0xff] %vm3589, %v4028
      %4117 = vst.msk [vmem:[%s231 + $0x70] sm:$0xff] %vm3589, %v4033
      %4118 = vst.msk [vmem:[%s231 + $0x78] sm:$0xff] %vm3589, %v4036
      %4119 = vst.msk [vmem:[%s231 + $0x80] sm:$0xff] %vm3589, %v4041
      %4120 = vst.msk [vmem:[%s231 + $0x88] sm:$0xff] %vm3589, %v4044
      %4121 = vst.msk [vmem:[%s231 + $0x90] sm:$0xff] %vm3589, %v4049
      %4122 = vst.msk [vmem:[%s231 + $0x98] sm:$0xff] %vm3589, %v4052
      %4123 = vst.msk [vmem:[%s231 + $0xa0] sm:$0xff] %vm3589, %v4057
      %4124 = vst.msk [vmem:[%s231 + $0xa8] sm:$0xff] %vm3589, %v4060
      %4125 = vst.msk [vmem:[%s231 + $0xb0] sm:$0xff] %vm3589, %v4065
      %4126 = vst.msk [vmem:[%s231 + $0xb8] sm:$0xff] %vm3589, %v4068
      %4127 = vst.msk [vmem:[%s231 + $0xc0] sm:$0xff] %vm3589, %v4073
      %4128 = vst.msk [vmem:[%s231 + $0xc8] sm:$0xff] %vm3589, %v4076
      %4129 = vst.msk [vmem:[%s231 + $0xd0] sm:$0xff] %vm3589, %v4081
      %4130 = vst.msk [vmem:[%s231 + $0xd8] sm:$0xff] %vm3589, %v4084
      %4131 = vst.msk [vmem:[%s231 + $0xe0] sm:$0xff] %vm3589, %v4089
      %4132 = vst.msk [vmem:[%s231 + $0xe8] sm:$0xff] %vm3589, %v4092
      %4133 = vst.msk [vmem:[%s231 + $0xf0] sm:$0xff] %vm3589, %v4097
      %4134 = vst.msk [vmem:[%s231 + $0xf8] sm:$0xff] %vm3589, %v4100
      %v4135 = vsel %vm3589, %v3977, 0.0
      %v4136 = vsel %vm3589, %v3980, 0.0
      %v4137 = vadd.f32 %v4135, %v4136
      %v4138 = vsel %vm3589, %v3985, 0.0
      %v4139 = vadd.f32 %v4137, %v4138
      %v4140 = vsel %vm3589, %v3988, 0.0
      %v4141 = vadd.f32 %v4139, %v4140
      %v4142 = vsel %vm3589, %v3993, 0.0
      %v4143 = vadd.f32 %v4141, %v4142
      %v4144 = vsel %vm3589, %v3996, 0.0
      %v4145 = vadd.f32 %v4143, %v4144
      %v4146 = vsel %vm3589, %v4001, 0.0
      %v4147 = vadd.f32 %v4145, %v4146
      %v4148 = vsel %vm3589, %v4004, 0.0
      %v4149 = vadd.f32 %v4147, %v4148
      %v4150 = vsel %vm3589, %v4009, 0.0
      %v4151 = vadd.f32 %v4149, %v4150
      %v4152 = vsel %vm3589, %v4012, 0.0
      %v4153 = vadd.f32 %v4151, %v4152
      %v4154 = vsel %vm3589, %v4017, 0.0
      %v4155 = vadd.f32 %v4153, %v4154
      %v4156 = vsel %vm3589, %v4020, 0.0
      %v4157 = vadd.f32 %v4155, %v4156
      %v4158 = vsel %vm3589, %v4025, 0.0
      %v4159 = vadd.f32 %v4157, %v4158
      %v4160 = vsel %vm3589, %v4028, 0.0
      %v4161 = vadd.f32 %v4159, %v4160
      %v4162 = vsel %vm3589, %v4033, 0.0
      %v4163 = vadd.f32 %v4161, %v4162
      %v4164 = vsel %vm3589, %v4036, 0.0
      %v4165 = vadd.f32 %v4163, %v4164
      %v4166 = vsel %vm3589, %v4041, 0.0
      %v4167 = vadd.f32 %v4165, %v4166
      %v4168 = vsel %vm3589, %v4044, 0.0
      %v4169 = vadd.f32 %v4167, %v4168
      %v4170 = vsel %vm3589, %v4049, 0.0
      %v4171 = vadd.f32 %v4169, %v4170
      %v4172 = vsel %vm3589, %v4052, 0.0
      %v4173 = vadd.f32 %v4171, %v4172
      %v4174 = vsel %vm3589, %v4057, 0.0
      %v4175 = vadd.f32 %v4173, %v4174
      %v4176 = vsel %vm3589, %v4060, 0.0
      %v4177 = vadd.f32 %v4175, %v4176
      %v4178 = vsel %vm3589, %v4065, 0.0
      %v4179 = vadd.f32 %v4177, %v4178
      %v4180 = vsel %vm3589, %v4068, 0.0
      %v4181 = vadd.f32 %v4179, %v4180
      %v4182 = vsel %vm3589, %v4073, 0.0
      %v4183 = vadd.f32 %v4181, %v4182
      %v4184 = vsel %vm3589, %v4076, 0.0
      %v4185 = vadd.f32 %v4183, %v4184
      %v4186 = vsel %vm3589, %v4081, 0.0
      %v4187 = vadd.f32 %v4185, %v4186
      %v4188 = vsel %vm3589, %v4084, 0.0
      %v4189 = vadd.f32 %v4187, %v4188
      %v4190 = vsel %vm3589, %v4089, 0.0
      %v4191 = vadd.f32 %v4189, %v4190
      %v4192 = vsel %vm3589, %v4092, 0.0
      %v4193 = vadd.f32 %v4191, %v4192
      %v4194 = vsel %vm3589, %v4097, 0.0
      %v4195 = vadd.f32 %v4193, %v4194
      %v4196 = vsel %vm3589, %v4100, 0.0
      %v4197 = vadd.f32 %v4195, %v4196
      %v4198 = vrot.slane %v4197, 4
      %v4199 = vadd.f32 %v4197, %v4198
      %v4200 = vrot.slane %v4199, 2
      %v4201 = vadd.f32 %v4199, %v4200
      %v4202 = vrot.slane %v4201, 1
      %v4203 = vadd.f32 %v4201, %v4202
      %v4204 = vmul.f32 %v4203, 0.00390625
      %4205 = vst.msk [vmem:[%s235] sm:$0x1] %vm398, %v4203
      %v4206 = vsub.f32 %v3977, %v4204
      %v4207 = vsub.f32 %v3980, %v4204
      %v4208 = vsub.f32 %v3985, %v4204
      %v4209 = vsub.f32 %v3988, %v4204
      %v4210 = vsub.f32 %v3993, %v4204
      %v4211 = vsub.f32 %v3996, %v4204
      %v4212 = vsub.f32 %v4001, %v4204
      %v4213 = vsub.f32 %v4004, %v4204
      %v4214 = vsub.f32 %v4009, %v4204
      %v4215 = vsub.f32 %v4012, %v4204
      %v4216 = vsub.f32 %v4017, %v4204
      %v4217 = vsub.f32 %v4020, %v4204
      %v4218 = vsub.f32 %v4025, %v4204
      %v4219 = vsub.f32 %v4028, %v4204
      %v4220 = vsub.f32 %v4033, %v4204
      %v4221 = vsub.f32 %v4036, %v4204
      %v4222 = vsub.f32 %v4041, %v4204
      %v4223 = vsub.f32 %v4044, %v4204
      %v4224 = vsub.f32 %v4049, %v4204
      %v4225 = vsub.f32 %v4052, %v4204
      %v4226 = vsub.f32 %v4057, %v4204
      %v4227 = vsub.f32 %v4060, %v4204
      %v4228 = vsub.f32 %v4065, %v4204
      %v4229 = vsub.f32 %v4068, %v4204
      %v4230 = vsub.f32 %v4073, %v4204
      %v4231 = vsub.f32 %v4076, %v4204
      %v4232 = vsub.f32 %v4081, %v4204
      %v4233 = vsub.f32 %v4084, %v4204
      %v4234 = vsub.f32 %v4089, %v4204
      %v4235 = vsub.f32 %v4092, %v4204
      %v4236 = vsub.f32 %v4097, %v4204
      %v4237 = vsub.f32 %v4100, %v4204
      %v4238 = vmul.f32 %v4206, %v4206
      %v4239 = vmul.f32 %v4207, %v4207
      %v4240 = vmul.f32 %v4208, %v4208
      %v4241 = vmul.f32 %v4209, %v4209
      %v4242 = vmul.f32 %v4210, %v4210
      %v4243 = vmul.f32 %v4211, %v4211
      %v4244 = vmul.f32 %v4212, %v4212
      %v4245 = vmul.f32 %v4213, %v4213
      %v4246 = vmul.f32 %v4214, %v4214
      %v4247 = vmul.f32 %v4215, %v4215
      %v4248 = vmul.f32 %v4216, %v4216
      %v4249 = vmul.f32 %v4217, %v4217
      %v4250 = vmul.f32 %v4218, %v4218
      %v4251 = vmul.f32 %v4219, %v4219
      %v4252 = vmul.f32 %v4220, %v4220
      %v4253 = vmul.f32 %v4221, %v4221
      %v4254 = vmul.f32 %v4222, %v4222
      %v4255 = vmul.f32 %v4223, %v4223
      %v4256 = vmul.f32 %v4224, %v4224
      %v4257 = vmul.f32 %v4225, %v4225
      %v4258 = vmul.f32 %v4226, %v4226
      %v4259 = vmul.f32 %v4227, %v4227
      %v4260 = vmul.f32 %v4228, %v4228
      %v4261 = vmul.f32 %v4229, %v4229
      %v4262 = vmul.f32 %v4230, %v4230
      %v4263 = vmul.f32 %v4231, %v4231
      %v4264 = vmul.f32 %v4232, %v4232
      %v4265 = vmul.f32 %v4233, %v4233
      %v4266 = vmul.f32 %v4234, %v4234
      %v4267 = vmul.f32 %v4235, %v4235
      %v4268 = vmul.f32 %v4236, %v4236
      %v4269 = vmul.f32 %v4237, %v4237
      %v4270 = vsel %vm3589, %v4238, 0.0
      %v4271 = vsel %vm3589, %v4239, 0.0
      %v4272 = vadd.f32 %v4270, %v4271
      %v4273 = vsel %vm3589, %v4240, 0.0
      %v4274 = vadd.f32 %v4272, %v4273
      %v4275 = vsel %vm3589, %v4241, 0.0
      %v4276 = vadd.f32 %v4274, %v4275
      %v4277 = vsel %vm3589, %v4242, 0.0
      %v4278 = vadd.f32 %v4276, %v4277
      %v4279 = vsel %vm3589, %v4243, 0.0
      %v4280 = vadd.f32 %v4278, %v4279
      %v4281 = vsel %vm3589, %v4244, 0.0
      %v4282 = vadd.f32 %v4280, %v4281
      %v4283 = vsel %vm3589, %v4245, 0.0
      %v4284 = vadd.f32 %v4282, %v4283
      %v4285 = vsel %vm3589, %v4246, 0.0
      %v4286 = vadd.f32 %v4284, %v4285
      %v4287 = vsel %vm3589, %v4247, 0.0
      %v4288 = vadd.f32 %v4286, %v4287
      %v4289 = vsel %vm3589, %v4248, 0.0
      %v4290 = vadd.f32 %v4288, %v4289
      %v4291 = vsel %vm3589, %v4249, 0.0
      %v4292 = vadd.f32 %v4290, %v4291
      %v4293 = vsel %vm3589, %v4250, 0.0
      %v4294 = vadd.f32 %v4292, %v4293
      %v4295 = vsel %vm3589, %v4251, 0.0
      %v4296 = vadd.f32 %v4294, %v4295
      %v4297 = vsel %vm3589, %v4252, 0.0
      %v4298 = vadd.f32 %v4296, %v4297
      %v4299 = vsel %vm3589, %v4253, 0.0
      %v4300 = vadd.f32 %v4298, %v4299
      %v4301 = vsel %vm3589, %v4254, 0.0
      %v4302 = vadd.f32 %v4300, %v4301
      %v4303 = vsel %vm3589, %v4255, 0.0
      %v4304 = vadd.f32 %v4302, %v4303
      %v4305 = vsel %vm3589, %v4256, 0.0
      %v4306 = vadd.f32 %v4304, %v4305
      %v4307 = vsel %vm3589, %v4257, 0.0
      %v4308 = vadd.f32 %v4306, %v4307
      %v4309 = vsel %vm3589, %v4258, 0.0
      %v4310 = vadd.f32 %v4308, %v4309
      %v4311 = vsel %vm3589, %v4259, 0.0
      %v4312 = vadd.f32 %v4310, %v4311
      %v4313 = vsel %vm3589, %v4260, 0.0
      %v4314 = vadd.f32 %v4312, %v4313
      %v4315 = vsel %vm3589, %v4261, 0.0
      %v4316 = vadd.f32 %v4314, %v4315
      %v4317 = vsel %vm3589, %v4262, 0.0
      %v4318 = vadd.f32 %v4316, %v4317
      %v4319 = vsel %vm3589, %v4263, 0.0
      %v4320 = vadd.f32 %v4318, %v4319
      %v4321 = vsel %vm3589, %v4264, 0.0
      %v4322 = vadd.f32 %v4320, %v4321
      %v4323 = vsel %vm3589, %v4265, 0.0
      %v4324 = vadd.f32 %v4322, %v4323
      %v4325 = vsel %vm3589, %v4266, 0.0
      %v4326 = vadd.f32 %v4324, %v4325
      %v4327 = vsel %vm3589, %v4267, 0.0
      %v4328 = vadd.f32 %v4326, %v4327
      %v4329 = vsel %vm3589, %v4268, 0.0
      %v4330 = vadd.f32 %v4328, %v4329
      %v4331 = vsel %vm3589, %v4269, 0.0
      %v4332 = vadd.f32 %v4330, %v4331
      %v4333 = vrot.slane %v4332, 4
      %v4334 = vadd.f32 %v4332, %v4333
      %v4335 = vrot.slane %v4334, 2
      %v4336 = vadd.f32 %v4334, %v4335
      %v4337 = vrot.slane %v4336, 1
      %v4338 = vadd.f32 %v4336, %v4337
      %4339 = vst.msk [vmem:[%s235 + $0x1] sm:$0x1] %vm398, %v4338
      %p4340 = scmp.lt.s32.totalorder %s17, 1
      %s4341 = scalar_select %p4340, %s17, 1
      %s4342 = smul.addr %s4341, 32
      %s4343 = smul.addr %s4342, 8
      %s4344 = scalar_lea.vmem %s4, %s4343
      %p4345 = scmp.lt.s32.totalorder %s17, 1
      %s4346 = scalar_select %p4345, %s17, 1
      %s4347 = smul.addr %s4346, 2
      %s4348 = scalar_lea.vmem %s5, %s4347
      // Predicated region
      $region37: #{basic_block_forward.4} parent=35 // pred_check
        %p4349 = pneg %p124
      $region38: #{basic_block_forward.4} parent=35 // pred_check_branch
        %4351 = sbr.rel (%p4349) target = $region40
      $region39: #{basic_block_forward.4} parent=35 // pred_region
        _
      $region40: #{basic_block_forward.4} parent=35 // pred_fallthru
        _
      // Predicated region
      $region41: #{basic_block_forward.4} parent=35 // pred_check
        %p4352 = pneg %p150
      $region42: #{basic_block_forward.4} parent=35 // pred_check_branch
        %4354 = sbr.rel (%p4352) target = $region44
      $region43: #{basic_block_forward.4} parent=35 // pred_region
        _
      $region44: #{basic_block_forward.4} parent=35 // pred_fallthru
        _
    $region36: #{basic_block_forward.4} parent=5 // pred_fallthru
      _
    %p4355 = scmp.le.s32.totalorder 2, %s12
    // Predicated region
    $region45: #{basic_block_forward.4} parent=5 // pred_check
      %p4356 = pneg %p4355
    $region46: #{basic_block_forward.4} parent=5 // pred_check_branch
      %4358 = sbr.rel (%p4356) target = $region48
    $region47: #{basic_block_forward.4} parent=5 // pred_region
      %s4359 = ssub.s32 %s12, 2
      // Predicated region
      $region49: #{basic_block_forward.4} parent=47 // pred_check
        %p4360 = pneg %p130
      $region50: #{basic_block_forward.4} parent=47 // pred_check_branch
        %4362 = sbr.rel (%p4360) target = $region52
      $region51: #{basic_block_forward.4} parent=47 // pred_region
        %p4363 = scmp.lt.s32.totalorder %s18, 1
        %s4364 = scalar_select %p4363, %s18, 1
        %s4365 = smul.addr %s4364, 32
        %s4366 = smul.addr %s4365, 8
        %s4367 = scalar_lea.vmem %s4, %s4366
      $region52: #{basic_block_forward.4} parent=47 // pred_fallthru
        _
      // Predicated region
      $region53: #{basic_block_forward.4} parent=47 // pred_check
        %p4368 = pneg %p156
      $region54: #{basic_block_forward.4} parent=47 // pred_check_branch
        %4370 = sbr.rel (%p4368) target = $region56
      $region55: #{basic_block_forward.4} parent=47 // pred_region
        %p4371 = scmp.lt.s32.totalorder %s18, 1
        %s4372 = scalar_select %p4371, %s18, 1
        %s4373 = smul.addr %s4372, 2
        %s4374 = scalar_lea.vmem %s5, %s4373
      $region56: #{basic_block_forward.4} parent=47 // pred_fallthru
        _
    $region48: #{basic_block_forward.4} parent=5 // pred_fallthru
      _
  $region6: #{basic_block_forward.4} parent=0 // loop_footer
    %s16 = sadd.s32 1, %s12
  $region7: #{basic_block_forward.4} parent=0 // loop_footer_branch
    %11 = sbr.rel target = $region3
  $region8: #{basic_block_forward.4} parent=0 // loop_exit
    _

</llo_original>
